<compile_context>
chip_gen: v6e
topology: v6e:2x2x1
jax: 0.10.0
libtpu: 0.0.40
codegen_flags: <defaults>
</compile_context>

<pallas_src>
import functools

import jax
import jax.numpy as jnp
from jax.experimental import pallas as pl
from jax.experimental.pallas import tpu as pltpu

EPS = 1e-5
MATMUL_DTYPE = jnp.bfloat16          # MXU-native on v5e / v6e / v7x; f32 accumulation kept

_VMEM = pl.BlockSpec(memory_space=pltpu.MemorySpace.VMEM)


# ----------------------------------------------------------------------------
# Fully fused decoder kernel
# ----------------------------------------------------------------------------
def _make_fused_kernel(num_blocks):
    def kernel(*refs):
        if num_blocks > 1:
            (xc_ref, w1cd0_ref, w20_ref, bn0_ref,
             w1s_ref, w2s_ref, bns_ref,
             fcw_ref, fcb_ref, o_ref, ypad_ref, cols_ref) = refs
        else:
            (xc_ref, w1cd0_ref, w20_ref, bn0_ref,
             fcw_ref, fcb_ref, o_ref, ypad_ref, cols_ref) = refs

        B, Hp1, Wp1, K4 = xc_ref.shape          # phase-packed block-0 input [B, Ho+1, Wo+1, 4*Cin]
        Ho, Wo = Hp1 - 1, Wp1 - 1
        C = ypad_ref.shape[-1]
        M = B * Ho * Wo
        cdt = cols_ref.dtype                    # bf16 MXU feed

        def mm(a, b):
            return jnp.dot(a, b, preferred_element_type=jnp.float32)

        def bn(x, g, b):
            # BatchNorm2d, training-mode batch statistics over the B*H*W rows of x: [M, C].
            mean = jnp.mean(x, axis=0, keepdims=True)
            var = jnp.mean((x - mean) ** 2, axis=0, keepdims=True)
            return (x - mean) * jax.lax.rsqrt(var + EPS) * g + b

        # Padded-activation scratch: zero ONCE.  Only the interior is ever rewritten, so
        # the 1-pixel halo stays zero for every 3x3 conv below.
        ypad_ref[...] = jnp.zeros(ypad_ref.shape, ypad_ref.dtype)

        def conv3x3(src_mc, w):
            # src_mc: [M, C] f32  ->  im2col into cols_ref (bf16)  ->  one K=9*C MXU matmul.
            ypad_ref[:, 1:Ho + 1, 1:Wo + 1, :] = src_mc.reshape(B, Ho, Wo, C)
            for di in range(3):
                for dj in range(3):
                    t = 3 * di + dj
                    tap = ypad_ref[:, di:di + Ho, dj:dj + Wo, :].reshape(M, C)
                    cols_ref[:, t * C:(t + 1) * C] = tap.astype(cdt)
            return mm(cols_ref[:, :9 * C], w)                      # [M, C] f32

        # ---- block 0: 3x3 stride-2 conv1 and 1x1 stride-2 downsample conv fused into ONE
        #      lane-dense [M, 4*K4] x [4*K4, 2C] matmul over the phase-packed, pre-padded,
        #      already-rotated input (conv1 -> cols 0:C, skip -> cols C:2C).
        for oi in range(2):
            for oj in range(2):
                t = 2 * oi + oj
                tap = xc_ref[:, oi:oi + Ho, oj:oj + Wo, :].reshape(M, K4)
                cols_ref[:, t * K4:(t + 1) * K4] = tap.astype(cdt)
        y01 = mm(cols_ref[:, :4 * K4], w1cd0_ref[...])             # [M, 2C] f32
        bn0 = bn0_ref[...]                                         # [5, C]: g1,b1,g2,b2,down_b
        h = jnp.maximum(bn(y01[:, :C], bn0[0:1], bn0[1:2]), 0.0)
        skip = y01[:, C:] + bn0[4:5]                               # downsample conv + bias

        z = conv3x3(h, w20_ref[...])
        x = jnp.maximum(bn(z, bn0[2:3], bn0[3:4]) + skip, 0.0)     # [M, C] f32

        # ---- residual blocks (stride 1, identity skip) ----
        for bi in range(num_blocks - 1):
            bnb = bns_ref[bi]                                      # [4, C]
            h = jnp.maximum(bn(conv3x3(x, w1s_ref[bi]), bnb[0:1], bnb[1:2]), 0.0)
            z = conv3x3(h, w2s_ref[bi])
            x = jnp.maximum(bn(z, bnb[2:3], bnb[3:4]) + x, 0.0)

        # ---- head: global average pool + Linear (output padded to 128 lanes -> lane-dense
        #      store; the num_classes slice happens outside the kernel) ----
        pooled = jnp.mean(x.reshape(B, Ho * Wo, C), axis=1)        # [B, C] f32
        o_ref[...] = mm(pooled.astype(fcw_ref.dtype), fcw_ref[...]) + fcb_ref[...]

    return kernel


def run_decoder_fused(packed, xc):
    B, Hp1, Wp1, K4 = xc.shape
    Ho, Wo = Hp1 - 1, Wp1 - 1
    C = packed["w20"].shape[-1]
    nb = 1 + (packed["w1s"].shape[0] if "w1s" in packed else 0)
    M = B * Ho * Wo
    n_pad = packed["fcw"].shape[1]
    cols_w = max(4 * K4, 9 * C)

    args = [xc, packed["w1cd0"], packed["w20"], packed["bn0"]]
    if nb > 1:
        args += [packed["w1s"], packed["w2s"], packed["bns"]]
    args += [packed["fcw"], packed["fcb"]]

    return pl.pallas_call(
        _make_fused_kernel(nb),
        out_shape=jax.ShapeDtypeStruct((B, n_pad), jnp.float32),
        in_specs=[_VMEM] * len(args),
        out_specs=_VMEM,
        scratch_shapes=[
            pltpu.VMEM((B, Ho + 2, Wo + 2, C), jnp.float32),   # zero-halo padded activations
            pltpu.VMEM((M, cols_w), MATMUL_DTYPE),             # im2col staging (bf16 MXU feed)
        ],
    )(*args)


# ----------------------------------------------------------------------------
# One-time weight repacking (hoisted off the per-forward path)
# ----------------------------------------------------------------------------
def pack_params(params):
    bp0 = params["blocks"][0]
    w1 = bp0["conv1_w"]                                  # [3, 3, Cin, C] (HWIO)
    Cin, C = w1.shape[2], w1.shape[3]

    # conv1 (3x3, stride 2, pad 1) phase-combined weight: K row = ((2*oi+oj)*4 + s)*Cin + c
    w1c = jnp.zeros((2, 2, 4, Cin, C), jnp.float32)
    for di in range(3):
        for dj in range(3):
            s = 2 * (di % 2) + (dj % 2)
            w1c = w1c.at[di // 2, dj // 2, s].set(w1[di, dj])
    w1c = w1c.reshape(16 * Cin, C)
    # 1x1 stride-2 downsample conv rides the same packed-K matmul: grid offset (0,0), phase 3
    wd = jnp.zeros((2, 2, 4, Cin, C), jnp.float32).at[0, 0, 3].set(bp0["down_w"][0, 0])
    wd = wd.reshape(16 * Cin, C)

    packed = {
        "w1cd0": jnp.concatenate([w1c, wd], axis=1).astype(MATMUL_DTYPE),     # [16*Cin, 2C]
        "w20": bp0["conv2_w"].reshape(9 * C, C).astype(MATMUL_DTYPE),         # [9C, C]
        "bn0": jnp.stack([bp0["bn1_g"], bp0["bn1_b"], bp0["bn2_g"], bp0["bn2_b"],
                          bp0["down_b"]]).astype(jnp.float32),                # [5, C]
    }
    rest = params["blocks"][1:]
    if rest:
        packed["w1s"] = jnp.stack(
            [bp["conv1_w"].reshape(9 * C, C) for bp in rest]).astype(MATMUL_DTYPE)
        packed["w2s"] = jnp.stack(
            [bp["conv2_w"].reshape(9 * C, C) for bp in rest]).astype(MATMUL_DTYPE)
        packed["bns"] = jnp.stack(
            [jnp.stack([bp["bn1_g"], bp["bn1_b"], bp["bn2_g"], bp["bn2_b"]]) for bp in rest]
        ).astype(jnp.float32)                                                 # [nb-1, 4, C]

    num_classes = params["fc_w"].shape[1]
    n_pad = max(128, ((num_classes + 127) // 128) * 128)
    packed["fcw"] = (jnp.zeros((C, n_pad), jnp.float32)
                     .at[:, :num_classes].set(params["fc_w"])).astype(MATMUL_DTYPE)
    packed["fcb"] = jnp.zeros((1, n_pad), jnp.float32).at[0, :num_classes].set(params["fc_b"])
    return packed


# ----------------------------------------------------------------------------
# Plain-JAX per-call prep (layout plumbing only; fused by XLA into one tiny prologue)
# ----------------------------------------------------------------------------
def _prep_block0_input(x_real_nchw, x_imag_nchw, thetas):
    """Rotate (real part of x * exp(-i*theta)), NCHW->NHWC, pad 1, and pack the 4 stride-2
    phases of the padded input onto the channel axis: [B, H/2+1, W/2+1, 4*Cin]."""
    B = x_real_nchw.shape[0]
    th = thetas.reshape(B)
    cos = jnp.cos(th)[:, None, None, None]
    sin = jnp.sin(th)[:, None, None, None]
    xr = jnp.transpose(x_real_nchw, (0, 2, 3, 1))
    xi = jnp.transpose(x_imag_nchw, (0, 2, 3, 1))
    x = xr * cos + xi * sin                                   # real(x * exp(-i*theta))
    xpad = jnp.pad(x, ((0, 0), (1, 1), (1, 1), (0, 0)))
    # phase slot s = 2*row_parity + col_parity
    return jnp.concatenate([xpad[:, 0::2, 0::2, :],
                            xpad[:, 0::2, 1::2, :],
                            xpad[:, 1::2, 0::2, :],
                            xpad[:, 1::2, 1::2, :]], axis=-1)


@functools.partial(jax.jit, static_argnames=("num_classes",))
def decoder_forward(packed, x_real, x_imag, thetas, *, num_classes):
    xc = _prep_block0_input(x_real, x_imag, thetas)
    logits_pad = run_decoder_fused(packed, xc)
    return logits_pad[:, :num_classes]


# ----------------------------------------------------------------------------
# Pure-JAX reference (module semantics; full-precision convs for the check)
# ----------------------------------------------------------------------------
def reference_forward(params, x_real_nchw, x_imag_nchw, thetas):
    B = x_real_nchw.shape[0]
    th = thetas.reshape(B)
    x = (x_real_nchw * jnp.cos(th)[:, None, None, None]
         + x_imag_nchw * jnp.sin(th)[:, None, None, None])   # real part, NCHW

    def conv(x, w_hwio, stride, pad, bias=None):
        out = jax.lax.conv_general_dilated(
            x, w_hwio, (stride, stride), [(pad, pad), (pad, pad)],
            dimension_numbers=("NCHW", "HWIO", "NCHW"),
            precision=jax.lax.Precision.HIGHEST)
        if bias is not None:
            out = out + bias[None, :, None, None]
        return out

    def bn(x, g, b):
        mean = jnp.mean(x, axis=(0, 2, 3), keepdims=True)
        var = jnp.mean((x - mean) ** 2, axis=(0, 2, 3), keepdims=True)
        return ((x - mean) * jax.lax.rsqrt(var + EPS)
                * g[None, :, None, None] + b[None, :, None, None])

    for i, bp in enumerate(params["blocks"]):
        stride = 2 if i == 0 else 1
        y = jax.nn.relu(bn(conv(x, bp["conv1_w"], stride, 1), bp["bn1_g"], bp["bn1_b"]))
        z = bn(conv(y, bp["conv2_w"], 1, 1), bp["bn2_g"], bp["bn2_b"])
        skip = conv(x, bp["down_w"], 2, 0, bp["down_b"]) if i == 0 else x
        x = jax.nn.relu(z + skip)

    pooled = jnp.mean(x, axis=(2, 3))
    return (jnp.dot(pooled, params["fc_w"], precision=jax.lax.Precision.HIGHEST)
            + params["fc_b"])


# ----------------------------------------------------------------------------
# Deterministic parameter init (shapes from Resnet_Decoder.__init__)
# ----------------------------------------------------------------------------
def init_params(key, num_blocks, num_classes):
    blocks = []
    for i in range(num_blocks):
        c_in = 32 if i == 0 else 64
        c_out = 64
        key, *ks = jax.random.split(key, 9)
        bp = {
            # weights stored HWIO (== PyTorch [C_out, C_in, kH, kW] transposed)
            "conv1_w": 0.05 * jax.random.normal(ks[0], (3, 3, c_in, c_out), jnp.float32),
            "bn1_g": 1.0 + 0.1 * jax.random.normal(ks[1], (c_out,), jnp.float32),
            "bn1_b": 0.1 * jax.random.normal(ks[2], (c_out,), jnp.float32),
            "conv2_w": 0.05 * jax.random.normal(ks[3], (3, 3, c_out, c_out), jnp.float32),
            "bn2_g": 1.0 + 0.1 * jax.random.normal(ks[4], (c_out,), jnp.float32),
            "bn2_b": 0.1 * jax.random.normal(ks[5], (c_out,), jnp.float32),
        }
        if i == 0:  # downsample 1x1 stride-2 conv (has bias in the PyTorch module)
            bp["down_w"] = 0.1 * jax.random.normal(ks[6], (1, 1, c_in, c_out), jnp.float32)
            bp["down_b"] = 0.1 * jax.random.normal(ks[7], (c_out,), jnp.float32)
        blocks.append(bp)
    key, k1, k2 = jax.random.split(key, 3)
    return {
        "blocks": blocks,
        "fc_w": 0.1 * jax.random.normal(k1, (64, num_classes), jnp.float32),
        "fc_b": 0.1 * jax.random.normal(k2, (num_classes,), jnp.float32),
    }


if __name__ == "__main__":
    num_blocks = 2
    num_classes = 10
    B, C, H, W = 2, 32, 16, 16     # first block requires c_in=32

    key = jax.random.PRNGKey(0)
    key, kp, kr, ki, kt = jax.random.split(key, 5)
    params = init_params(kp, num_blocks, num_classes)
    packed = pack_params(params)   # one-time weight repack (off the per-forward path)

    # encoded_batch is complex in the PyTorch module -> represented as (real, imag)
    x_real = jax.random.normal(kr, (B, C, H, W), jnp.float32)
    x_imag = jax.random.normal(ki, (B, C, H, W), jnp.float32)
    thetas = jax.random.uniform(kt, (B, 1, 1, 1), jnp.float32, 0.0, 2.0 * jnp.pi)

    logits = jax.block_until_ready(
        decoder_forward(packed, x_real, x_imag, thetas, num_classes=num_classes))

    ref = jax.block_until_ready(reference_forward(params, x_real, x_imag, thetas))
    assert logits.shape == (B, num_classes)
    err = float(jnp.max(jnp.abs(logits - ref)))
    assert err < 5e-2, err         # bf16 MXU inputs, f32 accumulation vs. f32 HIGHEST ref

    print("KERNEL_OK")
</pallas_src>

<mosaic_0001>
module attributes {stable_mosaic.version = 11 : i64} {
  func.func @kernel(%arg0: memref<2x9x9x128xf32, #tpu.memory_space<vmem>>, %arg1: memref<512x128xbf16, #tpu.memory_space<vmem>>, %arg2: memref<576x64xbf16, #tpu.memory_space<vmem>>, %arg3: memref<5x64xf32, #tpu.memory_space<vmem>>, %arg4: memref<1x576x64xbf16, #tpu.memory_space<vmem>>, %arg5: memref<1x576x64xbf16, #tpu.memory_space<vmem>>, %arg6: memref<1x4x64xf32, #tpu.memory_space<vmem>>, %arg7: memref<64x128xbf16, #tpu.memory_space<vmem>>, %arg8: memref<1x128xf32, #tpu.memory_space<vmem>>, %arg9: memref<2x128xf32, #tpu.memory_space<vmem>>, %arg10: memref<2x10x10x64xf32, #tpu.memory_space<vmem>>, %arg11: memref<128x576xbf16, #tpu.memory_space<vmem>>) attributes {dimension_semantics = [], scalar_prefetch = 0 : i64, scratch_operands = 2 : i64, tpu.core_type = #tpu.core_type<tc>} {
    %cst = arith.constant 0.000000e+00 : f32
    %0 = vector.broadcast %cst : f32 to vector<2x10x10x64xf32>
    %c0 = arith.constant 0 : index
    %c0_0 = arith.constant 0 : index
    %c0_1 = arith.constant 0 : index
    %c0_2 = arith.constant 0 : index
    %1 = vector.load %arg10[%c0, %c0_0, %c0_1, %c0_2] : memref<2x10x10x64xf32, #tpu.memory_space<vmem>>, vector<2x10x10x64xf32>
    tpu.vector_store %arg10[%c0, %c0_0, %c0_1, %c0_2], %0 {strides = array<i32>} : memref<2x10x10x64xf32, #tpu.memory_space<vmem>>, vector<2x10x10x64xf32>,
    %c0_3 = arith.constant 0 : index
    %c0_4 = arith.constant 0 : index
    %c0_5 = arith.constant 0 : index
    %c0_6 = arith.constant 0 : index
    %2 = vector.load %arg0[%c0_3, %c0_4, %c0_5, %c0_6] : memref<2x9x9x128xf32, #tpu.memory_space<vmem>>, vector<2x8x8x128xf32>
    %3 = vector.shape_cast %2 : vector<2x8x8x128xf32> to vector<128x128xf32>
    %4 = arith.truncf %3 : vector<128x128xf32> to vector<128x128xbf16>
    %c0_7 = arith.constant 0 : index
    %c0_8 = arith.constant 0 : index
    %5 = vector.load %arg11[%c0_7, %c0_8] : memref<128x576xbf16, #tpu.memory_space<vmem>>, vector<128x128xbf16>
    tpu.vector_store %arg11[%c0_7, %c0_8], %4 {strides = array<i32>} : memref<128x576xbf16, #tpu.memory_space<vmem>>, vector<128x128xbf16>,
    %c0_9 = arith.constant 0 : index
    %c0_10 = arith.constant 0 : index
    %c1 = arith.constant 1 : index
    %c0_11 = arith.constant 0 : index
    %6 = vector.load %arg0[%c0_9, %c0_10, %c1, %c0_11] : memref<2x9x9x128xf32, #tpu.memory_space<vmem>>, vector<2x8x8x128xf32>
    %7 = vector.shape_cast %6 : vector<2x8x8x128xf32> to vector<128x128xf32>
    %8 = arith.truncf %7 : vector<128x128xf32> to vector<128x128xbf16>
    %c0_12 = arith.constant 0 : index
    %c128 = arith.constant 128 : index
    %9 = vector.load %arg11[%c0_12, %c128] : memref<128x576xbf16, #tpu.memory_space<vmem>>, vector<128x128xbf16>
    tpu.vector_store %arg11[%c0_12, %c128], %8 {strides = array<i32>} : memref<128x576xbf16, #tpu.memory_space<vmem>>, vector<128x128xbf16>,
    %c0_13 = arith.constant 0 : index
    %c1_14 = arith.constant 1 : index
    %c0_15 = arith.constant 0 : index
    %c0_16 = arith.constant 0 : index
    %10 = vector.load %arg0[%c0_13, %c1_14, %c0_15, %c0_16] : memref<2x9x9x128xf32, #tpu.memory_space<vmem>>, vector<2x8x8x128xf32>
    %11 = vector.shape_cast %10 : vector<2x8x8x128xf32> to vector<128x128xf32>
    %12 = arith.truncf %11 : vector<128x128xf32> to vector<128x128xbf16>
    %c0_17 = arith.constant 0 : index
    %c256 = arith.constant 256 : index
    %13 = vector.load %arg11[%c0_17, %c256] : memref<128x576xbf16, #tpu.memory_space<vmem>>, vector<128x128xbf16>
    tpu.vector_store %arg11[%c0_17, %c256], %12 {strides = array<i32>} : memref<128x576xbf16, #tpu.memory_space<vmem>>, vector<128x128xbf16>,
    %c0_18 = arith.constant 0 : index
    %c1_19 = arith.constant 1 : index
    %c1_20 = arith.constant 1 : index
    %c0_21 = arith.constant 0 : index
    %14 = vector.load %arg0[%c0_18, %c1_19, %c1_20, %c0_21] : memref<2x9x9x128xf32, #tpu.memory_space<vmem>>, vector<2x8x8x128xf32>
    %15 = vector.shape_cast %14 : vector<2x8x8x128xf32> to vector<128x128xf32>
    %16 = arith.truncf %15 : vector<128x128xf32> to vector<128x128xbf16>
    %c0_22 = arith.constant 0 : index
    %c384 = arith.constant 384 : index
    %17 = vector.load %arg11[%c0_22, %c384] : memref<128x576xbf16, #tpu.memory_space<vmem>>, vector<128x128xbf16>
    tpu.vector_store %arg11[%c0_22, %c384], %16 {strides = array<i32>} : memref<128x576xbf16, #tpu.memory_space<vmem>>, vector<128x128xbf16>,
    %c0_23 = arith.constant 0 : index
    %c0_24 = arith.constant 0 : index
    %18 = vector.load %arg11[%c0_23, %c0_24] : memref<128x576xbf16, #tpu.memory_space<vmem>>, vector<128x512xbf16>
    %c0_25 = arith.constant 0 : index
    %c0_26 = arith.constant 0 : index
    %19 = vector.load %arg1[%c0_25, %c0_26] : memref<512x128xbf16, #tpu.memory_space<vmem>>, vector<512x128xbf16>
    %cst_27 = arith.constant dense<0.000000e+00> : vector<128x128xf32>
    %20 = tpu.matmul %18, %19, %cst_27 {dimension_numbers = #tpu.dot_dimension_numbers<[1], [0], [0], [1], [0, 0, 1, 1], [], []>} : vector<128x512xbf16>, vector<512x128xbf16>, vector<128x128xf32> -> vector<128x128xf32>
    %c0_28 = arith.constant 0 : index
    %c0_29 = arith.constant 0 : index
    %21 = vector.load %arg3[%c0_28, %c0_29] : memref<5x64xf32, #tpu.memory_space<vmem>>, vector<5x64xf32>
    %22 = vector.extract_strided_slice %20 {offsets = [0, 0], sizes = [128, 64], strides = [1, 1]} : vector<128x128xf32> to vector<128x64xf32>
    %23 = vector.extract_strided_slice %21 {offsets = [0, 0], sizes = [1, 64], strides = [1, 1]} : vector<5x64xf32> to vector<1x64xf32>
    %24 = vector.extract_strided_slice %21 {offsets = [1, 0], sizes = [1, 64], strides = [1, 1]} : vector<5x64xf32> to vector<1x64xf32>
    %cst_30 = arith.constant dense<0.000000e+00> : vector<64xf32>
    %25 = vector.multi_reduction <add>, %22, %cst_30 [0] : vector<128x64xf32> to vector<64xf32>
    %26 = vector.shape_cast %25 : vector<64xf32> to vector<1x64xf32>
    %cst_31 = arith.constant 1.280000e+02 : f32
    %27 = vector.broadcast %cst_31 : f32 to vector<1x64xf32>
    %28 = arith.divf %26, %27 : vector<1x64xf32>
    %29 = vector.broadcast %28 : vector<1x64xf32> to vector<128x64xf32>
    %30 = arith.subf %22, %29 : vector<128x64xf32>
    %31 = arith.mulf %30, %30 : vector<128x64xf32>
    %cst_32 = arith.constant dense<0.000000e+00> : vector<64xf32>
    %32 = vector.multi_reduction <add>, %31, %cst_32 [0] : vector<128x64xf32> to vector<64xf32>
    %33 = vector.shape_cast %32 : vector<64xf32> to vector<1x64xf32>
    %cst_33 = arith.constant 1.280000e+02 : f32
    %34 = vector.broadcast %cst_33 : f32 to vector<1x64xf32>
    %35 = arith.divf %33, %34 : vector<1x64xf32>
    %36 = vector.broadcast %28 : vector<1x64xf32> to vector<128x64xf32>
    %37 = arith.subf %22, %36 : vector<128x64xf32>
    %cst_34 = arith.constant 9.99999974E-6 : f32
    %38 = vector.broadcast %cst_34 : f32 to vector<1x64xf32>
    %39 = arith.addf %35, %38 : vector<1x64xf32>
    %40 = math.rsqrt %39 : vector<1x64xf32>
    %41 = vector.broadcast %40 : vector<1x64xf32> to vector<128x64xf32>
    %42 = arith.mulf %37, %41 : vector<128x64xf32>
    %43 = vector.broadcast %23 : vector<1x64xf32> to vector<128x64xf32>
    %44 = arith.mulf %42, %43 : vector<128x64xf32>
    %45 = vector.broadcast %24 : vector<1x64xf32> to vector<128x64xf32>
    %46 = arith.addf %44, %45 : vector<128x64xf32>
    %cst_35 = arith.constant 0.000000e+00 : f32
    %47 = vector.broadcast %cst_35 : f32 to vector<128x64xf32>
    %48 = arith.maximumf %46, %47 : vector<128x64xf32>
    %49 = vector.extract_strided_slice %20 {offsets = [0, 64], sizes = [128, 64], strides = [1, 1]} : vector<128x128xf32> to vector<128x64xf32>
    %50 = vector.extract_strided_slice %21 {offsets = [4, 0], sizes = [1, 64], strides = [1, 1]} : vector<5x64xf32> to vector<1x64xf32>
    %51 = vector.broadcast %50 : vector<1x64xf32> to vector<128x64xf32>
    %52 = arith.addf %49, %51 : vector<128x64xf32>
    %c0_36 = arith.constant 0 : index
    %c0_37 = arith.constant 0 : index
    %53 = vector.load %arg2[%c0_36, %c0_37] : memref<576x64xbf16, #tpu.memory_space<vmem>>, vector<576x64xbf16>
    %54 = vector.shape_cast %48 : vector<128x64xf32> to vector<2x8x8x64xf32>
    %c0_38 = arith.constant 0 : index
    %c1_39 = arith.constant 1 : index
    %c1_40 = arith.constant 1 : index
    %c0_41 = arith.constant 0 : index
    %55 = vector.load %arg10[%c0_38, %c1_39, %c1_40, %c0_41] : memref<2x10x10x64xf32, #tpu.memory_space<vmem>>, vector<2x8x8x64xf32>
    tpu.vector_store %arg10[%c0_38, %c1_39, %c1_40, %c0_41], %54 {strides = array<i32>} : memref<2x10x10x64xf32, #tpu.memory_space<vmem>>, vector<2x8x8x64xf32>,
    %c0_42 = arith.constant 0 : index
    %c0_43 = arith.constant 0 : index
    %c0_44 = arith.constant 0 : index
    %c0_45 = arith.constant 0 : index
    %56 = vector.load %arg10[%c0_42, %c0_43, %c0_44, %c0_45] : memref<2x10x10x64xf32, #tpu.memory_space<vmem>>, vector<2x8x8x64xf32>
    %57 = vector.shape_cast %56 : vector<2x8x8x64xf32> to vector<128x64xf32>
    %58 = arith.truncf %57 : vector<128x64xf32> to vector<128x64xbf16>
    %c0_46 = arith.constant 0 : index
    %c0_47 = arith.constant 0 : index
    %59 = vector.load %arg11[%c0_46, %c0_47] : memref<128x576xbf16, #tpu.memory_space<vmem>>, vector<128x64xbf16>
    tpu.vector_store %arg11[%c0_46, %c0_47], %58 {strides = array<i32>} : memref<128x576xbf16, #tpu.memory_space<vmem>>, vector<128x64xbf16>,
    %c0_48 = arith.constant 0 : index
    %c0_49 = arith.constant 0 : index
    %c1_50 = arith.constant 1 : index
    %c0_51 = arith.constant 0 : index
    %60 = vector.load %arg10[%c0_48, %c0_49, %c1_50, %c0_51] : memref<2x10x10x64xf32, #tpu.memory_space<vmem>>, vector<2x8x8x64xf32>
    %61 = vector.shape_cast %60 : vector<2x8x8x64xf32> to vector<128x64xf32>
    %62 = arith.truncf %61 : vector<128x64xf32> to vector<128x64xbf16>
    %c0_52 = arith.constant 0 : index
    %c64 = arith.constant 64 : index
    %63 = vector.load %arg11[%c0_52, %c64] : memref<128x576xbf16, #tpu.memory_space<vmem>>, vector<128x64xbf16>
    tpu.vector_store %arg11[%c0_52, %c64], %62 {strides = array<i32>} : memref<128x576xbf16, #tpu.memory_space<vmem>>, vector<128x64xbf16>,
    %c0_53 = arith.constant 0 : index
    %c0_54 = arith.constant 0 : index
    %c2 = arith.constant 2 : index
    %c0_55 = arith.constant 0 : index
    %64 = vector.load %arg10[%c0_53, %c0_54, %c2, %c0_55] : memref<2x10x10x64xf32, #tpu.memory_space<vmem>>, vector<2x8x8x64xf32>
    %65 = vector.shape_cast %64 : vector<2x8x8x64xf32> to vector<128x64xf32>
    %66 = arith.truncf %65 : vector<128x64xf32> to vector<128x64xbf16>
    %c0_56 = arith.constant 0 : index
    %c128_57 = arith.constant 128 : index
    %67 = vector.load %arg11[%c0_56, %c128_57] : memref<128x576xbf16, #tpu.memory_space<vmem>>, vector<128x64xbf16>
    tpu.vector_store %arg11[%c0_56, %c128_57], %66 {strides = array<i32>} : memref<128x576xbf16, #tpu.memory_space<vmem>>, vector<128x64xbf16>,
    %c0_58 = arith.constant 0 : index
    %c1_59 = arith.constant 1 : index
    %c0_60 = arith.constant 0 : index
    %c0_61 = arith.constant 0 : index
    %68 = vector.load %arg10[%c0_58, %c1_59, %c0_60, %c0_61] : memref<2x10x10x64xf32, #tpu.memory_space<vmem>>, vector<2x8x8x64xf32>
    %69 = vector.shape_cast %68 : vector<2x8x8x64xf32> to vector<128x64xf32>
    %70 = arith.truncf %69 : vector<128x64xf32> to vector<128x64xbf16>
    %c0_62 = arith.constant 0 : index
    %c192 = arith.constant 192 : index
    %71 = vector.load %arg11[%c0_62, %c192] : memref<128x576xbf16, #tpu.memory_space<vmem>>, vector<128x64xbf16>
    tpu.vector_store %arg11[%c0_62, %c192], %70 {strides = array<i32>} : memref<128x576xbf16, #tpu.memory_space<vmem>>, vector<128x64xbf16>,
    %c0_63 = arith.constant 0 : index
    %c1_64 = arith.constant 1 : index
    %c1_65 = arith.constant 1 : index
    %c0_66 = arith.constant 0 : index
    %72 = vector.load %arg10[%c0_63, %c1_64, %c1_65, %c0_66] : memref<2x10x10x64xf32, #tpu.memory_space<vmem>>, vector<2x8x8x64xf32>
    %73 = vector.shape_cast %72 : vector<2x8x8x64xf32> to vector<128x64xf32>
    %74 = arith.truncf %73 : vector<128x64xf32> to vector<128x64xbf16>
    %c0_67 = arith.constant 0 : index
    %c256_68 = arith.constant 256 : index
    %75 = vector.load %arg11[%c0_67, %c256_68] : memref<128x576xbf16, #tpu.memory_space<vmem>>, vector<128x64xbf16>
    tpu.vector_store %arg11[%c0_67, %c256_68], %74 {strides = array<i32>} : memref<128x576xbf16, #tpu.memory_space<vmem>>, vector<128x64xbf16>,
    %c0_69 = arith.constant 0 : index
    %c1_70 = arith.constant 1 : index
    %c2_71 = arith.constant 2 : index
    %c0_72 = arith.constant 0 : index
    %76 = vector.load %arg10[%c0_69, %c1_70, %c2_71, %c0_72] : memref<2x10x10x64xf32, #tpu.memory_space<vmem>>, vector<2x8x8x64xf32>
    %77 = vector.shape_cast %76 : vector<2x8x8x64xf32> to vector<128x64xf32>
    %78 = arith.truncf %77 : vector<128x64xf32> to vector<128x64xbf16>
    %c0_73 = arith.constant 0 : index
    %c320 = arith.constant 320 : index
    %79 = vector.load %arg11[%c0_73, %c320] : memref<128x576xbf16, #tpu.memory_space<vmem>>, vector<128x64xbf16>
    tpu.vector_store %arg11[%c0_73, %c320], %78 {strides = array<i32>} : memref<128x576xbf16, #tpu.memory_space<vmem>>, vector<128x64xbf16>,
    %c0_74 = arith.constant 0 : index
    %c2_75 = arith.constant 2 : index
    %c0_76 = arith.constant 0 : index
    %c0_77 = arith.constant 0 : index
    %80 = vector.load %arg10[%c0_74, %c2_75, %c0_76, %c0_77] : memref<2x10x10x64xf32, #tpu.memory_space<vmem>>, vector<2x8x8x64xf32>
    %81 = vector.shape_cast %80 : vector<2x8x8x64xf32> to vector<128x64xf32>
    %82 = arith.truncf %81 : vector<128x64xf32> to vector<128x64xbf16>
    %c0_78 = arith.constant 0 : index
    %c384_79 = arith.constant 384 : index
    %83 = vector.load %arg11[%c0_78, %c384_79] : memref<128x576xbf16, #tpu.memory_space<vmem>>, vector<128x64xbf16>
    tpu.vector_store %arg11[%c0_78, %c384_79], %82 {strides = array<i32>} : memref<128x576xbf16, #tpu.memory_space<vmem>>, vector<128x64xbf16>,
    %c0_80 = arith.constant 0 : index
    %c2_81 = arith.constant 2 : index
    %c1_82 = arith.constant 1 : index
    %c0_83 = arith.constant 0 : index
    %84 = vector.load %arg10[%c0_80, %c2_81, %c1_82, %c0_83] : memref<2x10x10x64xf32, #tpu.memory_space<vmem>>, vector<2x8x8x64xf32>
    %85 = vector.shape_cast %84 : vector<2x8x8x64xf32> to vector<128x64xf32>
    %86 = arith.truncf %85 : vector<128x64xf32> to vector<128x64xbf16>
    %c0_84 = arith.constant 0 : index
    %c448 = arith.constant 448 : index
    %87 = vector.load %arg11[%c0_84, %c448] : memref<128x576xbf16, #tpu.memory_space<vmem>>, vector<128x64xbf16>
    tpu.vector_store %arg11[%c0_84, %c448], %86 {strides = array<i32>} : memref<128x576xbf16, #tpu.memory_space<vmem>>, vector<128x64xbf16>,
    %c0_85 = arith.constant 0 : index
    %c2_86 = arith.constant 2 : index
    %c2_87 = arith.constant 2 : index
    %c0_88 = arith.constant 0 : index
    %88 = vector.load %arg10[%c0_85, %c2_86, %c2_87, %c0_88] : memref<2x10x10x64xf32, #tpu.memory_space<vmem>>, vector<2x8x8x64xf32>
    %89 = vector.shape_cast %88 : vector<2x8x8x64xf32> to vector<128x64xf32>
    %90 = arith.truncf %89 : vector<128x64xf32> to vector<128x64xbf16>
    %c0_89 = arith.constant 0 : index
    %c512 = arith.constant 512 : index
    %91 = vector.load %arg11[%c0_89, %c512] : memref<128x576xbf16, #tpu.memory_space<vmem>>, vector<128x64xbf16>
    tpu.vector_store %arg11[%c0_89, %c512], %90 {strides = array<i32>} : memref<128x576xbf16, #tpu.memory_space<vmem>>, vector<128x64xbf16>,
    %c0_90 = arith.constant 0 : index
    %c0_91 = arith.constant 0 : index
    %92 = vector.load %arg11[%c0_90, %c0_91] : memref<128x576xbf16, #tpu.memory_space<vmem>>, vector<128x576xbf16>
    %cst_92 = arith.constant dense<0.000000e+00> : vector<128x64xf32>
    %93 = tpu.matmul %92, %53, %cst_92 {dimension_numbers = #tpu.dot_dimension_numbers<[1], [0], [0], [1], [0, 0, 1, 1], [], []>} : vector<128x576xbf16>, vector<576x64xbf16>, vector<128x64xf32> -> vector<128x64xf32>
    %94 = vector.extract_strided_slice %21 {offsets = [2, 0], sizes = [1, 64], strides = [1, 1]} : vector<5x64xf32> to vector<1x64xf32>
    %95 = vector.extract_strided_slice %21 {offsets = [3, 0], sizes = [1, 64], strides = [1, 1]} : vector<5x64xf32> to vector<1x64xf32>
    %cst_93 = arith.constant dense<0.000000e+00> : vector<64xf32>
    %96 = vector.multi_reduction <add>, %93, %cst_93 [0] : vector<128x64xf32> to vector<64xf32>
    %97 = vector.shape_cast %96 : vector<64xf32> to vector<1x64xf32>
    %cst_94 = arith.constant 1.280000e+02 : f32
    %98 = vector.broadcast %cst_94 : f32 to vector<1x64xf32>
    %99 = arith.divf %97, %98 : vector<1x64xf32>
    %100 = vector.broadcast %99 : vector<1x64xf32> to vector<128x64xf32>
    %101 = arith.subf %93, %100 : vector<128x64xf32>
    %102 = arith.mulf %101, %101 : vector<128x64xf32>
    %cst_95 = arith.constant dense<0.000000e+00> : vector<64xf32>
    %103 = vector.multi_reduction <add>, %102, %cst_95 [0] : vector<128x64xf32> to vector<64xf32>
    %104 = vector.shape_cast %103 : vector<64xf32> to vector<1x64xf32>
    %cst_96 = arith.constant 1.280000e+02 : f32
    %105 = vector.broadcast %cst_96 : f32 to vector<1x64xf32>
    %106 = arith.divf %104, %105 : vector<1x64xf32>
    %107 = vector.broadcast %99 : vector<1x64xf32> to vector<128x64xf32>
    %108 = arith.subf %93, %107 : vector<128x64xf32>
    %cst_97 = arith.constant 9.99999974E-6 : f32
    %109 = vector.broadcast %cst_97 : f32 to vector<1x64xf32>
    %110 = arith.addf %106, %109 : vector<1x64xf32>
    %111 = math.rsqrt %110 : vector<1x64xf32>
    %112 = vector.broadcast %111 : vector<1x64xf32> to vector<128x64xf32>
    %113 = arith.mulf %108, %112 : vector<128x64xf32>
    %114 = vector.broadcast %94 : vector<1x64xf32> to vector<128x64xf32>
    %115 = arith.mulf %113, %114 : vector<128x64xf32>
    %116 = vector.broadcast %95 : vector<1x64xf32> to vector<128x64xf32>
    %117 = arith.addf %115, %116 : vector<128x64xf32>
    %118 = arith.addf %117, %52 : vector<128x64xf32>
    %cst_98 = arith.constant 0.000000e+00 : f32
    %119 = vector.broadcast %cst_98 : f32 to vector<128x64xf32>
    %120 = arith.maximumf %118, %119 : vector<128x64xf32>
    %c0_99 = arith.constant 0 : index
    %c0_100 = arith.constant 0 : index
    %c0_101 = arith.constant 0 : index
    %121 = vector.load %arg6[%c0_99, %c0_100, %c0_101] : memref<1x4x64xf32, #tpu.memory_space<vmem>>, vector<1x4x64xf32>
    %122 = vector.shape_cast %121 : vector<1x4x64xf32> to vector<4x64xf32>
    %c0_102 = arith.constant 0 : index
    %c0_103 = arith.constant 0 : index
    %c0_104 = arith.constant 0 : index
    %123 = vector.load %arg4[%c0_102, %c0_103, %c0_104] : memref<1x576x64xbf16, #tpu.memory_space<vmem>>, vector<1x576x64xbf16>
    %124 = vector.shape_cast %123 : vector<1x576x64xbf16> to vector<576x64xbf16>
    %125 = vector.shape_cast %120 : vector<128x64xf32> to vector<2x8x8x64xf32>
    %c0_105 = arith.constant 0 : index
    %c1_106 = arith.constant 1 : index
    %c1_107 = arith.constant 1 : index
    %c0_108 = arith.constant 0 : index
    %126 = vector.load %arg10[%c0_105, %c1_106, %c1_107, %c0_108] : memref<2x10x10x64xf32, #tpu.memory_space<vmem>>, vector<2x8x8x64xf32>
    tpu.vector_store %arg10[%c0_105, %c1_106, %c1_107, %c0_108], %125 {strides = array<i32>} : memref<2x10x10x64xf32, #tpu.memory_space<vmem>>, vector<2x8x8x64xf32>,
    %c0_109 = arith.constant 0 : index
    %c0_110 = arith.constant 0 : index
    %c0_111 = arith.constant 0 : index
    %c0_112 = arith.constant 0 : index
    %127 = vector.load %arg10[%c0_109, %c0_110, %c0_111, %c0_112] : memref<2x10x10x64xf32, #tpu.memory_space<vmem>>, vector<2x8x8x64xf32>
    %128 = vector.shape_cast %127 : vector<2x8x8x64xf32> to vector<128x64xf32>
    %129 = arith.truncf %128 : vector<128x64xf32> to vector<128x64xbf16>
    %c0_113 = arith.constant 0 : index
    %c0_114 = arith.constant 0 : index
    %130 = vector.load %arg11[%c0_113, %c0_114] : memref<128x576xbf16, #tpu.memory_space<vmem>>, vector<128x64xbf16>
    tpu.vector_store %arg11[%c0_113, %c0_114], %129 {strides = array<i32>} : memref<128x576xbf16, #tpu.memory_space<vmem>>, vector<128x64xbf16>,
    %c0_115 = arith.constant 0 : index
    %c0_116 = arith.constant 0 : index
    %c1_117 = arith.constant 1 : index
    %c0_118 = arith.constant 0 : index
    %131 = vector.load %arg10[%c0_115, %c0_116, %c1_117, %c0_118] : memref<2x10x10x64xf32, #tpu.memory_space<vmem>>, vector<2x8x8x64xf32>
    %132 = vector.shape_cast %131 : vector<2x8x8x64xf32> to vector<128x64xf32>
    %133 = arith.truncf %132 : vector<128x64xf32> to vector<128x64xbf16>
    %c0_119 = arith.constant 0 : index
    %c64_120 = arith.constant 64 : index
    %134 = vector.load %arg11[%c0_119, %c64_120] : memref<128x576xbf16, #tpu.memory_space<vmem>>, vector<128x64xbf16>
    tpu.vector_store %arg11[%c0_119, %c64_120], %133 {strides = array<i32>} : memref<128x576xbf16, #tpu.memory_space<vmem>>, vector<128x64xbf16>,
    %c0_121 = arith.constant 0 : index
    %c0_122 = arith.constant 0 : index
    %c2_123 = arith.constant 2 : index
    %c0_124 = arith.constant 0 : index
    %135 = vector.load %arg10[%c0_121, %c0_122, %c2_123, %c0_124] : memref<2x10x10x64xf32, #tpu.memory_space<vmem>>, vector<2x8x8x64xf32>
    %136 = vector.shape_cast %135 : vector<2x8x8x64xf32> to vector<128x64xf32>
    %137 = arith.truncf %136 : vector<128x64xf32> to vector<128x64xbf16>
    %c0_125 = arith.constant 0 : index
    %c128_126 = arith.constant 128 : index
    %138 = vector.load %arg11[%c0_125, %c128_126] : memref<128x576xbf16, #tpu.memory_space<vmem>>, vector<128x64xbf16>
    tpu.vector_store %arg11[%c0_125, %c128_126], %137 {strides = array<i32>} : memref<128x576xbf16, #tpu.memory_space<vmem>>, vector<128x64xbf16>,
    %c0_127 = arith.constant 0 : index
    %c1_128 = arith.constant 1 : index
    %c0_129 = arith.constant 0 : index
    %c0_130 = arith.constant 0 : index
    %139 = vector.load %arg10[%c0_127, %c1_128, %c0_129, %c0_130] : memref<2x10x10x64xf32, #tpu.memory_space<vmem>>, vector<2x8x8x64xf32>
    %140 = vector.shape_cast %139 : vector<2x8x8x64xf32> to vector<128x64xf32>
    %141 = arith.truncf %140 : vector<128x64xf32> to vector<128x64xbf16>
    %c0_131 = arith.constant 0 : index
    %c192_132 = arith.constant 192 : index
    %142 = vector.load %arg11[%c0_131, %c192_132] : memref<128x576xbf16, #tpu.memory_space<vmem>>, vector<128x64xbf16>
    tpu.vector_store %arg11[%c0_131, %c192_132], %141 {strides = array<i32>} : memref<128x576xbf16, #tpu.memory_space<vmem>>, vector<128x64xbf16>,
    %c0_133 = arith.constant 0 : index
    %c1_134 = arith.constant 1 : index
    %c1_135 = arith.constant 1 : index
    %c0_136 = arith.constant 0 : index
    %143 = vector.load %arg10[%c0_133, %c1_134, %c1_135, %c0_136] : memref<2x10x10x64xf32, #tpu.memory_space<vmem>>, vector<2x8x8x64xf32>
    %144 = vector.shape_cast %143 : vector<2x8x8x64xf32> to vector<128x64xf32>
    %145 = arith.truncf %144 : vector<128x64xf32> to vector<128x64xbf16>
    %c0_137 = arith.constant 0 : index
    %c256_138 = arith.constant 256 : index
    %146 = vector.load %arg11[%c0_137, %c256_138] : memref<128x576xbf16, #tpu.memory_space<vmem>>, vector<128x64xbf16>
    tpu.vector_store %arg11[%c0_137, %c256_138], %145 {strides = array<i32>} : memref<128x576xbf16, #tpu.memory_space<vmem>>, vector<128x64xbf16>,
    %c0_139 = arith.constant 0 : index
    %c1_140 = arith.constant 1 : index
    %c2_141 = arith.constant 2 : index
    %c0_142 = arith.constant 0 : index
    %147 = vector.load %arg10[%c0_139, %c1_140, %c2_141, %c0_142] : memref<2x10x10x64xf32, #tpu.memory_space<vmem>>, vector<2x8x8x64xf32>
    %148 = vector.shape_cast %147 : vector<2x8x8x64xf32> to vector<128x64xf32>
    %149 = arith.truncf %148 : vector<128x64xf32> to vector<128x64xbf16>
    %c0_143 = arith.constant 0 : index
    %c320_144 = arith.constant 320 : index
    %150 = vector.load %arg11[%c0_143, %c320_144] : memref<128x576xbf16, #tpu.memory_space<vmem>>, vector<128x64xbf16>
    tpu.vector_store %arg11[%c0_143, %c320_144], %149 {strides = array<i32>} : memref<128x576xbf16, #tpu.memory_space<vmem>>, vector<128x64xbf16>,
    %c0_145 = arith.constant 0 : index
    %c2_146 = arith.constant 2 : index
    %c0_147 = arith.constant 0 : index
    %c0_148 = arith.constant 0 : index
    %151 = vector.load %arg10[%c0_145, %c2_146, %c0_147, %c0_148] : memref<2x10x10x64xf32, #tpu.memory_space<vmem>>, vector<2x8x8x64xf32>
    %152 = vector.shape_cast %151 : vector<2x8x8x64xf32> to vector<128x64xf32>
    %153 = arith.truncf %152 : vector<128x64xf32> to vector<128x64xbf16>
    %c0_149 = arith.constant 0 : index
    %c384_150 = arith.constant 384 : index
    %154 = vector.load %arg11[%c0_149, %c384_150] : memref<128x576xbf16, #tpu.memory_space<vmem>>, vector<128x64xbf16>
    tpu.vector_store %arg11[%c0_149, %c384_150], %153 {strides = array<i32>} : memref<128x576xbf16, #tpu.memory_space<vmem>>, vector<128x64xbf16>,
    %c0_151 = arith.constant 0 : index
    %c2_152 = arith.constant 2 : index
    %c1_153 = arith.constant 1 : index
    %c0_154 = arith.constant 0 : index
    %155 = vector.load %arg10[%c0_151, %c2_152, %c1_153, %c0_154] : memref<2x10x10x64xf32, #tpu.memory_space<vmem>>, vector<2x8x8x64xf32>
    %156 = vector.shape_cast %155 : vector<2x8x8x64xf32> to vector<128x64xf32>
    %157 = arith.truncf %156 : vector<128x64xf32> to vector<128x64xbf16>
    %c0_155 = arith.constant 0 : index
    %c448_156 = arith.constant 448 : index
    %158 = vector.load %arg11[%c0_155, %c448_156] : memref<128x576xbf16, #tpu.memory_space<vmem>>, vector<128x64xbf16>
    tpu.vector_store %arg11[%c0_155, %c448_156], %157 {strides = array<i32>} : memref<128x576xbf16, #tpu.memory_space<vmem>>, vector<128x64xbf16>,
    %c0_157 = arith.constant 0 : index
    %c2_158 = arith.constant 2 : index
    %c2_159 = arith.constant 2 : index
    %c0_160 = arith.constant 0 : index
    %159 = vector.load %arg10[%c0_157, %c2_158, %c2_159, %c0_160] : memref<2x10x10x64xf32, #tpu.memory_space<vmem>>, vector<2x8x8x64xf32>
    %160 = vector.shape_cast %159 : vector<2x8x8x64xf32> to vector<128x64xf32>
    %161 = arith.truncf %160 : vector<128x64xf32> to vector<128x64xbf16>
    %c0_161 = arith.constant 0 : index
    %c512_162 = arith.constant 512 : index
    %162 = vector.load %arg11[%c0_161, %c512_162] : memref<128x576xbf16, #tpu.memory_space<vmem>>, vector<128x64xbf16>
    tpu.vector_store %arg11[%c0_161, %c512_162], %161 {strides = array<i32>} : memref<128x576xbf16, #tpu.memory_space<vmem>>, vector<128x64xbf16>,
    %c0_163 = arith.constant 0 : index
    %c0_164 = arith.constant 0 : index
    %163 = vector.load %arg11[%c0_163, %c0_164] : memref<128x576xbf16, #tpu.memory_space<vmem>>, vector<128x576xbf16>
    %cst_165 = arith.constant dense<0.000000e+00> : vector<128x64xf32>
    %164 = tpu.matmul %163, %124, %cst_165 {dimension_numbers = #tpu.dot_dimension_numbers<[1], [0], [0], [1], [0, 0, 1, 1], [], []>} : vector<128x576xbf16>, vector<576x64xbf16>, vector<128x64xf32> -> vector<128x64xf32>
    %165 = vector.extract_strided_slice %122 {offsets = [0, 0], sizes = [1, 64], strides = [1, 1]} : vector<4x64xf32> to vector<1x64xf32>
    %166 = vector.extract_strided_slice %122 {offsets = [1, 0], sizes = [1, 64], strides = [1, 1]} : vector<4x64xf32> to vector<1x64xf32>
    %cst_166 = arith.constant dense<0.000000e+00> : vector<64xf32>
    %167 = vector.multi_reduction <add>, %164, %cst_166 [0] : vector<128x64xf32> to vector<64xf32>
    %168 = vector.shape_cast %167 : vector<64xf32> to vector<1x64xf32>
    %cst_167 = arith.constant 1.280000e+02 : f32
    %169 = vector.broadcast %cst_167 : f32 to vector<1x64xf32>
    %170 = arith.divf %168, %169 : vector<1x64xf32>
    %171 = vector.broadcast %170 : vector<1x64xf32> to vector<128x64xf32>
    %172 = arith.subf %164, %171 : vector<128x64xf32>
    %173 = arith.mulf %172, %172 : vector<128x64xf32>
    %cst_168 = arith.constant dense<0.000000e+00> : vector<64xf32>
    %174 = vector.multi_reduction <add>, %173, %cst_168 [0] : vector<128x64xf32> to vector<64xf32>
    %175 = vector.shape_cast %174 : vector<64xf32> to vector<1x64xf32>
    %cst_169 = arith.constant 1.280000e+02 : f32
    %176 = vector.broadcast %cst_169 : f32 to vector<1x64xf32>
    %177 = arith.divf %175, %176 : vector<1x64xf32>
    %178 = vector.broadcast %170 : vector<1x64xf32> to vector<128x64xf32>
    %179 = arith.subf %164, %178 : vector<128x64xf32>
    %cst_170 = arith.constant 9.99999974E-6 : f32
    %180 = vector.broadcast %cst_170 : f32 to vector<1x64xf32>
    %181 = arith.addf %177, %180 : vector<1x64xf32>
    %182 = math.rsqrt %181 : vector<1x64xf32>
    %183 = vector.broadcast %182 : vector<1x64xf32> to vector<128x64xf32>
    %184 = arith.mulf %179, %183 : vector<128x64xf32>
    %185 = vector.broadcast %165 : vector<1x64xf32> to vector<128x64xf32>
    %186 = arith.mulf %184, %185 : vector<128x64xf32>
    %187 = vector.broadcast %166 : vector<1x64xf32> to vector<128x64xf32>
    %188 = arith.addf %186, %187 : vector<128x64xf32>
    %cst_171 = arith.constant 0.000000e+00 : f32
    %189 = vector.broadcast %cst_171 : f32 to vector<128x64xf32>
    %190 = arith.maximumf %188, %189 : vector<128x64xf32>
    %c0_172 = arith.constant 0 : index
    %c0_173 = arith.constant 0 : index
    %c0_174 = arith.constant 0 : index
    %191 = vector.load %arg5[%c0_172, %c0_173, %c0_174] : memref<1x576x64xbf16, #tpu.memory_space<vmem>>, vector<1x576x64xbf16>
    %192 = vector.shape_cast %191 : vector<1x576x64xbf16> to vector<576x64xbf16>
    %193 = vector.shape_cast %190 : vector<128x64xf32> to vector<2x8x8x64xf32>
    %c0_175 = arith.constant 0 : index
    %c1_176 = arith.constant 1 : index
    %c1_177 = arith.constant 1 : index
    %c0_178 = arith.constant 0 : index
    %194 = vector.load %arg10[%c0_175, %c1_176, %c1_177, %c0_178] : memref<2x10x10x64xf32, #tpu.memory_space<vmem>>, vector<2x8x8x64xf32>
    tpu.vector_store %arg10[%c0_175, %c1_176, %c1_177, %c0_178], %193 {strides = array<i32>} : memref<2x10x10x64xf32, #tpu.memory_space<vmem>>, vector<2x8x8x64xf32>,
    %c0_179 = arith.constant 0 : index
    %c0_180 = arith.constant 0 : index
    %c0_181 = arith.constant 0 : index
    %c0_182 = arith.constant 0 : index
    %195 = vector.load %arg10[%c0_179, %c0_180, %c0_181, %c0_182] : memref<2x10x10x64xf32, #tpu.memory_space<vmem>>, vector<2x8x8x64xf32>
    %196 = vector.shape_cast %195 : vector<2x8x8x64xf32> to vector<128x64xf32>
    %197 = arith.truncf %196 : vector<128x64xf32> to vector<128x64xbf16>
    %c0_183 = arith.constant 0 : index
    %c0_184 = arith.constant 0 : index
    %198 = vector.load %arg11[%c0_183, %c0_184] : memref<128x576xbf16, #tpu.memory_space<vmem>>, vector<128x64xbf16>
    tpu.vector_store %arg11[%c0_183, %c0_184], %197 {strides = array<i32>} : memref<128x576xbf16, #tpu.memory_space<vmem>>, vector<128x64xbf16>,
    %c0_185 = arith.constant 0 : index
    %c0_186 = arith.constant 0 : index
    %c1_187 = arith.constant 1 : index
    %c0_188 = arith.constant 0 : index
    %199 = vector.load %arg10[%c0_185, %c0_186, %c1_187, %c0_188] : memref<2x10x10x64xf32, #tpu.memory_space<vmem>>, vector<2x8x8x64xf32>
    %200 = vector.shape_cast %199 : vector<2x8x8x64xf32> to vector<128x64xf32>
    %201 = arith.truncf %200 : vector<128x64xf32> to vector<128x64xbf16>
    %c0_189 = arith.constant 0 : index
    %c64_190 = arith.constant 64 : index
    %202 = vector.load %arg11[%c0_189, %c64_190] : memref<128x576xbf16, #tpu.memory_space<vmem>>, vector<128x64xbf16>
    tpu.vector_store %arg11[%c0_189, %c64_190], %201 {strides = array<i32>} : memref<128x576xbf16, #tpu.memory_space<vmem>>, vector<128x64xbf16>,
    %c0_191 = arith.constant 0 : index
    %c0_192 = arith.constant 0 : index
    %c2_193 = arith.constant 2 : index
    %c0_194 = arith.constant 0 : index
    %203 = vector.load %arg10[%c0_191, %c0_192, %c2_193, %c0_194] : memref<2x10x10x64xf32, #tpu.memory_space<vmem>>, vector<2x8x8x64xf32>
    %204 = vector.shape_cast %203 : vector<2x8x8x64xf32> to vector<128x64xf32>
    %205 = arith.truncf %204 : vector<128x64xf32> to vector<128x64xbf16>
    %c0_195 = arith.constant 0 : index
    %c128_196 = arith.constant 128 : index
    %206 = vector.load %arg11[%c0_195, %c128_196] : memref<128x576xbf16, #tpu.memory_space<vmem>>, vector<128x64xbf16>
    tpu.vector_store %arg11[%c0_195, %c128_196], %205 {strides = array<i32>} : memref<128x576xbf16, #tpu.memory_space<vmem>>, vector<128x64xbf16>,
    %c0_197 = arith.constant 0 : index
    %c1_198 = arith.constant 1 : index
    %c0_199 = arith.constant 0 : index
    %c0_200 = arith.constant 0 : index
    %207 = vector.load %arg10[%c0_197, %c1_198, %c0_199, %c0_200] : memref<2x10x10x64xf32, #tpu.memory_space<vmem>>, vector<2x8x8x64xf32>
    %208 = vector.shape_cast %207 : vector<2x8x8x64xf32> to vector<128x64xf32>
    %209 = arith.truncf %208 : vector<128x64xf32> to vector<128x64xbf16>
    %c0_201 = arith.constant 0 : index
    %c192_202 = arith.constant 192 : index
    %210 = vector.load %arg11[%c0_201, %c192_202] : memref<128x576xbf16, #tpu.memory_space<vmem>>, vector<128x64xbf16>
    tpu.vector_store %arg11[%c0_201, %c192_202], %209 {strides = array<i32>} : memref<128x576xbf16, #tpu.memory_space<vmem>>, vector<128x64xbf16>,
    %c0_203 = arith.constant 0 : index
    %c1_204 = arith.constant 1 : index
    %c1_205 = arith.constant 1 : index
    %c0_206 = arith.constant 0 : index
    %211 = vector.load %arg10[%c0_203, %c1_204, %c1_205, %c0_206] : memref<2x10x10x64xf32, #tpu.memory_space<vmem>>, vector<2x8x8x64xf32>
    %212 = vector.shape_cast %211 : vector<2x8x8x64xf32> to vector<128x64xf32>
    %213 = arith.truncf %212 : vector<128x64xf32> to vector<128x64xbf16>
    %c0_207 = arith.constant 0 : index
    %c256_208 = arith.constant 256 : index
    %214 = vector.load %arg11[%c0_207, %c256_208] : memref<128x576xbf16, #tpu.memory_space<vmem>>, vector<128x64xbf16>
    tpu.vector_store %arg11[%c0_207, %c256_208], %213 {strides = array<i32>} : memref<128x576xbf16, #tpu.memory_space<vmem>>, vector<128x64xbf16>,
    %c0_209 = arith.constant 0 : index
    %c1_210 = arith.constant 1 : index
    %c2_211 = arith.constant 2 : index
    %c0_212 = arith.constant 0 : index
    %215 = vector.load %arg10[%c0_209, %c1_210, %c2_211, %c0_212] : memref<2x10x10x64xf32, #tpu.memory_space<vmem>>, vector<2x8x8x64xf32>
    %216 = vector.shape_cast %215 : vector<2x8x8x64xf32> to vector<128x64xf32>
    %217 = arith.truncf %216 : vector<128x64xf32> to vector<128x64xbf16>
    %c0_213 = arith.constant 0 : index
    %c320_214 = arith.constant 320 : index
    %218 = vector.load %arg11[%c0_213, %c320_214] : memref<128x576xbf16, #tpu.memory_space<vmem>>, vector<128x64xbf16>
    tpu.vector_store %arg11[%c0_213, %c320_214], %217 {strides = array<i32>} : memref<128x576xbf16, #tpu.memory_space<vmem>>, vector<128x64xbf16>,
    %c0_215 = arith.constant 0 : index
    %c2_216 = arith.constant 2 : index
    %c0_217 = arith.constant 0 : index
    %c0_218 = arith.constant 0 : index
    %219 = vector.load %arg10[%c0_215, %c2_216, %c0_217, %c0_218] : memref<2x10x10x64xf32, #tpu.memory_space<vmem>>, vector<2x8x8x64xf32>
    %220 = vector.shape_cast %219 : vector<2x8x8x64xf32> to vector<128x64xf32>
    %221 = arith.truncf %220 : vector<128x64xf32> to vector<128x64xbf16>
    %c0_219 = arith.constant 0 : index
    %c384_220 = arith.constant 384 : index
    %222 = vector.load %arg11[%c0_219, %c384_220] : memref<128x576xbf16, #tpu.memory_space<vmem>>, vector<128x64xbf16>
    tpu.vector_store %arg11[%c0_219, %c384_220], %221 {strides = array<i32>} : memref<128x576xbf16, #tpu.memory_space<vmem>>, vector<128x64xbf16>,
    %c0_221 = arith.constant 0 : index
    %c2_222 = arith.constant 2 : index
    %c1_223 = arith.constant 1 : index
    %c0_224 = arith.constant 0 : index
    %223 = vector.load %arg10[%c0_221, %c2_222, %c1_223, %c0_224] : memref<2x10x10x64xf32, #tpu.memory_space<vmem>>, vector<2x8x8x64xf32>
    %224 = vector.shape_cast %223 : vector<2x8x8x64xf32> to vector<128x64xf32>
    %225 = arith.truncf %224 : vector<128x64xf32> to vector<128x64xbf16>
    %c0_225 = arith.constant 0 : index
    %c448_226 = arith.constant 448 : index
    %226 = vector.load %arg11[%c0_225, %c448_226] : memref<128x576xbf16, #tpu.memory_space<vmem>>, vector<128x64xbf16>
    tpu.vector_store %arg11[%c0_225, %c448_226], %225 {strides = array<i32>} : memref<128x576xbf16, #tpu.memory_space<vmem>>, vector<128x64xbf16>,
    %c0_227 = arith.constant 0 : index
    %c2_228 = arith.constant 2 : index
    %c2_229 = arith.constant 2 : index
    %c0_230 = arith.constant 0 : index
    %227 = vector.load %arg10[%c0_227, %c2_228, %c2_229, %c0_230] : memref<2x10x10x64xf32, #tpu.memory_space<vmem>>, vector<2x8x8x64xf32>
    %228 = vector.shape_cast %227 : vector<2x8x8x64xf32> to vector<128x64xf32>
    %229 = arith.truncf %228 : vector<128x64xf32> to vector<128x64xbf16>
    %c0_231 = arith.constant 0 : index
    %c512_232 = arith.constant 512 : index
    %230 = vector.load %arg11[%c0_231, %c512_232] : memref<128x576xbf16, #tpu.memory_space<vmem>>, vector<128x64xbf16>
    tpu.vector_store %arg11[%c0_231, %c512_232], %229 {strides = array<i32>} : memref<128x576xbf16, #tpu.memory_space<vmem>>, vector<128x64xbf16>,
    %c0_233 = arith.constant 0 : index
    %c0_234 = arith.constant 0 : index
    %231 = vector.load %arg11[%c0_233, %c0_234] : memref<128x576xbf16, #tpu.memory_space<vmem>>, vector<128x576xbf16>
    %cst_235 = arith.constant dense<0.000000e+00> : vector<128x64xf32>
    %232 = tpu.matmul %231, %192, %cst_235 {dimension_numbers = #tpu.dot_dimension_numbers<[1], [0], [0], [1], [0, 0, 1, 1], [], []>} : vector<128x576xbf16>, vector<576x64xbf16>, vector<128x64xf32> -> vector<128x64xf32>
    %233 = vector.extract_strided_slice %122 {offsets = [2, 0], sizes = [1, 64], strides = [1, 1]} : vector<4x64xf32> to vector<1x64xf32>
    %234 = vector.extract_strided_slice %122 {offsets = [3, 0], sizes = [1, 64], strides = [1, 1]} : vector<4x64xf32> to vector<1x64xf32>
    %cst_236 = arith.constant dense<0.000000e+00> : vector<64xf32>
    %235 = vector.multi_reduction <add>, %232, %cst_236 [0] : vector<128x64xf32> to vector<64xf32>
    %236 = vector.shape_cast %235 : vector<64xf32> to vector<1x64xf32>
    %cst_237 = arith.constant 1.280000e+02 : f32
    %237 = vector.broadcast %cst_237 : f32 to vector<1x64xf32>
    %238 = arith.divf %236, %237 : vector<1x64xf32>
    %239 = vector.broadcast %238 : vector<1x64xf32> to vector<128x64xf32>
    %240 = arith.subf %232, %239 : vector<128x64xf32>
    %241 = arith.mulf %240, %240 : vector<128x64xf32>
    %cst_238 = arith.constant dense<0.000000e+00> : vector<64xf32>
    %242 = vector.multi_reduction <add>, %241, %cst_238 [0] : vector<128x64xf32> to vector<64xf32>
    %243 = vector.shape_cast %242 : vector<64xf32> to vector<1x64xf32>
    %cst_239 = arith.constant 1.280000e+02 : f32
    %244 = vector.broadcast %cst_239 : f32 to vector<1x64xf32>
    %245 = arith.divf %243, %244 : vector<1x64xf32>
    %246 = vector.broadcast %238 : vector<1x64xf32> to vector<128x64xf32>
    %247 = arith.subf %232, %246 : vector<128x64xf32>
    %cst_240 = arith.constant 9.99999974E-6 : f32
    %248 = vector.broadcast %cst_240 : f32 to vector<1x64xf32>
    %249 = arith.addf %245, %248 : vector<1x64xf32>
    %250 = math.rsqrt %249 : vector<1x64xf32>
    %251 = vector.broadcast %250 : vector<1x64xf32> to vector<128x64xf32>
    %252 = arith.mulf %247, %251 : vector<128x64xf32>
    %253 = vector.broadcast %233 : vector<1x64xf32> to vector<128x64xf32>
    %254 = arith.mulf %252, %253 : vector<128x64xf32>
    %255 = vector.broadcast %234 : vector<1x64xf32> to vector<128x64xf32>
    %256 = arith.addf %254, %255 : vector<128x64xf32>
    %257 = arith.addf %256, %120 : vector<128x64xf32>
    %cst_241 = arith.constant 0.000000e+00 : f32
    %258 = vector.broadcast %cst_241 : f32 to vector<128x64xf32>
    %259 = arith.maximumf %257, %258 : vector<128x64xf32>
    %260 = vector.shape_cast %259 : vector<128x64xf32> to vector<2x64x64xf32>
    %cst_242 = arith.constant dense<0.000000e+00> : vector<2x64xf32>
    %261 = vector.multi_reduction <add>, %260, %cst_242 [1] : vector<2x64x64xf32> to vector<2x64xf32>
    %cst_243 = arith.constant 6.400000e+01 : f32
    %262 = vector.broadcast %cst_243 : f32 to vector<2x64xf32>
    %263 = arith.divf %261, %262 : vector<2x64xf32>
    %264 = arith.truncf %263 : vector<2x64xf32> to vector<2x64xbf16>
    %c0_244 = arith.constant 0 : index
    %c0_245 = arith.constant 0 : index
    %265 = vector.load %arg7[%c0_244, %c0_245] : memref<64x128xbf16, #tpu.memory_space<vmem>>, vector<64x128xbf16>
    %cst_246 = arith.constant dense<0.000000e+00> : vector<2x128xf32>
    %266 = tpu.matmul %264, %265, %cst_246 {dimension_numbers = #tpu.dot_dimension_numbers<[1], [0], [0], [1], [0, 0, 1, 1], [], []>} : vector<2x64xbf16>, vector<64x128xbf16>, vector<2x128xf32> -> vector<2x128xf32>
    %c0_247 = arith.constant 0 : index
    %c0_248 = arith.constant 0 : index
    %267 = vector.load %arg8[%c0_247, %c0_248] : memref<1x128xf32, #tpu.memory_space<vmem>>, vector<1x128xf32>
    %268 = vector.broadcast %267 : vector<1x128xf32> to vector<2x128xf32>
    %269 = arith.addf %266, %268 : vector<2x128xf32>
    %c0_249 = arith.constant 0 : index
    %c0_250 = arith.constant 0 : index
    %270 = vector.load %arg9[%c0_249, %c0_250] : memref<2x128xf32, #tpu.memory_space<vmem>>, vector<2x128xf32>
    tpu.vector_store %arg9[%c0_249, %c0_250], %269 {strides = array<i32>} : memref<2x128xf32, #tpu.memory_space<vmem>>, vector<2x128xf32>,
    return
  }
}

</mosaic_0001>

<llo_original>
// kernel: decoder_forward.1
$region0: #{decoder_forward.1}
  #allocation0 [shape = 'u32[]', space=smem, size = 0x4, offset = 0x4, fixed_abs, tag = 'smem constant byte address 0x4 - core index']
  #allocation1 [shape = 'u32[144,128]{1,0:T(1,128)}', space=vmem, size = 0x12000, scoped, tag = 'internal scratch']
  #allocation2 [shape = 'f32[2,10,10,64]{3,2,1,0:T(8,128)}', space=vmem, size = 0x28000, scoped, tag = 'scratch operand']
  #allocation3 [shape = 'bf16[128,576]{1,0:T(8,128)(2,1)}', space=vmem, size = 0x28000, scoped, tag = 'scratch operand']
  %s0 = inlined_call_operand.vmem [shape: f32[2,9,9,128], index: 0, kind: input, shape index: {}]
  %s1 = inlined_call_operand.vmem [shape: bf16[512,128], index: 1, kind: input, shape index: {}]
  %s2 = inlined_call_operand.vmem [shape: bf16[576,64], index: 2, kind: input, shape index: {}]
  %s3 = inlined_call_operand.vmem [shape: f32[5,64], index: 3, kind: input, shape index: {}]
  %s4 = inlined_call_operand.vmem [shape: bf16[1,576,64], index: 4, kind: input, shape index: {}]
  %s5 = inlined_call_operand.vmem [shape: bf16[1,576,64], index: 5, kind: input, shape index: {}]
  %s6 = inlined_call_operand.vmem [shape: f32[1,4,64], index: 6, kind: input, shape index: {}]
  %s7 = inlined_call_operand.vmem [shape: bf16[64,128], index: 7, kind: input, shape index: {}]
  %s8 = inlined_call_operand.vmem [shape: f32[1,128], index: 8, kind: input, shape index: {}]
  %s9 = inlined_call_operand.hbm [shape: f32[2,128], index: 9, kind: output, shape index: {}]
  %s10 = sld [smem:[#allocation0]]
  $region46: #{decoder_forward.1} parent=0
    _
  %s12 = ssub.s32 1, %s10
  %s13 = scalar_select 0, %s12, %s10
  $region1: #{decoder_forward.1} parent=0
    #allocation4 [shape = 'u8[1024]{0}', space=vmem, size = 0x400, scoped, tag = 'output window, operand 0, single buffered']
    #allocation5 [shape = 's32[1]{0}', space=sflag, size = 0x4, scoped, tag = 'scoped memory for decoder_forward.1']
    %14 = vsyncpa [#allocation5], 0
    // Predicated region
    $region2: #{decoder_forward.1} parent=1 // pred_check
      _
    $region3: #{decoder_forward.1} parent=1 // pred_check_branch
      %16 = sbr.rel (0) target = $region5
    $region4: #{decoder_forward.1} parent=1 // pred_region
      _
    $region5: #{decoder_forward.1} parent=1 // pred_fallthru
      _
    // Predicated region
    $region6: #{decoder_forward.1} parent=1 // pred_check
      _
    $region7: #{decoder_forward.1} parent=1 // pred_check_branch
      %18 = sbr.rel (0) target = $region9
    $region8: #{decoder_forward.1} parent=1 // pred_region
      _
    $region9: #{decoder_forward.1} parent=1 // pred_fallthru
      _
    // Predicated region
    $region10: #{decoder_forward.1} parent=1 // pred_check
      _
    $region11: #{decoder_forward.1} parent=1 // pred_check_branch
      %20 = sbr.rel (0) target = $region13
    $region12: #{decoder_forward.1} parent=1 // pred_region
      _
    $region13: #{decoder_forward.1} parent=1 // pred_fallthru
      _
    // Predicated region
    $region14: #{decoder_forward.1} parent=1 // pred_check
      _
    $region15: #{decoder_forward.1} parent=1 // pred_check_branch
      %22 = sbr.rel (0) target = $region17
    $region16: #{decoder_forward.1} parent=1 // pred_region
      _
    $region17: #{decoder_forward.1} parent=1 // pred_fallthru
      _
    // Predicated region
    $region18: #{decoder_forward.1} parent=1 // pred_check
      _
    $region19: #{decoder_forward.1} parent=1 // pred_check_branch
      %24 = sbr.rel (0) target = $region21
    $region20: #{decoder_forward.1} parent=1 // pred_region
      _
    $region21: #{decoder_forward.1} parent=1 // pred_fallthru
      _
    // Predicated region
    $region22: #{decoder_forward.1} parent=1 // pred_check
      _
    $region23: #{decoder_forward.1} parent=1 // pred_check_branch
      %26 = sbr.rel (0) target = $region25
    $region24: #{decoder_forward.1} parent=1 // pred_region
      _
    $region25: #{decoder_forward.1} parent=1 // pred_fallthru
      _
    // Predicated region
    $region26: #{decoder_forward.1} parent=1 // pred_check
      _
    $region27: #{decoder_forward.1} parent=1 // pred_check_branch
      %28 = sbr.rel (0) target = $region29
    $region28: #{decoder_forward.1} parent=1 // pred_region
      _
    $region29: #{decoder_forward.1} parent=1 // pred_fallthru
      _
    // Predicated region
    $region30: #{decoder_forward.1} parent=1 // pred_check
      _
    $region31: #{decoder_forward.1} parent=1 // pred_check_branch
      %30 = sbr.rel (0) target = $region33
    $region32: #{decoder_forward.1} parent=1 // pred_region
      _
    $region33: #{decoder_forward.1} parent=1 // pred_fallthru
      _
    // Predicated region
    $region34: #{decoder_forward.1} parent=1 // pred_check
      _
    $region35: #{decoder_forward.1} parent=1 // pred_check_branch
      %32 = sbr.rel (0) target = $region37
    $region36: #{decoder_forward.1} parent=1 // pred_region
      _
    $region37: #{decoder_forward.1} parent=1 // pred_fallthru
      _
    %vm34 = vcmask 523264
    %35 = vst.msk [vmem:[#allocation2] sm:$0xff] %vm34, 0.0
    %vm36 = vcmask 517120
    %37 = vst.msk [vmem:[#allocation2 + $0x8] sm:$0x3] %vm36, 0.0
    %38 = vst.msk [vmem:[#allocation2 + $0x10] sm:$0xff] %vm34, 0.0
    %39 = vst.msk [vmem:[#allocation2 + $0x18] sm:$0x3] %vm36, 0.0
    %40 = vst.msk [vmem:[#allocation2 + $0x20] sm:$0xff] %vm34, 0.0
    %41 = vst.msk [vmem:[#allocation2 + $0x28] sm:$0x3] %vm36, 0.0
    %42 = vst.msk [vmem:[#allocation2 + $0x30] sm:$0xff] %vm34, 0.0
    %43 = vst.msk [vmem:[#allocation2 + $0x38] sm:$0x3] %vm36, 0.0
    %44 = vst.msk [vmem:[#allocation2 + $0x40] sm:$0xff] %vm34, 0.0
    %45 = vst.msk [vmem:[#allocation2 + $0x48] sm:$0x3] %vm36, 0.0
    %46 = vst.msk [vmem:[#allocation2 + $0x50] sm:$0xff] %vm34, 0.0
    %47 = vst.msk [vmem:[#allocation2 + $0x58] sm:$0x3] %vm36, 0.0
    %48 = vst.msk [vmem:[#allocation2 + $0x60] sm:$0xff] %vm34, 0.0
    %49 = vst.msk [vmem:[#allocation2 + $0x68] sm:$0x3] %vm36, 0.0
    %50 = vst.msk [vmem:[#allocation2 + $0x70] sm:$0xff] %vm34, 0.0
    %51 = vst.msk [vmem:[#allocation2 + $0x78] sm:$0x3] %vm36, 0.0
    %52 = vst.msk [vmem:[#allocation2 + $0x80] sm:$0xff] %vm34, 0.0
    %53 = vst.msk [vmem:[#allocation2 + $0x88] sm:$0x3] %vm36, 0.0
    %54 = vst.msk [vmem:[#allocation2 + $0x90] sm:$0xff] %vm34, 0.0
    %55 = vst.msk [vmem:[#allocation2 + $0x98] sm:$0x3] %vm36, 0.0
    %56 = vst.msk [vmem:[#allocation2 + $0xa0] sm:$0xff] %vm34, 0.0
    %57 = vst.msk [vmem:[#allocation2 + $0xa8] sm:$0x3] %vm36, 0.0
    %58 = vst.msk [vmem:[#allocation2 + $0xb0] sm:$0xff] %vm34, 0.0
    %59 = vst.msk [vmem:[#allocation2 + $0xb8] sm:$0x3] %vm36, 0.0
    %60 = vst.msk [vmem:[#allocation2 + $0xc0] sm:$0xff] %vm34, 0.0
    %61 = vst.msk [vmem:[#allocation2 + $0xc8] sm:$0x3] %vm36, 0.0
    %62 = vst.msk [vmem:[#allocation2 + $0xd0] sm:$0xff] %vm34, 0.0
    %63 = vst.msk [vmem:[#allocation2 + $0xd8] sm:$0x3] %vm36, 0.0
    %64 = vst.msk [vmem:[#allocation2 + $0xe0] sm:$0xff] %vm34, 0.0
    %65 = vst.msk [vmem:[#allocation2 + $0xe8] sm:$0x3] %vm36, 0.0
    %66 = vst.msk [vmem:[#allocation2 + $0xf0] sm:$0xff] %vm34, 0.0
    %67 = vst.msk [vmem:[#allocation2 + $0xf8] sm:$0x3] %vm36, 0.0
    %68 = vst.msk [vmem:[#allocation2 + $0x100] sm:$0xff] %vm34, 0.0
    %69 = vst.msk [vmem:[#allocation2 + $0x108] sm:$0x3] %vm36, 0.0
    %70 = vst.msk [vmem:[#allocation2 + $0x110] sm:$0xff] %vm34, 0.0
    %71 = vst.msk [vmem:[#allocation2 + $0x118] sm:$0x3] %vm36, 0.0
    %72 = vst.msk [vmem:[#allocation2 + $0x120] sm:$0xff] %vm34, 0.0
    %73 = vst.msk [vmem:[#allocation2 + $0x128] sm:$0x3] %vm36, 0.0
    %74 = vst.msk [vmem:[#allocation2 + $0x130] sm:$0xff] %vm34, 0.0
    %75 = vst.msk [vmem:[#allocation2 + $0x138] sm:$0x3] %vm36, 0.0
    %v76 = vld [vmem:[%s0] sm:$0xff]
    %v77 = vld [vmem:[%s0 + $0x10] sm:$0xff]
    %v78 = vld [vmem:[%s0 + $0x20] sm:$0xff]
    %v79 = vld [vmem:[%s0 + $0x30] sm:$0xff]
    %v80 = vld [vmem:[%s0 + $0x40] sm:$0xff]
    %v81 = vld [vmem:[%s0 + $0x50] sm:$0xff]
    %v82 = vld [vmem:[%s0 + $0x60] sm:$0xff]
    %v83 = vld [vmem:[%s0 + $0x70] sm:$0xff]
    %v84 = vld [vmem:[%s0 + $0x90] sm:$0xff]
    %v85 = vld [vmem:[%s0 + $0xa0] sm:$0xff]
    %v86 = vld [vmem:[%s0 + $0xb0] sm:$0xff]
    %v87 = vld [vmem:[%s0 + $0xc0] sm:$0xff]
    %v88 = vld [vmem:[%s0 + $0xd0] sm:$0xff]
    %v89 = vld [vmem:[%s0 + $0xe0] sm:$0xff]
    %v90 = vld [vmem:[%s0 + $0xf0] sm:$0xff]
    %v91 = vld [vmem:[%s0 + $0x100] sm:$0xff]
    %v92 = vpack.c.bf16 %v77, %v76
    %v93 = vpack.c.bf16 %v79, %v78
    %v94 = vpack.c.bf16 %v81, %v80
    %v95 = vpack.c.bf16 %v83, %v82
    %v96 = vpack.c.bf16 %v85, %v84
    %v97 = vpack.c.bf16 %v87, %v86
    %v98 = vpack.c.bf16 %v89, %v88
    %v99 = vpack.c.bf16 %v91, %v90
    %v108 = vunpack.c.l.b16 %v92
    %v109 = vunpack.c.h.b16 %v92
    %v110 = vunpack.c.l.b16 %v93
    %v111 = vunpack.c.h.b16 %v93
    %v112 = vunpack.c.l.b16 %v94
    %v113 = vunpack.c.h.b16 %v94
    %v114 = vunpack.c.l.b16 %v95
    %v115 = vunpack.c.h.b16 %v95
    %v116 = vunpack.c.l.b16 %v96
    %v117 = vunpack.c.h.b16 %v96
    %v118 = vunpack.c.l.b16 %v97
    %v119 = vunpack.c.h.b16 %v97
    %v120 = vunpack.c.l.b16 %v98
    %v121 = vunpack.c.h.b16 %v98
    %v122 = vunpack.c.l.b16 %v99
    %v123 = vunpack.c.h.b16 %v99
    %v124 = vpack.c.b16 %v108, %v108
    %v125 = vpack.c.b16 %v109, %v109
    %v126 = vpack.c.b16 %v110, %v110
    %v127 = vpack.c.b16 %v111, %v111
    %v128 = vpack.c.b16 %v112, %v112
    %v129 = vpack.c.b16 %v113, %v113
    %v130 = vpack.c.b16 %v114, %v114
    %v131 = vpack.c.b16 %v115, %v115
    %v132 = vpack.c.b16 %v116, %v116
    %v133 = vpack.c.b16 %v117, %v117
    %v134 = vpack.c.b16 %v118, %v118
    %v135 = vpack.c.b16 %v119, %v119
    %v136 = vpack.c.b16 %v120, %v120
    %v137 = vpack.c.b16 %v121, %v121
    %v138 = vpack.c.b16 %v122, %v122
    %v139 = vpack.c.b16 %v123, %v123
    %156 = vst [vmem:[#allocation3] sm:$0xf] %v124
    %157 = vst [vmem:[#allocation3 + $0x14] sm:$0xf] %v125
    %158 = vst [vmem:[#allocation3 + $0x28] sm:$0xf] %v126
    %159 = vst [vmem:[#allocation3 + $0x3c] sm:$0xf] %v127
    %160 = vst [vmem:[#allocation3 + $0x50] sm:$0xf] %v128
    %161 = vst [vmem:[#allocation3 + $0x64] sm:$0xf] %v129
    %162 = vst [vmem:[#allocation3 + $0x78] sm:$0xf] %v130
    %163 = vst [vmem:[#allocation3 + $0x8c] sm:$0xf] %v131
    %164 = vst [vmem:[#allocation3 + $0xa0] sm:$0xf] %v132
    %165 = vst [vmem:[#allocation3 + $0xb4] sm:$0xf] %v133
    %166 = vst [vmem:[#allocation3 + $0xc8] sm:$0xf] %v134
    %167 = vst [vmem:[#allocation3 + $0xdc] sm:$0xf] %v135
    %168 = vst [vmem:[#allocation3 + $0xf0] sm:$0xf] %v136
    %169 = vst [vmem:[#allocation3 + $0x104] sm:$0xf] %v137
    %170 = vst [vmem:[#allocation3 + $0x118] sm:$0xf] %v138
    %171 = vst [vmem:[#allocation3 + $0x12c] sm:$0xf] %v139
    %v172 = vld [vmem:[%s0 + $0x1] sm:$0xff]
    %v173 = vld [vmem:[%s0 + $0x11] sm:$0xff]
    %v174 = vld [vmem:[%s0 + $0x21] sm:$0xff]
    %v175 = vld [vmem:[%s0 + $0x31] sm:$0xff]
    %v176 = vld [vmem:[%s0 + $0x41] sm:$0xff]
    %v177 = vld [vmem:[%s0 + $0x51] sm:$0xff]
    %v178 = vld [vmem:[%s0 + $0x61] sm:$0xff]
    %v179 = vld [vmem:[%s0 + $0x71] sm:$0xff]
    %v180 = vld [vmem:[%s0 + $0x91] sm:$0xff]
    %v181 = vld [vmem:[%s0 + $0xa1] sm:$0xff]
    %v182 = vld [vmem:[%s0 + $0xb1] sm:$0xff]
    %v183 = vld [vmem:[%s0 + $0xc1] sm:$0xff]
    %v184 = vld [vmem:[%s0 + $0xd1] sm:$0xff]
    %v185 = vld [vmem:[%s0 + $0xe1] sm:$0xff]
    %v186 = vld [vmem:[%s0 + $0xf1] sm:$0xff]
    %v187 = vld [vmem:[%s0 + $0x101] sm:$0xff]
    %v188 = vpack.c.bf16 %v173, %v172
    %v189 = vpack.c.bf16 %v175, %v174
    %v190 = vpack.c.bf16 %v177, %v176
    %v191 = vpack.c.bf16 %v179, %v178
    %v192 = vpack.c.bf16 %v181, %v180
    %v193 = vpack.c.bf16 %v183, %v182
    %v194 = vpack.c.bf16 %v185, %v184
    %v195 = vpack.c.bf16 %v187, %v186
    %v204 = vunpack.c.l.b16 %v188
    %v205 = vunpack.c.h.b16 %v188
    %v206 = vunpack.c.l.b16 %v189
    %v207 = vunpack.c.h.b16 %v189
    %v208 = vunpack.c.l.b16 %v190
    %v209 = vunpack.c.h.b16 %v190
    %v210 = vunpack.c.l.b16 %v191
    %v211 = vunpack.c.h.b16 %v191
    %v212 = vunpack.c.l.b16 %v192
    %v213 = vunpack.c.h.b16 %v192
    %v214 = vunpack.c.l.b16 %v193
    %v215 = vunpack.c.h.b16 %v193
    %v216 = vunpack.c.l.b16 %v194
    %v217 = vunpack.c.h.b16 %v194
    %v218 = vunpack.c.l.b16 %v195
    %v219 = vunpack.c.h.b16 %v195
    %v220 = vpack.c.b16 %v204, %v204
    %v221 = vpack.c.b16 %v205, %v205
    %v222 = vpack.c.b16 %v206, %v206
    %v223 = vpack.c.b16 %v207, %v207
    %v224 = vpack.c.b16 %v208, %v208
    %v225 = vpack.c.b16 %v209, %v209
    %v226 = vpack.c.b16 %v210, %v210
    %v227 = vpack.c.b16 %v211, %v211
    %v228 = vpack.c.b16 %v212, %v212
    %v229 = vpack.c.b16 %v213, %v213
    %v230 = vpack.c.b16 %v214, %v214
    %v231 = vpack.c.b16 %v215, %v215
    %v232 = vpack.c.b16 %v216, %v216
    %v233 = vpack.c.b16 %v217, %v217
    %v234 = vpack.c.b16 %v218, %v218
    %v235 = vpack.c.b16 %v219, %v219
    %252 = vst [vmem:[#allocation3 + $0x4] sm:$0xf] %v220
    %253 = vst [vmem:[#allocation3 + $0x18] sm:$0xf] %v221
    %254 = vst [vmem:[#allocation3 + $0x2c] sm:$0xf] %v222
    %255 = vst [vmem:[#allocation3 + $0x40] sm:$0xf] %v223
    %256 = vst [vmem:[#allocation3 + $0x54] sm:$0xf] %v224
    %257 = vst [vmem:[#allocation3 + $0x68] sm:$0xf] %v225
    %258 = vst [vmem:[#allocation3 + $0x7c] sm:$0xf] %v226
    %259 = vst [vmem:[#allocation3 + $0x90] sm:$0xf] %v227
    %260 = vst [vmem:[#allocation3 + $0xa4] sm:$0xf] %v228
    %261 = vst [vmem:[#allocation3 + $0xb8] sm:$0xf] %v229
    %262 = vst [vmem:[#allocation3 + $0xcc] sm:$0xf] %v230
    %263 = vst [vmem:[#allocation3 + $0xe0] sm:$0xf] %v231
    %264 = vst [vmem:[#allocation3 + $0xf4] sm:$0xf] %v232
    %265 = vst [vmem:[#allocation3 + $0x108] sm:$0xf] %v233
    %266 = vst [vmem:[#allocation3 + $0x11c] sm:$0xf] %v234
    %267 = vst [vmem:[#allocation3 + $0x130] sm:$0xf] %v235
    %s268 = scalar_lea.vmem %s0, 16
    %v269 = vld [vmem:[%s268] sm:$0xff]
    %v270 = vld [vmem:[%s268 + $0x10] sm:$0xff]
    %v271 = vld [vmem:[%s268 + $0x20] sm:$0xff]
    %v272 = vld [vmem:[%s268 + $0x30] sm:$0xff]
    %v273 = vld [vmem:[%s268 + $0x40] sm:$0xff]
    %v274 = vld [vmem:[%s268 + $0x50] sm:$0xff]
    %v275 = vld [vmem:[%s268 + $0x60] sm:$0xff]
    %v276 = vld [vmem:[%s268 + $0x70] sm:$0xff]
    %v277 = vld [vmem:[%s268 + $0x90] sm:$0xff]
    %v278 = vld [vmem:[%s268 + $0xa0] sm:$0xff]
    %v279 = vld [vmem:[%s268 + $0xb0] sm:$0xff]
    %v280 = vld [vmem:[%s268 + $0xc0] sm:$0xff]
    %v281 = vld [vmem:[%s268 + $0xd0] sm:$0xff]
    %v282 = vld [vmem:[%s268 + $0xe0] sm:$0xff]
    %v283 = vld [vmem:[%s268 + $0xf0] sm:$0xff]
    %v284 = vld [vmem:[%s268 + $0x100] sm:$0xff]
    %v285 = vpack.c.bf16 %v270, %v269
    %v286 = vpack.c.bf16 %v272, %v271
    %v287 = vpack.c.bf16 %v274, %v273
    %v288 = vpack.c.bf16 %v276, %v275
    %v289 = vpack.c.bf16 %v278, %v277
    %v290 = vpack.c.bf16 %v280, %v279
    %v291 = vpack.c.bf16 %v282, %v281
    %v292 = vpack.c.bf16 %v284, %v283
    %v301 = vunpack.c.l.b16 %v285
    %v302 = vunpack.c.h.b16 %v285
    %v303 = vunpack.c.l.b16 %v286
    %v304 = vunpack.c.h.b16 %v286
    %v305 = vunpack.c.l.b16 %v287
    %v306 = vunpack.c.h.b16 %v287
    %v307 = vunpack.c.l.b16 %v288
    %v308 = vunpack.c.h.b16 %v288
    %v309 = vunpack.c.l.b16 %v289
    %v310 = vunpack.c.h.b16 %v289
    %v311 = vunpack.c.l.b16 %v290
    %v312 = vunpack.c.h.b16 %v290
    %v313 = vunpack.c.l.b16 %v291
    %v314 = vunpack.c.h.b16 %v291
    %v315 = vunpack.c.l.b16 %v292
    %v316 = vunpack.c.h.b16 %v292
    %v317 = vpack.c.b16 %v301, %v301
    %v318 = vpack.c.b16 %v302, %v302
    %v319 = vpack.c.b16 %v303, %v303
    %v320 = vpack.c.b16 %v304, %v304
    %v321 = vpack.c.b16 %v305, %v305
    %v322 = vpack.c.b16 %v306, %v306
    %v323 = vpack.c.b16 %v307, %v307
    %v324 = vpack.c.b16 %v308, %v308
    %v325 = vpack.c.b16 %v309, %v309
    %v326 = vpack.c.b16 %v310, %v310
    %v327 = vpack.c.b16 %v311, %v311
    %v328 = vpack.c.b16 %v312, %v312
    %v329 = vpack.c.b16 %v313, %v313
    %v330 = vpack.c.b16 %v314, %v314
    %v331 = vpack.c.b16 %v315, %v315
    %v332 = vpack.c.b16 %v316, %v316
    %349 = vst [vmem:[#allocation3 + $0x8] sm:$0xf] %v317
    %350 = vst [vmem:[#allocation3 + $0x1c] sm:$0xf] %v318
    %351 = vst [vmem:[#allocation3 + $0x30] sm:$0xf] %v319
    %352 = vst [vmem:[#allocation3 + $0x44] sm:$0xf] %v320
    %353 = vst [vmem:[#allocation3 + $0x58] sm:$0xf] %v321
    %354 = vst [vmem:[#allocation3 + $0x6c] sm:$0xf] %v322
    %355 = vst [vmem:[#allocation3 + $0x80] sm:$0xf] %v323
    %356 = vst [vmem:[#allocation3 + $0x94] sm:$0xf] %v324
    %357 = vst [vmem:[#allocation3 + $0xa8] sm:$0xf] %v325
    %358 = vst [vmem:[#allocation3 + $0xbc] sm:$0xf] %v326
    %359 = vst [vmem:[#allocation3 + $0xd0] sm:$0xf] %v327
    %360 = vst [vmem:[#allocation3 + $0xe4] sm:$0xf] %v328
    %361 = vst [vmem:[#allocation3 + $0xf8] sm:$0xf] %v329
    %362 = vst [vmem:[#allocation3 + $0x10c] sm:$0xf] %v330
    %363 = vst [vmem:[#allocation3 + $0x120] sm:$0xf] %v331
    %364 = vst [vmem:[#allocation3 + $0x134] sm:$0xf] %v332
    %v365 = vld [vmem:[%s268 + $0x1] sm:$0xff]
    %v366 = vld [vmem:[%s268 + $0x11] sm:$0xff]
    %v367 = vld [vmem:[%s268 + $0x21] sm:$0xff]
    %v368 = vld [vmem:[%s268 + $0x31] sm:$0xff]
    %v369 = vld [vmem:[%s268 + $0x41] sm:$0xff]
    %v370 = vld [vmem:[%s268 + $0x51] sm:$0xff]
    %v371 = vld [vmem:[%s268 + $0x61] sm:$0xff]
    %v372 = vld [vmem:[%s268 + $0x71] sm:$0xff]
    %v373 = vld [vmem:[%s268 + $0x91] sm:$0xff]
    %v374 = vld [vmem:[%s268 + $0xa1] sm:$0xff]
    %v375 = vld [vmem:[%s268 + $0xb1] sm:$0xff]
    %v376 = vld [vmem:[%s268 + $0xc1] sm:$0xff]
    %v377 = vld [vmem:[%s268 + $0xd1] sm:$0xff]
    %v378 = vld [vmem:[%s268 + $0xe1] sm:$0xff]
    %v379 = vld [vmem:[%s268 + $0xf1] sm:$0xff]
    %v380 = vld [vmem:[%s268 + $0x101] sm:$0xff]
    %v381 = vpack.c.bf16 %v366, %v365
    %v382 = vpack.c.bf16 %v368, %v367
    %v383 = vpack.c.bf16 %v370, %v369
    %v384 = vpack.c.bf16 %v372, %v371
    %v385 = vpack.c.bf16 %v374, %v373
    %v386 = vpack.c.bf16 %v376, %v375
    %v387 = vpack.c.bf16 %v378, %v377
    %v388 = vpack.c.bf16 %v380, %v379
    %v397 = vunpack.c.l.b16 %v381
    %v398 = vunpack.c.h.b16 %v381
    %v399 = vunpack.c.l.b16 %v382
    %v400 = vunpack.c.h.b16 %v382
    %v401 = vunpack.c.l.b16 %v383
    %v402 = vunpack.c.h.b16 %v383
    %v403 = vunpack.c.l.b16 %v384
    %v404 = vunpack.c.h.b16 %v384
    %v405 = vunpack.c.l.b16 %v385
    %v406 = vunpack.c.h.b16 %v385
    %v407 = vunpack.c.l.b16 %v386
    %v408 = vunpack.c.h.b16 %v386
    %v409 = vunpack.c.l.b16 %v387
    %v410 = vunpack.c.h.b16 %v387
    %v411 = vunpack.c.l.b16 %v388
    %v412 = vunpack.c.h.b16 %v388
    %v413 = vpack.c.b16 %v397, %v397
    %v414 = vpack.c.b16 %v398, %v398
    %v415 = vpack.c.b16 %v399, %v399
    %v416 = vpack.c.b16 %v400, %v400
    %v417 = vpack.c.b16 %v401, %v401
    %v418 = vpack.c.b16 %v402, %v402
    %v419 = vpack.c.b16 %v403, %v403
    %v420 = vpack.c.b16 %v404, %v404
    %v421 = vpack.c.b16 %v405, %v405
    %v422 = vpack.c.b16 %v406, %v406
    %v423 = vpack.c.b16 %v407, %v407
    %v424 = vpack.c.b16 %v408, %v408
    %v425 = vpack.c.b16 %v409, %v409
    %v426 = vpack.c.b16 %v410, %v410
    %v427 = vpack.c.b16 %v411, %v411
    %v428 = vpack.c.b16 %v412, %v412
    %445 = vst [vmem:[#allocation3 + $0xc] sm:$0xf] %v413
    %446 = vst [vmem:[#allocation3 + $0x20] sm:$0xf] %v414
    %447 = vst [vmem:[#allocation3 + $0x34] sm:$0xf] %v415
    %448 = vst [vmem:[#allocation3 + $0x48] sm:$0xf] %v416
    %449 = vst [vmem:[#allocation3 + $0x5c] sm:$0xf] %v417
    %450 = vst [vmem:[#allocation3 + $0x70] sm:$0xf] %v418
    %451 = vst [vmem:[#allocation3 + $0x84] sm:$0xf] %v419
    %452 = vst [vmem:[#allocation3 + $0x98] sm:$0xf] %v420
    %453 = vst [vmem:[#allocation3 + $0xac] sm:$0xf] %v421
    %454 = vst [vmem:[#allocation3 + $0xc0] sm:$0xf] %v422
    %455 = vst [vmem:[#allocation3 + $0xd4] sm:$0xf] %v423
    %456 = vst [vmem:[#allocation3 + $0xe8] sm:$0xf] %v424
    %457 = vst [vmem:[#allocation3 + $0xfc] sm:$0xf] %v425
    %458 = vst [vmem:[#allocation3 + $0x110] sm:$0xf] %v426
    %459 = vst [vmem:[#allocation3 + $0x124] sm:$0xf] %v427
    %460 = vst [vmem:[#allocation3 + $0x138] sm:$0xf] %v428
    %v461 = vld [vmem:[#allocation3] sm:$0xff]
    %v462 = vld [vmem:[#allocation3 + $0x8] sm:$0xff]
    %v463 = vld [vmem:[#allocation3 + $0x14] sm:$0xff]
    %v464 = vld [vmem:[#allocation3 + $0x1c] sm:$0xff]
    %v465 = vld [vmem:[#allocation3 + $0x28] sm:$0xff]
    %v466 = vld [vmem:[#allocation3 + $0x30] sm:$0xff]
    %v467 = vld [vmem:[#allocation3 + $0x3c] sm:$0xff]
    %v468 = vld [vmem:[#allocation3 + $0x44] sm:$0xff]
    %v469 = vld [vmem:[#allocation3 + $0x50] sm:$0xff]
    %v470 = vld [vmem:[#allocation3 + $0x58] sm:$0xff]
    %v471 = vld [vmem:[#allocation3 + $0x64] sm:$0xff]
    %v472 = vld [vmem:[#allocation3 + $0x6c] sm:$0xff]
    %v473 = vld [vmem:[#allocation3 + $0x78] sm:$0xff]
    %v474 = vld [vmem:[#allocation3 + $0x80] sm:$0xff]
    %v475 = vld [vmem:[#allocation3 + $0x8c] sm:$0xff]
    %v476 = vld [vmem:[#allocation3 + $0x94] sm:$0xff]
    %v477 = vld [vmem:[#allocation3 + $0xa0] sm:$0xff]
    %v478 = vld [vmem:[#allocation3 + $0xa8] sm:$0xff]
    %v479 = vld [vmem:[#allocation3 + $0xb4] sm:$0xff]
    %v480 = vld [vmem:[#allocation3 + $0xbc] sm:$0xff]
    %v481 = vld [vmem:[#allocation3 + $0xc8] sm:$0xff]
    %v482 = vld [vmem:[#allocation3 + $0xd0] sm:$0xff]
    %v483 = vld [vmem:[#allocation3 + $0xdc] sm:$0xff]
    %v484 = vld [vmem:[#allocation3 + $0xe4] sm:$0xff]
    %v485 = vld [vmem:[#allocation3 + $0xf0] sm:$0xff]
    %v486 = vld [vmem:[#allocation3 + $0xf8] sm:$0xff]
    %v487 = vld [vmem:[#allocation3 + $0x104] sm:$0xff]
    %v488 = vld [vmem:[#allocation3 + $0x10c] sm:$0xff]
    %v489 = vld [vmem:[#allocation3 + $0x118] sm:$0xff]
    %v490 = vld [vmem:[#allocation3 + $0x120] sm:$0xff]
    %v491 = vld [vmem:[#allocation3 + $0x12c] sm:$0xff]
    %v492 = vld [vmem:[#allocation3 + $0x134] sm:$0xff]
    %v493 = vld [vmem:[%s1] sm:$0xf]
    %v494 = vld [vmem:[%s1 + $0x4] sm:$0xf]
    %v495 = vld [vmem:[%s1 + $0x8] sm:$0xf]
    %v496 = vld [vmem:[%s1 + $0xc] sm:$0xf]
    %v497 = vld [vmem:[%s1 + $0x10] sm:$0xf]
    %v498 = vld [vmem:[%s1 + $0x14] sm:$0xf]
    %v499 = vld [vmem:[%s1 + $0x18] sm:$0xf]
    %v500 = vld [vmem:[%s1 + $0x1c] sm:$0xf]
    %v501 = vld [vmem:[%s1 + $0x20] sm:$0xf]
    %v502 = vld [vmem:[%s1 + $0x24] sm:$0xf]
    %v503 = vld [vmem:[%s1 + $0x28] sm:$0xf]
    %v504 = vld [vmem:[%s1 + $0x2c] sm:$0xf]
    %v505 = vld [vmem:[%s1 + $0x30] sm:$0xf]
    %v506 = vld [vmem:[%s1 + $0x34] sm:$0xf]
    %v507 = vld [vmem:[%s1 + $0x38] sm:$0xf]
    %v508 = vld [vmem:[%s1 + $0x3c] sm:$0xf]
    %v509 = vld [vmem:[%s1 + $0x40] sm:$0xf]
    %v510 = vld [vmem:[%s1 + $0x44] sm:$0xf]
    %v511 = vld [vmem:[%s1 + $0x48] sm:$0xf]
    %v512 = vld [vmem:[%s1 + $0x4c] sm:$0xf]
    %v513 = vld [vmem:[%s1 + $0x50] sm:$0xf]
    %v514 = vld [vmem:[%s1 + $0x54] sm:$0xf]
    %v515 = vld [vmem:[%s1 + $0x58] sm:$0xf]
    %v516 = vld [vmem:[%s1 + $0x5c] sm:$0xf]
    %v517 = vld [vmem:[%s1 + $0x60] sm:$0xf]
    %v518 = vld [vmem:[%s1 + $0x64] sm:$0xf]
    %v519 = vld [vmem:[%s1 + $0x68] sm:$0xf]
    %v520 = vld [vmem:[%s1 + $0x6c] sm:$0xf]
    %v521 = vld [vmem:[%s1 + $0x70] sm:$0xf]
    %v522 = vld [vmem:[%s1 + $0x74] sm:$0xf]
    %v523 = vld [vmem:[%s1 + $0x78] sm:$0xf]
    %v524 = vld [vmem:[%s1 + $0x7c] sm:$0xf]
    %v525 = vld [vmem:[%s1 + $0x80] sm:$0xf]
    %v526 = vld [vmem:[%s1 + $0x84] sm:$0xf]
    %v527 = vld [vmem:[%s1 + $0x88] sm:$0xf]
    %v528 = vld [vmem:[%s1 + $0x8c] sm:$0xf]
    %v529 = vld [vmem:[%s1 + $0x90] sm:$0xf]
    %v530 = vld [vmem:[%s1 + $0x94] sm:$0xf]
    %v531 = vld [vmem:[%s1 + $0x98] sm:$0xf]
    %v532 = vld [vmem:[%s1 + $0x9c] sm:$0xf]
    %v533 = vld [vmem:[%s1 + $0xa0] sm:$0xf]
    %v534 = vld [vmem:[%s1 + $0xa4] sm:$0xf]
    %v535 = vld [vmem:[%s1 + $0xa8] sm:$0xf]
    %v536 = vld [vmem:[%s1 + $0xac] sm:$0xf]
    %v537 = vld [vmem:[%s1 + $0xb0] sm:$0xf]
    %v538 = vld [vmem:[%s1 + $0xb4] sm:$0xf]
    %v539 = vld [vmem:[%s1 + $0xb8] sm:$0xf]
    %v540 = vld [vmem:[%s1 + $0xbc] sm:$0xf]
    %v541 = vld [vmem:[%s1 + $0xc0] sm:$0xf]
    %v542 = vld [vmem:[%s1 + $0xc4] sm:$0xf]
    %v543 = vld [vmem:[%s1 + $0xc8] sm:$0xf]
    %v544 = vld [vmem:[%s1 + $0xcc] sm:$0xf]
    %v545 = vld [vmem:[%s1 + $0xd0] sm:$0xf]
    %v546 = vld [vmem:[%s1 + $0xd4] sm:$0xf]
    %v547 = vld [vmem:[%s1 + $0xd8] sm:$0xf]
    %v548 = vld [vmem:[%s1 + $0xdc] sm:$0xf]
    %v549 = vld [vmem:[%s1 + $0xe0] sm:$0xf]
    %v550 = vld [vmem:[%s1 + $0xe4] sm:$0xf]
    %v551 = vld [vmem:[%s1 + $0xe8] sm:$0xf]
    %v552 = vld [vmem:[%s1 + $0xec] sm:$0xf]
    %v553 = vld [vmem:[%s1 + $0xf0] sm:$0xf]
    %v554 = vld [vmem:[%s1 + $0xf4] sm:$0xf]
    %v555 = vld [vmem:[%s1 + $0xf8] sm:$0xf]
    %v556 = vld [vmem:[%s1 + $0xfc] sm:$0xf]
    %v589 = vunpack.c.l.b16 %v461
    %v590 = vunpack.c.h.b16 %v461
    %v591 = vunpack.c.l.b16 %v462
    %v592 = vunpack.c.h.b16 %v462
    %v593 = vunpack.c.l.b16 %v463
    %v594 = vunpack.c.h.b16 %v463
    %v595 = vunpack.c.l.b16 %v464
    %v596 = vunpack.c.h.b16 %v464
    %v597 = vunpack.c.l.b16 %v465
    %v598 = vunpack.c.h.b16 %v465
    %v599 = vunpack.c.l.b16 %v466
    %v600 = vunpack.c.h.b16 %v466
    %v601 = vunpack.c.l.b16 %v467
    %v602 = vunpack.c.h.b16 %v467
    %v603 = vunpack.c.l.b16 %v468
    %v604 = vunpack.c.h.b16 %v468
    %v605 = vunpack.c.l.b16 %v469
    %v606 = vunpack.c.h.b16 %v469
    %v607 = vunpack.c.l.b16 %v470
    %v608 = vunpack.c.h.b16 %v470
    %v609 = vunpack.c.l.b16 %v471
    %v610 = vunpack.c.h.b16 %v471
    %v611 = vunpack.c.l.b16 %v472
    %v612 = vunpack.c.h.b16 %v472
    %v613 = vunpack.c.l.b16 %v473
    %v614 = vunpack.c.h.b16 %v473
    %v615 = vunpack.c.l.b16 %v474
    %v616 = vunpack.c.h.b16 %v474
    %v617 = vunpack.c.l.b16 %v475
    %v618 = vunpack.c.h.b16 %v475
    %v619 = vunpack.c.l.b16 %v476
    %v620 = vunpack.c.h.b16 %v476
    %v621 = vunpack.c.l.b16 %v477
    %v622 = vunpack.c.h.b16 %v477
    %v623 = vunpack.c.l.b16 %v478
    %v624 = vunpack.c.h.b16 %v478
    %v625 = vunpack.c.l.b16 %v479
    %v626 = vunpack.c.h.b16 %v479
    %v627 = vunpack.c.l.b16 %v480
    %v628 = vunpack.c.h.b16 %v480
    %v629 = vunpack.c.l.b16 %v481
    %v630 = vunpack.c.h.b16 %v481
    %v631 = vunpack.c.l.b16 %v482
    %v632 = vunpack.c.h.b16 %v482
    %v633 = vunpack.c.l.b16 %v483
    %v634 = vunpack.c.h.b16 %v483
    %v635 = vunpack.c.l.b16 %v484
    %v636 = vunpack.c.h.b16 %v484
    %v637 = vunpack.c.l.b16 %v485
    %v638 = vunpack.c.h.b16 %v485
    %v639 = vunpack.c.l.b16 %v486
    %v640 = vunpack.c.h.b16 %v486
    %v641 = vunpack.c.l.b16 %v487
    %v642 = vunpack.c.h.b16 %v487
    %v643 = vunpack.c.l.b16 %v488
    %v644 = vunpack.c.h.b16 %v488
    %v645 = vunpack.c.l.b16 %v489
    %v646 = vunpack.c.h.b16 %v489
    %v647 = vunpack.c.l.b16 %v490
    %v648 = vunpack.c.h.b16 %v490
    %v649 = vunpack.c.l.b16 %v491
    %v650 = vunpack.c.h.b16 %v491
    %v651 = vunpack.c.l.b16 %v492
    %v652 = vunpack.c.h.b16 %v492
    %v653 = vpack.c.b16 %v593, %v589
    %v654 = vpack.c.b16 %v594, %v590
    %v655 = vpack.c.b16 %v595, %v591
    %v656 = vpack.c.b16 %v596, %v592
    %v657 = vpack.c.b16 %v601, %v597
    %v658 = vpack.c.b16 %v602, %v598
    %v659 = vpack.c.b16 %v603, %v599
    %v660 = vpack.c.b16 %v604, %v600
    %v661 = vpack.c.b16 %v609, %v605
    %v662 = vpack.c.b16 %v610, %v606
    %v663 = vpack.c.b16 %v611, %v607
    %v664 = vpack.c.b16 %v612, %v608
    %v665 = vpack.c.b16 %v617, %v613
    %v666 = vpack.c.b16 %v618, %v614
    %v667 = vpack.c.b16 %v619, %v615
    %v668 = vpack.c.b16 %v620, %v616
    %v669 = vpack.c.b16 %v625, %v621
    %v670 = vpack.c.b16 %v626, %v622
    %v671 = vpack.c.b16 %v627, %v623
    %v672 = vpack.c.b16 %v628, %v624
    %v673 = vpack.c.b16 %v633, %v629
    %v674 = vpack.c.b16 %v634, %v630
    %v675 = vpack.c.b16 %v635, %v631
    %v676 = vpack.c.b16 %v636, %v632
    %v677 = vpack.c.b16 %v641, %v637
    %v678 = vpack.c.b16 %v642, %v638
    %v679 = vpack.c.b16 %v643, %v639
    %v680 = vpack.c.b16 %v644, %v640
    %v681 = vpack.c.b16 %v649, %v645
    %v682 = vpack.c.b16 %v650, %v646
    %v683 = vpack.c.b16 %v651, %v647
    %v684 = vpack.c.b16 %v652, %v648
    %v781 = vunpack.c.l.b16 %v493
    %v782 = vunpack.c.l.b16 %v494
    %v783 = vunpack.c.l.b16 %v495
    %v784 = vunpack.c.l.b16 %v496
    %v785 = vunpack.c.l.b16 %v497
    %v786 = vunpack.c.l.b16 %v498
    %v787 = vunpack.c.l.b16 %v499
    %v788 = vunpack.c.l.b16 %v500
    %v789 = vunpack.c.l.b16 %v501
    %v790 = vunpack.c.l.b16 %v502
    %v791 = vunpack.c.l.b16 %v503
    %v792 = vunpack.c.l.b16 %v504
    %v793 = vunpack.c.l.b16 %v505
    %v794 = vunpack.c.l.b16 %v506
    %v795 = vunpack.c.l.b16 %v507
    %v796 = vunpack.c.l.b16 %v508
    %v797 = vunpack.c.l.b16 %v509
    %v798 = vunpack.c.l.b16 %v510
    %v799 = vunpack.c.l.b16 %v511
    %v800 = vunpack.c.l.b16 %v512
    %v801 = vunpack.c.l.b16 %v513
    %v802 = vunpack.c.l.b16 %v514
    %v803 = vunpack.c.l.b16 %v515
    %v804 = vunpack.c.l.b16 %v516
    %v805 = vunpack.c.l.b16 %v517
    %v806 = vunpack.c.l.b16 %v518
    %v807 = vunpack.c.l.b16 %v519
    %v808 = vunpack.c.l.b16 %v520
    %v809 = vunpack.c.l.b16 %v521
    %v810 = vunpack.c.l.b16 %v522
    %v811 = vunpack.c.l.b16 %v523
    %v812 = vunpack.c.l.b16 %v524
    %v813 = vunpack.c.l.b16 %v525
    %v814 = vunpack.c.l.b16 %v526
    %v815 = vunpack.c.l.b16 %v527
    %v816 = vunpack.c.l.b16 %v528
    %v817 = vunpack.c.l.b16 %v529
    %v818 = vunpack.c.l.b16 %v530
    %v819 = vunpack.c.l.b16 %v531
    %v820 = vunpack.c.l.b16 %v532
    %v821 = vunpack.c.l.b16 %v533
    %v822 = vunpack.c.l.b16 %v534
    %v823 = vunpack.c.l.b16 %v535
    %v824 = vunpack.c.l.b16 %v536
    %v825 = vunpack.c.l.b16 %v537
    %v826 = vunpack.c.l.b16 %v538
    %v827 = vunpack.c.l.b16 %v539
    %v828 = vunpack.c.l.b16 %v540
    %v829 = vunpack.c.l.b16 %v541
    %v830 = vunpack.c.l.b16 %v542
    %v831 = vunpack.c.l.b16 %v543
    %v832 = vunpack.c.l.b16 %v544
    %v833 = vunpack.c.l.b16 %v545
    %v834 = vunpack.c.l.b16 %v546
    %v835 = vunpack.c.l.b16 %v547
    %v836 = vunpack.c.l.b16 %v548
    %v837 = vunpack.c.l.b16 %v549
    %v838 = vunpack.c.l.b16 %v550
    %v839 = vunpack.c.l.b16 %v551
    %v840 = vunpack.c.l.b16 %v552
    %v841 = vunpack.c.l.b16 %v553
    %v842 = vunpack.c.l.b16 %v554
    %v843 = vunpack.c.l.b16 %v555
    %v844 = vunpack.c.l.b16 %v556
    %v845 = vpack.c.b16 %v782, %v781
    %v846 = vpack.c.b16 %v784, %v783
    %v847 = vpack.c.b16 %v786, %v785
    %v848 = vpack.c.b16 %v788, %v787
    %v849 = vpack.c.b16 %v790, %v789
    %v850 = vpack.c.b16 %v792, %v791
    %v851 = vpack.c.b16 %v794, %v793
    %v852 = vpack.c.b16 %v796, %v795
    %v853 = vpack.c.b16 %v798, %v797
    %v854 = vpack.c.b16 %v800, %v799
    %v855 = vpack.c.b16 %v802, %v801
    %v856 = vpack.c.b16 %v804, %v803
    %v857 = vpack.c.b16 %v806, %v805
    %v858 = vpack.c.b16 %v808, %v807
    %v859 = vpack.c.b16 %v810, %v809
    %v860 = vpack.c.b16 %v812, %v811
    %v861 = vpack.c.b16 %v814, %v813
    %v862 = vpack.c.b16 %v816, %v815
    %v863 = vpack.c.b16 %v818, %v817
    %v864 = vpack.c.b16 %v820, %v819
    %v865 = vpack.c.b16 %v822, %v821
    %v866 = vpack.c.b16 %v824, %v823
    %v867 = vpack.c.b16 %v826, %v825
    %v868 = vpack.c.b16 %v828, %v827
    %v869 = vpack.c.b16 %v830, %v829
    %v870 = vpack.c.b16 %v832, %v831
    %v871 = vpack.c.b16 %v834, %v833
    %v872 = vpack.c.b16 %v836, %v835
    %v873 = vpack.c.b16 %v838, %v837
    %v874 = vpack.c.b16 %v840, %v839
    %v875 = vpack.c.b16 %v842, %v841
    %v876 = vpack.c.b16 %v844, %v843
    %909 = vmatprep.subr.bf16.mxu0 0
    %910 = vmatpush1.bf16.msra.mxu0 %v852
    %911 = vmatprep.subr.bf16.mxu0 0
    %912 = vmatpush1.bf16.msra.mxu0 %v851
    %913 = vmatprep.subr.bf16.mxu0 0
    %914 = vmatpush1.bf16.msra.mxu0 %v850
    %915 = vmatprep.subr.bf16.mxu0 0
    %916 = vmatpush1.bf16.msra.mxu0 %v849
    %917 = vmatprep.subr.bf16.mxu0 0
    %918 = vmatpush1.bf16.msra.mxu0 %v848
    %919 = vmatprep.subr.bf16.mxu0 0
    %920 = vmatpush1.bf16.msra.mxu0 %v847
    %921 = vmatprep.subr.bf16.mxu0 0
    %922 = vmatpush1.bf16.msra.mxu0 %v846
    %923 = vmatprep.subr.bf16.mxu0 0
    %924 = vmatpush1.bf16.msra.mxu0 %v845
    %925 = vmatprep.subr.bf16.mxu0 0
    %926 = vmatpush2.bf16.msra.mxu0 %v860
    %927 = vmatprep.subr.bf16.mxu0 0
    %928 = vmatpush2.bf16.msra.mxu0 %v859
    %929 = vmatprep.subr.bf16.mxu0 0
    %930 = vmatpush2.bf16.msra.mxu0 %v858
    %931 = vmatprep.subr.bf16.mxu0 0
    %932 = vmatpush2.bf16.msra.mxu0 %v857
    %933 = vmatprep.subr.bf16.mxu0 0
    %934 = vmatpush2.bf16.msra.mxu0 %v856
    %935 = vmatprep.subr.bf16.mxu0 0
    %936 = vmatpush2.bf16.msra.mxu0 %v855
    %937 = vmatprep.subr.bf16.mxu0 0
    %938 = vmatpush2.bf16.msra.mxu0 %v854
    %939 = vmatprep.subr.bf16.mxu0 0
    %940 = vmatpush2.bf16.msra.mxu0 %v853
    %941 = vmatprep.mubr.bf16.mxu0 %v654
    %942 = vmatmul.mubr.bf16.gmra.mxu0 %v653
    %v943 = vpop.f32.mrf.mxu0
    %v944 = vadd.f32 0.0, %v943
    %v945 = vpop.f32.mrf.mxu0
    %v946 = vpop.f32.mrf.mxu0
    %v947 = vadd.f32 0.0, %v946
    %v948 = vpop.f32.mrf.mxu0
    %949 = vmatprep.mubr.bf16.mxu0 %v658
    %950 = vmatmul.mubr.bf16.gmra.mxu0 %v657
    %v951 = vpop.f32.mrf.mxu0
    %v952 = vadd.f32 0.0, %v951
    %v953 = vpop.f32.mrf.mxu0
    %v954 = vpop.f32.mrf.mxu0
    %v955 = vadd.f32 0.0, %v954
    %v956 = vpop.f32.mrf.mxu0
    %957 = vmatprep.mubr.bf16.mxu0 %v662
    %958 = vmatmul.mubr.bf16.gmra.mxu0 %v661
    %v959 = vpop.f32.mrf.mxu0
    %v960 = vadd.f32 0.0, %v959
    %v961 = vpop.f32.mrf.mxu0
    %v962 = vpop.f32.mrf.mxu0
    %v963 = vadd.f32 0.0, %v962
    %v964 = vpop.f32.mrf.mxu0
    %965 = vmatprep.mubr.bf16.mxu0 %v666
    %966 = vmatmul.mubr.bf16.gmra.mxu0 %v665
    %v967 = vpop.f32.mrf.mxu0
    %v968 = vadd.f32 0.0, %v967
    %v969 = vpop.f32.mrf.mxu0
    %v970 = vpop.f32.mrf.mxu0
    %v971 = vadd.f32 0.0, %v970
    %v972 = vpop.f32.mrf.mxu0
    %973 = vmatprep.mubr.bf16.mxu0 %v670
    %974 = vmatmul.mubr.bf16.gmra.mxu0 %v669
    %v975 = vpop.f32.mrf.mxu0
    %v976 = vadd.f32 0.0, %v975
    %v977 = vpop.f32.mrf.mxu0
    %v978 = vpop.f32.mrf.mxu0
    %v979 = vadd.f32 0.0, %v978
    %v980 = vpop.f32.mrf.mxu0
    %981 = vmatprep.mubr.bf16.mxu0 %v674
    %982 = vmatmul.mubr.bf16.gmra.mxu0 %v673
    %v983 = vpop.f32.mrf.mxu0
    %v984 = vadd.f32 0.0, %v983
    %v985 = vpop.f32.mrf.mxu0
    %v986 = vpop.f32.mrf.mxu0
    %v987 = vadd.f32 0.0, %v986
    %v988 = vpop.f32.mrf.mxu0
    %989 = vmatprep.mubr.bf16.mxu0 %v678
    %990 = vmatmul.mubr.bf16.gmra.mxu0 %v677
    %v991 = vpop.f32.mrf.mxu0
    %v992 = vadd.f32 0.0, %v991
    %v993 = vpop.f32.mrf.mxu0
    %v994 = vpop.f32.mrf.mxu0
    %v995 = vadd.f32 0.0, %v994
    %v996 = vpop.f32.mrf.mxu0
    %997 = vmatprep.mubr.bf16.mxu0 %v682
    %998 = vmatmul.mubr.bf16.gmra.mxu0 %v681
    %v999 = vpop.f32.mrf.mxu0
    %v1000 = vadd.f32 0.0, %v999
    %v1001 = vpop.f32.mrf.mxu0
    %v1002 = vpop.f32.mrf.mxu0
    %v1003 = vadd.f32 0.0, %v1002
    %v1004 = vpop.f32.mrf.mxu0
    %1005 = vdwg.mxu0
    %1006 = vmatprep.subr.bf16.mxu0 0
    %1007 = vmatpush1.bf16.msra.mxu0 %v868
    %1008 = vmatprep.subr.bf16.mxu0 0
    %1009 = vmatpush1.bf16.msra.mxu0 %v867
    %1010 = vmatprep.subr.bf16.mxu0 0
    %1011 = vmatpush1.bf16.msra.mxu0 %v866
    %1012 = vmatprep.subr.bf16.mxu0 0
    %1013 = vmatpush1.bf16.msra.mxu0 %v865
    %1014 = vmatprep.subr.bf16.mxu0 0
    %1015 = vmatpush1.bf16.msra.mxu0 %v864
    %1016 = vmatprep.subr.bf16.mxu0 0
    %1017 = vmatpush1.bf16.msra.mxu0 %v863
    %1018 = vmatprep.subr.bf16.mxu0 0
    %1019 = vmatpush1.bf16.msra.mxu0 %v862
    %1020 = vmatprep.subr.bf16.mxu0 0
    %1021 = vmatpush1.bf16.msra.mxu0 %v861
    %1022 = vmatprep.subr.bf16.mxu0 0
    %1023 = vmatpush2.bf16.msra.mxu0 %v876
    %1024 = vmatprep.subr.bf16.mxu0 0
    %1025 = vmatpush2.bf16.msra.mxu0 %v875
    %1026 = vmatprep.subr.bf16.mxu0 0
    %1027 = vmatpush2.bf16.msra.mxu0 %v874
    %1028 = vmatprep.subr.bf16.mxu0 0
    %1029 = vmatpush2.bf16.msra.mxu0 %v873
    %1030 = vmatprep.subr.bf16.mxu0 0
    %1031 = vmatpush2.bf16.msra.mxu0 %v872
    %1032 = vmatprep.subr.bf16.mxu0 0
    %1033 = vmatpush2.bf16.msra.mxu0 %v871
    %1034 = vmatprep.subr.bf16.mxu0 0
    %1035 = vmatpush2.bf16.msra.mxu0 %v870
    %1036 = vmatprep.subr.bf16.mxu0 0
    %1037 = vmatpush2.bf16.msra.mxu0 %v869
    %1038 = vmatprep.mubr.bf16.mxu0 %v656
    %1039 = vmatmul.mubr.bf16.gmra.mxu0 %v655
    %v1040 = vpop.f32.mrf.mxu0
    %v1041 = vadd.f32 %v944, %v1040
    %v1042 = vpop.f32.mrf.mxu0
    %v1043 = vpop.f32.mrf.mxu0
    %v1044 = vadd.f32 %v947, %v1043
    %v1045 = vpop.f32.mrf.mxu0
    %1046 = vmatprep.mubr.bf16.mxu0 %v660
    %1047 = vmatmul.mubr.bf16.gmra.mxu0 %v659
    %v1048 = vpop.f32.mrf.mxu0
    %v1049 = vadd.f32 %v952, %v1048
    %v1050 = vpop.f32.mrf.mxu0
    %v1051 = vpop.f32.mrf.mxu0
    %v1052 = vadd.f32 %v955, %v1051
    %v1053 = vpop.f32.mrf.mxu0
    %1054 = vmatprep.mubr.bf16.mxu0 %v664
    %1055 = vmatmul.mubr.bf16.gmra.mxu0 %v663
    %v1056 = vpop.f32.mrf.mxu0
    %v1057 = vadd.f32 %v960, %v1056
    %v1058 = vpop.f32.mrf.mxu0
    %v1059 = vpop.f32.mrf.mxu0
    %v1060 = vadd.f32 %v963, %v1059
    %v1061 = vpop.f32.mrf.mxu0
    %1062 = vmatprep.mubr.bf16.mxu0 %v668
    %1063 = vmatmul.mubr.bf16.gmra.mxu0 %v667
    %v1064 = vpop.f32.mrf.mxu0
    %v1065 = vadd.f32 %v968, %v1064
    %v1066 = vpop.f32.mrf.mxu0
    %v1067 = vpop.f32.mrf.mxu0
    %v1068 = vadd.f32 %v971, %v1067
    %v1069 = vpop.f32.mrf.mxu0
    %1070 = vmatprep.mubr.bf16.mxu0 %v672
    %1071 = vmatmul.mubr.bf16.gmra.mxu0 %v671
    %v1072 = vpop.f32.mrf.mxu0
    %v1073 = vadd.f32 %v976, %v1072
    %v1074 = vpop.f32.mrf.mxu0
    %v1075 = vpop.f32.mrf.mxu0
    %v1076 = vadd.f32 %v979, %v1075
    %v1077 = vpop.f32.mrf.mxu0
    %1078 = vmatprep.mubr.bf16.mxu0 %v676
    %1079 = vmatmul.mubr.bf16.gmra.mxu0 %v675
    %v1080 = vpop.f32.mrf.mxu0
    %v1081 = vadd.f32 %v984, %v1080
    %v1082 = vpop.f32.mrf.mxu0
    %v1083 = vpop.f32.mrf.mxu0
    %v1084 = vadd.f32 %v987, %v1083
    %v1085 = vpop.f32.mrf.mxu0
    %1086 = vmatprep.mubr.bf16.mxu0 %v680
    %1087 = vmatmul.mubr.bf16.gmra.mxu0 %v679
    %v1088 = vpop.f32.mrf.mxu0
    %v1089 = vadd.f32 %v992, %v1088
    %v1090 = vpop.f32.mrf.mxu0
    %v1091 = vpop.f32.mrf.mxu0
    %v1092 = vadd.f32 %v995, %v1091
    %v1093 = vpop.f32.mrf.mxu0
    %1094 = vmatprep.mubr.bf16.mxu0 %v684
    %1095 = vmatmul.mubr.bf16.gmra.mxu0 %v683
    %v1096 = vpop.f32.mrf.mxu0
    %v1097 = vadd.f32 %v1000, %v1096
    %v1098 = vpop.f32.mrf.mxu0
    %v1099 = vpop.f32.mrf.mxu0
    %v1100 = vadd.f32 %v1003, %v1099
    %v1101 = vpop.f32.mrf.mxu0
    %1102 = vdwg.mxu0
    %v1103 = vld [vmem:[%s3] sm:$0x1f]
    %v1104 = vsel %vm34, %v1041, 0.0
    %v1105 = vsel %vm34, %v1044, 0.0
    %v1106 = vadd.f32 %v1104, %v1105
    %v1107 = vsel %vm34, %v1049, 0.0
    %v1108 = vadd.f32 %v1106, %v1107
    %v1109 = vsel %vm34, %v1052, 0.0
    %v1110 = vadd.f32 %v1108, %v1109
    %v1111 = vsel %vm34, %v1057, 0.0
    %v1112 = vadd.f32 %v1110, %v1111
    %v1113 = vsel %vm34, %v1060, 0.0
    %v1114 = vadd.f32 %v1112, %v1113
    %v1115 = vsel %vm34, %v1065, 0.0
    %v1116 = vadd.f32 %v1114, %v1115
    %v1117 = vsel %vm34, %v1068, 0.0
    %v1118 = vadd.f32 %v1116, %v1117
    %v1119 = vsel %vm34, %v1073, 0.0
    %v1120 = vadd.f32 %v1118, %v1119
    %v1121 = vsel %vm34, %v1076, 0.0
    %v1122 = vadd.f32 %v1120, %v1121
    %v1123 = vsel %vm34, %v1081, 0.0
    %v1124 = vadd.f32 %v1122, %v1123
    %v1125 = vsel %vm34, %v1084, 0.0
    %v1126 = vadd.f32 %v1124, %v1125
    %v1127 = vsel %vm34, %v1089, 0.0
    %v1128 = vadd.f32 %v1126, %v1127
    %v1129 = vsel %vm34, %v1092, 0.0
    %v1130 = vadd.f32 %v1128, %v1129
    %v1131 = vsel %vm34, %v1097, 0.0
    %v1132 = vadd.f32 %v1130, %v1131
    %v1133 = vsel %vm34, %v1100, 0.0
    %v1134 = vadd.f32 %v1132, %v1133
    %v1135 = vrot.slane %v1134, 4
    %v1136 = vadd.f32 %v1134, %v1135
    %v1137 = vrot.slane %v1136, 2
    %v1138 = vadd.f32 %v1136, %v1137
    %v1139 = vrot.slane %v1138, 1
    %v1140 = vadd.f32 %v1138, %v1139
    %v1141 = vrcp.pop 128.0
    %v1142 = vmul.f32 %v1140, %v1141
    %v1143 = vsub.f32 %v1041, %v1142
    %v1144 = vsub.f32 %v1044, %v1142
    %v1145 = vsub.f32 %v1049, %v1142
    %v1146 = vsub.f32 %v1052, %v1142
    %v1147 = vsub.f32 %v1057, %v1142
    %v1148 = vsub.f32 %v1060, %v1142
    %v1149 = vsub.f32 %v1065, %v1142
    %v1150 = vsub.f32 %v1068, %v1142
    %v1151 = vsub.f32 %v1073, %v1142
    %v1152 = vsub.f32 %v1076, %v1142
    %v1153 = vsub.f32 %v1081, %v1142
    %v1154 = vsub.f32 %v1084, %v1142
    %v1155 = vsub.f32 %v1089, %v1142
    %v1156 = vsub.f32 %v1092, %v1142
    %v1157 = vsub.f32 %v1097, %v1142
    %v1158 = vsub.f32 %v1100, %v1142
    %v1159 = vmul.f32 %v1143, %v1143
    %v1160 = vmul.f32 %v1144, %v1144
    %v1161 = vmul.f32 %v1145, %v1145
    %v1162 = vmul.f32 %v1146, %v1146
    %v1163 = vmul.f32 %v1147, %v1147
    %v1164 = vmul.f32 %v1148, %v1148
    %v1165 = vmul.f32 %v1149, %v1149
    %v1166 = vmul.f32 %v1150, %v1150
    %v1167 = vmul.f32 %v1151, %v1151
    %v1168 = vmul.f32 %v1152, %v1152
    %v1169 = vmul.f32 %v1153, %v1153
    %v1170 = vmul.f32 %v1154, %v1154
    %v1171 = vmul.f32 %v1155, %v1155
    %v1172 = vmul.f32 %v1156, %v1156
    %v1173 = vmul.f32 %v1157, %v1157
    %v1174 = vmul.f32 %v1158, %v1158
    %v1175 = vsel %vm34, %v1159, 0.0
    %v1176 = vsel %vm34, %v1160, 0.0
    %v1177 = vadd.f32 %v1175, %v1176
    %v1178 = vsel %vm34, %v1161, 0.0
    %v1179 = vadd.f32 %v1177, %v1178
    %v1180 = vsel %vm34, %v1162, 0.0
    %v1181 = vadd.f32 %v1179, %v1180
    %v1182 = vsel %vm34, %v1163, 0.0
    %v1183 = vadd.f32 %v1181, %v1182
    %v1184 = vsel %vm34, %v1164, 0.0
    %v1185 = vadd.f32 %v1183, %v1184
    %v1186 = vsel %vm34, %v1165, 0.0
    %v1187 = vadd.f32 %v1185, %v1186
    %v1188 = vsel %vm34, %v1166, 0.0
    %v1189 = vadd.f32 %v1187, %v1188
    %v1190 = vsel %vm34, %v1167, 0.0
    %v1191 = vadd.f32 %v1189, %v1190
    %v1192 = vsel %vm34, %v1168, 0.0
    %v1193 = vadd.f32 %v1191, %v1192
    %v1194 = vsel %vm34, %v1169, 0.0
    %v1195 = vadd.f32 %v1193, %v1194
    %v1196 = vsel %vm34, %v1170, 0.0
    %v1197 = vadd.f32 %v1195, %v1196
    %v1198 = vsel %vm34, %v1171, 0.0
    %v1199 = vadd.f32 %v1197, %v1198
    %v1200 = vsel %vm34, %v1172, 0.0
    %v1201 = vadd.f32 %v1199, %v1200
    %v1202 = vsel %vm34, %v1173, 0.0
    %v1203 = vadd.f32 %v1201, %v1202
    %v1204 = vsel %vm34, %v1174, 0.0
    %v1205 = vadd.f32 %v1203, %v1204
    %v1206 = vrot.slane %v1205, 4
    %v1207 = vadd.f32 %v1205, %v1206
    %v1208 = vrot.slane %v1207, 2
    %v1209 = vadd.f32 %v1207, %v1208
    %v1210 = vrot.slane %v1209, 1
    %v1211 = vadd.f32 %v1209, %v1210
    %v1212 = vmul.f32 %v1211, %v1141
    %v1213 = vadd.f32 %v1212, 1e-05
    %v1214 = vrsqrt.pop %v1213
    %v1215 = vmul.f32 %v1143, %v1214
    %v1216 = vmul.f32 %v1144, %v1214
    %v1217 = vmul.f32 %v1145, %v1214
    %v1218 = vmul.f32 %v1146, %v1214
    %v1219 = vmul.f32 %v1147, %v1214
    %v1220 = vmul.f32 %v1148, %v1214
    %v1221 = vmul.f32 %v1149, %v1214
    %v1222 = vmul.f32 %v1150, %v1214
    %v1223 = vmul.f32 %v1151, %v1214
    %v1224 = vmul.f32 %v1152, %v1214
    %v1225 = vmul.f32 %v1153, %v1214
    %v1226 = vmul.f32 %v1154, %v1214
    %v1227 = vmul.f32 %v1155, %v1214
    %v1228 = vmul.f32 %v1156, %v1214
    %v1229 = vmul.f32 %v1157, %v1214
    %v1230 = vmul.f32 %v1158, %v1214
    %v1231 = vlaneseq
    %v1232 = vshrl.u32 %v1231, 7
    %v1233 = vsub.s32 0, %v1232
    %v1234 = vrot.slane %v1103, %v1233
    %v1235 = vmul.f32 %v1215, %v1234
    %v1236 = vmul.f32 %v1216, %v1234
    %v1237 = vmul.f32 %v1217, %v1234
    %v1238 = vmul.f32 %v1218, %v1234
    %v1239 = vmul.f32 %v1219, %v1234
    %v1240 = vmul.f32 %v1220, %v1234
    %v1241 = vmul.f32 %v1221, %v1234
    %v1242 = vmul.f32 %v1222, %v1234
    %v1243 = vmul.f32 %v1223, %v1234
    %v1244 = vmul.f32 %v1224, %v1234
    %v1245 = vmul.f32 %v1225, %v1234
    %v1246 = vmul.f32 %v1226, %v1234
    %v1247 = vmul.f32 %v1227, %v1234
    %v1248 = vmul.f32 %v1228, %v1234
    %v1249 = vmul.f32 %v1229, %v1234
    %v1250 = vmul.f32 %v1230, %v1234
    %v1251 = vlaneseq
    %v1252 = vshrl.u32 %v1251, 7
    %v1253 = vsub.s32 1, %v1252
    %v1254 = vrot.slane %v1103, %v1253
    %v1255 = vadd.f32 %v1235, %v1254
    %v1256 = vadd.f32 %v1236, %v1254
    %v1257 = vadd.f32 %v1237, %v1254
    %v1258 = vadd.f32 %v1238, %v1254
    %v1259 = vadd.f32 %v1239, %v1254
    %v1260 = vadd.f32 %v1240, %v1254
    %v1261 = vadd.f32 %v1241, %v1254
    %v1262 = vadd.f32 %v1242, %v1254
    %v1263 = vadd.f32 %v1243, %v1254
    %v1264 = vadd.f32 %v1244, %v1254
    %v1265 = vadd.f32 %v1245, %v1254
    %v1266 = vadd.f32 %v1246, %v1254
    %v1267 = vadd.f32 %v1247, %v1254
    %v1268 = vadd.f32 %v1248, %v1254
    %v1269 = vadd.f32 %v1249, %v1254
    %v1270 = vadd.f32 %v1250, %v1254
    %v1271 = vmax.f32 %v1255, 0.0
    %v1272 = vmax.f32 %v1256, 0.0
    %v1273 = vmax.f32 %v1257, 0.0
    %v1274 = vmax.f32 %v1258, 0.0
    %v1275 = vmax.f32 %v1259, 0.0
    %v1276 = vmax.f32 %v1260, 0.0
    %v1277 = vmax.f32 %v1261, 0.0
    %v1278 = vmax.f32 %v1262, 0.0
    %v1279 = vmax.f32 %v1263, 0.0
    %v1280 = vmax.f32 %v1264, 0.0
    %v1281 = vmax.f32 %v1265, 0.0
    %v1282 = vmax.f32 %v1266, 0.0
    %v1283 = vmax.f32 %v1267, 0.0
    %v1284 = vmax.f32 %v1268, 0.0
    %v1285 = vmax.f32 %v1269, 0.0
    %v1286 = vmax.f32 %v1270, 0.0
    %v1287 = vlaneseq
    %v1288 = vshrl.u32 %v1287, 7
    %v1289 = vsub.s32 4, %v1288
    %v1290 = vrot.slane %v1103, %v1289
    %1292 = vrot.lane.b32.xlu0 %v1290, 64
    %v1293 = vpop.permute.xlu0 %1292
    %v1295 = vadd.f32 %v1041, %v1293
    %v1296 = vadd.f32 %v1044, %v1293
    %v1297 = vadd.f32 %v1049, %v1293
    %v1298 = vadd.f32 %v1052, %v1293
    %v1299 = vadd.f32 %v1057, %v1293
    %v1300 = vadd.f32 %v1060, %v1293
    %v1301 = vadd.f32 %v1065, %v1293
    %v1302 = vadd.f32 %v1068, %v1293
    %v1303 = vadd.f32 %v1073, %v1293
    %v1304 = vadd.f32 %v1076, %v1293
    %v1305 = vadd.f32 %v1081, %v1293
    %v1306 = vadd.f32 %v1084, %v1293
    %v1307 = vadd.f32 %v1089, %v1293
    %v1308 = vadd.f32 %v1092, %v1293
    %v1309 = vadd.f32 %v1097, %v1293
    %v1310 = vadd.f32 %v1100, %v1293
    %v1311 = vld [vmem:[%s2] sm:$0xf]
    %v1312 = vld [vmem:[%s2 + $0x4] sm:$0xf]
    %v1313 = vld [vmem:[%s2 + $0x8] sm:$0xf]
    %v1314 = vld [vmem:[%s2 + $0xc] sm:$0xf]
    %v1315 = vld [vmem:[%s2 + $0x10] sm:$0xf]
    %v1316 = vld [vmem:[%s2 + $0x14] sm:$0xf]
    %v1317 = vld [vmem:[%s2 + $0x18] sm:$0xf]
    %v1318 = vld [vmem:[%s2 + $0x1c] sm:$0xf]
    %v1319 = vld [vmem:[%s2 + $0x20] sm:$0xf]
    %v1320 = vld [vmem:[%s2 + $0x24] sm:$0xf]
    %v1321 = vld [vmem:[%s2 + $0x28] sm:$0xf]
    %v1322 = vld [vmem:[%s2 + $0x2c] sm:$0xf]
    %v1323 = vld [vmem:[%s2 + $0x30] sm:$0xf]
    %v1324 = vld [vmem:[%s2 + $0x34] sm:$0xf]
    %v1325 = vld [vmem:[%s2 + $0x38] sm:$0xf]
    %v1326 = vld [vmem:[%s2 + $0x3c] sm:$0xf]
    %v1327 = vld [vmem:[%s2 + $0x40] sm:$0xf]
    %v1328 = vld [vmem:[%s2 + $0x44] sm:$0xf]
    %v1329 = vld [vmem:[%s2 + $0x48] sm:$0xf]
    %v1330 = vld [vmem:[%s2 + $0x4c] sm:$0xf]
    %v1331 = vld [vmem:[%s2 + $0x50] sm:$0xf]
    %v1332 = vld [vmem:[%s2 + $0x54] sm:$0xf]
    %v1333 = vld [vmem:[%s2 + $0x58] sm:$0xf]
    %v1334 = vld [vmem:[%s2 + $0x5c] sm:$0xf]
    %v1335 = vld [vmem:[%s2 + $0x60] sm:$0xf]
    %v1336 = vld [vmem:[%s2 + $0x64] sm:$0xf]
    %v1337 = vld [vmem:[%s2 + $0x68] sm:$0xf]
    %v1338 = vld [vmem:[%s2 + $0x6c] sm:$0xf]
    %v1339 = vld [vmem:[%s2 + $0x70] sm:$0xf]
    %v1340 = vld [vmem:[%s2 + $0x74] sm:$0xf]
    %v1341 = vld [vmem:[%s2 + $0x78] sm:$0xf]
    %v1342 = vld [vmem:[%s2 + $0x7c] sm:$0xf]
    %v1343 = vld [vmem:[%s2 + $0x80] sm:$0xf]
    %v1344 = vld [vmem:[%s2 + $0x84] sm:$0xf]
    %v1345 = vld [vmem:[%s2 + $0x88] sm:$0xf]
    %v1346 = vld [vmem:[%s2 + $0x8c] sm:$0xf]
    %v1347 = vld [vmem:[%s2 + $0x90] sm:$0xf]
    %v1348 = vld [vmem:[%s2 + $0x94] sm:$0xf]
    %v1349 = vld [vmem:[%s2 + $0x98] sm:$0xf]
    %v1350 = vld [vmem:[%s2 + $0x9c] sm:$0xf]
    %v1351 = vld [vmem:[%s2 + $0xa0] sm:$0xf]
    %v1352 = vld [vmem:[%s2 + $0xa4] sm:$0xf]
    %v1353 = vld [vmem:[%s2 + $0xa8] sm:$0xf]
    %v1354 = vld [vmem:[%s2 + $0xac] sm:$0xf]
    %v1355 = vld [vmem:[%s2 + $0xb0] sm:$0xf]
    %v1356 = vld [vmem:[%s2 + $0xb4] sm:$0xf]
    %v1357 = vld [vmem:[%s2 + $0xb8] sm:$0xf]
    %v1358 = vld [vmem:[%s2 + $0xbc] sm:$0xf]
    %v1359 = vld [vmem:[%s2 + $0xc0] sm:$0xf]
    %v1360 = vld [vmem:[%s2 + $0xc4] sm:$0xf]
    %v1361 = vld [vmem:[%s2 + $0xc8] sm:$0xf]
    %v1362 = vld [vmem:[%s2 + $0xcc] sm:$0xf]
    %v1363 = vld [vmem:[%s2 + $0xd0] sm:$0xf]
    %v1364 = vld [vmem:[%s2 + $0xd4] sm:$0xf]
    %v1365 = vld [vmem:[%s2 + $0xd8] sm:$0xf]
    %v1366 = vld [vmem:[%s2 + $0xdc] sm:$0xf]
    %v1367 = vld [vmem:[%s2 + $0xe0] sm:$0xf]
    %v1368 = vld [vmem:[%s2 + $0xe4] sm:$0xf]
    %v1369 = vld [vmem:[%s2 + $0xe8] sm:$0xf]
    %v1370 = vld [vmem:[%s2 + $0xec] sm:$0xf]
    %v1371 = vld [vmem:[%s2 + $0xf0] sm:$0xf]
    %v1372 = vld [vmem:[%s2 + $0xf4] sm:$0xf]
    %v1373 = vld [vmem:[%s2 + $0xf8] sm:$0xf]
    %v1374 = vld [vmem:[%s2 + $0xfc] sm:$0xf]
    %v1375 = vld [vmem:[%s2 + $0x100] sm:$0xf]
    %v1376 = vld [vmem:[%s2 + $0x104] sm:$0xf]
    %v1377 = vld [vmem:[%s2 + $0x108] sm:$0xf]
    %v1378 = vld [vmem:[%s2 + $0x10c] sm:$0xf]
    %v1379 = vld [vmem:[%s2 + $0x110] sm:$0xf]
    %v1380 = vld [vmem:[%s2 + $0x114] sm:$0xf]
    %v1381 = vld [vmem:[%s2 + $0x118] sm:$0xf]
    %v1382 = vld [vmem:[%s2 + $0x11c] sm:$0xf]
    %s1383 = scalar_lea.vmem [#allocation2], 16
    %1384 = vst.msk [vmem:[%s1383 + $0x1] sm:$0xff] %vm34, %v1271
    %1385 = vst.msk [vmem:[%s1383 + $0x11] sm:$0xff] %vm34, %v1272
    %1386 = vst.msk [vmem:[%s1383 + $0x21] sm:$0xff] %vm34, %v1273
    %1387 = vst.msk [vmem:[%s1383 + $0x31] sm:$0xff] %vm34, %v1274
    %1388 = vst.msk [vmem:[%s1383 + $0x41] sm:$0xff] %vm34, %v1275
    %1389 = vst.msk [vmem:[%s1383 + $0x51] sm:$0xff] %vm34, %v1276
    %1390 = vst.msk [vmem:[%s1383 + $0x61] sm:$0xff] %vm34, %v1277
    %1391 = vst.msk [vmem:[%s1383 + $0x71] sm:$0xff] %vm34, %v1278
    %1392 = vst.msk [vmem:[%s1383 + $0xa1] sm:$0xff] %vm34, %v1279
    %1393 = vst.msk [vmem:[%s1383 + $0xb1] sm:$0xff] %vm34, %v1280
    %1394 = vst.msk [vmem:[%s1383 + $0xc1] sm:$0xff] %vm34, %v1281
    %1395 = vst.msk [vmem:[%s1383 + $0xd1] sm:$0xff] %vm34, %v1282
    %1396 = vst.msk [vmem:[%s1383 + $0xe1] sm:$0xff] %vm34, %v1283
    %1397 = vst.msk [vmem:[%s1383 + $0xf1] sm:$0xff] %vm34, %v1284
    %1398 = vst.msk [vmem:[%s1383 + $0x101] sm:$0xff] %vm34, %v1285
    %1399 = vst.msk [vmem:[%s1383 + $0x111] sm:$0xff] %vm34, %v1286
    %v1400 = vld [vmem:[#allocation2] sm:$0xff]
    %v1401 = vld [vmem:[#allocation2 + $0x10] sm:$0xff]
    %v1402 = vld [vmem:[#allocation2 + $0x20] sm:$0xff]
    %v1403 = vld [vmem:[#allocation2 + $0x30] sm:$0xff]
    %v1404 = vld [vmem:[#allocation2 + $0x40] sm:$0xff]
    %v1405 = vld [vmem:[#allocation2 + $0x50] sm:$0xff]
    %v1406 = vld [vmem:[#allocation2 + $0x60] sm:$0xff]
    %v1407 = vld [vmem:[#allocation2 + $0x70] sm:$0xff]
    %v1408 = vld [vmem:[#allocation2 + $0xa0] sm:$0xff]
    %v1409 = vld [vmem:[#allocation2 + $0xb0] sm:$0xff]
    %v1410 = vld [vmem:[#allocation2 + $0xc0] sm:$0xff]
    %v1411 = vld [vmem:[#allocation2 + $0xd0] sm:$0xff]
    %v1412 = vld [vmem:[#allocation2 + $0xe0] sm:$0xff]
    %v1413 = vld [vmem:[#allocation2 + $0xf0] sm:$0xff]
    %v1414 = vld [vmem:[#allocation2 + $0x100] sm:$0xff]
    %v1415 = vld [vmem:[#allocation2 + $0x110] sm:$0xff]
    %v1416 = vpack.c.bf16 %v1401, %v1400
    %v1417 = vpack.c.bf16 %v1403, %v1402
    %v1418 = vpack.c.bf16 %v1405, %v1404
    %v1419 = vpack.c.bf16 %v1407, %v1406
    %v1420 = vpack.c.bf16 %v1409, %v1408
    %v1421 = vpack.c.bf16 %v1411, %v1410
    %v1422 = vpack.c.bf16 %v1413, %v1412
    %v1423 = vpack.c.bf16 %v1415, %v1414
    %v1432 = vunpack.c.l.b16 %v1416
    %v1433 = vunpack.c.h.b16 %v1416
    %v1434 = vunpack.c.l.b16 %v1417
    %v1435 = vunpack.c.h.b16 %v1417
    %v1436 = vunpack.c.l.b16 %v1418
    %v1437 = vunpack.c.h.b16 %v1418
    %v1438 = vunpack.c.l.b16 %v1419
    %v1439 = vunpack.c.h.b16 %v1419
    %v1440 = vunpack.c.l.b16 %v1420
    %v1441 = vunpack.c.h.b16 %v1420
    %v1442 = vunpack.c.l.b16 %v1421
    %v1443 = vunpack.c.h.b16 %v1421
    %v1444 = vunpack.c.l.b16 %v1422
    %v1445 = vunpack.c.h.b16 %v1422
    %v1446 = vunpack.c.l.b16 %v1423
    %v1447 = vunpack.c.h.b16 %v1423
    %v1448 = vpack.c.b16 %v1432, %v1432
    %v1449 = vpack.c.b16 %v1433, %v1433
    %v1450 = vpack.c.b16 %v1434, %v1434
    %v1451 = vpack.c.b16 %v1435, %v1435
    %v1452 = vpack.c.b16 %v1436, %v1436
    %v1453 = vpack.c.b16 %v1437, %v1437
    %v1454 = vpack.c.b16 %v1438, %v1438
    %v1455 = vpack.c.b16 %v1439, %v1439
    %v1456 = vpack.c.b16 %v1440, %v1440
    %v1457 = vpack.c.b16 %v1441, %v1441
    %v1458 = vpack.c.b16 %v1442, %v1442
    %v1459 = vpack.c.b16 %v1443, %v1443
    %v1460 = vpack.c.b16 %v1444, %v1444
    %v1461 = vpack.c.b16 %v1445, %v1445
    %v1462 = vpack.c.b16 %v1446, %v1446
    %v1463 = vpack.c.b16 %v1447, %v1447
    %vm1480 = vcmask 519168
    %1481 = vst.msk [vmem:[#allocation3] sm:$0xf] %vm1480, %v1448
    %1482 = vst.msk [vmem:[#allocation3 + $0x14] sm:$0xf] %vm1480, %v1449
    %1483 = vst.msk [vmem:[#allocation3 + $0x28] sm:$0xf] %vm1480, %v1450
    %1484 = vst.msk [vmem:[#allocation3 + $0x3c] sm:$0xf] %vm1480, %v1451
    %1485 = vst.msk [vmem:[#allocation3 + $0x50] sm:$0xf] %vm1480, %v1452
    %1486 = vst.msk [vmem:[#allocation3 + $0x64] sm:$0xf] %vm1480, %v1453
    %1487 = vst.msk [vmem:[#allocation3 + $0x78] sm:$0xf] %vm1480, %v1454
    %1488 = vst.msk [vmem:[#allocation3 + $0x8c] sm:$0xf] %vm1480, %v1455
    %1489 = vst.msk [vmem:[#allocation3 + $0xa0] sm:$0xf] %vm1480, %v1456
    %1490 = vst.msk [vmem:[#allocation3 + $0xb4] sm:$0xf] %vm1480, %v1457
    %1491 = vst.msk [vmem:[#allocation3 + $0xc8] sm:$0xf] %vm1480, %v1458
    %1492 = vst.msk [vmem:[#allocation3 + $0xdc] sm:$0xf] %vm1480, %v1459
    %1493 = vst.msk [vmem:[#allocation3 + $0xf0] sm:$0xf] %vm1480, %v1460
    %1494 = vst.msk [vmem:[#allocation3 + $0x104] sm:$0xf] %vm1480, %v1461
    %1495 = vst.msk [vmem:[#allocation3 + $0x118] sm:$0xf] %vm1480, %v1462
    %1496 = vst.msk [vmem:[#allocation3 + $0x12c] sm:$0xf] %vm1480, %v1463
    %v1497 = vld [vmem:[#allocation2 + $0x1] sm:$0xff]
    %v1498 = vld [vmem:[#allocation2 + $0x11] sm:$0xff]
    %v1499 = vld [vmem:[#allocation2 + $0x21] sm:$0xff]
    %v1500 = vld [vmem:[#allocation2 + $0x31] sm:$0xff]
    %v1501 = vld [vmem:[#allocation2 + $0x41] sm:$0xff]
    %v1502 = vld [vmem:[#allocation2 + $0x51] sm:$0xff]
    %v1503 = vld [vmem:[#allocation2 + $0x61] sm:$0xff]
    %v1504 = vld [vmem:[#allocation2 + $0x71] sm:$0xff]
    %v1505 = vld [vmem:[#allocation2 + $0xa1] sm:$0xff]
    %v1506 = vld [vmem:[#allocation2 + $0xb1] sm:$0xff]
    %v1507 = vld [vmem:[#allocation2 + $0xc1] sm:$0xff]
    %v1508 = vld [vmem:[#allocation2 + $0xd1] sm:$0xff]
    %v1509 = vld [vmem:[#allocation2 + $0xe1] sm:$0xff]
    %v1510 = vld [vmem:[#allocation2 + $0xf1] sm:$0xff]
    %v1511 = vld [vmem:[#allocation2 + $0x101] sm:$0xff]
    %v1512 = vld [vmem:[#allocation2 + $0x111] sm:$0xff]
    %v1513 = vpack.c.bf16 %v1498, %v1497
    %v1514 = vpack.c.bf16 %v1500, %v1499
    %v1515 = vpack.c.bf16 %v1502, %v1501
    %v1516 = vpack.c.bf16 %v1504, %v1503
    %v1517 = vpack.c.bf16 %v1506, %v1505
    %v1518 = vpack.c.bf16 %v1508, %v1507
    %v1519 = vpack.c.bf16 %v1510, %v1509
    %v1520 = vpack.c.bf16 %v1512, %v1511
    %v1529 = vunpack.c.l.b16 %v1513
    %v1530 = vunpack.c.h.b16 %v1513
    %v1531 = vunpack.c.l.b16 %v1514
    %v1532 = vunpack.c.h.b16 %v1514
    %v1533 = vunpack.c.l.b16 %v1515
    %v1534 = vunpack.c.h.b16 %v1515
    %v1535 = vunpack.c.l.b16 %v1516
    %v1536 = vunpack.c.h.b16 %v1516
    %v1537 = vunpack.c.l.b16 %v1517
    %v1538 = vunpack.c.h.b16 %v1517
    %v1539 = vunpack.c.l.b16 %v1518
    %v1540 = vunpack.c.h.b16 %v1518
    %v1541 = vunpack.c.l.b16 %v1519
    %v1542 = vunpack.c.h.b16 %v1519
    %v1543 = vunpack.c.l.b16 %v1520
    %v1544 = vunpack.c.h.b16 %v1520
    %v1545 = vpack.c.b16 %v1529, %v1529
    %v1546 = vpack.c.b16 %v1530, %v1530
    %v1547 = vpack.c.b16 %v1531, %v1531
    %v1548 = vpack.c.b16 %v1532, %v1532
    %v1549 = vpack.c.b16 %v1533, %v1533
    %v1550 = vpack.c.b16 %v1534, %v1534
    %v1551 = vpack.c.b16 %v1535, %v1535
    %v1552 = vpack.c.b16 %v1536, %v1536
    %v1553 = vpack.c.b16 %v1537, %v1537
    %v1554 = vpack.c.b16 %v1538, %v1538
    %v1555 = vpack.c.b16 %v1539, %v1539
    %v1556 = vpack.c.b16 %v1540, %v1540
    %v1557 = vpack.c.b16 %v1541, %v1541
    %v1558 = vpack.c.b16 %v1542, %v1542
    %v1559 = vpack.c.b16 %v1543, %v1543
    %v1560 = vpack.c.b16 %v1544, %v1544
    %1561 = vrot.lane.b32.xlu0 %v1545, 64
    %v1562 = vpop.permute.xlu0 %1561
    %1563 = vrot.lane.b32.xlu0 %v1546, 64
    %v1564 = vpop.permute.xlu0 %1563
    %1565 = vrot.lane.b32.xlu0 %v1547, 64
    %v1566 = vpop.permute.xlu0 %1565
    %1567 = vrot.lane.b32.xlu0 %v1548, 64
    %v1568 = vpop.permute.xlu0 %1567
    %1569 = vrot.lane.b32.xlu0 %v1549, 64
    %v1570 = vpop.permute.xlu0 %1569
    %1571 = vrot.lane.b32.xlu0 %v1550, 64
    %v1572 = vpop.permute.xlu0 %1571
    %1573 = vrot.lane.b32.xlu0 %v1551, 64
    %v1574 = vpop.permute.xlu0 %1573
    %1575 = vrot.lane.b32.xlu0 %v1552, 64
    %v1576 = vpop.permute.xlu0 %1575
    %1577 = vrot.lane.b32.xlu0 %v1553, 64
    %v1578 = vpop.permute.xlu0 %1577
    %1579 = vrot.lane.b32.xlu0 %v1554, 64
    %v1580 = vpop.permute.xlu0 %1579
    %1581 = vrot.lane.b32.xlu0 %v1555, 64
    %v1582 = vpop.permute.xlu0 %1581
    %1583 = vrot.lane.b32.xlu0 %v1556, 64
    %v1584 = vpop.permute.xlu0 %1583
    %1585 = vrot.lane.b32.xlu0 %v1557, 64
    %v1586 = vpop.permute.xlu0 %1585
    %1587 = vrot.lane.b32.xlu0 %v1558, 64
    %v1588 = vpop.permute.xlu0 %1587
    %1589 = vrot.lane.b32.xlu0 %v1559, 64
    %v1590 = vpop.permute.xlu0 %1589
    %1591 = vrot.lane.b32.xlu0 %v1560, 64
    %v1592 = vpop.permute.xlu0 %1591
    %vm1609 = vcmask 1043968
    %1610 = vst.msk [vmem:[#allocation3] sm:$0xf] %vm1609, %v1562
    %1611 = vst.msk [vmem:[#allocation3 + $0x14] sm:$0xf] %vm1609, %v1564
    %1612 = vst.msk [vmem:[#allocation3 + $0x28] sm:$0xf] %vm1609, %v1566
    %1613 = vst.msk [vmem:[#allocation3 + $0x3c] sm:$0xf] %vm1609, %v1568
    %1614 = vst.msk [vmem:[#allocation3 + $0x50] sm:$0xf] %vm1609, %v1570
    %1615 = vst.msk [vmem:[#allocation3 + $0x64] sm:$0xf] %vm1609, %v1572
    %1616 = vst.msk [vmem:[#allocation3 + $0x78] sm:$0xf] %vm1609, %v1574
    %1617 = vst.msk [vmem:[#allocation3 + $0x8c] sm:$0xf] %vm1609, %v1576
    %1618 = vst.msk [vmem:[#allocation3 + $0xa0] sm:$0xf] %vm1609, %v1578
    %1619 = vst.msk [vmem:[#allocation3 + $0xb4] sm:$0xf] %vm1609, %v1580
    %1620 = vst.msk [vmem:[#allocation3 + $0xc8] sm:$0xf] %vm1609, %v1582
    %1621 = vst.msk [vmem:[#allocation3 + $0xdc] sm:$0xf] %vm1609, %v1584
    %1622 = vst.msk [vmem:[#allocation3 + $0xf0] sm:$0xf] %vm1609, %v1586
    %1623 = vst.msk [vmem:[#allocation3 + $0x104] sm:$0xf] %vm1609, %v1588
    %1624 = vst.msk [vmem:[#allocation3 + $0x118] sm:$0xf] %vm1609, %v1590
    %1625 = vst.msk [vmem:[#allocation3 + $0x12c] sm:$0xf] %vm1609, %v1592
    %v1626 = vld [vmem:[#allocation2 + $0x2] sm:$0xff]
    %v1627 = vld [vmem:[#allocation2 + $0x12] sm:$0xff]
    %v1628 = vld [vmem:[#allocation2 + $0x22] sm:$0xff]
    %v1629 = vld [vmem:[#allocation2 + $0x32] sm:$0xff]
    %v1630 = vld [vmem:[#allocation2 + $0x42] sm:$0xff]
    %v1631 = vld [vmem:[#allocation2 + $0x52] sm:$0xff]
    %v1632 = vld [vmem:[#allocation2 + $0x62] sm:$0xff]
    %v1633 = vld [vmem:[#allocation2 + $0x72] sm:$0xff]
    %v1634 = vld [vmem:[#allocation2 + $0xa2] sm:$0xff]
    %v1635 = vld [vmem:[#allocation2 + $0xb2] sm:$0xff]
    %v1636 = vld [vmem:[#allocation2 + $0xc2] sm:$0xff]
    %v1637 = vld [vmem:[#allocation2 + $0xd2] sm:$0xff]
    %v1638 = vld [vmem:[#allocation2 + $0xe2] sm:$0xff]
    %v1639 = vld [vmem:[#allocation2 + $0xf2] sm:$0xff]
    %v1640 = vld [vmem:[#allocation2 + $0x102] sm:$0xff]
    %v1641 = vld [vmem:[#allocation2 + $0x112] sm:$0xff]
    %v1642 = vpack.c.bf16 %v1627, %v1626
    %v1643 = vpack.c.bf16 %v1629, %v1628
    %v1644 = vpack.c.bf16 %v1631, %v1630
    %v1645 = vpack.c.bf16 %v1633, %v1632
    %v1646 = vpack.c.bf16 %v1635, %v1634
    %v1647 = vpack.c.bf16 %v1637, %v1636
    %v1648 = vpack.c.bf16 %v1639, %v1638
    %v1649 = vpack.c.bf16 %v1641, %v1640
    %v1658 = vunpack.c.l.b16 %v1642
    %v1659 = vunpack.c.h.b16 %v1642
    %v1660 = vunpack.c.l.b16 %v1643
    %v1661 = vunpack.c.h.b16 %v1643
    %v1662 = vunpack.c.l.b16 %v1644
    %v1663 = vunpack.c.h.b16 %v1644
    %v1664 = vunpack.c.l.b16 %v1645
    %v1665 = vunpack.c.h.b16 %v1645
    %v1666 = vunpack.c.l.b16 %v1646
    %v1667 = vunpack.c.h.b16 %v1646
    %v1668 = vunpack.c.l.b16 %v1647
    %v1669 = vunpack.c.h.b16 %v1647
    %v1670 = vunpack.c.l.b16 %v1648
    %v1671 = vunpack.c.h.b16 %v1648
    %v1672 = vunpack.c.l.b16 %v1649
    %v1673 = vunpack.c.h.b16 %v1649
    %v1674 = vpack.c.b16 %v1658, %v1658
    %v1675 = vpack.c.b16 %v1659, %v1659
    %v1676 = vpack.c.b16 %v1660, %v1660
    %v1677 = vpack.c.b16 %v1661, %v1661
    %v1678 = vpack.c.b16 %v1662, %v1662
    %v1679 = vpack.c.b16 %v1663, %v1663
    %v1680 = vpack.c.b16 %v1664, %v1664
    %v1681 = vpack.c.b16 %v1665, %v1665
    %v1682 = vpack.c.b16 %v1666, %v1666
    %v1683 = vpack.c.b16 %v1667, %v1667
    %v1684 = vpack.c.b16 %v1668, %v1668
    %v1685 = vpack.c.b16 %v1669, %v1669
    %v1686 = vpack.c.b16 %v1670, %v1670
    %v1687 = vpack.c.b16 %v1671, %v1671
    %v1688 = vpack.c.b16 %v1672, %v1672
    %v1689 = vpack.c.b16 %v1673, %v1673
    %1706 = vst.msk [vmem:[#allocation3 + $0x4] sm:$0xf] %vm1480, %v1674
    %1707 = vst.msk [vmem:[#allocation3 + $0x18] sm:$0xf] %vm1480, %v1675
    %1708 = vst.msk [vmem:[#allocation3 + $0x2c] sm:$0xf] %vm1480, %v1676
    %1709 = vst.msk [vmem:[#allocation3 + $0x40] sm:$0xf] %vm1480, %v1677
    %1710 = vst.msk [vmem:[#allocation3 + $0x54] sm:$0xf] %vm1480, %v1678
    %1711 = vst.msk [vmem:[#allocation3 + $0x68] sm:$0xf] %vm1480, %v1679
    %1712 = vst.msk [vmem:[#allocation3 + $0x7c] sm:$0xf] %vm1480, %v1680
    %1713 = vst.msk [vmem:[#allocation3 + $0x90] sm:$0xf] %vm1480, %v1681
    %1714 = vst.msk [vmem:[#allocation3 + $0xa4] sm:$0xf] %vm1480, %v1682
    %1715 = vst.msk [vmem:[#allocation3 + $0xb8] sm:$0xf] %vm1480, %v1683
    %1716 = vst.msk [vmem:[#allocation3 + $0xcc] sm:$0xf] %vm1480, %v1684
    %1717 = vst.msk [vmem:[#allocation3 + $0xe0] sm:$0xf] %vm1480, %v1685
    %1718 = vst.msk [vmem:[#allocation3 + $0xf4] sm:$0xf] %vm1480, %v1686
    %1719 = vst.msk [vmem:[#allocation3 + $0x108] sm:$0xf] %vm1480, %v1687
    %1720 = vst.msk [vmem:[#allocation3 + $0x11c] sm:$0xf] %vm1480, %v1688
    %1721 = vst.msk [vmem:[#allocation3 + $0x130] sm:$0xf] %vm1480, %v1689
    %v1722 = vld [vmem:[%s1383] sm:$0xff]
    %v1723 = vld [vmem:[%s1383 + $0x10] sm:$0xff]
    %v1724 = vld [vmem:[%s1383 + $0x20] sm:$0xff]
    %v1725 = vld [vmem:[%s1383 + $0x30] sm:$0xff]
    %v1726 = vld [vmem:[%s1383 + $0x40] sm:$0xff]
    %v1727 = vld [vmem:[%s1383 + $0x50] sm:$0xff]
    %v1728 = vld [vmem:[%s1383 + $0x60] sm:$0xff]
    %v1729 = vld [vmem:[%s1383 + $0x70] sm:$0xff]
    %v1730 = vld [vmem:[%s1383 + $0xa0] sm:$0xff]
    %v1731 = vld [vmem:[%s1383 + $0xb0] sm:$0xff]
    %v1732 = vld [vmem:[%s1383 + $0xc0] sm:$0xff]
    %v1733 = vld [vmem:[%s1383 + $0xd0] sm:$0xff]
    %v1734 = vld [vmem:[%s1383 + $0xe0] sm:$0xff]
    %v1735 = vld [vmem:[%s1383 + $0xf0] sm:$0xff]
    %v1736 = vld [vmem:[%s1383 + $0x100] sm:$0xff]
    %v1737 = vld [vmem:[%s1383 + $0x110] sm:$0xff]
    %v1738 = vpack.c.bf16 %v1723, %v1722
    %v1739 = vpack.c.bf16 %v1725, %v1724
    %v1740 = vpack.c.bf16 %v1727, %v1726
    %v1741 = vpack.c.bf16 %v1729, %v1728
    %v1742 = vpack.c.bf16 %v1731, %v1730
    %v1743 = vpack.c.bf16 %v1733, %v1732
    %v1744 = vpack.c.bf16 %v1735, %v1734
    %v1745 = vpack.c.bf16 %v1737, %v1736
    %v1754 = vunpack.c.l.b16 %v1738
    %v1755 = vunpack.c.h.b16 %v1738
    %v1756 = vunpack.c.l.b16 %v1739
    %v1757 = vunpack.c.h.b16 %v1739
    %v1758 = vunpack.c.l.b16 %v1740
    %v1759 = vunpack.c.h.b16 %v1740
    %v1760 = vunpack.c.l.b16 %v1741
    %v1761 = vunpack.c.h.b16 %v1741
    %v1762 = vunpack.c.l.b16 %v1742
    %v1763 = vunpack.c.h.b16 %v1742
    %v1764 = vunpack.c.l.b16 %v1743
    %v1765 = vunpack.c.h.b16 %v1743
    %v1766 = vunpack.c.l.b16 %v1744
    %v1767 = vunpack.c.h.b16 %v1744
    %v1768 = vunpack.c.l.b16 %v1745
    %v1769 = vunpack.c.h.b16 %v1745
    %v1770 = vpack.c.b16 %v1754, %v1754
    %v1771 = vpack.c.b16 %v1755, %v1755
    %v1772 = vpack.c.b16 %v1756, %v1756
    %v1773 = vpack.c.b16 %v1757, %v1757
    %v1774 = vpack.c.b16 %v1758, %v1758
    %v1775 = vpack.c.b16 %v1759, %v1759
    %v1776 = vpack.c.b16 %v1760, %v1760
    %v1777 = vpack.c.b16 %v1761, %v1761
    %v1778 = vpack.c.b16 %v1762, %v1762
    %v1779 = vpack.c.b16 %v1763, %v1763
    %v1780 = vpack.c.b16 %v1764, %v1764
    %v1781 = vpack.c.b16 %v1765, %v1765
    %v1782 = vpack.c.b16 %v1766, %v1766
    %v1783 = vpack.c.b16 %v1767, %v1767
    %v1784 = vpack.c.b16 %v1768, %v1768
    %v1785 = vpack.c.b16 %v1769, %v1769
    %1786 = vrot.lane.b32.xlu0 %v1770, 64
    %v1787 = vpop.permute.xlu0 %1786
    %1788 = vrot.lane.b32.xlu0 %v1771, 64
    %v1789 = vpop.permute.xlu0 %1788
    %1790 = vrot.lane.b32.xlu0 %v1772, 64
    %v1791 = vpop.permute.xlu0 %1790
    %1792 = vrot.lane.b32.xlu0 %v1773, 64
    %v1793 = vpop.permute.xlu0 %1792
    %1794 = vrot.lane.b32.xlu0 %v1774, 64
    %v1795 = vpop.permute.xlu0 %1794
    %1796 = vrot.lane.b32.xlu0 %v1775, 64
    %v1797 = vpop.permute.xlu0 %1796
    %1798 = vrot.lane.b32.xlu0 %v1776, 64
    %v1799 = vpop.permute.xlu0 %1798
    %1800 = vrot.lane.b32.xlu0 %v1777, 64
    %v1801 = vpop.permute.xlu0 %1800
    %1802 = vrot.lane.b32.xlu0 %v1778, 64
    %v1803 = vpop.permute.xlu0 %1802
    %1804 = vrot.lane.b32.xlu0 %v1779, 64
    %v1805 = vpop.permute.xlu0 %1804
    %1806 = vrot.lane.b32.xlu0 %v1780, 64
    %v1807 = vpop.permute.xlu0 %1806
    %1808 = vrot.lane.b32.xlu0 %v1781, 64
    %v1809 = vpop.permute.xlu0 %1808
    %1810 = vrot.lane.b32.xlu0 %v1782, 64
    %v1811 = vpop.permute.xlu0 %1810
    %1812 = vrot.lane.b32.xlu0 %v1783, 64
    %v1813 = vpop.permute.xlu0 %1812
    %1814 = vrot.lane.b32.xlu0 %v1784, 64
    %v1815 = vpop.permute.xlu0 %1814
    %1816 = vrot.lane.b32.xlu0 %v1785, 64
    %v1817 = vpop.permute.xlu0 %1816
    %1834 = vst.msk [vmem:[#allocation3 + $0x4] sm:$0xf] %vm1609, %v1787
    %1835 = vst.msk [vmem:[#allocation3 + $0x18] sm:$0xf] %vm1609, %v1789
    %1836 = vst.msk [vmem:[#allocation3 + $0x2c] sm:$0xf] %vm1609, %v1791
    %1837 = vst.msk [vmem:[#allocation3 + $0x40] sm:$0xf] %vm1609, %v1793
    %1838 = vst.msk [vmem:[#allocation3 + $0x54] sm:$0xf] %vm1609, %v1795
    %1839 = vst.msk [vmem:[#allocation3 + $0x68] sm:$0xf] %vm1609, %v1797
    %1840 = vst.msk [vmem:[#allocation3 + $0x7c] sm:$0xf] %vm1609, %v1799
    %1841 = vst.msk [vmem:[#allocation3 + $0x90] sm:$0xf] %vm1609, %v1801
    %1842 = vst.msk [vmem:[#allocation3 + $0xa4] sm:$0xf] %vm1609, %v1803
    %1843 = vst.msk [vmem:[#allocation3 + $0xb8] sm:$0xf] %vm1609, %v1805
    %1844 = vst.msk [vmem:[#allocation3 + $0xcc] sm:$0xf] %vm1609, %v1807
    %1845 = vst.msk [vmem:[#allocation3 + $0xe0] sm:$0xf] %vm1609, %v1809
    %1846 = vst.msk [vmem:[#allocation3 + $0xf4] sm:$0xf] %vm1609, %v1811
    %1847 = vst.msk [vmem:[#allocation3 + $0x108] sm:$0xf] %vm1609, %v1813
    %1848 = vst.msk [vmem:[#allocation3 + $0x11c] sm:$0xf] %vm1609, %v1815
    %1849 = vst.msk [vmem:[#allocation3 + $0x130] sm:$0xf] %vm1609, %v1817
    %v1850 = vld [vmem:[%s1383 + $0x1] sm:$0xff]
    %v1851 = vld [vmem:[%s1383 + $0x11] sm:$0xff]
    %v1852 = vld [vmem:[%s1383 + $0x21] sm:$0xff]
    %v1853 = vld [vmem:[%s1383 + $0x31] sm:$0xff]
    %v1854 = vld [vmem:[%s1383 + $0x41] sm:$0xff]
    %v1855 = vld [vmem:[%s1383 + $0x51] sm:$0xff]
    %v1856 = vld [vmem:[%s1383 + $0x61] sm:$0xff]
    %v1857 = vld [vmem:[%s1383 + $0x71] sm:$0xff]
    %v1858 = vld [vmem:[%s1383 + $0xa1] sm:$0xff]
    %v1859 = vld [vmem:[%s1383 + $0xb1] sm:$0xff]
    %v1860 = vld [vmem:[%s1383 + $0xc1] sm:$0xff]
    %v1861 = vld [vmem:[%s1383 + $0xd1] sm:$0xff]
    %v1862 = vld [vmem:[%s1383 + $0xe1] sm:$0xff]
    %v1863 = vld [vmem:[%s1383 + $0xf1] sm:$0xff]
    %v1864 = vld [vmem:[%s1383 + $0x101] sm:$0xff]
    %v1865 = vld [vmem:[%s1383 + $0x111] sm:$0xff]
    %v1866 = vpack.c.bf16 %v1851, %v1850
    %v1867 = vpack.c.bf16 %v1853, %v1852
    %v1868 = vpack.c.bf16 %v1855, %v1854
    %v1869 = vpack.c.bf16 %v1857, %v1856
    %v1870 = vpack.c.bf16 %v1859, %v1858
    %v1871 = vpack.c.bf16 %v1861, %v1860
    %v1872 = vpack.c.bf16 %v1863, %v1862
    %v1873 = vpack.c.bf16 %v1865, %v1864
    %v1882 = vunpack.c.l.b16 %v1866
    %v1883 = vunpack.c.h.b16 %v1866
    %v1884 = vunpack.c.l.b16 %v1867
    %v1885 = vunpack.c.h.b16 %v1867
    %v1886 = vunpack.c.l.b16 %v1868
    %v1887 = vunpack.c.h.b16 %v1868
    %v1888 = vunpack.c.l.b16 %v1869
    %v1889 = vunpack.c.h.b16 %v1869
    %v1890 = vunpack.c.l.b16 %v1870
    %v1891 = vunpack.c.h.b16 %v1870
    %v1892 = vunpack.c.l.b16 %v1871
    %v1893 = vunpack.c.h.b16 %v1871
    %v1894 = vunpack.c.l.b16 %v1872
    %v1895 = vunpack.c.h.b16 %v1872
    %v1896 = vunpack.c.l.b16 %v1873
    %v1897 = vunpack.c.h.b16 %v1873
    %v1898 = vpack.c.b16 %v1882, %v1882
    %v1899 = vpack.c.b16 %v1883, %v1883
    %v1900 = vpack.c.b16 %v1884, %v1884
    %v1901 = vpack.c.b16 %v1885, %v1885
    %v1902 = vpack.c.b16 %v1886, %v1886
    %v1903 = vpack.c.b16 %v1887, %v1887
    %v1904 = vpack.c.b16 %v1888, %v1888
    %v1905 = vpack.c.b16 %v1889, %v1889
    %v1906 = vpack.c.b16 %v1890, %v1890
    %v1907 = vpack.c.b16 %v1891, %v1891
    %v1908 = vpack.c.b16 %v1892, %v1892
    %v1909 = vpack.c.b16 %v1893, %v1893
    %v1910 = vpack.c.b16 %v1894, %v1894
    %v1911 = vpack.c.b16 %v1895, %v1895
    %v1912 = vpack.c.b16 %v1896, %v1896
    %v1913 = vpack.c.b16 %v1897, %v1897
    %1930 = vst.msk [vmem:[#allocation3 + $0x8] sm:$0xf] %vm1480, %v1898
    %1931 = vst.msk [vmem:[#allocation3 + $0x1c] sm:$0xf] %vm1480, %v1899
    %1932 = vst.msk [vmem:[#allocation3 + $0x30] sm:$0xf] %vm1480, %v1900
    %1933 = vst.msk [vmem:[#allocation3 + $0x44] sm:$0xf] %vm1480, %v1901
    %1934 = vst.msk [vmem:[#allocation3 + $0x58] sm:$0xf] %vm1480, %v1902
    %1935 = vst.msk [vmem:[#allocation3 + $0x6c] sm:$0xf] %vm1480, %v1903
    %1936 = vst.msk [vmem:[#allocation3 + $0x80] sm:$0xf] %vm1480, %v1904
    %1937 = vst.msk [vmem:[#allocation3 + $0x94] sm:$0xf] %vm1480, %v1905
    %1938 = vst.msk [vmem:[#allocation3 + $0xa8] sm:$0xf] %vm1480, %v1906
    %1939 = vst.msk [vmem:[#allocation3 + $0xbc] sm:$0xf] %vm1480, %v1907
    %1940 = vst.msk [vmem:[#allocation3 + $0xd0] sm:$0xf] %vm1480, %v1908
    %1941 = vst.msk [vmem:[#allocation3 + $0xe4] sm:$0xf] %vm1480, %v1909
    %1942 = vst.msk [vmem:[#allocation3 + $0xf8] sm:$0xf] %vm1480, %v1910
    %1943 = vst.msk [vmem:[#allocation3 + $0x10c] sm:$0xf] %vm1480, %v1911
    %1944 = vst.msk [vmem:[#allocation3 + $0x120] sm:$0xf] %vm1480, %v1912
    %1945 = vst.msk [vmem:[#allocation3 + $0x134] sm:$0xf] %vm1480, %v1913
    %v1946 = vld [vmem:[%s1383 + $0x2] sm:$0xff]
    %v1947 = vld [vmem:[%s1383 + $0x12] sm:$0xff]
    %v1948 = vld [vmem:[%s1383 + $0x22] sm:$0xff]
    %v1949 = vld [vmem:[%s1383 + $0x32] sm:$0xff]
    %v1950 = vld [vmem:[%s1383 + $0x42] sm:$0xff]
    %v1951 = vld [vmem:[%s1383 + $0x52] sm:$0xff]
    %v1952 = vld [vmem:[%s1383 + $0x62] sm:$0xff]
    %v1953 = vld [vmem:[%s1383 + $0x72] sm:$0xff]
    %v1954 = vld [vmem:[%s1383 + $0xa2] sm:$0xff]
    %v1955 = vld [vmem:[%s1383 + $0xb2] sm:$0xff]
    %v1956 = vld [vmem:[%s1383 + $0xc2] sm:$0xff]
    %v1957 = vld [vmem:[%s1383 + $0xd2] sm:$0xff]
    %v1958 = vld [vmem:[%s1383 + $0xe2] sm:$0xff]
    %v1959 = vld [vmem:[%s1383 + $0xf2] sm:$0xff]
    %v1960 = vld [vmem:[%s1383 + $0x102] sm:$0xff]
    %v1961 = vld [vmem:[%s1383 + $0x112] sm:$0xff]
    %v1962 = vpack.c.bf16 %v1947, %v1946
    %v1963 = vpack.c.bf16 %v1949, %v1948
    %v1964 = vpack.c.bf16 %v1951, %v1950
    %v1965 = vpack.c.bf16 %v1953, %v1952
    %v1966 = vpack.c.bf16 %v1955, %v1954
    %v1967 = vpack.c.bf16 %v1957, %v1956
    %v1968 = vpack.c.bf16 %v1959, %v1958
    %v1969 = vpack.c.bf16 %v1961, %v1960
    %v1978 = vunpack.c.l.b16 %v1962
    %v1979 = vunpack.c.h.b16 %v1962
    %v1980 = vunpack.c.l.b16 %v1963
    %v1981 = vunpack.c.h.b16 %v1963
    %v1982 = vunpack.c.l.b16 %v1964
    %v1983 = vunpack.c.h.b16 %v1964
    %v1984 = vunpack.c.l.b16 %v1965
    %v1985 = vunpack.c.h.b16 %v1965
    %v1986 = vunpack.c.l.b16 %v1966
    %v1987 = vunpack.c.h.b16 %v1966
    %v1988 = vunpack.c.l.b16 %v1967
    %v1989 = vunpack.c.h.b16 %v1967
    %v1990 = vunpack.c.l.b16 %v1968
    %v1991 = vunpack.c.h.b16 %v1968
    %v1992 = vunpack.c.l.b16 %v1969
    %v1993 = vunpack.c.h.b16 %v1969
    %v1994 = vpack.c.b16 %v1978, %v1978
    %v1995 = vpack.c.b16 %v1979, %v1979
    %v1996 = vpack.c.b16 %v1980, %v1980
    %v1997 = vpack.c.b16 %v1981, %v1981
    %v1998 = vpack.c.b16 %v1982, %v1982
    %v1999 = vpack.c.b16 %v1983, %v1983
    %v2000 = vpack.c.b16 %v1984, %v1984
    %v2001 = vpack.c.b16 %v1985, %v1985
    %v2002 = vpack.c.b16 %v1986, %v1986
    %v2003 = vpack.c.b16 %v1987, %v1987
    %v2004 = vpack.c.b16 %v1988, %v1988
    %v2005 = vpack.c.b16 %v1989, %v1989
    %v2006 = vpack.c.b16 %v1990, %v1990
    %v2007 = vpack.c.b16 %v1991, %v1991
    %v2008 = vpack.c.b16 %v1992, %v1992
    %v2009 = vpack.c.b16 %v1993, %v1993
    %2010 = vrot.lane.b32.xlu0 %v1994, 64
    %v2011 = vpop.permute.xlu0 %2010
    %2012 = vrot.lane.b32.xlu0 %v1995, 64
    %v2013 = vpop.permute.xlu0 %2012
    %2014 = vrot.lane.b32.xlu0 %v1996, 64
    %v2015 = vpop.permute.xlu0 %2014
    %2016 = vrot.lane.b32.xlu0 %v1997, 64
    %v2017 = vpop.permute.xlu0 %2016
    %2018 = vrot.lane.b32.xlu0 %v1998, 64
    %v2019 = vpop.permute.xlu0 %2018
    %2020 = vrot.lane.b32.xlu0 %v1999, 64
    %v2021 = vpop.permute.xlu0 %2020
    %2022 = vrot.lane.b32.xlu0 %v2000, 64
    %v2023 = vpop.permute.xlu0 %2022
    %2024 = vrot.lane.b32.xlu0 %v2001, 64
    %v2025 = vpop.permute.xlu0 %2024
    %2026 = vrot.lane.b32.xlu0 %v2002, 64
    %v2027 = vpop.permute.xlu0 %2026
    %2028 = vrot.lane.b32.xlu0 %v2003, 64
    %v2029 = vpop.permute.xlu0 %2028
    %2030 = vrot.lane.b32.xlu0 %v2004, 64
    %v2031 = vpop.permute.xlu0 %2030
    %2032 = vrot.lane.b32.xlu0 %v2005, 64
    %v2033 = vpop.permute.xlu0 %2032
    %2034 = vrot.lane.b32.xlu0 %v2006, 64
    %v2035 = vpop.permute.xlu0 %2034
    %2036 = vrot.lane.b32.xlu0 %v2007, 64
    %v2037 = vpop.permute.xlu0 %2036
    %2038 = vrot.lane.b32.xlu0 %v2008, 64
    %v2039 = vpop.permute.xlu0 %2038
    %2040 = vrot.lane.b32.xlu0 %v2009, 64
    %v2041 = vpop.permute.xlu0 %2040
    %2058 = vst.msk [vmem:[#allocation3 + $0x8] sm:$0xf] %vm1609, %v2011
    %2059 = vst.msk [vmem:[#allocation3 + $0x1c] sm:$0xf] %vm1609, %v2013
    %2060 = vst.msk [vmem:[#allocation3 + $0x30] sm:$0xf] %vm1609, %v2015
    %2061 = vst.msk [vmem:[#allocation3 + $0x44] sm:$0xf] %vm1609, %v2017
    %2062 = vst.msk [vmem:[#allocation3 + $0x58] sm:$0xf] %vm1609, %v2019
    %2063 = vst.msk [vmem:[#allocation3 + $0x6c] sm:$0xf] %vm1609, %v2021
    %2064 = vst.msk [vmem:[#allocation3 + $0x80] sm:$0xf] %vm1609, %v2023
    %2065 = vst.msk [vmem:[#allocation3 + $0x94] sm:$0xf] %vm1609, %v2025
    %2066 = vst.msk [vmem:[#allocation3 + $0xa8] sm:$0xf] %vm1609, %v2027
    %2067 = vst.msk [vmem:[#allocation3 + $0xbc] sm:$0xf] %vm1609, %v2029
    %2068 = vst.msk [vmem:[#allocation3 + $0xd0] sm:$0xf] %vm1609, %v2031
    %2069 = vst.msk [vmem:[#allocation3 + $0xe4] sm:$0xf] %vm1609, %v2033
    %2070 = vst.msk [vmem:[#allocation3 + $0xf8] sm:$0xf] %vm1609, %v2035
    %2071 = vst.msk [vmem:[#allocation3 + $0x10c] sm:$0xf] %vm1609, %v2037
    %2072 = vst.msk [vmem:[#allocation3 + $0x120] sm:$0xf] %vm1609, %v2039
    %2073 = vst.msk [vmem:[#allocation3 + $0x134] sm:$0xf] %vm1609, %v2041
    %s2074 = scalar_lea.vmem [#allocation2], 32
    %v2075 = vld [vmem:[%s2074] sm:$0xff]
    %v2076 = vld [vmem:[%s2074 + $0x10] sm:$0xff]
    %v2077 = vld [vmem:[%s2074 + $0x20] sm:$0xff]
    %v2078 = vld [vmem:[%s2074 + $0x30] sm:$0xff]
    %v2079 = vld [vmem:[%s2074 + $0x40] sm:$0xff]
    %v2080 = vld [vmem:[%s2074 + $0x50] sm:$0xff]
    %v2081 = vld [vmem:[%s2074 + $0x60] sm:$0xff]
    %v2082 = vld [vmem:[%s2074 + $0x70] sm:$0xff]
    %v2083 = vld [vmem:[%s2074 + $0xa0] sm:$0xff]
    %v2084 = vld [vmem:[%s2074 + $0xb0] sm:$0xff]
    %v2085 = vld [vmem:[%s2074 + $0xc0] sm:$0xff]
    %v2086 = vld [vmem:[%s2074 + $0xd0] sm:$0xff]
    %v2087 = vld [vmem:[%s2074 + $0xe0] sm:$0xff]
    %v2088 = vld [vmem:[%s2074 + $0xf0] sm:$0xff]
    %v2089 = vld [vmem:[%s2074 + $0x100] sm:$0xff]
    %v2090 = vld [vmem:[%s2074 + $0x110] sm:$0xff]
    %v2091 = vpack.c.bf16 %v2076, %v2075
    %v2092 = vpack.c.bf16 %v2078, %v2077
    %v2093 = vpack.c.bf16 %v2080, %v2079
    %v2094 = vpack.c.bf16 %v2082, %v2081
    %v2095 = vpack.c.bf16 %v2084, %v2083
    %v2096 = vpack.c.bf16 %v2086, %v2085
    %v2097 = vpack.c.bf16 %v2088, %v2087
    %v2098 = vpack.c.bf16 %v2090, %v2089
    %v2107 = vunpack.c.l.b16 %v2091
    %v2108 = vunpack.c.h.b16 %v2091
    %v2109 = vunpack.c.l.b16 %v2092
    %v2110 = vunpack.c.h.b16 %v2092
    %v2111 = vunpack.c.l.b16 %v2093
    %v2112 = vunpack.c.h.b16 %v2093
    %v2113 = vunpack.c.l.b16 %v2094
    %v2114 = vunpack.c.h.b16 %v2094
    %v2115 = vunpack.c.l.b16 %v2095
    %v2116 = vunpack.c.h.b16 %v2095
    %v2117 = vunpack.c.l.b16 %v2096
    %v2118 = vunpack.c.h.b16 %v2096
    %v2119 = vunpack.c.l.b16 %v2097
    %v2120 = vunpack.c.h.b16 %v2097
    %v2121 = vunpack.c.l.b16 %v2098
    %v2122 = vunpack.c.h.b16 %v2098
    %v2123 = vpack.c.b16 %v2107, %v2107
    %v2124 = vpack.c.b16 %v2108, %v2108
    %v2125 = vpack.c.b16 %v2109, %v2109
    %v2126 = vpack.c.b16 %v2110, %v2110
    %v2127 = vpack.c.b16 %v2111, %v2111
    %v2128 = vpack.c.b16 %v2112, %v2112
    %v2129 = vpack.c.b16 %v2113, %v2113
    %v2130 = vpack.c.b16 %v2114, %v2114
    %v2131 = vpack.c.b16 %v2115, %v2115
    %v2132 = vpack.c.b16 %v2116, %v2116
    %v2133 = vpack.c.b16 %v2117, %v2117
    %v2134 = vpack.c.b16 %v2118, %v2118
    %v2135 = vpack.c.b16 %v2119, %v2119
    %v2136 = vpack.c.b16 %v2120, %v2120
    %v2137 = vpack.c.b16 %v2121, %v2121
    %v2138 = vpack.c.b16 %v2122, %v2122
    %2155 = vst.msk [vmem:[#allocation3 + $0xc] sm:$0xf] %vm1480, %v2123
    %2156 = vst.msk [vmem:[#allocation3 + $0x20] sm:$0xf] %vm1480, %v2124
    %2157 = vst.msk [vmem:[#allocation3 + $0x34] sm:$0xf] %vm1480, %v2125
    %2158 = vst.msk [vmem:[#allocation3 + $0x48] sm:$0xf] %vm1480, %v2126
    %2159 = vst.msk [vmem:[#allocation3 + $0x5c] sm:$0xf] %vm1480, %v2127
    %2160 = vst.msk [vmem:[#allocation3 + $0x70] sm:$0xf] %vm1480, %v2128
    %2161 = vst.msk [vmem:[#allocation3 + $0x84] sm:$0xf] %vm1480, %v2129
    %2162 = vst.msk [vmem:[#allocation3 + $0x98] sm:$0xf] %vm1480, %v2130
    %2163 = vst.msk [vmem:[#allocation3 + $0xac] sm:$0xf] %vm1480, %v2131
    %2164 = vst.msk [vmem:[#allocation3 + $0xc0] sm:$0xf] %vm1480, %v2132
    %2165 = vst.msk [vmem:[#allocation3 + $0xd4] sm:$0xf] %vm1480, %v2133
    %2166 = vst.msk [vmem:[#allocation3 + $0xe8] sm:$0xf] %vm1480, %v2134
    %2167 = vst.msk [vmem:[#allocation3 + $0xfc] sm:$0xf] %vm1480, %v2135
    %2168 = vst.msk [vmem:[#allocation3 + $0x110] sm:$0xf] %vm1480, %v2136
    %2169 = vst.msk [vmem:[#allocation3 + $0x124] sm:$0xf] %vm1480, %v2137
    %2170 = vst.msk [vmem:[#allocation3 + $0x138] sm:$0xf] %vm1480, %v2138
    %v2171 = vld [vmem:[%s2074 + $0x1] sm:$0xff]
    %v2172 = vld [vmem:[%s2074 + $0x11] sm:$0xff]
    %v2173 = vld [vmem:[%s2074 + $0x21] sm:$0xff]
    %v2174 = vld [vmem:[%s2074 + $0x31] sm:$0xff]
    %v2175 = vld [vmem:[%s2074 + $0x41] sm:$0xff]
    %v2176 = vld [vmem:[%s2074 + $0x51] sm:$0xff]
    %v2177 = vld [vmem:[%s2074 + $0x61] sm:$0xff]
    %v2178 = vld [vmem:[%s2074 + $0x71] sm:$0xff]
    %v2179 = vld [vmem:[%s2074 + $0xa1] sm:$0xff]
    %v2180 = vld [vmem:[%s2074 + $0xb1] sm:$0xff]
    %v2181 = vld [vmem:[%s2074 + $0xc1] sm:$0xff]
    %v2182 = vld [vmem:[%s2074 + $0xd1] sm:$0xff]
    %v2183 = vld [vmem:[%s2074 + $0xe1] sm:$0xff]
    %v2184 = vld [vmem:[%s2074 + $0xf1] sm:$0xff]
    %v2185 = vld [vmem:[%s2074 + $0x101] sm:$0xff]
    %v2186 = vld [vmem:[%s2074 + $0x111] sm:$0xff]
    %v2187 = vpack.c.bf16 %v2172, %v2171
    %v2188 = vpack.c.bf16 %v2174, %v2173
    %v2189 = vpack.c.bf16 %v2176, %v2175
    %v2190 = vpack.c.bf16 %v2178, %v2177
    %v2191 = vpack.c.bf16 %v2180, %v2179
    %v2192 = vpack.c.bf16 %v2182, %v2181
    %v2193 = vpack.c.bf16 %v2184, %v2183
    %v2194 = vpack.c.bf16 %v2186, %v2185
    %v2203 = vunpack.c.l.b16 %v2187
    %v2204 = vunpack.c.h.b16 %v2187
    %v2205 = vunpack.c.l.b16 %v2188
    %v2206 = vunpack.c.h.b16 %v2188
    %v2207 = vunpack.c.l.b16 %v2189
    %v2208 = vunpack.c.h.b16 %v2189
    %v2209 = vunpack.c.l.b16 %v2190
    %v2210 = vunpack.c.h.b16 %v2190
    %v2211 = vunpack.c.l.b16 %v2191
    %v2212 = vunpack.c.h.b16 %v2191
    %v2213 = vunpack.c.l.b16 %v2192
    %v2214 = vunpack.c.h.b16 %v2192
    %v2215 = vunpack.c.l.b16 %v2193
    %v2216 = vunpack.c.h.b16 %v2193
    %v2217 = vunpack.c.l.b16 %v2194
    %v2218 = vunpack.c.h.b16 %v2194
    %v2219 = vpack.c.b16 %v2203, %v2203
    %v2220 = vpack.c.b16 %v2204, %v2204
    %v2221 = vpack.c.b16 %v2205, %v2205
    %v2222 = vpack.c.b16 %v2206, %v2206
    %v2223 = vpack.c.b16 %v2207, %v2207
    %v2224 = vpack.c.b16 %v2208, %v2208
    %v2225 = vpack.c.b16 %v2209, %v2209
    %v2226 = vpack.c.b16 %v2210, %v2210
    %v2227 = vpack.c.b16 %v2211, %v2211
    %v2228 = vpack.c.b16 %v2212, %v2212
    %v2229 = vpack.c.b16 %v2213, %v2213
    %v2230 = vpack.c.b16 %v2214, %v2214
    %v2231 = vpack.c.b16 %v2215, %v2215
    %v2232 = vpack.c.b16 %v2216, %v2216
    %v2233 = vpack.c.b16 %v2217, %v2217
    %v2234 = vpack.c.b16 %v2218, %v2218
    %2235 = vrot.lane.b32.xlu0 %v2219, 64
    %v2236 = vpop.permute.xlu0 %2235
    %2237 = vrot.lane.b32.xlu0 %v2220, 64
    %v2238 = vpop.permute.xlu0 %2237
    %2239 = vrot.lane.b32.xlu0 %v2221, 64
    %v2240 = vpop.permute.xlu0 %2239
    %2241 = vrot.lane.b32.xlu0 %v2222, 64
    %v2242 = vpop.permute.xlu0 %2241
    %2243 = vrot.lane.b32.xlu0 %v2223, 64
    %v2244 = vpop.permute.xlu0 %2243
    %2245 = vrot.lane.b32.xlu0 %v2224, 64
    %v2246 = vpop.permute.xlu0 %2245
    %2247 = vrot.lane.b32.xlu0 %v2225, 64
    %v2248 = vpop.permute.xlu0 %2247
    %2249 = vrot.lane.b32.xlu0 %v2226, 64
    %v2250 = vpop.permute.xlu0 %2249
    %2251 = vrot.lane.b32.xlu0 %v2227, 64
    %v2252 = vpop.permute.xlu0 %2251
    %2253 = vrot.lane.b32.xlu0 %v2228, 64
    %v2254 = vpop.permute.xlu0 %2253
    %2255 = vrot.lane.b32.xlu0 %v2229, 64
    %v2256 = vpop.permute.xlu0 %2255
    %2257 = vrot.lane.b32.xlu0 %v2230, 64
    %v2258 = vpop.permute.xlu0 %2257
    %2259 = vrot.lane.b32.xlu0 %v2231, 64
    %v2260 = vpop.permute.xlu0 %2259
    %2261 = vrot.lane.b32.xlu0 %v2232, 64
    %v2262 = vpop.permute.xlu0 %2261
    %2263 = vrot.lane.b32.xlu0 %v2233, 64
    %v2264 = vpop.permute.xlu0 %2263
    %2265 = vrot.lane.b32.xlu0 %v2234, 64
    %v2266 = vpop.permute.xlu0 %2265
    %2283 = vst.msk [vmem:[#allocation3 + $0xc] sm:$0xf] %vm1609, %v2236
    %2284 = vst.msk [vmem:[#allocation3 + $0x20] sm:$0xf] %vm1609, %v2238
    %2285 = vst.msk [vmem:[#allocation3 + $0x34] sm:$0xf] %vm1609, %v2240
    %2286 = vst.msk [vmem:[#allocation3 + $0x48] sm:$0xf] %vm1609, %v2242
    %2287 = vst.msk [vmem:[#allocation3 + $0x5c] sm:$0xf] %vm1609, %v2244
    %2288 = vst.msk [vmem:[#allocation3 + $0x70] sm:$0xf] %vm1609, %v2246
    %2289 = vst.msk [vmem:[#allocation3 + $0x84] sm:$0xf] %vm1609, %v2248
    %2290 = vst.msk [vmem:[#allocation3 + $0x98] sm:$0xf] %vm1609, %v2250
    %2291 = vst.msk [vmem:[#allocation3 + $0xac] sm:$0xf] %vm1609, %v2252
    %2292 = vst.msk [vmem:[#allocation3 + $0xc0] sm:$0xf] %vm1609, %v2254
    %2293 = vst.msk [vmem:[#allocation3 + $0xd4] sm:$0xf] %vm1609, %v2256
    %2294 = vst.msk [vmem:[#allocation3 + $0xe8] sm:$0xf] %vm1609, %v2258
    %2295 = vst.msk [vmem:[#allocation3 + $0xfc] sm:$0xf] %vm1609, %v2260
    %2296 = vst.msk [vmem:[#allocation3 + $0x110] sm:$0xf] %vm1609, %v2262
    %2297 = vst.msk [vmem:[#allocation3 + $0x124] sm:$0xf] %vm1609, %v2264
    %2298 = vst.msk [vmem:[#allocation3 + $0x138] sm:$0xf] %vm1609, %v2266
    %v2299 = vld [vmem:[%s2074 + $0x2] sm:$0xff]
    %v2300 = vld [vmem:[%s2074 + $0x12] sm:$0xff]
    %v2301 = vld [vmem:[%s2074 + $0x22] sm:$0xff]
    %v2302 = vld [vmem:[%s2074 + $0x32] sm:$0xff]
    %v2303 = vld [vmem:[%s2074 + $0x42] sm:$0xff]
    %v2304 = vld [vmem:[%s2074 + $0x52] sm:$0xff]
    %v2305 = vld [vmem:[%s2074 + $0x62] sm:$0xff]
    %v2306 = vld [vmem:[%s2074 + $0x72] sm:$0xff]
    %v2307 = vld [vmem:[%s2074 + $0xa2] sm:$0xff]
    %v2308 = vld [vmem:[%s2074 + $0xb2] sm:$0xff]
    %v2309 = vld [vmem:[%s2074 + $0xc2] sm:$0xff]
    %v2310 = vld [vmem:[%s2074 + $0xd2] sm:$0xff]
    %v2311 = vld [vmem:[%s2074 + $0xe2] sm:$0xff]
    %v2312 = vld [vmem:[%s2074 + $0xf2] sm:$0xff]
    %v2313 = vld [vmem:[%s2074 + $0x102] sm:$0xff]
    %v2314 = vld [vmem:[%s2074 + $0x112] sm:$0xff]
    %v2315 = vpack.c.bf16 %v2300, %v2299
    %v2316 = vpack.c.bf16 %v2302, %v2301
    %v2317 = vpack.c.bf16 %v2304, %v2303
    %v2318 = vpack.c.bf16 %v2306, %v2305
    %v2319 = vpack.c.bf16 %v2308, %v2307
    %v2320 = vpack.c.bf16 %v2310, %v2309
    %v2321 = vpack.c.bf16 %v2312, %v2311
    %v2322 = vpack.c.bf16 %v2314, %v2313
    %v2331 = vunpack.c.l.b16 %v2315
    %v2332 = vunpack.c.h.b16 %v2315
    %v2333 = vunpack.c.l.b16 %v2316
    %v2334 = vunpack.c.h.b16 %v2316
    %v2335 = vunpack.c.l.b16 %v2317
    %v2336 = vunpack.c.h.b16 %v2317
    %v2337 = vunpack.c.l.b16 %v2318
    %v2338 = vunpack.c.h.b16 %v2318
    %v2339 = vunpack.c.l.b16 %v2319
    %v2340 = vunpack.c.h.b16 %v2319
    %v2341 = vunpack.c.l.b16 %v2320
    %v2342 = vunpack.c.h.b16 %v2320
    %v2343 = vunpack.c.l.b16 %v2321
    %v2344 = vunpack.c.h.b16 %v2321
    %v2345 = vunpack.c.l.b16 %v2322
    %v2346 = vunpack.c.h.b16 %v2322
    %v2347 = vpack.c.b16 %v2331, %v2331
    %v2348 = vpack.c.b16 %v2332, %v2332
    %v2349 = vpack.c.b16 %v2333, %v2333
    %v2350 = vpack.c.b16 %v2334, %v2334
    %v2351 = vpack.c.b16 %v2335, %v2335
    %v2352 = vpack.c.b16 %v2336, %v2336
    %v2353 = vpack.c.b16 %v2337, %v2337
    %v2354 = vpack.c.b16 %v2338, %v2338
    %v2355 = vpack.c.b16 %v2339, %v2339
    %v2356 = vpack.c.b16 %v2340, %v2340
    %v2357 = vpack.c.b16 %v2341, %v2341
    %v2358 = vpack.c.b16 %v2342, %v2342
    %v2359 = vpack.c.b16 %v2343, %v2343
    %v2360 = vpack.c.b16 %v2344, %v2344
    %v2361 = vpack.c.b16 %v2345, %v2345
    %v2362 = vpack.c.b16 %v2346, %v2346
    %2379 = vst.msk [vmem:[#allocation3 + $0x10] sm:$0xf] %vm1480, %v2347
    %2380 = vst.msk [vmem:[#allocation3 + $0x24] sm:$0xf] %vm1480, %v2348
    %2381 = vst.msk [vmem:[#allocation3 + $0x38] sm:$0xf] %vm1480, %v2349
    %2382 = vst.msk [vmem:[#allocation3 + $0x4c] sm:$0xf] %vm1480, %v2350
    %2383 = vst.msk [vmem:[#allocation3 + $0x60] sm:$0xf] %vm1480, %v2351
    %2384 = vst.msk [vmem:[#allocation3 + $0x74] sm:$0xf] %vm1480, %v2352
    %2385 = vst.msk [vmem:[#allocation3 + $0x88] sm:$0xf] %vm1480, %v2353
    %2386 = vst.msk [vmem:[#allocation3 + $0x9c] sm:$0xf] %vm1480, %v2354
    %2387 = vst.msk [vmem:[#allocation3 + $0xb0] sm:$0xf] %vm1480, %v2355
    %2388 = vst.msk [vmem:[#allocation3 + $0xc4] sm:$0xf] %vm1480, %v2356
    %2389 = vst.msk [vmem:[#allocation3 + $0xd8] sm:$0xf] %vm1480, %v2357
    %2390 = vst.msk [vmem:[#allocation3 + $0xec] sm:$0xf] %vm1480, %v2358
    %2391 = vst.msk [vmem:[#allocation3 + $0x100] sm:$0xf] %vm1480, %v2359
    %2392 = vst.msk [vmem:[#allocation3 + $0x114] sm:$0xf] %vm1480, %v2360
    %2393 = vst.msk [vmem:[#allocation3 + $0x128] sm:$0xf] %vm1480, %v2361
    %2394 = vst.msk [vmem:[#allocation3 + $0x13c] sm:$0xf] %vm1480, %v2362
    %v2395 = vld [vmem:[#allocation3] sm:$0xff]
    %v2396 = vld [vmem:[#allocation3 + $0x8] sm:$0xff]
    %v2397 = vld [vmem:[#allocation3 + $0x10] sm:$0xf]
    %v2398 = vld [vmem:[#allocation3 + $0x14] sm:$0xff]
    %v2399 = vld [vmem:[#allocation3 + $0x1c] sm:$0xff]
    %v2400 = vld [vmem:[#allocation3 + $0x24] sm:$0xf]
    %v2401 = vld [vmem:[#allocation3 + $0x28] sm:$0xff]
    %v2402 = vld [vmem:[#allocation3 + $0x30] sm:$0xff]
    %v2403 = vld [vmem:[#allocation3 + $0x38] sm:$0xf]
    %v2404 = vld [vmem:[#allocation3 + $0x3c] sm:$0xff]
    %v2405 = vld [vmem:[#allocation3 + $0x44] sm:$0xff]
    %v2406 = vld [vmem:[#allocation3 + $0x4c] sm:$0xf]
    %v2407 = vld [vmem:[#allocation3 + $0x50] sm:$0xff]
    %v2408 = vld [vmem:[#allocation3 + $0x58] sm:$0xff]
    %v2409 = vld [vmem:[#allocation3 + $0x60] sm:$0xf]
    %v2410 = vld [vmem:[#allocation3 + $0x64] sm:$0xff]
    %v2411 = vld [vmem:[#allocation3 + $0x6c] sm:$0xff]
    %v2412 = vld [vmem:[#allocation3 + $0x74] sm:$0xf]
    %v2413 = vld [vmem:[#allocation3 + $0x78] sm:$0xff]
    %v2414 = vld [vmem:[#allocation3 + $0x80] sm:$0xff]
    %v2415 = vld [vmem:[#allocation3 + $0x88] sm:$0xf]
    %v2416 = vld [vmem:[#allocation3 + $0x8c] sm:$0xff]
    %v2417 = vld [vmem:[#allocation3 + $0x94] sm:$0xff]
    %v2418 = vld [vmem:[#allocation3 + $0x9c] sm:$0xf]
    %v2419 = vld [vmem:[#allocation3 + $0xa0] sm:$0xff]
    %v2420 = vld [vmem:[#allocation3 + $0xa8] sm:$0xff]
    %v2421 = vld [vmem:[#allocation3 + $0xb0] sm:$0xf]
    %v2422 = vld [vmem:[#allocation3 + $0xb4] sm:$0xff]
    %v2423 = vld [vmem:[#allocation3 + $0xbc] sm:$0xff]
    %v2424 = vld [vmem:[#allocation3 + $0xc4] sm:$0xf]
    %v2425 = vld [vmem:[#allocation3 + $0xc8] sm:$0xff]
    %v2426 = vld [vmem:[#allocation3 + $0xd0] sm:$0xff]
    %v2427 = vld [vmem:[#allocation3 + $0xd8] sm:$0xf]
    %v2428 = vld [vmem:[#allocation3 + $0xdc] sm:$0xff]
    %v2429 = vld [vmem:[#allocation3 + $0xe4] sm:$0xff]
    %v2430 = vld [vmem:[#allocation3 + $0xec] sm:$0xf]
    %v2431 = vld [vmem:[#allocation3 + $0xf0] sm:$0xff]
    %v2432 = vld [vmem:[#allocation3 + $0xf8] sm:$0xff]
    %v2433 = vld [vmem:[#allocation3 + $0x100] sm:$0xf]
    %v2434 = vld [vmem:[#allocation3 + $0x104] sm:$0xff]
    %v2435 = vld [vmem:[#allocation3 + $0x10c] sm:$0xff]
    %v2436 = vld [vmem:[#allocation3 + $0x114] sm:$0xf]
    %v2437 = vld [vmem:[#allocation3 + $0x118] sm:$0xff]
    %v2438 = vld [vmem:[#allocation3 + $0x120] sm:$0xff]
    %v2439 = vld [vmem:[#allocation3 + $0x128] sm:$0xf]
    %v2440 = vld [vmem:[#allocation3 + $0x12c] sm:$0xff]
    %v2441 = vld [vmem:[#allocation3 + $0x134] sm:$0xff]
    %v2442 = vld [vmem:[#allocation3 + $0x13c] sm:$0xf]
    %v2491 = vunpack.c.l.b16 %v2395
    %v2492 = vunpack.c.h.b16 %v2395
    %v2493 = vunpack.c.l.b16 %v2396
    %v2494 = vunpack.c.h.b16 %v2396
    %v2495 = vunpack.c.l.b16 %v2397
    %v2496 = vunpack.c.l.b16 %v2398
    %v2497 = vunpack.c.h.b16 %v2398
    %v2498 = vunpack.c.l.b16 %v2399
    %v2499 = vunpack.c.h.b16 %v2399
    %v2500 = vunpack.c.l.b16 %v2400
    %v2501 = vunpack.c.l.b16 %v2401
    %v2502 = vunpack.c.h.b16 %v2401
    %v2503 = vunpack.c.l.b16 %v2402
    %v2504 = vunpack.c.h.b16 %v2402
    %v2505 = vunpack.c.l.b16 %v2403
    %v2506 = vunpack.c.l.b16 %v2404
    %v2507 = vunpack.c.h.b16 %v2404
    %v2508 = vunpack.c.l.b16 %v2405
    %v2509 = vunpack.c.h.b16 %v2405
    %v2510 = vunpack.c.l.b16 %v2406
    %v2511 = vunpack.c.l.b16 %v2407
    %v2512 = vunpack.c.h.b16 %v2407
    %v2513 = vunpack.c.l.b16 %v2408
    %v2514 = vunpack.c.h.b16 %v2408
    %v2515 = vunpack.c.l.b16 %v2409
    %v2516 = vunpack.c.l.b16 %v2410
    %v2517 = vunpack.c.h.b16 %v2410
    %v2518 = vunpack.c.l.b16 %v2411
    %v2519 = vunpack.c.h.b16 %v2411
    %v2520 = vunpack.c.l.b16 %v2412
    %v2521 = vunpack.c.l.b16 %v2413
    %v2522 = vunpack.c.h.b16 %v2413
    %v2523 = vunpack.c.l.b16 %v2414
    %v2524 = vunpack.c.h.b16 %v2414
    %v2525 = vunpack.c.l.b16 %v2415
    %v2526 = vunpack.c.l.b16 %v2416
    %v2527 = vunpack.c.h.b16 %v2416
    %v2528 = vunpack.c.l.b16 %v2417
    %v2529 = vunpack.c.h.b16 %v2417
    %v2530 = vunpack.c.l.b16 %v2418
    %v2531 = vunpack.c.l.b16 %v2419
    %v2532 = vunpack.c.h.b16 %v2419
    %v2533 = vunpack.c.l.b16 %v2420
    %v2534 = vunpack.c.h.b16 %v2420
    %v2535 = vunpack.c.l.b16 %v2421
    %v2536 = vunpack.c.l.b16 %v2422
    %v2537 = vunpack.c.h.b16 %v2422
    %v2538 = vunpack.c.l.b16 %v2423
    %v2539 = vunpack.c.h.b16 %v2423
    %v2540 = vunpack.c.l.b16 %v2424
    %v2541 = vunpack.c.l.b16 %v2425
    %v2542 = vunpack.c.h.b16 %v2425
    %v2543 = vunpack.c.l.b16 %v2426
    %v2544 = vunpack.c.h.b16 %v2426
    %v2545 = vunpack.c.l.b16 %v2427
    %v2546 = vunpack.c.l.b16 %v2428
    %v2547 = vunpack.c.h.b16 %v2428
    %v2548 = vunpack.c.l.b16 %v2429
    %v2549 = vunpack.c.h.b16 %v2429
    %v2550 = vunpack.c.l.b16 %v2430
    %v2551 = vunpack.c.l.b16 %v2431
    %v2552 = vunpack.c.h.b16 %v2431
    %v2553 = vunpack.c.l.b16 %v2432
    %v2554 = vunpack.c.h.b16 %v2432
    %v2555 = vunpack.c.l.b16 %v2433
    %v2556 = vunpack.c.l.b16 %v2434
    %v2557 = vunpack.c.h.b16 %v2434
    %v2558 = vunpack.c.l.b16 %v2435
    %v2559 = vunpack.c.h.b16 %v2435
    %v2560 = vunpack.c.l.b16 %v2436
    %v2561 = vunpack.c.l.b16 %v2437
    %v2562 = vunpack.c.h.b16 %v2437
    %v2563 = vunpack.c.l.b16 %v2438
    %v2564 = vunpack.c.h.b16 %v2438
    %v2565 = vunpack.c.l.b16 %v2439
    %v2566 = vunpack.c.l.b16 %v2440
    %v2567 = vunpack.c.h.b16 %v2440
    %v2568 = vunpack.c.l.b16 %v2441
    %v2569 = vunpack.c.h.b16 %v2441
    %v2570 = vunpack.c.l.b16 %v2442
    %v2571 = vpack.c.b16 %v2496, %v2491
    %v2572 = vpack.c.b16 %v2497, %v2492
    %v2573 = vpack.c.b16 %v2498, %v2493
    %v2574 = vpack.c.b16 %v2499, %v2494
    %v2575 = vpack.c.b16 %v2500, %v2495
    %v2576 = vpack.c.b16 %v2506, %v2501
    %v2577 = vpack.c.b16 %v2507, %v2502
    %v2578 = vpack.c.b16 %v2508, %v2503
    %v2579 = vpack.c.b16 %v2509, %v2504
    %v2580 = vpack.c.b16 %v2510, %v2505
    %v2581 = vpack.c.b16 %v2516, %v2511
    %v2582 = vpack.c.b16 %v2517, %v2512
    %v2583 = vpack.c.b16 %v2518, %v2513
    %v2584 = vpack.c.b16 %v2519, %v2514
    %v2585 = vpack.c.b16 %v2520, %v2515
    %v2586 = vpack.c.b16 %v2526, %v2521
    %v2587 = vpack.c.b16 %v2527, %v2522
    %v2588 = vpack.c.b16 %v2528, %v2523
    %v2589 = vpack.c.b16 %v2529, %v2524
    %v2590 = vpack.c.b16 %v2530, %v2525
    %v2591 = vpack.c.b16 %v2536, %v2531
    %v2592 = vpack.c.b16 %v2537, %v2532
    %v2593 = vpack.c.b16 %v2538, %v2533
    %v2594 = vpack.c.b16 %v2539, %v2534
    %v2595 = vpack.c.b16 %v2540, %v2535
    %v2596 = vpack.c.b16 %v2546, %v2541
    %v2597 = vpack.c.b16 %v2547, %v2542
    %v2598 = vpack.c.b16 %v2548, %v2543
    %v2599 = vpack.c.b16 %v2549, %v2544
    %v2600 = vpack.c.b16 %v2550, %v2545
    %v2601 = vpack.c.b16 %v2556, %v2551
    %v2602 = vpack.c.b16 %v2557, %v2552
    %v2603 = vpack.c.b16 %v2558, %v2553
    %v2604 = vpack.c.b16 %v2559, %v2554
    %v2605 = vpack.c.b16 %v2560, %v2555
    %v2606 = vpack.c.b16 %v2566, %v2561
    %v2607 = vpack.c.b16 %v2567, %v2562
    %v2608 = vpack.c.b16 %v2568, %v2563
    %v2609 = vpack.c.b16 %v2569, %v2564
    %v2610 = vpack.c.b16 %v2570, %v2565
    %v2715 = vunpack.c.l.b16 %v1311
    %v2716 = vunpack.c.l.b16 %v1312
    %v2717 = vunpack.c.l.b16 %v1313
    %v2718 = vunpack.c.l.b16 %v1314
    %v2719 = vunpack.c.l.b16 %v1315
    %v2720 = vunpack.c.l.b16 %v1316
    %v2721 = vunpack.c.l.b16 %v1317
    %v2722 = vunpack.c.l.b16 %v1318
    %v2723 = vunpack.c.l.b16 %v1319
    %v2724 = vunpack.c.l.b16 %v1320
    %v2725 = vunpack.c.l.b16 %v1321
    %v2726 = vunpack.c.l.b16 %v1322
    %v2727 = vunpack.c.l.b16 %v1323
    %v2728 = vunpack.c.l.b16 %v1324
    %v2729 = vunpack.c.l.b16 %v1325
    %v2730 = vunpack.c.l.b16 %v1326
    %v2731 = vunpack.c.l.b16 %v1327
    %v2732 = vunpack.c.l.b16 %v1328
    %v2733 = vunpack.c.l.b16 %v1329
    %v2734 = vunpack.c.l.b16 %v1330
    %v2735 = vunpack.c.l.b16 %v1331
    %v2736 = vunpack.c.l.b16 %v1332
    %v2737 = vunpack.c.l.b16 %v1333
    %v2738 = vunpack.c.l.b16 %v1334
    %v2739 = vunpack.c.l.b16 %v1335
    %v2740 = vunpack.c.l.b16 %v1336
    %v2741 = vunpack.c.l.b16 %v1337
    %v2742 = vunpack.c.l.b16 %v1338
    %v2743 = vunpack.c.l.b16 %v1339
    %v2744 = vunpack.c.l.b16 %v1340
    %v2745 = vunpack.c.l.b16 %v1341
    %v2746 = vunpack.c.l.b16 %v1342
    %v2747 = vunpack.c.l.b16 %v1343
    %v2748 = vunpack.c.l.b16 %v1344
    %v2749 = vunpack.c.l.b16 %v1345
    %v2750 = vunpack.c.l.b16 %v1346
    %v2751 = vunpack.c.l.b16 %v1347
    %v2752 = vunpack.c.l.b16 %v1348
    %v2753 = vunpack.c.l.b16 %v1349
    %v2754 = vunpack.c.l.b16 %v1350
    %v2755 = vunpack.c.l.b16 %v1351
    %v2756 = vunpack.c.l.b16 %v1352
    %v2757 = vunpack.c.l.b16 %v1353
    %v2758 = vunpack.c.l.b16 %v1354
    %v2759 = vunpack.c.l.b16 %v1355
    %v2760 = vunpack.c.l.b16 %v1356
    %v2761 = vunpack.c.l.b16 %v1357
    %v2762 = vunpack.c.l.b16 %v1358
    %v2763 = vunpack.c.l.b16 %v1359
    %v2764 = vunpack.c.l.b16 %v1360
    %v2765 = vunpack.c.l.b16 %v1361
    %v2766 = vunpack.c.l.b16 %v1362
    %v2767 = vunpack.c.l.b16 %v1363
    %v2768 = vunpack.c.l.b16 %v1364
    %v2769 = vunpack.c.l.b16 %v1365
    %v2770 = vunpack.c.l.b16 %v1366
    %v2771 = vunpack.c.l.b16 %v1367
    %v2772 = vunpack.c.l.b16 %v1368
    %v2773 = vunpack.c.l.b16 %v1369
    %v2774 = vunpack.c.l.b16 %v1370
    %v2775 = vunpack.c.l.b16 %v1371
    %v2776 = vunpack.c.l.b16 %v1372
    %v2777 = vunpack.c.l.b16 %v1373
    %v2778 = vunpack.c.l.b16 %v1374
    %v2779 = vunpack.c.l.b16 %v1375
    %v2780 = vunpack.c.l.b16 %v1376
    %v2781 = vunpack.c.l.b16 %v1377
    %v2782 = vunpack.c.l.b16 %v1378
    %v2783 = vunpack.c.l.b16 %v1379
    %v2784 = vunpack.c.l.b16 %v1380
    %v2785 = vunpack.c.l.b16 %v1381
    %v2786 = vunpack.c.l.b16 %v1382
    %v2787 = vpack.c.b16 %v2716, %v2715
    %v2788 = vpack.c.b16 %v2718, %v2717
    %v2789 = vpack.c.b16 %v2720, %v2719
    %v2790 = vpack.c.b16 %v2722, %v2721
    %v2791 = vpack.c.b16 %v2724, %v2723
    %v2792 = vpack.c.b16 %v2726, %v2725
    %v2793 = vpack.c.b16 %v2728, %v2727
    %v2794 = vpack.c.b16 %v2730, %v2729
    %v2795 = vpack.c.b16 %v2732, %v2731
    %v2796 = vpack.c.b16 %v2734, %v2733
    %v2797 = vpack.c.b16 %v2736, %v2735
    %v2798 = vpack.c.b16 %v2738, %v2737
    %v2799 = vpack.c.b16 %v2740, %v2739
    %v2800 = vpack.c.b16 %v2742, %v2741
    %v2801 = vpack.c.b16 %v2744, %v2743
    %v2802 = vpack.c.b16 %v2746, %v2745
    %v2803 = vpack.c.b16 %v2748, %v2747
    %v2804 = vpack.c.b16 %v2750, %v2749
    %v2805 = vpack.c.b16 %v2752, %v2751
    %v2806 = vpack.c.b16 %v2754, %v2753
    %v2807 = vpack.c.b16 %v2756, %v2755
    %v2808 = vpack.c.b16 %v2758, %v2757
    %v2809 = vpack.c.b16 %v2760, %v2759
    %v2810 = vpack.c.b16 %v2762, %v2761
    %v2811 = vpack.c.b16 %v2764, %v2763
    %v2812 = vpack.c.b16 %v2766, %v2765
    %v2813 = vpack.c.b16 %v2768, %v2767
    %v2814 = vpack.c.b16 %v2770, %v2769
    %v2815 = vpack.c.b16 %v2772, %v2771
    %v2816 = vpack.c.b16 %v2774, %v2773
    %v2817 = vpack.c.b16 %v2776, %v2775
    %v2818 = vpack.c.b16 %v2778, %v2777
    %v2819 = vpack.c.b16 %v2780, %v2779
    %v2820 = vpack.c.b16 %v2782, %v2781
    %v2821 = vpack.c.b16 %v2784, %v2783
    %v2822 = vpack.c.b16 %v2786, %v2785
    %v2860 = vsel %vm34, %v2575, 0
    %v2863 = vsel %vm34, %v2580, 0
    %v2866 = vsel %vm34, %v2585, 0
    %v2869 = vsel %vm34, %v2590, 0
    %v2872 = vsel %vm34, %v2595, 0
    %v2875 = vsel %vm34, %v2600, 0
    %v2878 = vsel %vm34, %v2605, 0
    %v2881 = vsel %vm34, %v2610, 0
    %2883 = vmatprep.subr.bf16.mxu0 0
    %2884 = vmatpush1.bf16.msra.mxu0 %v2794
    %2885 = vmatprep.subr.bf16.mxu0 0
    %2886 = vmatpush1.bf16.msra.mxu0 %v2793
    %2887 = vmatprep.subr.bf16.mxu0 0
    %2888 = vmatpush1.bf16.msra.mxu0 %v2792
    %2889 = vmatprep.subr.bf16.mxu0 0
    %2890 = vmatpush1.bf16.msra.mxu0 %v2791
    %2891 = vmatprep.subr.bf16.mxu0 0
    %2892 = vmatpush1.bf16.msra.mxu0 %v2790
    %2893 = vmatprep.subr.bf16.mxu0 0
    %2894 = vmatpush1.bf16.msra.mxu0 %v2789
    %2895 = vmatprep.subr.bf16.mxu0 0
    %2896 = vmatpush1.bf16.msra.mxu0 %v2788
    %2897 = vmatprep.subr.bf16.mxu0 0
    %2898 = vmatpush1.bf16.msra.mxu0 %v2787
    %2899 = vmatprep.subr.bf16.mxu0 0
    %2900 = vmatpush2.bf16.msra.mxu0 %v2802
    %2901 = vmatprep.subr.bf16.mxu0 0
    %2902 = vmatpush2.bf16.msra.mxu0 %v2801
    %2903 = vmatprep.subr.bf16.mxu0 0
    %2904 = vmatpush2.bf16.msra.mxu0 %v2800
    %2905 = vmatprep.subr.bf16.mxu0 0
    %2906 = vmatpush2.bf16.msra.mxu0 %v2799
    %2907 = vmatprep.subr.bf16.mxu0 0
    %2908 = vmatpush2.bf16.msra.mxu0 %v2798
    %2909 = vmatprep.subr.bf16.mxu0 0
    %2910 = vmatpush2.bf16.msra.mxu0 %v2797
    %2911 = vmatprep.subr.bf16.mxu0 0
    %2912 = vmatpush2.bf16.msra.mxu0 %v2796
    %2913 = vmatprep.subr.bf16.mxu0 0
    %2914 = vmatpush2.bf16.msra.mxu0 %v2795
    %2915 = vmatprep.mubr.bf16.mxu0 %v2572
    %2916 = vmatmul.mubr.bf16.gmra.mxu0 %v2571
    %v2917 = vpop.f32.mrf.mxu0
    %v2918 = vadd.f32 0.0, %v2917
    %v2919 = vpop.f32.mrf.mxu0
    %v2920 = vpop.f32.mrf.mxu0
    %v2921 = vadd.f32 0.0, %v2920
    %v2922 = vpop.f32.mrf.mxu0
    %2923 = vmatprep.mubr.bf16.mxu0 %v2577
    %2924 = vmatmul.mubr.bf16.gmra.mxu0 %v2576
    %v2925 = vpop.f32.mrf.mxu0
    %v2926 = vadd.f32 0.0, %v2925
    %v2927 = vpop.f32.mrf.mxu0
    %v2928 = vpop.f32.mrf.mxu0
    %v2929 = vadd.f32 0.0, %v2928
    %v2930 = vpop.f32.mrf.mxu0
    %2931 = vmatprep.mubr.bf16.mxu0 %v2582
    %2932 = vmatmul.mubr.bf16.gmra.mxu0 %v2581
    %v2933 = vpop.f32.mrf.mxu0
    %v2934 = vadd.f32 0.0, %v2933
    %v2935 = vpop.f32.mrf.mxu0
    %v2936 = vpop.f32.mrf.mxu0
    %v2937 = vadd.f32 0.0, %v2936
    %v2938 = vpop.f32.mrf.mxu0
    %2939 = vmatprep.mubr.bf16.mxu0 %v2587
    %2940 = vmatmul.mubr.bf16.gmra.mxu0 %v2586
    %v2941 = vpop.f32.mrf.mxu0
    %v2942 = vadd.f32 0.0, %v2941
    %v2943 = vpop.f32.mrf.mxu0
    %v2944 = vpop.f32.mrf.mxu0
    %v2945 = vadd.f32 0.0, %v2944
    %v2946 = vpop.f32.mrf.mxu0
    %2947 = vmatprep.mubr.bf16.mxu0 %v2592
    %2948 = vmatmul.mubr.bf16.gmra.mxu0 %v2591
    %v2949 = vpop.f32.mrf.mxu0
    %v2950 = vadd.f32 0.0, %v2949
    %v2951 = vpop.f32.mrf.mxu0
    %v2952 = vpop.f32.mrf.mxu0
    %v2953 = vadd.f32 0.0, %v2952
    %v2954 = vpop.f32.mrf.mxu0
    %2955 = vmatprep.mubr.bf16.mxu0 %v2597
    %2956 = vmatmul.mubr.bf16.gmra.mxu0 %v2596
    %v2957 = vpop.f32.mrf.mxu0
    %v2958 = vadd.f32 0.0, %v2957
    %v2959 = vpop.f32.mrf.mxu0
    %v2960 = vpop.f32.mrf.mxu0
    %v2961 = vadd.f32 0.0, %v2960
    %v2962 = vpop.f32.mrf.mxu0
    %2963 = vmatprep.mubr.bf16.mxu0 %v2602
    %2964 = vmatmul.mubr.bf16.gmra.mxu0 %v2601
    %v2965 = vpop.f32.mrf.mxu0
    %v2966 = vadd.f32 0.0, %v2965
    %v2967 = vpop.f32.mrf.mxu0
    %v2968 = vpop.f32.mrf.mxu0
    %v2969 = vadd.f32 0.0, %v2968
    %v2970 = vpop.f32.mrf.mxu0
    %2971 = vmatprep.mubr.bf16.mxu0 %v2607
    %2972 = vmatmul.mubr.bf16.gmra.mxu0 %v2606
    %v2973 = vpop.f32.mrf.mxu0
    %v2974 = vadd.f32 0.0, %v2973
    %v2975 = vpop.f32.mrf.mxu0
    %v2976 = vpop.f32.mrf.mxu0
    %v2977 = vadd.f32 0.0, %v2976
    %v2978 = vpop.f32.mrf.mxu0
    %2979 = vdwg.mxu0
    %2980 = vmatprep.subr.bf16.mxu0 0
    %2981 = vmatpush1.bf16.msra.mxu0 %v2810
    %2982 = vmatprep.subr.bf16.mxu0 0
    %2983 = vmatpush1.bf16.msra.mxu0 %v2809
    %2984 = vmatprep.subr.bf16.mxu0 0
    %2985 = vmatpush1.bf16.msra.mxu0 %v2808
    %2986 = vmatprep.subr.bf16.mxu0 0
    %2987 = vmatpush1.bf16.msra.mxu0 %v2807
    %2988 = vmatprep.subr.bf16.mxu0 0
    %2989 = vmatpush1.bf16.msra.mxu0 %v2806
    %2990 = vmatprep.subr.bf16.mxu0 0
    %2991 = vmatpush1.bf16.msra.mxu0 %v2805
    %2992 = vmatprep.subr.bf16.mxu0 0
    %2993 = vmatpush1.bf16.msra.mxu0 %v2804
    %2994 = vmatprep.subr.bf16.mxu0 0
    %2995 = vmatpush1.bf16.msra.mxu0 %v2803
    %2996 = vmatprep.subr.bf16.mxu0 0
    %2997 = vmatpush2.bf16.msra.mxu0 %v2818
    %2998 = vmatprep.subr.bf16.mxu0 0
    %2999 = vmatpush2.bf16.msra.mxu0 %v2817
    %3000 = vmatprep.subr.bf16.mxu0 0
    %3001 = vmatpush2.bf16.msra.mxu0 %v2816
    %3002 = vmatprep.subr.bf16.mxu0 0
    %3003 = vmatpush2.bf16.msra.mxu0 %v2815
    %3004 = vmatprep.subr.bf16.mxu0 0
    %3005 = vmatpush2.bf16.msra.mxu0 %v2814
    %3006 = vmatprep.subr.bf16.mxu0 0
    %3007 = vmatpush2.bf16.msra.mxu0 %v2813
    %3008 = vmatprep.subr.bf16.mxu0 0
    %3009 = vmatpush2.bf16.msra.mxu0 %v2812
    %3010 = vmatprep.subr.bf16.mxu0 0
    %3011 = vmatpush2.bf16.msra.mxu0 %v2811
    %3012 = vmatprep.mubr.bf16.mxu0 %v2574
    %3013 = vmatmul.mubr.bf16.gmra.mxu0 %v2573
    %v3014 = vpop.f32.mrf.mxu0
    %v3015 = vadd.f32 %v2918, %v3014
    %v3016 = vpop.f32.mrf.mxu0
    %v3017 = vpop.f32.mrf.mxu0
    %v3018 = vadd.f32 %v2921, %v3017
    %v3019 = vpop.f32.mrf.mxu0
    %3020 = vmatprep.mubr.bf16.mxu0 %v2579
    %3021 = vmatmul.mubr.bf16.gmra.mxu0 %v2578
    %v3022 = vpop.f32.mrf.mxu0
    %v3023 = vadd.f32 %v2926, %v3022
    %v3024 = vpop.f32.mrf.mxu0
    %v3025 = vpop.f32.mrf.mxu0
    %v3026 = vadd.f32 %v2929, %v3025
    %v3027 = vpop.f32.mrf.mxu0
    %3028 = vmatprep.mubr.bf16.mxu0 %v2584
    %3029 = vmatmul.mubr.bf16.gmra.mxu0 %v2583
    %v3030 = vpop.f32.mrf.mxu0
    %v3031 = vadd.f32 %v2934, %v3030
    %v3032 = vpop.f32.mrf.mxu0
    %v3033 = vpop.f32.mrf.mxu0
    %v3034 = vadd.f32 %v2937, %v3033
    %v3035 = vpop.f32.mrf.mxu0
    %3036 = vmatprep.mubr.bf16.mxu0 %v2589
    %3037 = vmatmul.mubr.bf16.gmra.mxu0 %v2588
    %v3038 = vpop.f32.mrf.mxu0
    %v3039 = vadd.f32 %v2942, %v3038
    %v3040 = vpop.f32.mrf.mxu0
    %v3041 = vpop.f32.mrf.mxu0
    %v3042 = vadd.f32 %v2945, %v3041
    %v3043 = vpop.f32.mrf.mxu0
    %3044 = vmatprep.mubr.bf16.mxu0 %v2594
    %3045 = vmatmul.mubr.bf16.gmra.mxu0 %v2593
    %v3046 = vpop.f32.mrf.mxu0
    %v3047 = vadd.f32 %v2950, %v3046
    %v3048 = vpop.f32.mrf.mxu0
    %v3049 = vpop.f32.mrf.mxu0
    %v3050 = vadd.f32 %v2953, %v3049
    %v3051 = vpop.f32.mrf.mxu0
    %3052 = vmatprep.mubr.bf16.mxu0 %v2599
    %3053 = vmatmul.mubr.bf16.gmra.mxu0 %v2598
    %v3054 = vpop.f32.mrf.mxu0
    %v3055 = vadd.f32 %v2958, %v3054
    %v3056 = vpop.f32.mrf.mxu0
    %v3057 = vpop.f32.mrf.mxu0
    %v3058 = vadd.f32 %v2961, %v3057
    %v3059 = vpop.f32.mrf.mxu0
    %3060 = vmatprep.mubr.bf16.mxu0 %v2604
    %3061 = vmatmul.mubr.bf16.gmra.mxu0 %v2603
    %v3062 = vpop.f32.mrf.mxu0
    %v3063 = vadd.f32 %v2966, %v3062
    %v3064 = vpop.f32.mrf.mxu0
    %v3065 = vpop.f32.mrf.mxu0
    %v3066 = vadd.f32 %v2969, %v3065
    %v3067 = vpop.f32.mrf.mxu0
    %3068 = vmatprep.mubr.bf16.mxu0 %v2609
    %3069 = vmatmul.mubr.bf16.gmra.mxu0 %v2608
    %v3070 = vpop.f32.mrf.mxu0
    %v3071 = vadd.f32 %v2974, %v3070
    %v3072 = vpop.f32.mrf.mxu0
    %v3073 = vpop.f32.mrf.mxu0
    %v3074 = vadd.f32 %v2977, %v3073
    %v3075 = vpop.f32.mrf.mxu0
    %3076 = vdwg.mxu0
    %3077 = vmatprep.subr.bf16.mxu0 0
    %3078 = vmatpush1.bf16.msra.mxu0 0
    %3079 = vmatprep.subr.bf16.mxu0 0
    %3080 = vmatpush1.bf16.msra.mxu0 0
    %3081 = vmatprep.subr.bf16.mxu0 0
    %3082 = vmatpush1.bf16.msra.mxu0 0
    %3083 = vmatprep.subr.bf16.mxu0 0
    %3084 = vmatpush1.bf16.msra.mxu0 0
    %3085 = vmatprep.subr.bf16.mxu0 0
    %3086 = vmatpush1.bf16.msra.mxu0 %v2822
    %3087 = vmatprep.subr.bf16.mxu0 0
    %3088 = vmatpush1.bf16.msra.mxu0 %v2821
    %3089 = vmatprep.subr.bf16.mxu0 0
    %3090 = vmatpush1.bf16.msra.mxu0 %v2820
    %3091 = vmatprep.subr.bf16.mxu0 0
    %3092 = vmatpush1.bf16.msra.mxu0 %v2819
    %3093 = vmatprep.subr.bf16.mxu0 0
    %3094 = vmatpush2.bf16.msra.mxu0 0
    %3095 = vmatprep.subr.bf16.mxu0 0
    %3096 = vmatpush2.bf16.msra.mxu0 0
    %3097 = vmatprep.subr.bf16.mxu0 0
    %3098 = vmatpush2.bf16.msra.mxu0 0
    %3099 = vmatprep.subr.bf16.mxu0 0
    %3100 = vmatpush2.bf16.msra.mxu0 0
    %3101 = vmatprep.subr.bf16.mxu0 0
    %3102 = vmatpush2.bf16.msra.mxu0 0
    %3103 = vmatprep.subr.bf16.mxu0 0
    %3104 = vmatpush2.bf16.msra.mxu0 0
    %3105 = vmatprep.subr.bf16.mxu0 0
    %3106 = vmatpush2.bf16.msra.mxu0 0
    %3107 = vmatprep.subr.bf16.mxu0 0
    %3108 = vmatpush2.bf16.msra.mxu0 0
    %3109 = vmatprep.mubr.bf16.mxu0 0
    %3110 = vmatmul.mubr.bf16.gmra.mxu0 %v2860
    %v3111 = vpop.f32.mrf.mxu0
    %v3112 = vadd.f32 %v3015, %v3111
    %v3113 = vpop.f32.mrf.mxu0
    %v3114 = vpop.f32.mrf.mxu0
    %v3115 = vadd.f32 %v3018, %v3114
    %v3116 = vpop.f32.mrf.mxu0
    %3117 = vmatprep.mubr.bf16.mxu0 0
    %3118 = vmatmul.mubr.bf16.gmra.mxu0 %v2863
    %v3119 = vpop.f32.mrf.mxu0
    %v3120 = vadd.f32 %v3023, %v3119
    %v3121 = vpop.f32.mrf.mxu0
    %v3122 = vpop.f32.mrf.mxu0
    %v3123 = vadd.f32 %v3026, %v3122
    %v3124 = vpop.f32.mrf.mxu0
    %3125 = vmatprep.mubr.bf16.mxu0 0
    %3126 = vmatmul.mubr.bf16.gmra.mxu0 %v2866
    %v3127 = vpop.f32.mrf.mxu0
    %v3128 = vadd.f32 %v3031, %v3127
    %v3129 = vpop.f32.mrf.mxu0
    %v3130 = vpop.f32.mrf.mxu0
    %v3131 = vadd.f32 %v3034, %v3130
    %v3132 = vpop.f32.mrf.mxu0
    %3133 = vmatprep.mubr.bf16.mxu0 0
    %3134 = vmatmul.mubr.bf16.gmra.mxu0 %v2869
    %v3135 = vpop.f32.mrf.mxu0
    %v3136 = vadd.f32 %v3039, %v3135
    %v3137 = vpop.f32.mrf.mxu0
    %v3138 = vpop.f32.mrf.mxu0
    %v3139 = vadd.f32 %v3042, %v3138
    %v3140 = vpop.f32.mrf.mxu0
    %3141 = vmatprep.mubr.bf16.mxu0 0
    %3142 = vmatmul.mubr.bf16.gmra.mxu0 %v2872
    %v3143 = vpop.f32.mrf.mxu0
    %v3144 = vadd.f32 %v3047, %v3143
    %v3145 = vpop.f32.mrf.mxu0
    %v3146 = vpop.f32.mrf.mxu0
    %v3147 = vadd.f32 %v3050, %v3146
    %v3148 = vpop.f32.mrf.mxu0
    %3149 = vmatprep.mubr.bf16.mxu0 0
    %3150 = vmatmul.mubr.bf16.gmra.mxu0 %v2875
    %v3151 = vpop.f32.mrf.mxu0
    %v3152 = vadd.f32 %v3055, %v3151
    %v3153 = vpop.f32.mrf.mxu0
    %v3154 = vpop.f32.mrf.mxu0
    %v3155 = vadd.f32 %v3058, %v3154
    %v3156 = vpop.f32.mrf.mxu0
    %3157 = vmatprep.mubr.bf16.mxu0 0
    %3158 = vmatmul.mubr.bf16.gmra.mxu0 %v2878
    %v3159 = vpop.f32.mrf.mxu0
    %v3160 = vadd.f32 %v3063, %v3159
    %v3161 = vpop.f32.mrf.mxu0
    %v3162 = vpop.f32.mrf.mxu0
    %v3163 = vadd.f32 %v3066, %v3162
    %v3164 = vpop.f32.mrf.mxu0
    %3165 = vmatprep.mubr.bf16.mxu0 0
    %3166 = vmatmul.mubr.bf16.gmra.mxu0 %v2881
    %v3167 = vpop.f32.mrf.mxu0
    %v3168 = vadd.f32 %v3071, %v3167
    %v3169 = vpop.f32.mrf.mxu0
    %v3170 = vpop.f32.mrf.mxu0
    %v3171 = vadd.f32 %v3074, %v3170
    %v3172 = vpop.f32.mrf.mxu0
    %3173 = vdwg.mxu0
    %v3174 = vsel %vm34, %v3112, 0.0
    %v3175 = vsel %vm34, %v3115, 0.0
    %v3176 = vadd.f32 %v3174, %v3175
    %v3177 = vsel %vm34, %v3120, 0.0
    %v3178 = vadd.f32 %v3176, %v3177
    %v3179 = vsel %vm34, %v3123, 0.0
    %v3180 = vadd.f32 %v3178, %v3179
    %v3181 = vsel %vm34, %v3128, 0.0
    %v3182 = vadd.f32 %v3180, %v3181
    %v3183 = vsel %vm34, %v3131, 0.0
    %v3184 = vadd.f32 %v3182, %v3183
    %v3185 = vsel %vm34, %v3136, 0.0
    %v3186 = vadd.f32 %v3184, %v3185
    %v3187 = vsel %vm34, %v3139, 0.0
    %v3188 = vadd.f32 %v3186, %v3187
    %v3189 = vsel %vm34, %v3144, 0.0
    %v3190 = vadd.f32 %v3188, %v3189
    %v3191 = vsel %vm34, %v3147, 0.0
    %v3192 = vadd.f32 %v3190, %v3191
    %v3193 = vsel %vm34, %v3152, 0.0
    %v3194 = vadd.f32 %v3192, %v3193
    %v3195 = vsel %vm34, %v3155, 0.0
    %v3196 = vadd.f32 %v3194, %v3195
    %v3197 = vsel %vm34, %v3160, 0.0
    %v3198 = vadd.f32 %v3196, %v3197
    %v3199 = vsel %vm34, %v3163, 0.0
    %v3200 = vadd.f32 %v3198, %v3199
    %v3201 = vsel %vm34, %v3168, 0.0
    %v3202 = vadd.f32 %v3200, %v3201
    %v3203 = vsel %vm34, %v3171, 0.0
    %v3204 = vadd.f32 %v3202, %v3203
    %v3205 = vrot.slane %v3204, 4
    %v3206 = vadd.f32 %v3204, %v3205
    %v3207 = vrot.slane %v3206, 2
    %v3208 = vadd.f32 %v3206, %v3207
    %v3209 = vrot.slane %v3208, 1
    %v3210 = vadd.f32 %v3208, %v3209
    %v3211 = vmul.f32 %v3210, %v1141
    %v3212 = vsub.f32 %v3112, %v3211
    %v3213 = vsub.f32 %v3115, %v3211
    %v3214 = vsub.f32 %v3120, %v3211
    %v3215 = vsub.f32 %v3123, %v3211
    %v3216 = vsub.f32 %v3128, %v3211
    %v3217 = vsub.f32 %v3131, %v3211
    %v3218 = vsub.f32 %v3136, %v3211
    %v3219 = vsub.f32 %v3139, %v3211
    %v3220 = vsub.f32 %v3144, %v3211
    %v3221 = vsub.f32 %v3147, %v3211
    %v3222 = vsub.f32 %v3152, %v3211
    %v3223 = vsub.f32 %v3155, %v3211
    %v3224 = vsub.f32 %v3160, %v3211
    %v3225 = vsub.f32 %v3163, %v3211
    %v3226 = vsub.f32 %v3168, %v3211
    %v3227 = vsub.f32 %v3171, %v3211
    %v3228 = vmul.f32 %v3212, %v3212
    %v3229 = vmul.f32 %v3213, %v3213
    %v3230 = vmul.f32 %v3214, %v3214
    %v3231 = vmul.f32 %v3215, %v3215
    %v3232 = vmul.f32 %v3216, %v3216
    %v3233 = vmul.f32 %v3217, %v3217
    %v3234 = vmul.f32 %v3218, %v3218
    %v3235 = vmul.f32 %v3219, %v3219
    %v3236 = vmul.f32 %v3220, %v3220
    %v3237 = vmul.f32 %v3221, %v3221
    %v3238 = vmul.f32 %v3222, %v3222
    %v3239 = vmul.f32 %v3223, %v3223
    %v3240 = vmul.f32 %v3224, %v3224
    %v3241 = vmul.f32 %v3225, %v3225
    %v3242 = vmul.f32 %v3226, %v3226
    %v3243 = vmul.f32 %v3227, %v3227
    %v3244 = vsel %vm34, %v3228, 0.0
    %v3245 = vsel %vm34, %v3229, 0.0
    %v3246 = vadd.f32 %v3244, %v3245
    %v3247 = vsel %vm34, %v3230, 0.0
    %v3248 = vadd.f32 %v3246, %v3247
    %v3249 = vsel %vm34, %v3231, 0.0
    %v3250 = vadd.f32 %v3248, %v3249
    %v3251 = vsel %vm34, %v3232, 0.0
    %v3252 = vadd.f32 %v3250, %v3251
    %v3253 = vsel %vm34, %v3233, 0.0
    %v3254 = vadd.f32 %v3252, %v3253
    %v3255 = vsel %vm34, %v3234, 0.0
    %v3256 = vadd.f32 %v3254, %v3255
    %v3257 = vsel %vm34, %v3235, 0.0
    %v3258 = vadd.f32 %v3256, %v3257
    %v3259 = vsel %vm34, %v3236, 0.0
    %v3260 = vadd.f32 %v3258, %v3259
    %v3261 = vsel %vm34, %v3237, 0.0
    %v3262 = vadd.f32 %v3260, %v3261
    %v3263 = vsel %vm34, %v3238, 0.0
    %v3264 = vadd.f32 %v3262, %v3263
    %v3265 = vsel %vm34, %v3239, 0.0
    %v3266 = vadd.f32 %v3264, %v3265
    %v3267 = vsel %vm34, %v3240, 0.0
    %v3268 = vadd.f32 %v3266, %v3267
    %v3269 = vsel %vm34, %v3241, 0.0
    %v3270 = vadd.f32 %v3268, %v3269
    %v3271 = vsel %vm34, %v3242, 0.0
    %v3272 = vadd.f32 %v3270, %v3271
    %v3273 = vsel %vm34, %v3243, 0.0
    %v3274 = vadd.f32 %v3272, %v3273
    %v3275 = vrot.slane %v3274, 4
    %v3276 = vadd.f32 %v3274, %v3275
    %v3277 = vrot.slane %v3276, 2
    %v3278 = vadd.f32 %v3276, %v3277
    %v3279 = vrot.slane %v3278, 1
    %v3280 = vadd.f32 %v3278, %v3279
    %v3281 = vmul.f32 %v3280, %v1141
    %v3282 = vadd.f32 %v3281, 1e-05
    %v3283 = vrsqrt.pop %v3282
    %v3284 = vmul.f32 %v3212, %v3283
    %v3285 = vmul.f32 %v3213, %v3283
    %v3286 = vmul.f32 %v3214, %v3283
    %v3287 = vmul.f32 %v3215, %v3283
    %v3288 = vmul.f32 %v3216, %v3283
    %v3289 = vmul.f32 %v3217, %v3283
    %v3290 = vmul.f32 %v3218, %v3283
    %v3291 = vmul.f32 %v3219, %v3283
    %v3292 = vmul.f32 %v3220, %v3283
    %v3293 = vmul.f32 %v3221, %v3283
    %v3294 = vmul.f32 %v3222, %v3283
    %v3295 = vmul.f32 %v3223, %v3283
    %v3296 = vmul.f32 %v3224, %v3283
    %v3297 = vmul.f32 %v3225, %v3283
    %v3298 = vmul.f32 %v3226, %v3283
    %v3299 = vmul.f32 %v3227, %v3283
    %v3300 = vlaneseq
    %v3301 = vshrl.u32 %v3300, 7
    %v3302 = vsub.s32 2, %v3301
    %v3303 = vrot.slane %v1103, %v3302
    %v3304 = vmul.f32 %v3284, %v3303
    %v3305 = vmul.f32 %v3285, %v3303
    %v3306 = vmul.f32 %v3286, %v3303
    %v3307 = vmul.f32 %v3287, %v3303
    %v3308 = vmul.f32 %v3288, %v3303
    %v3309 = vmul.f32 %v3289, %v3303
    %v3310 = vmul.f32 %v3290, %v3303
    %v3311 = vmul.f32 %v3291, %v3303
    %v3312 = vmul.f32 %v3292, %v3303
    %v3313 = vmul.f32 %v3293, %v3303
    %v3314 = vmul.f32 %v3294, %v3303
    %v3315 = vmul.f32 %v3295, %v3303
    %v3316 = vmul.f32 %v3296, %v3303
    %v3317 = vmul.f32 %v3297, %v3303
    %v3318 = vmul.f32 %v3298, %v3303
    %v3319 = vmul.f32 %v3299, %v3303
    %v3320 = vlaneseq
    %v3321 = vshrl.u32 %v3320, 7
    %v3322 = vsub.s32 3, %v3321
    %v3323 = vrot.slane %v1103, %v3322
    %v3324 = vadd.f32 %v3304, %v3323
    %v3325 = vadd.f32 %v3305, %v3323
    %v3326 = vadd.f32 %v3306, %v3323
    %v3327 = vadd.f32 %v3307, %v3323
    %v3328 = vadd.f32 %v3308, %v3323
    %v3329 = vadd.f32 %v3309, %v3323
    %v3330 = vadd.f32 %v3310, %v3323
    %v3331 = vadd.f32 %v3311, %v3323
    %v3332 = vadd.f32 %v3312, %v3323
    %v3333 = vadd.f32 %v3313, %v3323
    %v3334 = vadd.f32 %v3314, %v3323
    %v3335 = vadd.f32 %v3315, %v3323
    %v3336 = vadd.f32 %v3316, %v3323
    %v3337 = vadd.f32 %v3317, %v3323
    %v3338 = vadd.f32 %v3318, %v3323
    %v3339 = vadd.f32 %v3319, %v3323
    %3356 = vrot.lane.b32.xlu0 %v1295, 64
    %v3357 = vpop.permute.xlu0 %3356
    %3358 = vrot.lane.b32.xlu0 %v1296, 64
    %v3359 = vpop.permute.xlu0 %3358
    %3360 = vrot.lane.b32.xlu0 %v1297, 64
    %v3361 = vpop.permute.xlu0 %3360
    %3362 = vrot.lane.b32.xlu0 %v1298, 64
    %v3363 = vpop.permute.xlu0 %3362
    %3364 = vrot.lane.b32.xlu0 %v1299, 64
    %v3365 = vpop.permute.xlu0 %3364
    %3366 = vrot.lane.b32.xlu0 %v1300, 64
    %v3367 = vpop.permute.xlu0 %3366
    %3368 = vrot.lane.b32.xlu0 %v1301, 64
    %v3369 = vpop.permute.xlu0 %3368
    %3370 = vrot.lane.b32.xlu0 %v1302, 64
    %v3371 = vpop.permute.xlu0 %3370
    %3372 = vrot.lane.b32.xlu0 %v1303, 64
    %v3373 = vpop.permute.xlu0 %3372
    %3374 = vrot.lane.b32.xlu0 %v1304, 64
    %v3375 = vpop.permute.xlu0 %3374
    %3376 = vrot.lane.b32.xlu0 %v1305, 64
    %v3377 = vpop.permute.xlu0 %3376
    %3378 = vrot.lane.b32.xlu0 %v1306, 64
    %v3379 = vpop.permute.xlu0 %3378
    %3380 = vrot.lane.b32.xlu0 %v1307, 64
    %v3381 = vpop.permute.xlu0 %3380
    %3382 = vrot.lane.b32.xlu0 %v1308, 64
    %v3383 = vpop.permute.xlu0 %3382
    %3384 = vrot.lane.b32.xlu0 %v1309, 64
    %v3385 = vpop.permute.xlu0 %3384
    %3386 = vrot.lane.b32.xlu0 %v1310, 64
    %v3387 = vpop.permute.xlu0 %3386
    %v3404 = vadd.f32 %v3324, %v3357
    %v3405 = vadd.f32 %v3325, %v3359
    %v3406 = vadd.f32 %v3326, %v3361
    %v3407 = vadd.f32 %v3327, %v3363
    %v3408 = vadd.f32 %v3328, %v3365
    %v3409 = vadd.f32 %v3329, %v3367
    %v3410 = vadd.f32 %v3330, %v3369
    %v3411 = vadd.f32 %v3331, %v3371
    %v3412 = vadd.f32 %v3332, %v3373
    %v3413 = vadd.f32 %v3333, %v3375
    %v3414 = vadd.f32 %v3334, %v3377
    %v3415 = vadd.f32 %v3335, %v3379
    %v3416 = vadd.f32 %v3336, %v3381
    %v3417 = vadd.f32 %v3337, %v3383
    %v3418 = vadd.f32 %v3338, %v3385
    %v3419 = vadd.f32 %v3339, %v3387
    %v3420 = vmax.f32 %v3404, 0.0
    %v3421 = vmax.f32 %v3405, 0.0
    %v3422 = vmax.f32 %v3406, 0.0
    %v3423 = vmax.f32 %v3407, 0.0
    %v3424 = vmax.f32 %v3408, 0.0
    %v3425 = vmax.f32 %v3409, 0.0
    %v3426 = vmax.f32 %v3410, 0.0
    %v3427 = vmax.f32 %v3411, 0.0
    %v3428 = vmax.f32 %v3412, 0.0
    %v3429 = vmax.f32 %v3413, 0.0
    %v3430 = vmax.f32 %v3414, 0.0
    %v3431 = vmax.f32 %v3415, 0.0
    %v3432 = vmax.f32 %v3416, 0.0
    %v3433 = vmax.f32 %v3417, 0.0
    %v3434 = vmax.f32 %v3418, 0.0
    %v3435 = vmax.f32 %v3419, 0.0
    %v3436 = vld [vmem:[%s6] sm:$0xf]
    %v3437 = vld [vmem:[%s4] sm:$0xf]
    %v3438 = vld [vmem:[%s4 + $0x4] sm:$0xf]
    %v3439 = vld [vmem:[%s4 + $0x8] sm:$0xf]
    %v3440 = vld [vmem:[%s4 + $0xc] sm:$0xf]
    %v3441 = vld [vmem:[%s4 + $0x10] sm:$0xf]
    %v3442 = vld [vmem:[%s4 + $0x14] sm:$0xf]
    %v3443 = vld [vmem:[%s4 + $0x18] sm:$0xf]
    %v3444 = vld [vmem:[%s4 + $0x1c] sm:$0xf]
    %v3445 = vld [vmem:[%s4 + $0x20] sm:$0xf]
    %v3446 = vld [vmem:[%s4 + $0x24] sm:$0xf]
    %v3447 = vld [vmem:[%s4 + $0x28] sm:$0xf]
    %v3448 = vld [vmem:[%s4 + $0x2c] sm:$0xf]
    %v3449 = vld [vmem:[%s4 + $0x30] sm:$0xf]
    %v3450 = vld [vmem:[%s4 + $0x34] sm:$0xf]
    %v3451 = vld [vmem:[%s4 + $0x38] sm:$0xf]
    %v3452 = vld [vmem:[%s4 + $0x3c] sm:$0xf]
    %v3453 = vld [vmem:[%s4 + $0x40] sm:$0xf]
    %v3454 = vld [vmem:[%s4 + $0x44] sm:$0xf]
    %v3455 = vld [vmem:[%s4 + $0x48] sm:$0xf]
    %v3456 = vld [vmem:[%s4 + $0x4c] sm:$0xf]
    %v3457 = vld [vmem:[%s4 + $0x50] sm:$0xf]
    %v3458 = vld [vmem:[%s4 + $0x54] sm:$0xf]
    %v3459 = vld [vmem:[%s4 + $0x58] sm:$0xf]
    %v3460 = vld [vmem:[%s4 + $0x5c] sm:$0xf]
    %v3461 = vld [vmem:[%s4 + $0x60] sm:$0xf]
    %v3462 = vld [vmem:[%s4 + $0x64] sm:$0xf]
    %v3463 = vld [vmem:[%s4 + $0x68] sm:$0xf]
    %v3464 = vld [vmem:[%s4 + $0x6c] sm:$0xf]
    %v3465 = vld [vmem:[%s4 + $0x70] sm:$0xf]
    %v3466 = vld [vmem:[%s4 + $0x74] sm:$0xf]
    %v3467 = vld [vmem:[%s4 + $0x78] sm:$0xf]
    %v3468 = vld [vmem:[%s4 + $0x7c] sm:$0xf]
    %v3469 = vld [vmem:[%s4 + $0x80] sm:$0xf]
    %v3470 = vld [vmem:[%s4 + $0x84] sm:$0xf]
    %v3471 = vld [vmem:[%s4 + $0x88] sm:$0xf]
    %v3472 = vld [vmem:[%s4 + $0x8c] sm:$0xf]
    %v3473 = vld [vmem:[%s4 + $0x90] sm:$0xf]
    %v3474 = vld [vmem:[%s4 + $0x94] sm:$0xf]
    %v3475 = vld [vmem:[%s4 + $0x98] sm:$0xf]
    %v3476 = vld [vmem:[%s4 + $0x9c] sm:$0xf]
    %v3477 = vld [vmem:[%s4 + $0xa0] sm:$0xf]
    %v3478 = vld [vmem:[%s4 + $0xa4] sm:$0xf]
    %v3479 = vld [vmem:[%s4 + $0xa8] sm:$0xf]
    %v3480 = vld [vmem:[%s4 + $0xac] sm:$0xf]
    %v3481 = vld [vmem:[%s4 + $0xb0] sm:$0xf]
    %v3482 = vld [vmem:[%s4 + $0xb4] sm:$0xf]
    %v3483 = vld [vmem:[%s4 + $0xb8] sm:$0xf]
    %v3484 = vld [vmem:[%s4 + $0xbc] sm:$0xf]
    %v3485 = vld [vmem:[%s4 + $0xc0] sm:$0xf]
    %v3486 = vld [vmem:[%s4 + $0xc4] sm:$0xf]
    %v3487 = vld [vmem:[%s4 + $0xc8] sm:$0xf]
    %v3488 = vld [vmem:[%s4 + $0xcc] sm:$0xf]
    %v3489 = vld [vmem:[%s4 + $0xd0] sm:$0xf]
    %v3490 = vld [vmem:[%s4 + $0xd4] sm:$0xf]
    %v3491 = vld [vmem:[%s4 + $0xd8] sm:$0xf]
    %v3492 = vld [vmem:[%s4 + $0xdc] sm:$0xf]
    %v3493 = vld [vmem:[%s4 + $0xe0] sm:$0xf]
    %v3494 = vld [vmem:[%s4 + $0xe4] sm:$0xf]
    %v3495 = vld [vmem:[%s4 + $0xe8] sm:$0xf]
    %v3496 = vld [vmem:[%s4 + $0xec] sm:$0xf]
    %v3497 = vld [vmem:[%s4 + $0xf0] sm:$0xf]
    %v3498 = vld [vmem:[%s4 + $0xf4] sm:$0xf]
    %v3499 = vld [vmem:[%s4 + $0xf8] sm:$0xf]
    %v3500 = vld [vmem:[%s4 + $0xfc] sm:$0xf]
    %v3501 = vld [vmem:[%s4 + $0x100] sm:$0xf]
    %v3502 = vld [vmem:[%s4 + $0x104] sm:$0xf]
    %v3503 = vld [vmem:[%s4 + $0x108] sm:$0xf]
    %v3504 = vld [vmem:[%s4 + $0x10c] sm:$0xf]
    %v3505 = vld [vmem:[%s4 + $0x110] sm:$0xf]
    %v3506 = vld [vmem:[%s4 + $0x114] sm:$0xf]
    %v3507 = vld [vmem:[%s4 + $0x118] sm:$0xf]
    %v3508 = vld [vmem:[%s4 + $0x11c] sm:$0xf]
    %3509 = vst.msk [vmem:[%s1383 + $0x1] sm:$0xff] %vm34, %v3420
    %3510 = vst.msk [vmem:[%s1383 + $0x11] sm:$0xff] %vm34, %v3421
    %3511 = vst.msk [vmem:[%s1383 + $0x21] sm:$0xff] %vm34, %v3422
    %3512 = vst.msk [vmem:[%s1383 + $0x31] sm:$0xff] %vm34, %v3423
    %3513 = vst.msk [vmem:[%s1383 + $0x41] sm:$0xff] %vm34, %v3424
    %3514 = vst.msk [vmem:[%s1383 + $0x51] sm:$0xff] %vm34, %v3425
    %3515 = vst.msk [vmem:[%s1383 + $0x61] sm:$0xff] %vm34, %v3426
    %3516 = vst.msk [vmem:[%s1383 + $0x71] sm:$0xff] %vm34, %v3427
    %3517 = vst.msk [vmem:[%s1383 + $0xa1] sm:$0xff] %vm34, %v3428
    %3518 = vst.msk [vmem:[%s1383 + $0xb1] sm:$0xff] %vm34, %v3429
    %3519 = vst.msk [vmem:[%s1383 + $0xc1] sm:$0xff] %vm34, %v3430
    %3520 = vst.msk [vmem:[%s1383 + $0xd1] sm:$0xff] %vm34, %v3431
    %3521 = vst.msk [vmem:[%s1383 + $0xe1] sm:$0xff] %vm34, %v3432
    %3522 = vst.msk [vmem:[%s1383 + $0xf1] sm:$0xff] %vm34, %v3433
    %3523 = vst.msk [vmem:[%s1383 + $0x101] sm:$0xff] %vm34, %v3434
    %3524 = vst.msk [vmem:[%s1383 + $0x111] sm:$0xff] %vm34, %v3435
    %v3525 = vld [vmem:[#allocation2] sm:$0xff]
    %v3526 = vld [vmem:[#allocation2 + $0x10] sm:$0xff]
    %v3527 = vld [vmem:[#allocation2 + $0x20] sm:$0xff]
    %v3528 = vld [vmem:[#allocation2 + $0x30] sm:$0xff]
    %v3529 = vld [vmem:[#allocation2 + $0x40] sm:$0xff]
    %v3530 = vld [vmem:[#allocation2 + $0x50] sm:$0xff]
    %v3531 = vld [vmem:[#allocation2 + $0x60] sm:$0xff]
    %v3532 = vld [vmem:[#allocation2 + $0x70] sm:$0xff]
    %v3533 = vld [vmem:[#allocation2 + $0xa0] sm:$0xff]
    %v3534 = vld [vmem:[#allocation2 + $0xb0] sm:$0xff]
    %v3535 = vld [vmem:[#allocation2 + $0xc0] sm:$0xff]
    %v3536 = vld [vmem:[#allocation2 + $0xd0] sm:$0xff]
    %v3537 = vld [vmem:[#allocation2 + $0xe0] sm:$0xff]
    %v3538 = vld [vmem:[#allocation2 + $0xf0] sm:$0xff]
    %v3539 = vld [vmem:[#allocation2 + $0x100] sm:$0xff]
    %v3540 = vld [vmem:[#allocation2 + $0x110] sm:$0xff]
    %v3541 = vpack.c.bf16 %v3526, %v3525
    %v3542 = vpack.c.bf16 %v3528, %v3527
    %v3543 = vpack.c.bf16 %v3530, %v3529
    %v3544 = vpack.c.bf16 %v3532, %v3531
    %v3545 = vpack.c.bf16 %v3534, %v3533
    %v3546 = vpack.c.bf16 %v3536, %v3535
    %v3547 = vpack.c.bf16 %v3538, %v3537
    %v3548 = vpack.c.bf16 %v3540, %v3539
    %v3557 = vunpack.c.l.b16 %v3541
    %v3558 = vunpack.c.h.b16 %v3541
    %v3559 = vunpack.c.l.b16 %v3542
    %v3560 = vunpack.c.h.b16 %v3542
    %v3561 = vunpack.c.l.b16 %v3543
    %v3562 = vunpack.c.h.b16 %v3543
    %v3563 = vunpack.c.l.b16 %v3544
    %v3564 = vunpack.c.h.b16 %v3544
    %v3565 = vunpack.c.l.b16 %v3545
    %v3566 = vunpack.c.h.b16 %v3545
    %v3567 = vunpack.c.l.b16 %v3546
    %v3568 = vunpack.c.h.b16 %v3546
    %v3569 = vunpack.c.l.b16 %v3547
    %v3570 = vunpack.c.h.b16 %v3547
    %v3571 = vunpack.c.l.b16 %v3548
    %v3572 = vunpack.c.h.b16 %v3548
    %v3573 = vpack.c.b16 %v3557, %v3557
    %v3574 = vpack.c.b16 %v3558, %v3558
    %v3575 = vpack.c.b16 %v3559, %v3559
    %v3576 = vpack.c.b16 %v3560, %v3560
    %v3577 = vpack.c.b16 %v3561, %v3561
    %v3578 = vpack.c.b16 %v3562, %v3562
    %v3579 = vpack.c.b16 %v3563, %v3563
    %v3580 = vpack.c.b16 %v3564, %v3564
    %v3581 = vpack.c.b16 %v3565, %v3565
    %v3582 = vpack.c.b16 %v3566, %v3566
    %v3583 = vpack.c.b16 %v3567, %v3567
    %v3584 = vpack.c.b16 %v3568, %v3568
    %v3585 = vpack.c.b16 %v3569, %v3569
    %v3586 = vpack.c.b16 %v3570, %v3570
    %v3587 = vpack.c.b16 %v3571, %v3571
    %v3588 = vpack.c.b16 %v3572, %v3572
    %3605 = vst.msk [vmem:[#allocation3] sm:$0xf] %vm1480, %v3573
    %3606 = vst.msk [vmem:[#allocation3 + $0x14] sm:$0xf] %vm1480, %v3574
    %3607 = vst.msk [vmem:[#allocation3 + $0x28] sm:$0xf] %vm1480, %v3575
    %3608 = vst.msk [vmem:[#allocation3 + $0x3c] sm:$0xf] %vm1480, %v3576
    %3609 = vst.msk [vmem:[#allocation3 + $0x50] sm:$0xf] %vm1480, %v3577
    %3610 = vst.msk [vmem:[#allocation3 + $0x64] sm:$0xf] %vm1480, %v3578
    %3611 = vst.msk [vmem:[#allocation3 + $0x78] sm:$0xf] %vm1480, %v3579
    %3612 = vst.msk [vmem:[#allocation3 + $0x8c] sm:$0xf] %vm1480, %v3580
    %3613 = vst.msk [vmem:[#allocation3 + $0xa0] sm:$0xf] %vm1480, %v3581
    %3614 = vst.msk [vmem:[#allocation3 + $0xb4] sm:$0xf] %vm1480, %v3582
    %3615 = vst.msk [vmem:[#allocation3 + $0xc8] sm:$0xf] %vm1480, %v3583
    %3616 = vst.msk [vmem:[#allocation3 + $0xdc] sm:$0xf] %vm1480, %v3584
    %3617 = vst.msk [vmem:[#allocation3 + $0xf0] sm:$0xf] %vm1480, %v3585
    %3618 = vst.msk [vmem:[#allocation3 + $0x104] sm:$0xf] %vm1480, %v3586
    %3619 = vst.msk [vmem:[#allocation3 + $0x118] sm:$0xf] %vm1480, %v3587
    %3620 = vst.msk [vmem:[#allocation3 + $0x12c] sm:$0xf] %vm1480, %v3588
    %v3621 = vld [vmem:[#allocation2 + $0x1] sm:$0xff]
    %v3622 = vld [vmem:[#allocation2 + $0x11] sm:$0xff]
    %v3623 = vld [vmem:[#allocation2 + $0x21] sm:$0xff]
    %v3624 = vld [vmem:[#allocation2 + $0x31] sm:$0xff]
    %v3625 = vld [vmem:[#allocation2 + $0x41] sm:$0xff]
    %v3626 = vld [vmem:[#allocation2 + $0x51] sm:$0xff]
    %v3627 = vld [vmem:[#allocation2 + $0x61] sm:$0xff]
    %v3628 = vld [vmem:[#allocation2 + $0x71] sm:$0xff]
    %v3629 = vld [vmem:[#allocation2 + $0xa1] sm:$0xff]
    %v3630 = vld [vmem:[#allocation2 + $0xb1] sm:$0xff]
    %v3631 = vld [vmem:[#allocation2 + $0xc1] sm:$0xff]
    %v3632 = vld [vmem:[#allocation2 + $0xd1] sm:$0xff]
    %v3633 = vld [vmem:[#allocation2 + $0xe1] sm:$0xff]
    %v3634 = vld [vmem:[#allocation2 + $0xf1] sm:$0xff]
    %v3635 = vld [vmem:[#allocation2 + $0x101] sm:$0xff]
    %v3636 = vld [vmem:[#allocation2 + $0x111] sm:$0xff]
    %v3637 = vpack.c.bf16 %v3622, %v3621
    %v3638 = vpack.c.bf16 %v3624, %v3623
    %v3639 = vpack.c.bf16 %v3626, %v3625
    %v3640 = vpack.c.bf16 %v3628, %v3627
    %v3641 = vpack.c.bf16 %v3630, %v3629
    %v3642 = vpack.c.bf16 %v3632, %v3631
    %v3643 = vpack.c.bf16 %v3634, %v3633
    %v3644 = vpack.c.bf16 %v3636, %v3635
    %v3653 = vunpack.c.l.b16 %v3637
    %v3654 = vunpack.c.h.b16 %v3637
    %v3655 = vunpack.c.l.b16 %v3638
    %v3656 = vunpack.c.h.b16 %v3638
    %v3657 = vunpack.c.l.b16 %v3639
    %v3658 = vunpack.c.h.b16 %v3639
    %v3659 = vunpack.c.l.b16 %v3640
    %v3660 = vunpack.c.h.b16 %v3640
    %v3661 = vunpack.c.l.b16 %v3641
    %v3662 = vunpack.c.h.b16 %v3641
    %v3663 = vunpack.c.l.b16 %v3642
    %v3664 = vunpack.c.h.b16 %v3642
    %v3665 = vunpack.c.l.b16 %v3643
    %v3666 = vunpack.c.h.b16 %v3643
    %v3667 = vunpack.c.l.b16 %v3644
    %v3668 = vunpack.c.h.b16 %v3644
    %v3669 = vpack.c.b16 %v3653, %v3653
    %v3670 = vpack.c.b16 %v3654, %v3654
    %v3671 = vpack.c.b16 %v3655, %v3655
    %v3672 = vpack.c.b16 %v3656, %v3656
    %v3673 = vpack.c.b16 %v3657, %v3657
    %v3674 = vpack.c.b16 %v3658, %v3658
    %v3675 = vpack.c.b16 %v3659, %v3659
    %v3676 = vpack.c.b16 %v3660, %v3660
    %v3677 = vpack.c.b16 %v3661, %v3661
    %v3678 = vpack.c.b16 %v3662, %v3662
    %v3679 = vpack.c.b16 %v3663, %v3663
    %v3680 = vpack.c.b16 %v3664, %v3664
    %v3681 = vpack.c.b16 %v3665, %v3665
    %v3682 = vpack.c.b16 %v3666, %v3666
    %v3683 = vpack.c.b16 %v3667, %v3667
    %v3684 = vpack.c.b16 %v3668, %v3668
    %3685 = vrot.lane.b32.xlu0 %v3669, 64
    %v3686 = vpop.permute.xlu0 %3685
    %3687 = vrot.lane.b32.xlu0 %v3670, 64
    %v3688 = vpop.permute.xlu0 %3687
    %3689 = vrot.lane.b32.xlu0 %v3671, 64
    %v3690 = vpop.permute.xlu0 %3689
    %3691 = vrot.lane.b32.xlu0 %v3672, 64
    %v3692 = vpop.permute.xlu0 %3691
    %3693 = vrot.lane.b32.xlu0 %v3673, 64
    %v3694 = vpop.permute.xlu0 %3693
    %3695 = vrot.lane.b32.xlu0 %v3674, 64
    %v3696 = vpop.permute.xlu0 %3695
    %3697 = vrot.lane.b32.xlu0 %v3675, 64
    %v3698 = vpop.permute.xlu0 %3697
    %3699 = vrot.lane.b32.xlu0 %v3676, 64
    %v3700 = vpop.permute.xlu0 %3699
    %3701 = vrot.lane.b32.xlu0 %v3677, 64
    %v3702 = vpop.permute.xlu0 %3701
    %3703 = vrot.lane.b32.xlu0 %v3678, 64
    %v3704 = vpop.permute.xlu0 %3703
    %3705 = vrot.lane.b32.xlu0 %v3679, 64
    %v3706 = vpop.permute.xlu0 %3705
    %3707 = vrot.lane.b32.xlu0 %v3680, 64
    %v3708 = vpop.permute.xlu0 %3707
    %3709 = vrot.lane.b32.xlu0 %v3681, 64
    %v3710 = vpop.permute.xlu0 %3709
    %3711 = vrot.lane.b32.xlu0 %v3682, 64
    %v3712 = vpop.permute.xlu0 %3711
    %3713 = vrot.lane.b32.xlu0 %v3683, 64
    %v3714 = vpop.permute.xlu0 %3713
    %3715 = vrot.lane.b32.xlu0 %v3684, 64
    %v3716 = vpop.permute.xlu0 %3715
    %3733 = vst.msk [vmem:[#allocation3] sm:$0xf] %vm1609, %v3686
    %3734 = vst.msk [vmem:[#allocation3 + $0x14] sm:$0xf] %vm1609, %v3688
    %3735 = vst.msk [vmem:[#allocation3 + $0x28] sm:$0xf] %vm1609, %v3690
    %3736 = vst.msk [vmem:[#allocation3 + $0x3c] sm:$0xf] %vm1609, %v3692
    %3737 = vst.msk [vmem:[#allocation3 + $0x50] sm:$0xf] %vm1609, %v3694
    %3738 = vst.msk [vmem:[#allocation3 + $0x64] sm:$0xf] %vm1609, %v3696
    %3739 = vst.msk [vmem:[#allocation3 + $0x78] sm:$0xf] %vm1609, %v3698
    %3740 = vst.msk [vmem:[#allocation3 + $0x8c] sm:$0xf] %vm1609, %v3700
    %3741 = vst.msk [vmem:[#allocation3 + $0xa0] sm:$0xf] %vm1609, %v3702
    %3742 = vst.msk [vmem:[#allocation3 + $0xb4] sm:$0xf] %vm1609, %v3704
    %3743 = vst.msk [vmem:[#allocation3 + $0xc8] sm:$0xf] %vm1609, %v3706
    %3744 = vst.msk [vmem:[#allocation3 + $0xdc] sm:$0xf] %vm1609, %v3708
    %3745 = vst.msk [vmem:[#allocation3 + $0xf0] sm:$0xf] %vm1609, %v3710
    %3746 = vst.msk [vmem:[#allocation3 + $0x104] sm:$0xf] %vm1609, %v3712
    %3747 = vst.msk [vmem:[#allocation3 + $0x118] sm:$0xf] %vm1609, %v3714
    %3748 = vst.msk [vmem:[#allocation3 + $0x12c] sm:$0xf] %vm1609, %v3716
    %v3749 = vld [vmem:[#allocation2 + $0x2] sm:$0xff]
    %v3750 = vld [vmem:[#allocation2 + $0x12] sm:$0xff]
    %v3751 = vld [vmem:[#allocation2 + $0x22] sm:$0xff]
    %v3752 = vld [vmem:[#allocation2 + $0x32] sm:$0xff]
    %v3753 = vld [vmem:[#allocation2 + $0x42] sm:$0xff]
    %v3754 = vld [vmem:[#allocation2 + $0x52] sm:$0xff]
    %v3755 = vld [vmem:[#allocation2 + $0x62] sm:$0xff]
    %v3756 = vld [vmem:[#allocation2 + $0x72] sm:$0xff]
    %v3757 = vld [vmem:[#allocation2 + $0xa2] sm:$0xff]
    %v3758 = vld [vmem:[#allocation2 + $0xb2] sm:$0xff]
    %v3759 = vld [vmem:[#allocation2 + $0xc2] sm:$0xff]
    %v3760 = vld [vmem:[#allocation2 + $0xd2] sm:$0xff]
    %v3761 = vld [vmem:[#allocation2 + $0xe2] sm:$0xff]
    %v3762 = vld [vmem:[#allocation2 + $0xf2] sm:$0xff]
    %v3763 = vld [vmem:[#allocation2 + $0x102] sm:$0xff]
    %v3764 = vld [vmem:[#allocation2 + $0x112] sm:$0xff]
    %v3765 = vpack.c.bf16 %v3750, %v3749
    %v3766 = vpack.c.bf16 %v3752, %v3751
    %v3767 = vpack.c.bf16 %v3754, %v3753
    %v3768 = vpack.c.bf16 %v3756, %v3755
    %v3769 = vpack.c.bf16 %v3758, %v3757
    %v3770 = vpack.c.bf16 %v3760, %v3759
    %v3771 = vpack.c.bf16 %v3762, %v3761
    %v3772 = vpack.c.bf16 %v3764, %v3763
    %v3781 = vunpack.c.l.b16 %v3765
    %v3782 = vunpack.c.h.b16 %v3765
    %v3783 = vunpack.c.l.b16 %v3766
    %v3784 = vunpack.c.h.b16 %v3766
    %v3785 = vunpack.c.l.b16 %v3767
    %v3786 = vunpack.c.h.b16 %v3767
    %v3787 = vunpack.c.l.b16 %v3768
    %v3788 = vunpack.c.h.b16 %v3768
    %v3789 = vunpack.c.l.b16 %v3769
    %v3790 = vunpack.c.h.b16 %v3769
    %v3791 = vunpack.c.l.b16 %v3770
    %v3792 = vunpack.c.h.b16 %v3770
    %v3793 = vunpack.c.l.b16 %v3771
    %v3794 = vunpack.c.h.b16 %v3771
    %v3795 = vunpack.c.l.b16 %v3772
    %v3796 = vunpack.c.h.b16 %v3772
    %v3797 = vpack.c.b16 %v3781, %v3781
    %v3798 = vpack.c.b16 %v3782, %v3782
    %v3799 = vpack.c.b16 %v3783, %v3783
    %v3800 = vpack.c.b16 %v3784, %v3784
    %v3801 = vpack.c.b16 %v3785, %v3785
    %v3802 = vpack.c.b16 %v3786, %v3786
    %v3803 = vpack.c.b16 %v3787, %v3787
    %v3804 = vpack.c.b16 %v3788, %v3788
    %v3805 = vpack.c.b16 %v3789, %v3789
    %v3806 = vpack.c.b16 %v3790, %v3790
    %v3807 = vpack.c.b16 %v3791, %v3791
    %v3808 = vpack.c.b16 %v3792, %v3792
    %v3809 = vpack.c.b16 %v3793, %v3793
    %v3810 = vpack.c.b16 %v3794, %v3794
    %v3811 = vpack.c.b16 %v3795, %v3795
    %v3812 = vpack.c.b16 %v3796, %v3796
    %3829 = vst.msk [vmem:[#allocation3 + $0x4] sm:$0xf] %vm1480, %v3797
    %3830 = vst.msk [vmem:[#allocation3 + $0x18] sm:$0xf] %vm1480, %v3798
    %3831 = vst.msk [vmem:[#allocation3 + $0x2c] sm:$0xf] %vm1480, %v3799
    %3832 = vst.msk [vmem:[#allocation3 + $0x40] sm:$0xf] %vm1480, %v3800
    %3833 = vst.msk [vmem:[#allocation3 + $0x54] sm:$0xf] %vm1480, %v3801
    %3834 = vst.msk [vmem:[#allocation3 + $0x68] sm:$0xf] %vm1480, %v3802
    %3835 = vst.msk [vmem:[#allocation3 + $0x7c] sm:$0xf] %vm1480, %v3803
    %3836 = vst.msk [vmem:[#allocation3 + $0x90] sm:$0xf] %vm1480, %v3804
    %3837 = vst.msk [vmem:[#allocation3 + $0xa4] sm:$0xf] %vm1480, %v3805
    %3838 = vst.msk [vmem:[#allocation3 + $0xb8] sm:$0xf] %vm1480, %v3806
    %3839 = vst.msk [vmem:[#allocation3 + $0xcc] sm:$0xf] %vm1480, %v3807
    %3840 = vst.msk [vmem:[#allocation3 + $0xe0] sm:$0xf] %vm1480, %v3808
    %3841 = vst.msk [vmem:[#allocation3 + $0xf4] sm:$0xf] %vm1480, %v3809
    %3842 = vst.msk [vmem:[#allocation3 + $0x108] sm:$0xf] %vm1480, %v3810
    %3843 = vst.msk [vmem:[#allocation3 + $0x11c] sm:$0xf] %vm1480, %v3811
    %3844 = vst.msk [vmem:[#allocation3 + $0x130] sm:$0xf] %vm1480, %v3812
    %v3845 = vld [vmem:[%s1383] sm:$0xff]
    %v3846 = vld [vmem:[%s1383 + $0x10] sm:$0xff]
    %v3847 = vld [vmem:[%s1383 + $0x20] sm:$0xff]
    %v3848 = vld [vmem:[%s1383 + $0x30] sm:$0xff]
    %v3849 = vld [vmem:[%s1383 + $0x40] sm:$0xff]
    %v3850 = vld [vmem:[%s1383 + $0x50] sm:$0xff]
    %v3851 = vld [vmem:[%s1383 + $0x60] sm:$0xff]
    %v3852 = vld [vmem:[%s1383 + $0x70] sm:$0xff]
    %v3853 = vld [vmem:[%s1383 + $0xa0] sm:$0xff]
    %v3854 = vld [vmem:[%s1383 + $0xb0] sm:$0xff]
    %v3855 = vld [vmem:[%s1383 + $0xc0] sm:$0xff]
    %v3856 = vld [vmem:[%s1383 + $0xd0] sm:$0xff]
    %v3857 = vld [vmem:[%s1383 + $0xe0] sm:$0xff]
    %v3858 = vld [vmem:[%s1383 + $0xf0] sm:$0xff]
    %v3859 = vld [vmem:[%s1383 + $0x100] sm:$0xff]
    %v3860 = vld [vmem:[%s1383 + $0x110] sm:$0xff]
    %v3861 = vpack.c.bf16 %v3846, %v3845
    %v3862 = vpack.c.bf16 %v3848, %v3847
    %v3863 = vpack.c.bf16 %v3850, %v3849
    %v3864 = vpack.c.bf16 %v3852, %v3851
    %v3865 = vpack.c.bf16 %v3854, %v3853
    %v3866 = vpack.c.bf16 %v3856, %v3855
    %v3867 = vpack.c.bf16 %v3858, %v3857
    %v3868 = vpack.c.bf16 %v3860, %v3859
    %v3877 = vunpack.c.l.b16 %v3861
    %v3878 = vunpack.c.h.b16 %v3861
    %v3879 = vunpack.c.l.b16 %v3862
    %v3880 = vunpack.c.h.b16 %v3862
    %v3881 = vunpack.c.l.b16 %v3863
    %v3882 = vunpack.c.h.b16 %v3863
    %v3883 = vunpack.c.l.b16 %v3864
    %v3884 = vunpack.c.h.b16 %v3864
    %v3885 = vunpack.c.l.b16 %v3865
    %v3886 = vunpack.c.h.b16 %v3865
    %v3887 = vunpack.c.l.b16 %v3866
    %v3888 = vunpack.c.h.b16 %v3866
    %v3889 = vunpack.c.l.b16 %v3867
    %v3890 = vunpack.c.h.b16 %v3867
    %v3891 = vunpack.c.l.b16 %v3868
    %v3892 = vunpack.c.h.b16 %v3868
    %v3893 = vpack.c.b16 %v3877, %v3877
    %v3894 = vpack.c.b16 %v3878, %v3878
    %v3895 = vpack.c.b16 %v3879, %v3879
    %v3896 = vpack.c.b16 %v3880, %v3880
    %v3897 = vpack.c.b16 %v3881, %v3881
    %v3898 = vpack.c.b16 %v3882, %v3882
    %v3899 = vpack.c.b16 %v3883, %v3883
    %v3900 = vpack.c.b16 %v3884, %v3884
    %v3901 = vpack.c.b16 %v3885, %v3885
    %v3902 = vpack.c.b16 %v3886, %v3886
    %v3903 = vpack.c.b16 %v3887, %v3887
    %v3904 = vpack.c.b16 %v3888, %v3888
    %v3905 = vpack.c.b16 %v3889, %v3889
    %v3906 = vpack.c.b16 %v3890, %v3890
    %v3907 = vpack.c.b16 %v3891, %v3891
    %v3908 = vpack.c.b16 %v3892, %v3892
    %3909 = vrot.lane.b32.xlu0 %v3893, 64
    %v3910 = vpop.permute.xlu0 %3909
    %3911 = vrot.lane.b32.xlu0 %v3894, 64
    %v3912 = vpop.permute.xlu0 %3911
    %3913 = vrot.lane.b32.xlu0 %v3895, 64
    %v3914 = vpop.permute.xlu0 %3913
    %3915 = vrot.lane.b32.xlu0 %v3896, 64
    %v3916 = vpop.permute.xlu0 %3915
    %3917 = vrot.lane.b32.xlu0 %v3897, 64
    %v3918 = vpop.permute.xlu0 %3917
    %3919 = vrot.lane.b32.xlu0 %v3898, 64
    %v3920 = vpop.permute.xlu0 %3919
    %3921 = vrot.lane.b32.xlu0 %v3899, 64
    %v3922 = vpop.permute.xlu0 %3921
    %3923 = vrot.lane.b32.xlu0 %v3900, 64
    %v3924 = vpop.permute.xlu0 %3923
    %3925 = vrot.lane.b32.xlu0 %v3901, 64
    %v3926 = vpop.permute.xlu0 %3925
    %3927 = vrot.lane.b32.xlu0 %v3902, 64
    %v3928 = vpop.permute.xlu0 %3927
    %3929 = vrot.lane.b32.xlu0 %v3903, 64
    %v3930 = vpop.permute.xlu0 %3929
    %3931 = vrot.lane.b32.xlu0 %v3904, 64
    %v3932 = vpop.permute.xlu0 %3931
    %3933 = vrot.lane.b32.xlu0 %v3905, 64
    %v3934 = vpop.permute.xlu0 %3933
    %3935 = vrot.lane.b32.xlu0 %v3906, 64
    %v3936 = vpop.permute.xlu0 %3935
    %3937 = vrot.lane.b32.xlu0 %v3907, 64
    %v3938 = vpop.permute.xlu0 %3937
    %3939 = vrot.lane.b32.xlu0 %v3908, 64
    %v3940 = vpop.permute.xlu0 %3939
    %3957 = vst.msk [vmem:[#allocation3 + $0x4] sm:$0xf] %vm1609, %v3910
    %3958 = vst.msk [vmem:[#allocation3 + $0x18] sm:$0xf] %vm1609, %v3912
    %3959 = vst.msk [vmem:[#allocation3 + $0x2c] sm:$0xf] %vm1609, %v3914
    %3960 = vst.msk [vmem:[#allocation3 + $0x40] sm:$0xf] %vm1609, %v3916
    %3961 = vst.msk [vmem:[#allocation3 + $0x54] sm:$0xf] %vm1609, %v3918
    %3962 = vst.msk [vmem:[#allocation3 + $0x68] sm:$0xf] %vm1609, %v3920
    %3963 = vst.msk [vmem:[#allocation3 + $0x7c] sm:$0xf] %vm1609, %v3922
    %3964 = vst.msk [vmem:[#allocation3 + $0x90] sm:$0xf] %vm1609, %v3924
    %3965 = vst.msk [vmem:[#allocation3 + $0xa4] sm:$0xf] %vm1609, %v3926
    %3966 = vst.msk [vmem:[#allocation3 + $0xb8] sm:$0xf] %vm1609, %v3928
    %3967 = vst.msk [vmem:[#allocation3 + $0xcc] sm:$0xf] %vm1609, %v3930
    %3968 = vst.msk [vmem:[#allocation3 + $0xe0] sm:$0xf] %vm1609, %v3932
    %3969 = vst.msk [vmem:[#allocation3 + $0xf4] sm:$0xf] %vm1609, %v3934
    %3970 = vst.msk [vmem:[#allocation3 + $0x108] sm:$0xf] %vm1609, %v3936
    %3971 = vst.msk [vmem:[#allocation3 + $0x11c] sm:$0xf] %vm1609, %v3938
    %3972 = vst.msk [vmem:[#allocation3 + $0x130] sm:$0xf] %vm1609, %v3940
    %v3973 = vld [vmem:[%s1383 + $0x1] sm:$0xff]
    %v3974 = vld [vmem:[%s1383 + $0x11] sm:$0xff]
    %v3975 = vld [vmem:[%s1383 + $0x21] sm:$0xff]
    %v3976 = vld [vmem:[%s1383 + $0x31] sm:$0xff]
    %v3977 = vld [vmem:[%s1383 + $0x41] sm:$0xff]
    %v3978 = vld [vmem:[%s1383 + $0x51] sm:$0xff]
    %v3979 = vld [vmem:[%s1383 + $0x61] sm:$0xff]
    %v3980 = vld [vmem:[%s1383 + $0x71] sm:$0xff]
    %v3981 = vld [vmem:[%s1383 + $0xa1] sm:$0xff]
    %v3982 = vld [vmem:[%s1383 + $0xb1] sm:$0xff]
    %v3983 = vld [vmem:[%s1383 + $0xc1] sm:$0xff]
    %v3984 = vld [vmem:[%s1383 + $0xd1] sm:$0xff]
    %v3985 = vld [vmem:[%s1383 + $0xe1] sm:$0xff]
    %v3986 = vld [vmem:[%s1383 + $0xf1] sm:$0xff]
    %v3987 = vld [vmem:[%s1383 + $0x101] sm:$0xff]
    %v3988 = vld [vmem:[%s1383 + $0x111] sm:$0xff]
    %v3989 = vpack.c.bf16 %v3974, %v3973
    %v3990 = vpack.c.bf16 %v3976, %v3975
    %v3991 = vpack.c.bf16 %v3978, %v3977
    %v3992 = vpack.c.bf16 %v3980, %v3979
    %v3993 = vpack.c.bf16 %v3982, %v3981
    %v3994 = vpack.c.bf16 %v3984, %v3983
    %v3995 = vpack.c.bf16 %v3986, %v3985
    %v3996 = vpack.c.bf16 %v3988, %v3987
    %v4005 = vunpack.c.l.b16 %v3989
    %v4006 = vunpack.c.h.b16 %v3989
    %v4007 = vunpack.c.l.b16 %v3990
    %v4008 = vunpack.c.h.b16 %v3990
    %v4009 = vunpack.c.l.b16 %v3991
    %v4010 = vunpack.c.h.b16 %v3991
    %v4011 = vunpack.c.l.b16 %v3992
    %v4012 = vunpack.c.h.b16 %v3992
    %v4013 = vunpack.c.l.b16 %v3993
    %v4014 = vunpack.c.h.b16 %v3993
    %v4015 = vunpack.c.l.b16 %v3994
    %v4016 = vunpack.c.h.b16 %v3994
    %v4017 = vunpack.c.l.b16 %v3995
    %v4018 = vunpack.c.h.b16 %v3995
    %v4019 = vunpack.c.l.b16 %v3996
    %v4020 = vunpack.c.h.b16 %v3996
    %v4021 = vpack.c.b16 %v4005, %v4005
    %v4022 = vpack.c.b16 %v4006, %v4006
    %v4023 = vpack.c.b16 %v4007, %v4007
    %v4024 = vpack.c.b16 %v4008, %v4008
    %v4025 = vpack.c.b16 %v4009, %v4009
    %v4026 = vpack.c.b16 %v4010, %v4010
    %v4027 = vpack.c.b16 %v4011, %v4011
    %v4028 = vpack.c.b16 %v4012, %v4012
    %v4029 = vpack.c.b16 %v4013, %v4013
    %v4030 = vpack.c.b16 %v4014, %v4014
    %v4031 = vpack.c.b16 %v4015, %v4015
    %v4032 = vpack.c.b16 %v4016, %v4016
    %v4033 = vpack.c.b16 %v4017, %v4017
    %v4034 = vpack.c.b16 %v4018, %v4018
    %v4035 = vpack.c.b16 %v4019, %v4019
    %v4036 = vpack.c.b16 %v4020, %v4020
    %4053 = vst.msk [vmem:[#allocation3 + $0x8] sm:$0xf] %vm1480, %v4021
    %4054 = vst.msk [vmem:[#allocation3 + $0x1c] sm:$0xf] %vm1480, %v4022
    %4055 = vst.msk [vmem:[#allocation3 + $0x30] sm:$0xf] %vm1480, %v4023
    %4056 = vst.msk [vmem:[#allocation3 + $0x44] sm:$0xf] %vm1480, %v4024
    %4057 = vst.msk [vmem:[#allocation3 + $0x58] sm:$0xf] %vm1480, %v4025
    %4058 = vst.msk [vmem:[#allocation3 + $0x6c] sm:$0xf] %vm1480, %v4026
    %4059 = vst.msk [vmem:[#allocation3 + $0x80] sm:$0xf] %vm1480, %v4027
    %4060 = vst.msk [vmem:[#allocation3 + $0x94] sm:$0xf] %vm1480, %v4028
    %4061 = vst.msk [vmem:[#allocation3 + $0xa8] sm:$0xf] %vm1480, %v4029
    %4062 = vst.msk [vmem:[#allocation3 + $0xbc] sm:$0xf] %vm1480, %v4030
    %4063 = vst.msk [vmem:[#allocation3 + $0xd0] sm:$0xf] %vm1480, %v4031
    %4064 = vst.msk [vmem:[#allocation3 + $0xe4] sm:$0xf] %vm1480, %v4032
    %4065 = vst.msk [vmem:[#allocation3 + $0xf8] sm:$0xf] %vm1480, %v4033
    %4066 = vst.msk [vmem:[#allocation3 + $0x10c] sm:$0xf] %vm1480, %v4034
    %4067 = vst.msk [vmem:[#allocation3 + $0x120] sm:$0xf] %vm1480, %v4035
    %4068 = vst.msk [vmem:[#allocation3 + $0x134] sm:$0xf] %vm1480, %v4036
    %v4069 = vld [vmem:[%s1383 + $0x2] sm:$0xff]
    %v4070 = vld [vmem:[%s1383 + $0x12] sm:$0xff]
    %v4071 = vld [vmem:[%s1383 + $0x22] sm:$0xff]
    %v4072 = vld [vmem:[%s1383 + $0x32] sm:$0xff]
    %v4073 = vld [vmem:[%s1383 + $0x42] sm:$0xff]
    %v4074 = vld [vmem:[%s1383 + $0x52] sm:$0xff]
    %v4075 = vld [vmem:[%s1383 + $0x62] sm:$0xff]
    %v4076 = vld [vmem:[%s1383 + $0x72] sm:$0xff]
    %v4077 = vld [vmem:[%s1383 + $0xa2] sm:$0xff]
    %v4078 = vld [vmem:[%s1383 + $0xb2] sm:$0xff]
    %v4079 = vld [vmem:[%s1383 + $0xc2] sm:$0xff]
    %v4080 = vld [vmem:[%s1383 + $0xd2] sm:$0xff]
    %v4081 = vld [vmem:[%s1383 + $0xe2] sm:$0xff]
    %v4082 = vld [vmem:[%s1383 + $0xf2] sm:$0xff]
    %v4083 = vld [vmem:[%s1383 + $0x102] sm:$0xff]
    %v4084 = vld [vmem:[%s1383 + $0x112] sm:$0xff]
    %v4085 = vpack.c.bf16 %v4070, %v4069
    %v4086 = vpack.c.bf16 %v4072, %v4071
    %v4087 = vpack.c.bf16 %v4074, %v4073
    %v4088 = vpack.c.bf16 %v4076, %v4075
    %v4089 = vpack.c.bf16 %v4078, %v4077
    %v4090 = vpack.c.bf16 %v4080, %v4079
    %v4091 = vpack.c.bf16 %v4082, %v4081
    %v4092 = vpack.c.bf16 %v4084, %v4083
    %v4101 = vunpack.c.l.b16 %v4085
    %v4102 = vunpack.c.h.b16 %v4085
    %v4103 = vunpack.c.l.b16 %v4086
    %v4104 = vunpack.c.h.b16 %v4086
    %v4105 = vunpack.c.l.b16 %v4087
    %v4106 = vunpack.c.h.b16 %v4087
    %v4107 = vunpack.c.l.b16 %v4088
    %v4108 = vunpack.c.h.b16 %v4088
    %v4109 = vunpack.c.l.b16 %v4089
    %v4110 = vunpack.c.h.b16 %v4089
    %v4111 = vunpack.c.l.b16 %v4090
    %v4112 = vunpack.c.h.b16 %v4090
    %v4113 = vunpack.c.l.b16 %v4091
    %v4114 = vunpack.c.h.b16 %v4091
    %v4115 = vunpack.c.l.b16 %v4092
    %v4116 = vunpack.c.h.b16 %v4092
    %v4117 = vpack.c.b16 %v4101, %v4101
    %v4118 = vpack.c.b16 %v4102, %v4102
    %v4119 = vpack.c.b16 %v4103, %v4103
    %v4120 = vpack.c.b16 %v4104, %v4104
    %v4121 = vpack.c.b16 %v4105, %v4105
    %v4122 = vpack.c.b16 %v4106, %v4106
    %v4123 = vpack.c.b16 %v4107, %v4107
    %v4124 = vpack.c.b16 %v4108, %v4108
    %v4125 = vpack.c.b16 %v4109, %v4109
    %v4126 = vpack.c.b16 %v4110, %v4110
    %v4127 = vpack.c.b16 %v4111, %v4111
    %v4128 = vpack.c.b16 %v4112, %v4112
    %v4129 = vpack.c.b16 %v4113, %v4113
    %v4130 = vpack.c.b16 %v4114, %v4114
    %v4131 = vpack.c.b16 %v4115, %v4115
    %v4132 = vpack.c.b16 %v4116, %v4116
    %4133 = vrot.lane.b32.xlu0 %v4117, 64
    %v4134 = vpop.permute.xlu0 %4133
    %4135 = vrot.lane.b32.xlu0 %v4118, 64
    %v4136 = vpop.permute.xlu0 %4135
    %4137 = vrot.lane.b32.xlu0 %v4119, 64
    %v4138 = vpop.permute.xlu0 %4137
    %4139 = vrot.lane.b32.xlu0 %v4120, 64
    %v4140 = vpop.permute.xlu0 %4139
    %4141 = vrot.lane.b32.xlu0 %v4121, 64
    %v4142 = vpop.permute.xlu0 %4141
    %4143 = vrot.lane.b32.xlu0 %v4122, 64
    %v4144 = vpop.permute.xlu0 %4143
    %4145 = vrot.lane.b32.xlu0 %v4123, 64
    %v4146 = vpop.permute.xlu0 %4145
    %4147 = vrot.lane.b32.xlu0 %v4124, 64
    %v4148 = vpop.permute.xlu0 %4147
    %4149 = vrot.lane.b32.xlu0 %v4125, 64
    %v4150 = vpop.permute.xlu0 %4149
    %4151 = vrot.lane.b32.xlu0 %v4126, 64
    %v4152 = vpop.permute.xlu0 %4151
    %4153 = vrot.lane.b32.xlu0 %v4127, 64
    %v4154 = vpop.permute.xlu0 %4153
    %4155 = vrot.lane.b32.xlu0 %v4128, 64
    %v4156 = vpop.permute.xlu0 %4155
    %4157 = vrot.lane.b32.xlu0 %v4129, 64
    %v4158 = vpop.permute.xlu0 %4157
    %4159 = vrot.lane.b32.xlu0 %v4130, 64
    %v4160 = vpop.permute.xlu0 %4159
    %4161 = vrot.lane.b32.xlu0 %v4131, 64
    %v4162 = vpop.permute.xlu0 %4161
    %4163 = vrot.lane.b32.xlu0 %v4132, 64
    %v4164 = vpop.permute.xlu0 %4163
    %4181 = vst.msk [vmem:[#allocation3 + $0x8] sm:$0xf] %vm1609, %v4134
    %4182 = vst.msk [vmem:[#allocation3 + $0x1c] sm:$0xf] %vm1609, %v4136
    %4183 = vst.msk [vmem:[#allocation3 + $0x30] sm:$0xf] %vm1609, %v4138
    %4184 = vst.msk [vmem:[#allocation3 + $0x44] sm:$0xf] %vm1609, %v4140
    %4185 = vst.msk [vmem:[#allocation3 + $0x58] sm:$0xf] %vm1609, %v4142
    %4186 = vst.msk [vmem:[#allocation3 + $0x6c] sm:$0xf] %vm1609, %v4144
    %4187 = vst.msk [vmem:[#allocation3 + $0x80] sm:$0xf] %vm1609, %v4146
    %4188 = vst.msk [vmem:[#allocation3 + $0x94] sm:$0xf] %vm1609, %v4148
    %4189 = vst.msk [vmem:[#allocation3 + $0xa8] sm:$0xf] %vm1609, %v4150
    %4190 = vst.msk [vmem:[#allocation3 + $0xbc] sm:$0xf] %vm1609, %v4152
    %4191 = vst.msk [vmem:[#allocation3 + $0xd0] sm:$0xf] %vm1609, %v4154
    %4192 = vst.msk [vmem:[#allocation3 + $0xe4] sm:$0xf] %vm1609, %v4156
    %4193 = vst.msk [vmem:[#allocation3 + $0xf8] sm:$0xf] %vm1609, %v4158
    %4194 = vst.msk [vmem:[#allocation3 + $0x10c] sm:$0xf] %vm1609, %v4160
    %4195 = vst.msk [vmem:[#allocation3 + $0x120] sm:$0xf] %vm1609, %v4162
    %4196 = vst.msk [vmem:[#allocation3 + $0x134] sm:$0xf] %vm1609, %v4164
    %v4197 = vld [vmem:[%s2074] sm:$0xff]
    %v4198 = vld [vmem:[%s2074 + $0x10] sm:$0xff]
    %v4199 = vld [vmem:[%s2074 + $0x20] sm:$0xff]
    %v4200 = vld [vmem:[%s2074 + $0x30] sm:$0xff]
    %v4201 = vld [vmem:[%s2074 + $0x40] sm:$0xff]
    %v4202 = vld [vmem:[%s2074 + $0x50] sm:$0xff]
    %v4203 = vld [vmem:[%s2074 + $0x60] sm:$0xff]
    %v4204 = vld [vmem:[%s2074 + $0x70] sm:$0xff]
    %v4205 = vld [vmem:[%s2074 + $0xa0] sm:$0xff]
    %v4206 = vld [vmem:[%s2074 + $0xb0] sm:$0xff]
    %v4207 = vld [vmem:[%s2074 + $0xc0] sm:$0xff]
    %v4208 = vld [vmem:[%s2074 + $0xd0] sm:$0xff]
    %v4209 = vld [vmem:[%s2074 + $0xe0] sm:$0xff]
    %v4210 = vld [vmem:[%s2074 + $0xf0] sm:$0xff]
    %v4211 = vld [vmem:[%s2074 + $0x100] sm:$0xff]
    %v4212 = vld [vmem:[%s2074 + $0x110] sm:$0xff]
    %v4213 = vpack.c.bf16 %v4198, %v4197
    %v4214 = vpack.c.bf16 %v4200, %v4199
    %v4215 = vpack.c.bf16 %v4202, %v4201
    %v4216 = vpack.c.bf16 %v4204, %v4203
    %v4217 = vpack.c.bf16 %v4206, %v4205
    %v4218 = vpack.c.bf16 %v4208, %v4207
    %v4219 = vpack.c.bf16 %v4210, %v4209
    %v4220 = vpack.c.bf16 %v4212, %v4211
    %v4229 = vunpack.c.l.b16 %v4213
    %v4230 = vunpack.c.h.b16 %v4213
    %v4231 = vunpack.c.l.b16 %v4214
    %v4232 = vunpack.c.h.b16 %v4214
    %v4233 = vunpack.c.l.b16 %v4215
    %v4234 = vunpack.c.h.b16 %v4215
    %v4235 = vunpack.c.l.b16 %v4216
    %v4236 = vunpack.c.h.b16 %v4216
    %v4237 = vunpack.c.l.b16 %v4217
    %v4238 = vunpack.c.h.b16 %v4217
    %v4239 = vunpack.c.l.b16 %v4218
    %v4240 = vunpack.c.h.b16 %v4218
    %v4241 = vunpack.c.l.b16 %v4219
    %v4242 = vunpack.c.h.b16 %v4219
    %v4243 = vunpack.c.l.b16 %v4220
    %v4244 = vunpack.c.h.b16 %v4220
    %v4245 = vpack.c.b16 %v4229, %v4229
    %v4246 = vpack.c.b16 %v4230, %v4230
    %v4247 = vpack.c.b16 %v4231, %v4231
    %v4248 = vpack.c.b16 %v4232, %v4232
    %v4249 = vpack.c.b16 %v4233, %v4233
    %v4250 = vpack.c.b16 %v4234, %v4234
    %v4251 = vpack.c.b16 %v4235, %v4235
    %v4252 = vpack.c.b16 %v4236, %v4236
    %v4253 = vpack.c.b16 %v4237, %v4237
    %v4254 = vpack.c.b16 %v4238, %v4238
    %v4255 = vpack.c.b16 %v4239, %v4239
    %v4256 = vpack.c.b16 %v4240, %v4240
    %v4257 = vpack.c.b16 %v4241, %v4241
    %v4258 = vpack.c.b16 %v4242, %v4242
    %v4259 = vpack.c.b16 %v4243, %v4243
    %v4260 = vpack.c.b16 %v4244, %v4244
    %4277 = vst.msk [vmem:[#allocation3 + $0xc] sm:$0xf] %vm1480, %v4245
    %4278 = vst.msk [vmem:[#allocation3 + $0x20] sm:$0xf] %vm1480, %v4246
    %4279 = vst.msk [vmem:[#allocation3 + $0x34] sm:$0xf] %vm1480, %v4247
    %4280 = vst.msk [vmem:[#allocation3 + $0x48] sm:$0xf] %vm1480, %v4248
    %4281 = vst.msk [vmem:[#allocation3 + $0x5c] sm:$0xf] %vm1480, %v4249
    %4282 = vst.msk [vmem:[#allocation3 + $0x70] sm:$0xf] %vm1480, %v4250
    %4283 = vst.msk [vmem:[#allocation3 + $0x84] sm:$0xf] %vm1480, %v4251
    %4284 = vst.msk [vmem:[#allocation3 + $0x98] sm:$0xf] %vm1480, %v4252
    %4285 = vst.msk [vmem:[#allocation3 + $0xac] sm:$0xf] %vm1480, %v4253
    %4286 = vst.msk [vmem:[#allocation3 + $0xc0] sm:$0xf] %vm1480, %v4254
    %4287 = vst.msk [vmem:[#allocation3 + $0xd4] sm:$0xf] %vm1480, %v4255
    %4288 = vst.msk [vmem:[#allocation3 + $0xe8] sm:$0xf] %vm1480, %v4256
    %4289 = vst.msk [vmem:[#allocation3 + $0xfc] sm:$0xf] %vm1480, %v4257
    %4290 = vst.msk [vmem:[#allocation3 + $0x110] sm:$0xf] %vm1480, %v4258
    %4291 = vst.msk [vmem:[#allocation3 + $0x124] sm:$0xf] %vm1480, %v4259
    %4292 = vst.msk [vmem:[#allocation3 + $0x138] sm:$0xf] %vm1480, %v4260
    %v4293 = vld [vmem:[%s2074 + $0x1] sm:$0xff]
    %v4294 = vld [vmem:[%s2074 + $0x11] sm:$0xff]
    %v4295 = vld [vmem:[%s2074 + $0x21] sm:$0xff]
    %v4296 = vld [vmem:[%s2074 + $0x31] sm:$0xff]
    %v4297 = vld [vmem:[%s2074 + $0x41] sm:$0xff]
    %v4298 = vld [vmem:[%s2074 + $0x51] sm:$0xff]
    %v4299 = vld [vmem:[%s2074 + $0x61] sm:$0xff]
    %v4300 = vld [vmem:[%s2074 + $0x71] sm:$0xff]
    %v4301 = vld [vmem:[%s2074 + $0xa1] sm:$0xff]
    %v4302 = vld [vmem:[%s2074 + $0xb1] sm:$0xff]
    %v4303 = vld [vmem:[%s2074 + $0xc1] sm:$0xff]
    %v4304 = vld [vmem:[%s2074 + $0xd1] sm:$0xff]
    %v4305 = vld [vmem:[%s2074 + $0xe1] sm:$0xff]
    %v4306 = vld [vmem:[%s2074 + $0xf1] sm:$0xff]
    %v4307 = vld [vmem:[%s2074 + $0x101] sm:$0xff]
    %v4308 = vld [vmem:[%s2074 + $0x111] sm:$0xff]
    %v4309 = vpack.c.bf16 %v4294, %v4293
    %v4310 = vpack.c.bf16 %v4296, %v4295
    %v4311 = vpack.c.bf16 %v4298, %v4297
    %v4312 = vpack.c.bf16 %v4300, %v4299
    %v4313 = vpack.c.bf16 %v4302, %v4301
    %v4314 = vpack.c.bf16 %v4304, %v4303
    %v4315 = vpack.c.bf16 %v4306, %v4305
    %v4316 = vpack.c.bf16 %v4308, %v4307
    %v4325 = vunpack.c.l.b16 %v4309
    %v4326 = vunpack.c.h.b16 %v4309
    %v4327 = vunpack.c.l.b16 %v4310
    %v4328 = vunpack.c.h.b16 %v4310
    %v4329 = vunpack.c.l.b16 %v4311
    %v4330 = vunpack.c.h.b16 %v4311
    %v4331 = vunpack.c.l.b16 %v4312
    %v4332 = vunpack.c.h.b16 %v4312
    %v4333 = vunpack.c.l.b16 %v4313
    %v4334 = vunpack.c.h.b16 %v4313
    %v4335 = vunpack.c.l.b16 %v4314
    %v4336 = vunpack.c.h.b16 %v4314
    %v4337 = vunpack.c.l.b16 %v4315
    %v4338 = vunpack.c.h.b16 %v4315
    %v4339 = vunpack.c.l.b16 %v4316
    %v4340 = vunpack.c.h.b16 %v4316
    %v4341 = vpack.c.b16 %v4325, %v4325
    %v4342 = vpack.c.b16 %v4326, %v4326
    %v4343 = vpack.c.b16 %v4327, %v4327
    %v4344 = vpack.c.b16 %v4328, %v4328
    %v4345 = vpack.c.b16 %v4329, %v4329
    %v4346 = vpack.c.b16 %v4330, %v4330
    %v4347 = vpack.c.b16 %v4331, %v4331
    %v4348 = vpack.c.b16 %v4332, %v4332
    %v4349 = vpack.c.b16 %v4333, %v4333
    %v4350 = vpack.c.b16 %v4334, %v4334
    %v4351 = vpack.c.b16 %v4335, %v4335
    %v4352 = vpack.c.b16 %v4336, %v4336
    %v4353 = vpack.c.b16 %v4337, %v4337
    %v4354 = vpack.c.b16 %v4338, %v4338
    %v4355 = vpack.c.b16 %v4339, %v4339
    %v4356 = vpack.c.b16 %v4340, %v4340
    %4357 = vrot.lane.b32.xlu0 %v4341, 64
    %v4358 = vpop.permute.xlu0 %4357
    %4359 = vrot.lane.b32.xlu0 %v4342, 64
    %v4360 = vpop.permute.xlu0 %4359
    %4361 = vrot.lane.b32.xlu0 %v4343, 64
    %v4362 = vpop.permute.xlu0 %4361
    %4363 = vrot.lane.b32.xlu0 %v4344, 64
    %v4364 = vpop.permute.xlu0 %4363
    %4365 = vrot.lane.b32.xlu0 %v4345, 64
    %v4366 = vpop.permute.xlu0 %4365
    %4367 = vrot.lane.b32.xlu0 %v4346, 64
    %v4368 = vpop.permute.xlu0 %4367
    %4369 = vrot.lane.b32.xlu0 %v4347, 64
    %v4370 = vpop.permute.xlu0 %4369
    %4371 = vrot.lane.b32.xlu0 %v4348, 64
    %v4372 = vpop.permute.xlu0 %4371
    %4373 = vrot.lane.b32.xlu0 %v4349, 64
    %v4374 = vpop.permute.xlu0 %4373
    %4375 = vrot.lane.b32.xlu0 %v4350, 64
    %v4376 = vpop.permute.xlu0 %4375
    %4377 = vrot.lane.b32.xlu0 %v4351, 64
    %v4378 = vpop.permute.xlu0 %4377
    %4379 = vrot.lane.b32.xlu0 %v4352, 64
    %v4380 = vpop.permute.xlu0 %4379
    %4381 = vrot.lane.b32.xlu0 %v4353, 64
    %v4382 = vpop.permute.xlu0 %4381
    %4383 = vrot.lane.b32.xlu0 %v4354, 64
    %v4384 = vpop.permute.xlu0 %4383
    %4385 = vrot.lane.b32.xlu0 %v4355, 64
    %v4386 = vpop.permute.xlu0 %4385
    %4387 = vrot.lane.b32.xlu0 %v4356, 64
    %v4388 = vpop.permute.xlu0 %4387
    %4405 = vst.msk [vmem:[#allocation3 + $0xc] sm:$0xf] %vm1609, %v4358
    %4406 = vst.msk [vmem:[#allocation3 + $0x20] sm:$0xf] %vm1609, %v4360
    %4407 = vst.msk [vmem:[#allocation3 + $0x34] sm:$0xf] %vm1609, %v4362
    %4408 = vst.msk [vmem:[#allocation3 + $0x48] sm:$0xf] %vm1609, %v4364
    %4409 = vst.msk [vmem:[#allocation3 + $0x5c] sm:$0xf] %vm1609, %v4366
    %4410 = vst.msk [vmem:[#allocation3 + $0x70] sm:$0xf] %vm1609, %v4368
    %4411 = vst.msk [vmem:[#allocation3 + $0x84] sm:$0xf] %vm1609, %v4370
    %4412 = vst.msk [vmem:[#allocation3 + $0x98] sm:$0xf] %vm1609, %v4372
    %4413 = vst.msk [vmem:[#allocation3 + $0xac] sm:$0xf] %vm1609, %v4374
    %4414 = vst.msk [vmem:[#allocation3 + $0xc0] sm:$0xf] %vm1609, %v4376
    %4415 = vst.msk [vmem:[#allocation3 + $0xd4] sm:$0xf] %vm1609, %v4378
    %4416 = vst.msk [vmem:[#allocation3 + $0xe8] sm:$0xf] %vm1609, %v4380
    %4417 = vst.msk [vmem:[#allocation3 + $0xfc] sm:$0xf] %vm1609, %v4382
    %4418 = vst.msk [vmem:[#allocation3 + $0x110] sm:$0xf] %vm1609, %v4384
    %4419 = vst.msk [vmem:[#allocation3 + $0x124] sm:$0xf] %vm1609, %v4386
    %4420 = vst.msk [vmem:[#allocation3 + $0x138] sm:$0xf] %vm1609, %v4388
    %v4421 = vld [vmem:[%s2074 + $0x2] sm:$0xff]
    %v4422 = vld [vmem:[%s2074 + $0x12] sm:$0xff]
    %v4423 = vld [vmem:[%s2074 + $0x22] sm:$0xff]
    %v4424 = vld [vmem:[%s2074 + $0x32] sm:$0xff]
    %v4425 = vld [vmem:[%s2074 + $0x42] sm:$0xff]
    %v4426 = vld [vmem:[%s2074 + $0x52] sm:$0xff]
    %v4427 = vld [vmem:[%s2074 + $0x62] sm:$0xff]
    %v4428 = vld [vmem:[%s2074 + $0x72] sm:$0xff]
    %v4429 = vld [vmem:[%s2074 + $0xa2] sm:$0xff]
    %v4430 = vld [vmem:[%s2074 + $0xb2] sm:$0xff]
    %v4431 = vld [vmem:[%s2074 + $0xc2] sm:$0xff]
    %v4432 = vld [vmem:[%s2074 + $0xd2] sm:$0xff]
    %v4433 = vld [vmem:[%s2074 + $0xe2] sm:$0xff]
    %v4434 = vld [vmem:[%s2074 + $0xf2] sm:$0xff]
    %v4435 = vld [vmem:[%s2074 + $0x102] sm:$0xff]
    %v4436 = vld [vmem:[%s2074 + $0x112] sm:$0xff]
    %v4437 = vpack.c.bf16 %v4422, %v4421
    %v4438 = vpack.c.bf16 %v4424, %v4423
    %v4439 = vpack.c.bf16 %v4426, %v4425
    %v4440 = vpack.c.bf16 %v4428, %v4427
    %v4441 = vpack.c.bf16 %v4430, %v4429
    %v4442 = vpack.c.bf16 %v4432, %v4431
    %v4443 = vpack.c.bf16 %v4434, %v4433
    %v4444 = vpack.c.bf16 %v4436, %v4435
    %v4453 = vunpack.c.l.b16 %v4437
    %v4454 = vunpack.c.h.b16 %v4437
    %v4455 = vunpack.c.l.b16 %v4438
    %v4456 = vunpack.c.h.b16 %v4438
    %v4457 = vunpack.c.l.b16 %v4439
    %v4458 = vunpack.c.h.b16 %v4439
    %v4459 = vunpack.c.l.b16 %v4440
    %v4460 = vunpack.c.h.b16 %v4440
    %v4461 = vunpack.c.l.b16 %v4441
    %v4462 = vunpack.c.h.b16 %v4441
    %v4463 = vunpack.c.l.b16 %v4442
    %v4464 = vunpack.c.h.b16 %v4442
    %v4465 = vunpack.c.l.b16 %v4443
    %v4466 = vunpack.c.h.b16 %v4443
    %v4467 = vunpack.c.l.b16 %v4444
    %v4468 = vunpack.c.h.b16 %v4444
    %v4469 = vpack.c.b16 %v4453, %v4453
    %v4470 = vpack.c.b16 %v4454, %v4454
    %v4471 = vpack.c.b16 %v4455, %v4455
    %v4472 = vpack.c.b16 %v4456, %v4456
    %v4473 = vpack.c.b16 %v4457, %v4457
    %v4474 = vpack.c.b16 %v4458, %v4458
    %v4475 = vpack.c.b16 %v4459, %v4459
    %v4476 = vpack.c.b16 %v4460, %v4460
    %v4477 = vpack.c.b16 %v4461, %v4461
    %v4478 = vpack.c.b16 %v4462, %v4462
    %v4479 = vpack.c.b16 %v4463, %v4463
    %v4480 = vpack.c.b16 %v4464, %v4464
    %v4481 = vpack.c.b16 %v4465, %v4465
    %v4482 = vpack.c.b16 %v4466, %v4466
    %v4483 = vpack.c.b16 %v4467, %v4467
    %v4484 = vpack.c.b16 %v4468, %v4468
    %4501 = vst.msk [vmem:[#allocation3 + $0x10] sm:$0xf] %vm1480, %v4469
    %4502 = vst.msk [vmem:[#allocation3 + $0x24] sm:$0xf] %vm1480, %v4470
    %4503 = vst.msk [vmem:[#allocation3 + $0x38] sm:$0xf] %vm1480, %v4471
    %4504 = vst.msk [vmem:[#allocation3 + $0x4c] sm:$0xf] %vm1480, %v4472
    %4505 = vst.msk [vmem:[#allocation3 + $0x60] sm:$0xf] %vm1480, %v4473
    %4506 = vst.msk [vmem:[#allocation3 + $0x74] sm:$0xf] %vm1480, %v4474
    %4507 = vst.msk [vmem:[#allocation3 + $0x88] sm:$0xf] %vm1480, %v4475
    %4508 = vst.msk [vmem:[#allocation3 + $0x9c] sm:$0xf] %vm1480, %v4476
    %4509 = vst.msk [vmem:[#allocation3 + $0xb0] sm:$0xf] %vm1480, %v4477
    %4510 = vst.msk [vmem:[#allocation3 + $0xc4] sm:$0xf] %vm1480, %v4478
    %4511 = vst.msk [vmem:[#allocation3 + $0xd8] sm:$0xf] %vm1480, %v4479
    %4512 = vst.msk [vmem:[#allocation3 + $0xec] sm:$0xf] %vm1480, %v4480
    %4513 = vst.msk [vmem:[#allocation3 + $0x100] sm:$0xf] %vm1480, %v4481
    %4514 = vst.msk [vmem:[#allocation3 + $0x114] sm:$0xf] %vm1480, %v4482
    %4515 = vst.msk [vmem:[#allocation3 + $0x128] sm:$0xf] %vm1480, %v4483
    %4516 = vst.msk [vmem:[#allocation3 + $0x13c] sm:$0xf] %vm1480, %v4484
    %v4517 = vld [vmem:[#allocation3] sm:$0xff]
    %v4518 = vld [vmem:[#allocation3 + $0x8] sm:$0xff]
    %v4519 = vld [vmem:[#allocation3 + $0x10] sm:$0xf]
    %v4520 = vld [vmem:[#allocation3 + $0x14] sm:$0xff]
    %v4521 = vld [vmem:[#allocation3 + $0x1c] sm:$0xff]
    %v4522 = vld [vmem:[#allocation3 + $0x24] sm:$0xf]
    %v4523 = vld [vmem:[#allocation3 + $0x28] sm:$0xff]
    %v4524 = vld [vmem:[#allocation3 + $0x30] sm:$0xff]
    %v4525 = vld [vmem:[#allocation3 + $0x38] sm:$0xf]
    %v4526 = vld [vmem:[#allocation3 + $0x3c] sm:$0xff]
    %v4527 = vld [vmem:[#allocation3 + $0x44] sm:$0xff]
    %v4528 = vld [vmem:[#allocation3 + $0x4c] sm:$0xf]
    %v4529 = vld [vmem:[#allocation3 + $0x50] sm:$0xff]
    %v4530 = vld [vmem:[#allocation3 + $0x58] sm:$0xff]
    %v4531 = vld [vmem:[#allocation3 + $0x60] sm:$0xf]
    %v4532 = vld [vmem:[#allocation3 + $0x64] sm:$0xff]
    %v4533 = vld [vmem:[#allocation3 + $0x6c] sm:$0xff]
    %v4534 = vld [vmem:[#allocation3 + $0x74] sm:$0xf]
    %v4535 = vld [vmem:[#allocation3 + $0x78] sm:$0xff]
    %v4536 = vld [vmem:[#allocation3 + $0x80] sm:$0xff]
    %v4537 = vld [vmem:[#allocation3 + $0x88] sm:$0xf]
    %v4538 = vld [vmem:[#allocation3 + $0x8c] sm:$0xff]
    %v4539 = vld [vmem:[#allocation3 + $0x94] sm:$0xff]
    %v4540 = vld [vmem:[#allocation3 + $0x9c] sm:$0xf]
    %v4541 = vld [vmem:[#allocation3 + $0xa0] sm:$0xff]
    %v4542 = vld [vmem:[#allocation3 + $0xa8] sm:$0xff]
    %v4543 = vld [vmem:[#allocation3 + $0xb0] sm:$0xf]
    %v4544 = vld [vmem:[#allocation3 + $0xb4] sm:$0xff]
    %v4545 = vld [vmem:[#allocation3 + $0xbc] sm:$0xff]
    %v4546 = vld [vmem:[#allocation3 + $0xc4] sm:$0xf]
    %v4547 = vld [vmem:[#allocation3 + $0xc8] sm:$0xff]
    %v4548 = vld [vmem:[#allocation3 + $0xd0] sm:$0xff]
    %v4549 = vld [vmem:[#allocation3 + $0xd8] sm:$0xf]
    %v4550 = vld [vmem:[#allocation3 + $0xdc] sm:$0xff]
    %v4551 = vld [vmem:[#allocation3 + $0xe4] sm:$0xff]
    %v4552 = vld [vmem:[#allocation3 + $0xec] sm:$0xf]
    %v4553 = vld [vmem:[#allocation3 + $0xf0] sm:$0xff]
    %v4554 = vld [vmem:[#allocation3 + $0xf8] sm:$0xff]
    %v4555 = vld [vmem:[#allocation3 + $0x100] sm:$0xf]
    %v4556 = vld [vmem:[#allocation3 + $0x104] sm:$0xff]
    %v4557 = vld [vmem:[#allocation3 + $0x10c] sm:$0xff]
    %v4558 = vld [vmem:[#allocation3 + $0x114] sm:$0xf]
    %v4559 = vld [vmem:[#allocation3 + $0x118] sm:$0xff]
    %v4560 = vld [vmem:[#allocation3 + $0x120] sm:$0xff]
    %v4561 = vld [vmem:[#allocation3 + $0x128] sm:$0xf]
    %v4562 = vld [vmem:[#allocation3 + $0x12c] sm:$0xff]
    %v4563 = vld [vmem:[#allocation3 + $0x134] sm:$0xff]
    %v4564 = vld [vmem:[#allocation3 + $0x13c] sm:$0xf]
    %v4613 = vunpack.c.l.b16 %v4517
    %v4614 = vunpack.c.h.b16 %v4517
    %v4615 = vunpack.c.l.b16 %v4518
    %v4616 = vunpack.c.h.b16 %v4518
    %v4617 = vunpack.c.l.b16 %v4519
    %v4618 = vunpack.c.l.b16 %v4520
    %v4619 = vunpack.c.h.b16 %v4520
    %v4620 = vunpack.c.l.b16 %v4521
    %v4621 = vunpack.c.h.b16 %v4521
    %v4622 = vunpack.c.l.b16 %v4522
    %v4623 = vunpack.c.l.b16 %v4523
    %v4624 = vunpack.c.h.b16 %v4523
    %v4625 = vunpack.c.l.b16 %v4524
    %v4626 = vunpack.c.h.b16 %v4524
    %v4627 = vunpack.c.l.b16 %v4525
    %v4628 = vunpack.c.l.b16 %v4526
    %v4629 = vunpack.c.h.b16 %v4526
    %v4630 = vunpack.c.l.b16 %v4527
    %v4631 = vunpack.c.h.b16 %v4527
    %v4632 = vunpack.c.l.b16 %v4528
    %v4633 = vunpack.c.l.b16 %v4529
    %v4634 = vunpack.c.h.b16 %v4529
    %v4635 = vunpack.c.l.b16 %v4530
    %v4636 = vunpack.c.h.b16 %v4530
    %v4637 = vunpack.c.l.b16 %v4531
    %v4638 = vunpack.c.l.b16 %v4532
    %v4639 = vunpack.c.h.b16 %v4532
    %v4640 = vunpack.c.l.b16 %v4533
    %v4641 = vunpack.c.h.b16 %v4533
    %v4642 = vunpack.c.l.b16 %v4534
    %v4643 = vunpack.c.l.b16 %v4535
    %v4644 = vunpack.c.h.b16 %v4535
    %v4645 = vunpack.c.l.b16 %v4536
    %v4646 = vunpack.c.h.b16 %v4536
    %v4647 = vunpack.c.l.b16 %v4537
    %v4648 = vunpack.c.l.b16 %v4538
    %v4649 = vunpack.c.h.b16 %v4538
    %v4650 = vunpack.c.l.b16 %v4539
    %v4651 = vunpack.c.h.b16 %v4539
    %v4652 = vunpack.c.l.b16 %v4540
    %v4653 = vunpack.c.l.b16 %v4541
    %v4654 = vunpack.c.h.b16 %v4541
    %v4655 = vunpack.c.l.b16 %v4542
    %v4656 = vunpack.c.h.b16 %v4542
    %v4657 = vunpack.c.l.b16 %v4543
    %v4658 = vunpack.c.l.b16 %v4544
    %v4659 = vunpack.c.h.b16 %v4544
    %v4660 = vunpack.c.l.b16 %v4545
    %v4661 = vunpack.c.h.b16 %v4545
    %v4662 = vunpack.c.l.b16 %v4546
    %v4663 = vunpack.c.l.b16 %v4547
    %v4664 = vunpack.c.h.b16 %v4547
    %v4665 = vunpack.c.l.b16 %v4548
    %v4666 = vunpack.c.h.b16 %v4548
    %v4667 = vunpack.c.l.b16 %v4549
    %v4668 = vunpack.c.l.b16 %v4550
    %v4669 = vunpack.c.h.b16 %v4550
    %v4670 = vunpack.c.l.b16 %v4551
    %v4671 = vunpack.c.h.b16 %v4551
    %v4672 = vunpack.c.l.b16 %v4552
    %v4673 = vunpack.c.l.b16 %v4553
    %v4674 = vunpack.c.h.b16 %v4553
    %v4675 = vunpack.c.l.b16 %v4554
    %v4676 = vunpack.c.h.b16 %v4554
    %v4677 = vunpack.c.l.b16 %v4555
    %v4678 = vunpack.c.l.b16 %v4556
    %v4679 = vunpack.c.h.b16 %v4556
    %v4680 = vunpack.c.l.b16 %v4557
    %v4681 = vunpack.c.h.b16 %v4557
    %v4682 = vunpack.c.l.b16 %v4558
    %v4683 = vunpack.c.l.b16 %v4559
    %v4684 = vunpack.c.h.b16 %v4559
    %v4685 = vunpack.c.l.b16 %v4560
    %v4686 = vunpack.c.h.b16 %v4560
    %v4687 = vunpack.c.l.b16 %v4561
    %v4688 = vunpack.c.l.b16 %v4562
    %v4689 = vunpack.c.h.b16 %v4562
    %v4690 = vunpack.c.l.b16 %v4563
    %v4691 = vunpack.c.h.b16 %v4563
    %v4692 = vunpack.c.l.b16 %v4564
    %v4693 = vpack.c.b16 %v4618, %v4613
    %v4694 = vpack.c.b16 %v4619, %v4614
    %v4695 = vpack.c.b16 %v4620, %v4615
    %v4696 = vpack.c.b16 %v4621, %v4616
    %v4697 = vpack.c.b16 %v4622, %v4617
    %v4698 = vpack.c.b16 %v4628, %v4623
    %v4699 = vpack.c.b16 %v4629, %v4624
    %v4700 = vpack.c.b16 %v4630, %v4625
    %v4701 = vpack.c.b16 %v4631, %v4626
    %v4702 = vpack.c.b16 %v4632, %v4627
    %v4703 = vpack.c.b16 %v4638, %v4633
    %v4704 = vpack.c.b16 %v4639, %v4634
    %v4705 = vpack.c.b16 %v4640, %v4635
    %v4706 = vpack.c.b16 %v4641, %v4636
    %v4707 = vpack.c.b16 %v4642, %v4637
    %v4708 = vpack.c.b16 %v4648, %v4643
    %v4709 = vpack.c.b16 %v4649, %v4644
    %v4710 = vpack.c.b16 %v4650, %v4645
    %v4711 = vpack.c.b16 %v4651, %v4646
    %v4712 = vpack.c.b16 %v4652, %v4647
    %v4713 = vpack.c.b16 %v4658, %v4653
    %v4714 = vpack.c.b16 %v4659, %v4654
    %v4715 = vpack.c.b16 %v4660, %v4655
    %v4716 = vpack.c.b16 %v4661, %v4656
    %v4717 = vpack.c.b16 %v4662, %v4657
    %v4718 = vpack.c.b16 %v4668, %v4663
    %v4719 = vpack.c.b16 %v4669, %v4664
    %v4720 = vpack.c.b16 %v4670, %v4665
    %v4721 = vpack.c.b16 %v4671, %v4666
    %v4722 = vpack.c.b16 %v4672, %v4667
    %v4723 = vpack.c.b16 %v4678, %v4673
    %v4724 = vpack.c.b16 %v4679, %v4674
    %v4725 = vpack.c.b16 %v4680, %v4675
    %v4726 = vpack.c.b16 %v4681, %v4676
    %v4727 = vpack.c.b16 %v4682, %v4677
    %v4728 = vpack.c.b16 %v4688, %v4683
    %v4729 = vpack.c.b16 %v4689, %v4684
    %v4730 = vpack.c.b16 %v4690, %v4685
    %v4731 = vpack.c.b16 %v4691, %v4686
    %v4732 = vpack.c.b16 %v4692, %v4687
    %v4837 = vunpack.c.l.b16 %v3437
    %v4838 = vunpack.c.l.b16 %v3438
    %v4839 = vunpack.c.l.b16 %v3439
    %v4840 = vunpack.c.l.b16 %v3440
    %v4841 = vunpack.c.l.b16 %v3441
    %v4842 = vunpack.c.l.b16 %v3442
    %v4843 = vunpack.c.l.b16 %v3443
    %v4844 = vunpack.c.l.b16 %v3444
    %v4845 = vunpack.c.l.b16 %v3445
    %v4846 = vunpack.c.l.b16 %v3446
    %v4847 = vunpack.c.l.b16 %v3447
    %v4848 = vunpack.c.l.b16 %v3448
    %v4849 = vunpack.c.l.b16 %v3449
    %v4850 = vunpack.c.l.b16 %v3450
    %v4851 = vunpack.c.l.b16 %v3451
    %v4852 = vunpack.c.l.b16 %v3452
    %v4853 = vunpack.c.l.b16 %v3453
    %v4854 = vunpack.c.l.b16 %v3454
    %v4855 = vunpack.c.l.b16 %v3455
    %v4856 = vunpack.c.l.b16 %v3456
    %v4857 = vunpack.c.l.b16 %v3457
    %v4858 = vunpack.c.l.b16 %v3458
    %v4859 = vunpack.c.l.b16 %v3459
    %v4860 = vunpack.c.l.b16 %v3460
    %v4861 = vunpack.c.l.b16 %v3461
    %v4862 = vunpack.c.l.b16 %v3462
    %v4863 = vunpack.c.l.b16 %v3463
    %v4864 = vunpack.c.l.b16 %v3464
    %v4865 = vunpack.c.l.b16 %v3465
    %v4866 = vunpack.c.l.b16 %v3466
    %v4867 = vunpack.c.l.b16 %v3467
    %v4868 = vunpack.c.l.b16 %v3468
    %v4869 = vunpack.c.l.b16 %v3469
    %v4870 = vunpack.c.l.b16 %v3470
    %v4871 = vunpack.c.l.b16 %v3471
    %v4872 = vunpack.c.l.b16 %v3472
    %v4873 = vunpack.c.l.b16 %v3473
    %v4874 = vunpack.c.l.b16 %v3474
    %v4875 = vunpack.c.l.b16 %v3475
    %v4876 = vunpack.c.l.b16 %v3476
    %v4877 = vunpack.c.l.b16 %v3477
    %v4878 = vunpack.c.l.b16 %v3478
    %v4879 = vunpack.c.l.b16 %v3479
    %v4880 = vunpack.c.l.b16 %v3480
    %v4881 = vunpack.c.l.b16 %v3481
    %v4882 = vunpack.c.l.b16 %v3482
    %v4883 = vunpack.c.l.b16 %v3483
    %v4884 = vunpack.c.l.b16 %v3484
    %v4885 = vunpack.c.l.b16 %v3485
    %v4886 = vunpack.c.l.b16 %v3486
    %v4887 = vunpack.c.l.b16 %v3487
    %v4888 = vunpack.c.l.b16 %v3488
    %v4889 = vunpack.c.l.b16 %v3489
    %v4890 = vunpack.c.l.b16 %v3490
    %v4891 = vunpack.c.l.b16 %v3491
    %v4892 = vunpack.c.l.b16 %v3492
    %v4893 = vunpack.c.l.b16 %v3493
    %v4894 = vunpack.c.l.b16 %v3494
    %v4895 = vunpack.c.l.b16 %v3495
    %v4896 = vunpack.c.l.b16 %v3496
    %v4897 = vunpack.c.l.b16 %v3497
    %v4898 = vunpack.c.l.b16 %v3498
    %v4899 = vunpack.c.l.b16 %v3499
    %v4900 = vunpack.c.l.b16 %v3500
    %v4901 = vunpack.c.l.b16 %v3501
    %v4902 = vunpack.c.l.b16 %v3502
    %v4903 = vunpack.c.l.b16 %v3503
    %v4904 = vunpack.c.l.b16 %v3504
    %v4905 = vunpack.c.l.b16 %v3505
    %v4906 = vunpack.c.l.b16 %v3506
    %v4907 = vunpack.c.l.b16 %v3507
    %v4908 = vunpack.c.l.b16 %v3508
    %v4909 = vpack.c.b16 %v4838, %v4837
    %v4910 = vpack.c.b16 %v4840, %v4839
    %v4911 = vpack.c.b16 %v4842, %v4841
    %v4912 = vpack.c.b16 %v4844, %v4843
    %v4913 = vpack.c.b16 %v4846, %v4845
    %v4914 = vpack.c.b16 %v4848, %v4847
    %v4915 = vpack.c.b16 %v4850, %v4849
    %v4916 = vpack.c.b16 %v4852, %v4851
    %v4917 = vpack.c.b16 %v4854, %v4853
    %v4918 = vpack.c.b16 %v4856, %v4855
    %v4919 = vpack.c.b16 %v4858, %v4857
    %v4920 = vpack.c.b16 %v4860, %v4859
    %v4921 = vpack.c.b16 %v4862, %v4861
    %v4922 = vpack.c.b16 %v4864, %v4863
    %v4923 = vpack.c.b16 %v4866, %v4865
    %v4924 = vpack.c.b16 %v4868, %v4867
    %v4925 = vpack.c.b16 %v4870, %v4869
    %v4926 = vpack.c.b16 %v4872, %v4871
    %v4927 = vpack.c.b16 %v4874, %v4873
    %v4928 = vpack.c.b16 %v4876, %v4875
    %v4929 = vpack.c.b16 %v4878, %v4877
    %v4930 = vpack.c.b16 %v4880, %v4879
    %v4931 = vpack.c.b16 %v4882, %v4881
    %v4932 = vpack.c.b16 %v4884, %v4883
    %v4933 = vpack.c.b16 %v4886, %v4885
    %v4934 = vpack.c.b16 %v4888, %v4887
    %v4935 = vpack.c.b16 %v4890, %v4889
    %v4936 = vpack.c.b16 %v4892, %v4891
    %v4937 = vpack.c.b16 %v4894, %v4893
    %v4938 = vpack.c.b16 %v4896, %v4895
    %v4939 = vpack.c.b16 %v4898, %v4897
    %v4940 = vpack.c.b16 %v4900, %v4899
    %v4941 = vpack.c.b16 %v4902, %v4901
    %v4942 = vpack.c.b16 %v4904, %v4903
    %v4943 = vpack.c.b16 %v4906, %v4905
    %v4944 = vpack.c.b16 %v4908, %v4907
    %v4982 = vsel %vm34, %v4697, 0
    %v4985 = vsel %vm34, %v4702, 0
    %v4988 = vsel %vm34, %v4707, 0
    %v4991 = vsel %vm34, %v4712, 0
    %v4994 = vsel %vm34, %v4717, 0
    %v4997 = vsel %vm34, %v4722, 0
    %v5000 = vsel %vm34, %v4727, 0
    %v5003 = vsel %vm34, %v4732, 0
    %5005 = vmatprep.subr.bf16.mxu0 0
    %5006 = vmatpush1.bf16.msra.mxu0 %v4916
    %5007 = vmatprep.subr.bf16.mxu0 0
    %5008 = vmatpush1.bf16.msra.mxu0 %v4915
    %5009 = vmatprep.subr.bf16.mxu0 0
    %5010 = vmatpush1.bf16.msra.mxu0 %v4914
    %5011 = vmatprep.subr.bf16.mxu0 0
    %5012 = vmatpush1.bf16.msra.mxu0 %v4913
    %5013 = vmatprep.subr.bf16.mxu0 0
    %5014 = vmatpush1.bf16.msra.mxu0 %v4912
    %5015 = vmatprep.subr.bf16.mxu0 0
    %5016 = vmatpush1.bf16.msra.mxu0 %v4911
    %5017 = vmatprep.subr.bf16.mxu0 0
    %5018 = vmatpush1.bf16.msra.mxu0 %v4910
    %5019 = vmatprep.subr.bf16.mxu0 0
    %5020 = vmatpush1.bf16.msra.mxu0 %v4909
    %5021 = vmatprep.subr.bf16.mxu0 0
    %5022 = vmatpush2.bf16.msra.mxu0 %v4924
    %5023 = vmatprep.subr.bf16.mxu0 0
    %5024 = vmatpush2.bf16.msra.mxu0 %v4923
    %5025 = vmatprep.subr.bf16.mxu0 0
    %5026 = vmatpush2.bf16.msra.mxu0 %v4922
    %5027 = vmatprep.subr.bf16.mxu0 0
    %5028 = vmatpush2.bf16.msra.mxu0 %v4921
    %5029 = vmatprep.subr.bf16.mxu0 0
    %5030 = vmatpush2.bf16.msra.mxu0 %v4920
    %5031 = vmatprep.subr.bf16.mxu0 0
    %5032 = vmatpush2.bf16.msra.mxu0 %v4919
    %5033 = vmatprep.subr.bf16.mxu0 0
    %5034 = vmatpush2.bf16.msra.mxu0 %v4918
    %5035 = vmatprep.subr.bf16.mxu0 0
    %5036 = vmatpush2.bf16.msra.mxu0 %v4917
    %5037 = vmatprep.mubr.bf16.mxu0 %v4694
    %5038 = vmatmul.mubr.bf16.gmra.mxu0 %v4693
    %v5039 = vpop.f32.mrf.mxu0
    %v5040 = vadd.f32 0.0, %v5039
    %v5041 = vpop.f32.mrf.mxu0
    %v5042 = vpop.f32.mrf.mxu0
    %v5043 = vadd.f32 0.0, %v5042
    %v5044 = vpop.f32.mrf.mxu0
    %5045 = vmatprep.mubr.bf16.mxu0 %v4699
    %5046 = vmatmul.mubr.bf16.gmra.mxu0 %v4698
    %v5047 = vpop.f32.mrf.mxu0
    %v5048 = vadd.f32 0.0, %v5047
    %v5049 = vpop.f32.mrf.mxu0
    %v5050 = vpop.f32.mrf.mxu0
    %v5051 = vadd.f32 0.0, %v5050
    %v5052 = vpop.f32.mrf.mxu0
    %5053 = vmatprep.mubr.bf16.mxu0 %v4704
    %5054 = vmatmul.mubr.bf16.gmra.mxu0 %v4703
    %v5055 = vpop.f32.mrf.mxu0
    %v5056 = vadd.f32 0.0, %v5055
    %v5057 = vpop.f32.mrf.mxu0
    %v5058 = vpop.f32.mrf.mxu0
    %v5059 = vadd.f32 0.0, %v5058
    %v5060 = vpop.f32.mrf.mxu0
    %5061 = vmatprep.mubr.bf16.mxu0 %v4709
    %5062 = vmatmul.mubr.bf16.gmra.mxu0 %v4708
    %v5063 = vpop.f32.mrf.mxu0
    %v5064 = vadd.f32 0.0, %v5063
    %v5065 = vpop.f32.mrf.mxu0
    %v5066 = vpop.f32.mrf.mxu0
    %v5067 = vadd.f32 0.0, %v5066
    %v5068 = vpop.f32.mrf.mxu0
    %5069 = vmatprep.mubr.bf16.mxu0 %v4714
    %5070 = vmatmul.mubr.bf16.gmra.mxu0 %v4713
    %v5071 = vpop.f32.mrf.mxu0
    %v5072 = vadd.f32 0.0, %v5071
    %v5073 = vpop.f32.mrf.mxu0
    %v5074 = vpop.f32.mrf.mxu0
    %v5075 = vadd.f32 0.0, %v5074
    %v5076 = vpop.f32.mrf.mxu0
    %5077 = vmatprep.mubr.bf16.mxu0 %v4719
    %5078 = vmatmul.mubr.bf16.gmra.mxu0 %v4718
    %v5079 = vpop.f32.mrf.mxu0
    %v5080 = vadd.f32 0.0, %v5079
    %v5081 = vpop.f32.mrf.mxu0
    %v5082 = vpop.f32.mrf.mxu0
    %v5083 = vadd.f32 0.0, %v5082
    %v5084 = vpop.f32.mrf.mxu0
    %5085 = vmatprep.mubr.bf16.mxu0 %v4724
    %5086 = vmatmul.mubr.bf16.gmra.mxu0 %v4723
    %v5087 = vpop.f32.mrf.mxu0
    %v5088 = vadd.f32 0.0, %v5087
    %v5089 = vpop.f32.mrf.mxu0
    %v5090 = vpop.f32.mrf.mxu0
    %v5091 = vadd.f32 0.0, %v5090
    %v5092 = vpop.f32.mrf.mxu0
    %5093 = vmatprep.mubr.bf16.mxu0 %v4729
    %5094 = vmatmul.mubr.bf16.gmra.mxu0 %v4728
    %v5095 = vpop.f32.mrf.mxu0
    %v5096 = vadd.f32 0.0, %v5095
    %v5097 = vpop.f32.mrf.mxu0
    %v5098 = vpop.f32.mrf.mxu0
    %v5099 = vadd.f32 0.0, %v5098
    %v5100 = vpop.f32.mrf.mxu0
    %5101 = vdwg.mxu0
    %5102 = vmatprep.subr.bf16.mxu0 0
    %5103 = vmatpush1.bf16.msra.mxu0 %v4932
    %5104 = vmatprep.subr.bf16.mxu0 0
    %5105 = vmatpush1.bf16.msra.mxu0 %v4931
    %5106 = vmatprep.subr.bf16.mxu0 0
    %5107 = vmatpush1.bf16.msra.mxu0 %v4930
    %5108 = vmatprep.subr.bf16.mxu0 0
    %5109 = vmatpush1.bf16.msra.mxu0 %v4929
    %5110 = vmatprep.subr.bf16.mxu0 0
    %5111 = vmatpush1.bf16.msra.mxu0 %v4928
    %5112 = vmatprep.subr.bf16.mxu0 0
    %5113 = vmatpush1.bf16.msra.mxu0 %v4927
    %5114 = vmatprep.subr.bf16.mxu0 0
    %5115 = vmatpush1.bf16.msra.mxu0 %v4926
    %5116 = vmatprep.subr.bf16.mxu0 0
    %5117 = vmatpush1.bf16.msra.mxu0 %v4925
    %5118 = vmatprep.subr.bf16.mxu0 0
    %5119 = vmatpush2.bf16.msra.mxu0 %v4940
    %5120 = vmatprep.subr.bf16.mxu0 0
    %5121 = vmatpush2.bf16.msra.mxu0 %v4939
    %5122 = vmatprep.subr.bf16.mxu0 0
    %5123 = vmatpush2.bf16.msra.mxu0 %v4938
    %5124 = vmatprep.subr.bf16.mxu0 0
    %5125 = vmatpush2.bf16.msra.mxu0 %v4937
    %5126 = vmatprep.subr.bf16.mxu0 0
    %5127 = vmatpush2.bf16.msra.mxu0 %v4936
    %5128 = vmatprep.subr.bf16.mxu0 0
    %5129 = vmatpush2.bf16.msra.mxu0 %v4935
    %5130 = vmatprep.subr.bf16.mxu0 0
    %5131 = vmatpush2.bf16.msra.mxu0 %v4934
    %5132 = vmatprep.subr.bf16.mxu0 0
    %5133 = vmatpush2.bf16.msra.mxu0 %v4933
    %5134 = vmatprep.mubr.bf16.mxu0 %v4696
    %5135 = vmatmul.mubr.bf16.gmra.mxu0 %v4695
    %v5136 = vpop.f32.mrf.mxu0
    %v5137 = vadd.f32 %v5040, %v5136
    %v5138 = vpop.f32.mrf.mxu0
    %v5139 = vpop.f32.mrf.mxu0
    %v5140 = vadd.f32 %v5043, %v5139
    %v5141 = vpop.f32.mrf.mxu0
    %5142 = vmatprep.mubr.bf16.mxu0 %v4701
    %5143 = vmatmul.mubr.bf16.gmra.mxu0 %v4700
    %v5144 = vpop.f32.mrf.mxu0
    %v5145 = vadd.f32 %v5048, %v5144
    %v5146 = vpop.f32.mrf.mxu0
    %v5147 = vpop.f32.mrf.mxu0
    %v5148 = vadd.f32 %v5051, %v5147
    %v5149 = vpop.f32.mrf.mxu0
    %5150 = vmatprep.mubr.bf16.mxu0 %v4706
    %5151 = vmatmul.mubr.bf16.gmra.mxu0 %v4705
    %v5152 = vpop.f32.mrf.mxu0
    %v5153 = vadd.f32 %v5056, %v5152
    %v5154 = vpop.f32.mrf.mxu0
    %v5155 = vpop.f32.mrf.mxu0
    %v5156 = vadd.f32 %v5059, %v5155
    %v5157 = vpop.f32.mrf.mxu0
    %5158 = vmatprep.mubr.bf16.mxu0 %v4711
    %5159 = vmatmul.mubr.bf16.gmra.mxu0 %v4710
    %v5160 = vpop.f32.mrf.mxu0
    %v5161 = vadd.f32 %v5064, %v5160
    %v5162 = vpop.f32.mrf.mxu0
    %v5163 = vpop.f32.mrf.mxu0
    %v5164 = vadd.f32 %v5067, %v5163
    %v5165 = vpop.f32.mrf.mxu0
    %5166 = vmatprep.mubr.bf16.mxu0 %v4716
    %5167 = vmatmul.mubr.bf16.gmra.mxu0 %v4715
    %v5168 = vpop.f32.mrf.mxu0
    %v5169 = vadd.f32 %v5072, %v5168
    %v5170 = vpop.f32.mrf.mxu0
    %v5171 = vpop.f32.mrf.mxu0
    %v5172 = vadd.f32 %v5075, %v5171
    %v5173 = vpop.f32.mrf.mxu0
    %5174 = vmatprep.mubr.bf16.mxu0 %v4721
    %5175 = vmatmul.mubr.bf16.gmra.mxu0 %v4720
    %v5176 = vpop.f32.mrf.mxu0
    %v5177 = vadd.f32 %v5080, %v5176
    %v5178 = vpop.f32.mrf.mxu0
    %v5179 = vpop.f32.mrf.mxu0
    %v5180 = vadd.f32 %v5083, %v5179
    %v5181 = vpop.f32.mrf.mxu0
    %5182 = vmatprep.mubr.bf16.mxu0 %v4726
    %5183 = vmatmul.mubr.bf16.gmra.mxu0 %v4725
    %v5184 = vpop.f32.mrf.mxu0
    %v5185 = vadd.f32 %v5088, %v5184
    %v5186 = vpop.f32.mrf.mxu0
    %v5187 = vpop.f32.mrf.mxu0
    %v5188 = vadd.f32 %v5091, %v5187
    %v5189 = vpop.f32.mrf.mxu0
    %5190 = vmatprep.mubr.bf16.mxu0 %v4731
    %5191 = vmatmul.mubr.bf16.gmra.mxu0 %v4730
    %v5192 = vpop.f32.mrf.mxu0
    %v5193 = vadd.f32 %v5096, %v5192
    %v5194 = vpop.f32.mrf.mxu0
    %v5195 = vpop.f32.mrf.mxu0
    %v5196 = vadd.f32 %v5099, %v5195
    %v5197 = vpop.f32.mrf.mxu0
    %5198 = vdwg.mxu0
    %5199 = vmatprep.subr.bf16.mxu0 0
    %5200 = vmatpush1.bf16.msra.mxu0 0
    %5201 = vmatprep.subr.bf16.mxu0 0
    %5202 = vmatpush1.bf16.msra.mxu0 0
    %5203 = vmatprep.subr.bf16.mxu0 0
    %5204 = vmatpush1.bf16.msra.mxu0 0
    %5205 = vmatprep.subr.bf16.mxu0 0
    %5206 = vmatpush1.bf16.msra.mxu0 0
    %5207 = vmatprep.subr.bf16.mxu0 0
    %5208 = vmatpush1.bf16.msra.mxu0 %v4944
    %5209 = vmatprep.subr.bf16.mxu0 0
    %5210 = vmatpush1.bf16.msra.mxu0 %v4943
    %5211 = vmatprep.subr.bf16.mxu0 0
    %5212 = vmatpush1.bf16.msra.mxu0 %v4942
    %5213 = vmatprep.subr.bf16.mxu0 0
    %5214 = vmatpush1.bf16.msra.mxu0 %v4941
    %5215 = vmatprep.subr.bf16.mxu0 0
    %5216 = vmatpush2.bf16.msra.mxu0 0
    %5217 = vmatprep.subr.bf16.mxu0 0
    %5218 = vmatpush2.bf16.msra.mxu0 0
    %5219 = vmatprep.subr.bf16.mxu0 0
    %5220 = vmatpush2.bf16.msra.mxu0 0
    %5221 = vmatprep.subr.bf16.mxu0 0
    %5222 = vmatpush2.bf16.msra.mxu0 0
    %5223 = vmatprep.subr.bf16.mxu0 0
    %5224 = vmatpush2.bf16.msra.mxu0 0
    %5225 = vmatprep.subr.bf16.mxu0 0
    %5226 = vmatpush2.bf16.msra.mxu0 0
    %5227 = vmatprep.subr.bf16.mxu0 0
    %5228 = vmatpush2.bf16.msra.mxu0 0
    %5229 = vmatprep.subr.bf16.mxu0 0
    %5230 = vmatpush2.bf16.msra.mxu0 0
    %5231 = vmatprep.mubr.bf16.mxu0 0
    %5232 = vmatmul.mubr.bf16.gmra.mxu0 %v4982
    %v5233 = vpop.f32.mrf.mxu0
    %v5234 = vadd.f32 %v5137, %v5233
    %v5235 = vpop.f32.mrf.mxu0
    %v5236 = vpop.f32.mrf.mxu0
    %v5237 = vadd.f32 %v5140, %v5236
    %v5238 = vpop.f32.mrf.mxu0
    %5239 = vmatprep.mubr.bf16.mxu0 0
    %5240 = vmatmul.mubr.bf16.gmra.mxu0 %v4985
    %v5241 = vpop.f32.mrf.mxu0
    %v5242 = vadd.f32 %v5145, %v5241
    %v5243 = vpop.f32.mrf.mxu0
    %v5244 = vpop.f32.mrf.mxu0
    %v5245 = vadd.f32 %v5148, %v5244
    %v5246 = vpop.f32.mrf.mxu0
    %5247 = vmatprep.mubr.bf16.mxu0 0
    %5248 = vmatmul.mubr.bf16.gmra.mxu0 %v4988
    %v5249 = vpop.f32.mrf.mxu0
    %v5250 = vadd.f32 %v5153, %v5249
    %v5251 = vpop.f32.mrf.mxu0
    %v5252 = vpop.f32.mrf.mxu0
    %v5253 = vadd.f32 %v5156, %v5252
    %v5254 = vpop.f32.mrf.mxu0
    %5255 = vmatprep.mubr.bf16.mxu0 0
    %5256 = vmatmul.mubr.bf16.gmra.mxu0 %v4991
    %v5257 = vpop.f32.mrf.mxu0
    %v5258 = vadd.f32 %v5161, %v5257
    %v5259 = vpop.f32.mrf.mxu0
    %v5260 = vpop.f32.mrf.mxu0
    %v5261 = vadd.f32 %v5164, %v5260
    %v5262 = vpop.f32.mrf.mxu0
    %5263 = vmatprep.mubr.bf16.mxu0 0
    %5264 = vmatmul.mubr.bf16.gmra.mxu0 %v4994
    %v5265 = vpop.f32.mrf.mxu0
    %v5266 = vadd.f32 %v5169, %v5265
    %v5267 = vpop.f32.mrf.mxu0
    %v5268 = vpop.f32.mrf.mxu0
    %v5269 = vadd.f32 %v5172, %v5268
    %v5270 = vpop.f32.mrf.mxu0
    %5271 = vmatprep.mubr.bf16.mxu0 0
    %5272 = vmatmul.mubr.bf16.gmra.mxu0 %v4997
    %v5273 = vpop.f32.mrf.mxu0
    %v5274 = vadd.f32 %v5177, %v5273
    %v5275 = vpop.f32.mrf.mxu0
    %v5276 = vpop.f32.mrf.mxu0
    %v5277 = vadd.f32 %v5180, %v5276
    %v5278 = vpop.f32.mrf.mxu0
    %5279 = vmatprep.mubr.bf16.mxu0 0
    %5280 = vmatmul.mubr.bf16.gmra.mxu0 %v5000
    %v5281 = vpop.f32.mrf.mxu0
    %v5282 = vadd.f32 %v5185, %v5281
    %v5283 = vpop.f32.mrf.mxu0
    %v5284 = vpop.f32.mrf.mxu0
    %v5285 = vadd.f32 %v5188, %v5284
    %v5286 = vpop.f32.mrf.mxu0
    %5287 = vmatprep.mubr.bf16.mxu0 0
    %5288 = vmatmul.mubr.bf16.gmra.mxu0 %v5003
    %v5289 = vpop.f32.mrf.mxu0
    %v5290 = vadd.f32 %v5193, %v5289
    %v5291 = vpop.f32.mrf.mxu0
    %v5292 = vpop.f32.mrf.mxu0
    %v5293 = vadd.f32 %v5196, %v5292
    %v5294 = vpop.f32.mrf.mxu0
    %5295 = vdwg.mxu0
    %v5296 = vsel %vm34, %v5234, 0.0
    %v5297 = vsel %vm34, %v5237, 0.0
    %v5298 = vadd.f32 %v5296, %v5297
    %v5299 = vsel %vm34, %v5242, 0.0
    %v5300 = vadd.f32 %v5298, %v5299
    %v5301 = vsel %vm34, %v5245, 0.0
    %v5302 = vadd.f32 %v5300, %v5301
    %v5303 = vsel %vm34, %v5250, 0.0
    %v5304 = vadd.f32 %v5302, %v5303
    %v5305 = vsel %vm34, %v5253, 0.0
    %v5306 = vadd.f32 %v5304, %v5305
    %v5307 = vsel %vm34, %v5258, 0.0
    %v5308 = vadd.f32 %v5306, %v5307
    %v5309 = vsel %vm34, %v5261, 0.0
    %v5310 = vadd.f32 %v5308, %v5309
    %v5311 = vsel %vm34, %v5266, 0.0
    %v5312 = vadd.f32 %v5310, %v5311
    %v5313 = vsel %vm34, %v5269, 0.0
    %v5314 = vadd.f32 %v5312, %v5313
    %v5315 = vsel %vm34, %v5274, 0.0
    %v5316 = vadd.f32 %v5314, %v5315
    %v5317 = vsel %vm34, %v5277, 0.0
    %v5318 = vadd.f32 %v5316, %v5317
    %v5319 = vsel %vm34, %v5282, 0.0
    %v5320 = vadd.f32 %v5318, %v5319
    %v5321 = vsel %vm34, %v5285, 0.0
    %v5322 = vadd.f32 %v5320, %v5321
    %v5323 = vsel %vm34, %v5290, 0.0
    %v5324 = vadd.f32 %v5322, %v5323
    %v5325 = vsel %vm34, %v5293, 0.0
    %v5326 = vadd.f32 %v5324, %v5325
    %v5327 = vrot.slane %v5326, 4
    %v5328 = vadd.f32 %v5326, %v5327
    %v5329 = vrot.slane %v5328, 2
    %v5330 = vadd.f32 %v5328, %v5329
    %v5331 = vrot.slane %v5330, 1
    %v5332 = vadd.f32 %v5330, %v5331
    %v5333 = vmul.f32 %v5332, %v1141
    %v5334 = vsub.f32 %v5234, %v5333
    %v5335 = vsub.f32 %v5237, %v5333
    %v5336 = vsub.f32 %v5242, %v5333
    %v5337 = vsub.f32 %v5245, %v5333
    %v5338 = vsub.f32 %v5250, %v5333
    %v5339 = vsub.f32 %v5253, %v5333
    %v5340 = vsub.f32 %v5258, %v5333
    %v5341 = vsub.f32 %v5261, %v5333
    %v5342 = vsub.f32 %v5266, %v5333
    %v5343 = vsub.f32 %v5269, %v5333
    %v5344 = vsub.f32 %v5274, %v5333
    %v5345 = vsub.f32 %v5277, %v5333
    %v5346 = vsub.f32 %v5282, %v5333
    %v5347 = vsub.f32 %v5285, %v5333
    %v5348 = vsub.f32 %v5290, %v5333
    %v5349 = vsub.f32 %v5293, %v5333
    %v5350 = vmul.f32 %v5334, %v5334
    %v5351 = vmul.f32 %v5335, %v5335
    %v5352 = vmul.f32 %v5336, %v5336
    %v5353 = vmul.f32 %v5337, %v5337
    %v5354 = vmul.f32 %v5338, %v5338
    %v5355 = vmul.f32 %v5339, %v5339
    %v5356 = vmul.f32 %v5340, %v5340
    %v5357 = vmul.f32 %v5341, %v5341
    %v5358 = vmul.f32 %v5342, %v5342
    %v5359 = vmul.f32 %v5343, %v5343
    %v5360 = vmul.f32 %v5344, %v5344
    %v5361 = vmul.f32 %v5345, %v5345
    %v5362 = vmul.f32 %v5346, %v5346
    %v5363 = vmul.f32 %v5347, %v5347
    %v5364 = vmul.f32 %v5348, %v5348
    %v5365 = vmul.f32 %v5349, %v5349
    %v5366 = vsel %vm34, %v5350, 0.0
    %v5367 = vsel %vm34, %v5351, 0.0
    %v5368 = vadd.f32 %v5366, %v5367
    %v5369 = vsel %vm34, %v5352, 0.0
    %v5370 = vadd.f32 %v5368, %v5369
    %v5371 = vsel %vm34, %v5353, 0.0
    %v5372 = vadd.f32 %v5370, %v5371
    %v5373 = vsel %vm34, %v5354, 0.0
    %v5374 = vadd.f32 %v5372, %v5373
    %v5375 = vsel %vm34, %v5355, 0.0
    %v5376 = vadd.f32 %v5374, %v5375
    %v5377 = vsel %vm34, %v5356, 0.0
    %v5378 = vadd.f32 %v5376, %v5377
    %v5379 = vsel %vm34, %v5357, 0.0
    %v5380 = vadd.f32 %v5378, %v5379
    %v5381 = vsel %vm34, %v5358, 0.0
    %v5382 = vadd.f32 %v5380, %v5381
    %v5383 = vsel %vm34, %v5359, 0.0
    %v5384 = vadd.f32 %v5382, %v5383
    %v5385 = vsel %vm34, %v5360, 0.0
    %v5386 = vadd.f32 %v5384, %v5385
    %v5387 = vsel %vm34, %v5361, 0.0
    %v5388 = vadd.f32 %v5386, %v5387
    %v5389 = vsel %vm34, %v5362, 0.0
    %v5390 = vadd.f32 %v5388, %v5389
    %v5391 = vsel %vm34, %v5363, 0.0
    %v5392 = vadd.f32 %v5390, %v5391
    %v5393 = vsel %vm34, %v5364, 0.0
    %v5394 = vadd.f32 %v5392, %v5393
    %v5395 = vsel %vm34, %v5365, 0.0
    %v5396 = vadd.f32 %v5394, %v5395
    %v5397 = vrot.slane %v5396, 4
    %v5398 = vadd.f32 %v5396, %v5397
    %v5399 = vrot.slane %v5398, 2
    %v5400 = vadd.f32 %v5398, %v5399
    %v5401 = vrot.slane %v5400, 1
    %v5402 = vadd.f32 %v5400, %v5401
    %v5403 = vmul.f32 %v5402, %v1141
    %v5404 = vadd.f32 %v5403, 1e-05
    %v5405 = vrsqrt.pop %v5404
    %v5406 = vmul.f32 %v5334, %v5405
    %v5407 = vmul.f32 %v5335, %v5405
    %v5408 = vmul.f32 %v5336, %v5405
    %v5409 = vmul.f32 %v5337, %v5405
    %v5410 = vmul.f32 %v5338, %v5405
    %v5411 = vmul.f32 %v5339, %v5405
    %v5412 = vmul.f32 %v5340, %v5405
    %v5413 = vmul.f32 %v5341, %v5405
    %v5414 = vmul.f32 %v5342, %v5405
    %v5415 = vmul.f32 %v5343, %v5405
    %v5416 = vmul.f32 %v5344, %v5405
    %v5417 = vmul.f32 %v5345, %v5405
    %v5418 = vmul.f32 %v5346, %v5405
    %v5419 = vmul.f32 %v5347, %v5405
    %v5420 = vmul.f32 %v5348, %v5405
    %v5421 = vmul.f32 %v5349, %v5405
    %v5422 = vlaneseq
    %v5423 = vshrl.u32 %v5422, 7
    %v5424 = vsub.s32 0, %v5423
    %v5425 = vrot.slane %v3436, %v5424
    %v5426 = vmul.f32 %v5406, %v5425
    %v5427 = vmul.f32 %v5407, %v5425
    %v5428 = vmul.f32 %v5408, %v5425
    %v5429 = vmul.f32 %v5409, %v5425
    %v5430 = vmul.f32 %v5410, %v5425
    %v5431 = vmul.f32 %v5411, %v5425
    %v5432 = vmul.f32 %v5412, %v5425
    %v5433 = vmul.f32 %v5413, %v5425
    %v5434 = vmul.f32 %v5414, %v5425
    %v5435 = vmul.f32 %v5415, %v5425
    %v5436 = vmul.f32 %v5416, %v5425
    %v5437 = vmul.f32 %v5417, %v5425
    %v5438 = vmul.f32 %v5418, %v5425
    %v5439 = vmul.f32 %v5419, %v5425
    %v5440 = vmul.f32 %v5420, %v5425
    %v5441 = vmul.f32 %v5421, %v5425
    %v5442 = vlaneseq
    %v5443 = vshrl.u32 %v5442, 7
    %v5444 = vsub.s32 1, %v5443
    %v5445 = vrot.slane %v3436, %v5444
    %v5446 = vadd.f32 %v5426, %v5445
    %v5447 = vadd.f32 %v5427, %v5445
    %v5448 = vadd.f32 %v5428, %v5445
    %v5449 = vadd.f32 %v5429, %v5445
    %v5450 = vadd.f32 %v5430, %v5445
    %v5451 = vadd.f32 %v5431, %v5445
    %v5452 = vadd.f32 %v5432, %v5445
    %v5453 = vadd.f32 %v5433, %v5445
    %v5454 = vadd.f32 %v5434, %v5445
    %v5455 = vadd.f32 %v5435, %v5445
    %v5456 = vadd.f32 %v5436, %v5445
    %v5457 = vadd.f32 %v5437, %v5445
    %v5458 = vadd.f32 %v5438, %v5445
    %v5459 = vadd.f32 %v5439, %v5445
    %v5460 = vadd.f32 %v5440, %v5445
    %v5461 = vadd.f32 %v5441, %v5445
    %v5462 = vmax.f32 %v5446, 0.0
    %v5463 = vmax.f32 %v5447, 0.0
    %v5464 = vmax.f32 %v5448, 0.0
    %v5465 = vmax.f32 %v5449, 0.0
    %v5466 = vmax.f32 %v5450, 0.0
    %v5467 = vmax.f32 %v5451, 0.0
    %v5468 = vmax.f32 %v5452, 0.0
    %v5469 = vmax.f32 %v5453, 0.0
    %v5470 = vmax.f32 %v5454, 0.0
    %v5471 = vmax.f32 %v5455, 0.0
    %v5472 = vmax.f32 %v5456, 0.0
    %v5473 = vmax.f32 %v5457, 0.0
    %v5474 = vmax.f32 %v5458, 0.0
    %v5475 = vmax.f32 %v5459, 0.0
    %v5476 = vmax.f32 %v5460, 0.0
    %v5477 = vmax.f32 %v5461, 0.0
    %v5478 = vld [vmem:[%s5] sm:$0xf]
    %v5479 = vld [vmem:[%s5 + $0x4] sm:$0xf]
    %v5480 = vld [vmem:[%s5 + $0x8] sm:$0xf]
    %v5481 = vld [vmem:[%s5 + $0xc] sm:$0xf]
    %v5482 = vld [vmem:[%s5 + $0x10] sm:$0xf]
    %v5483 = vld [vmem:[%s5 + $0x14] sm:$0xf]
    %v5484 = vld [vmem:[%s5 + $0x18] sm:$0xf]
    %v5485 = vld [vmem:[%s5 + $0x1c] sm:$0xf]
    %v5486 = vld [vmem:[%s5 + $0x20] sm:$0xf]
    %v5487 = vld [vmem:[%s5 + $0x24] sm:$0xf]
    %v5488 = vld [vmem:[%s5 + $0x28] sm:$0xf]
    %v5489 = vld [vmem:[%s5 + $0x2c] sm:$0xf]
    %v5490 = vld [vmem:[%s5 + $0x30] sm:$0xf]
    %v5491 = vld [vmem:[%s5 + $0x34] sm:$0xf]
    %v5492 = vld [vmem:[%s5 + $0x38] sm:$0xf]
    %v5493 = vld [vmem:[%s5 + $0x3c] sm:$0xf]
    %v5494 = vld [vmem:[%s5 + $0x40] sm:$0xf]
    %v5495 = vld [vmem:[%s5 + $0x44] sm:$0xf]
    %v5496 = vld [vmem:[%s5 + $0x48] sm:$0xf]
    %v5497 = vld [vmem:[%s5 + $0x4c] sm:$0xf]
    %v5498 = vld [vmem:[%s5 + $0x50] sm:$0xf]
    %v5499 = vld [vmem:[%s5 + $0x54] sm:$0xf]
    %v5500 = vld [vmem:[%s5 + $0x58] sm:$0xf]
    %v5501 = vld [vmem:[%s5 + $0x5c] sm:$0xf]
    %v5502 = vld [vmem:[%s5 + $0x60] sm:$0xf]
    %v5503 = vld [vmem:[%s5 + $0x64] sm:$0xf]
    %v5504 = vld [vmem:[%s5 + $0x68] sm:$0xf]
    %v5505 = vld [vmem:[%s5 + $0x6c] sm:$0xf]
    %v5506 = vld [vmem:[%s5 + $0x70] sm:$0xf]
    %v5507 = vld [vmem:[%s5 + $0x74] sm:$0xf]
    %v5508 = vld [vmem:[%s5 + $0x78] sm:$0xf]
    %v5509 = vld [vmem:[%s5 + $0x7c] sm:$0xf]
    %v5510 = vld [vmem:[%s5 + $0x80] sm:$0xf]
    %v5511 = vld [vmem:[%s5 + $0x84] sm:$0xf]
    %v5512 = vld [vmem:[%s5 + $0x88] sm:$0xf]
    %v5513 = vld [vmem:[%s5 + $0x8c] sm:$0xf]
    %v5514 = vld [vmem:[%s5 + $0x90] sm:$0xf]
    %v5515 = vld [vmem:[%s5 + $0x94] sm:$0xf]
    %v5516 = vld [vmem:[%s5 + $0x98] sm:$0xf]
    %v5517 = vld [vmem:[%s5 + $0x9c] sm:$0xf]
    %v5518 = vld [vmem:[%s5 + $0xa0] sm:$0xf]
    %v5519 = vld [vmem:[%s5 + $0xa4] sm:$0xf]
    %v5520 = vld [vmem:[%s5 + $0xa8] sm:$0xf]
    %v5521 = vld [vmem:[%s5 + $0xac] sm:$0xf]
    %v5522 = vld [vmem:[%s5 + $0xb0] sm:$0xf]
    %v5523 = vld [vmem:[%s5 + $0xb4] sm:$0xf]
    %v5524 = vld [vmem:[%s5 + $0xb8] sm:$0xf]
    %v5525 = vld [vmem:[%s5 + $0xbc] sm:$0xf]
    %v5526 = vld [vmem:[%s5 + $0xc0] sm:$0xf]
    %v5527 = vld [vmem:[%s5 + $0xc4] sm:$0xf]
    %v5528 = vld [vmem:[%s5 + $0xc8] sm:$0xf]
    %v5529 = vld [vmem:[%s5 + $0xcc] sm:$0xf]
    %v5530 = vld [vmem:[%s5 + $0xd0] sm:$0xf]
    %v5531 = vld [vmem:[%s5 + $0xd4] sm:$0xf]
    %v5532 = vld [vmem:[%s5 + $0xd8] sm:$0xf]
    %v5533 = vld [vmem:[%s5 + $0xdc] sm:$0xf]
    %v5534 = vld [vmem:[%s5 + $0xe0] sm:$0xf]
    %v5535 = vld [vmem:[%s5 + $0xe4] sm:$0xf]
    %v5536 = vld [vmem:[%s5 + $0xe8] sm:$0xf]
    %v5537 = vld [vmem:[%s5 + $0xec] sm:$0xf]
    %v5538 = vld [vmem:[%s5 + $0xf0] sm:$0xf]
    %v5539 = vld [vmem:[%s5 + $0xf4] sm:$0xf]
    %v5540 = vld [vmem:[%s5 + $0xf8] sm:$0xf]
    %v5541 = vld [vmem:[%s5 + $0xfc] sm:$0xf]
    %v5542 = vld [vmem:[%s5 + $0x100] sm:$0xf]
    %v5543 = vld [vmem:[%s5 + $0x104] sm:$0xf]
    %v5544 = vld [vmem:[%s5 + $0x108] sm:$0xf]
    %v5545 = vld [vmem:[%s5 + $0x10c] sm:$0xf]
    %v5546 = vld [vmem:[%s5 + $0x110] sm:$0xf]
    %v5547 = vld [vmem:[%s5 + $0x114] sm:$0xf]
    %v5548 = vld [vmem:[%s5 + $0x118] sm:$0xf]
    %v5549 = vld [vmem:[%s5 + $0x11c] sm:$0xf]
    %5550 = vst.msk [vmem:[%s1383 + $0x1] sm:$0xff] %vm34, %v5462
    %5551 = vst.msk [vmem:[%s1383 + $0x11] sm:$0xff] %vm34, %v5463
    %5552 = vst.msk [vmem:[%s1383 + $0x21] sm:$0xff] %vm34, %v5464
    %5553 = vst.msk [vmem:[%s1383 + $0x31] sm:$0xff] %vm34, %v5465
    %5554 = vst.msk [vmem:[%s1383 + $0x41] sm:$0xff] %vm34, %v5466
    %5555 = vst.msk [vmem:[%s1383 + $0x51] sm:$0xff] %vm34, %v5467
    %5556 = vst.msk [vmem:[%s1383 + $0x61] sm:$0xff] %vm34, %v5468
    %5557 = vst.msk [vmem:[%s1383 + $0x71] sm:$0xff] %vm34, %v5469
    %5558 = vst.msk [vmem:[%s1383 + $0xa1] sm:$0xff] %vm34, %v5470
    %5559 = vst.msk [vmem:[%s1383 + $0xb1] sm:$0xff] %vm34, %v5471
    %5560 = vst.msk [vmem:[%s1383 + $0xc1] sm:$0xff] %vm34, %v5472
    %5561 = vst.msk [vmem:[%s1383 + $0xd1] sm:$0xff] %vm34, %v5473
    %5562 = vst.msk [vmem:[%s1383 + $0xe1] sm:$0xff] %vm34, %v5474
    %5563 = vst.msk [vmem:[%s1383 + $0xf1] sm:$0xff] %vm34, %v5475
    %5564 = vst.msk [vmem:[%s1383 + $0x101] sm:$0xff] %vm34, %v5476
    %5565 = vst.msk [vmem:[%s1383 + $0x111] sm:$0xff] %vm34, %v5477
    %v5566 = vld [vmem:[#allocation2] sm:$0xff]
    %v5567 = vld [vmem:[#allocation2 + $0x10] sm:$0xff]
    %v5568 = vld [vmem:[#allocation2 + $0x20] sm:$0xff]
    %v5569 = vld [vmem:[#allocation2 + $0x30] sm:$0xff]
    %v5570 = vld [vmem:[#allocation2 + $0x40] sm:$0xff]
    %v5571 = vld [vmem:[#allocation2 + $0x50] sm:$0xff]
    %v5572 = vld [vmem:[#allocation2 + $0x60] sm:$0xff]
    %v5573 = vld [vmem:[#allocation2 + $0x70] sm:$0xff]
    %v5574 = vld [vmem:[#allocation2 + $0xa0] sm:$0xff]
    %v5575 = vld [vmem:[#allocation2 + $0xb0] sm:$0xff]
    %v5576 = vld [vmem:[#allocation2 + $0xc0] sm:$0xff]
    %v5577 = vld [vmem:[#allocation2 + $0xd0] sm:$0xff]
    %v5578 = vld [vmem:[#allocation2 + $0xe0] sm:$0xff]
    %v5579 = vld [vmem:[#allocation2 + $0xf0] sm:$0xff]
    %v5580 = vld [vmem:[#allocation2 + $0x100] sm:$0xff]
    %v5581 = vld [vmem:[#allocation2 + $0x110] sm:$0xff]
    %v5582 = vpack.c.bf16 %v5567, %v5566
    %v5583 = vpack.c.bf16 %v5569, %v5568
    %v5584 = vpack.c.bf16 %v5571, %v5570
    %v5585 = vpack.c.bf16 %v5573, %v5572
    %v5586 = vpack.c.bf16 %v5575, %v5574
    %v5587 = vpack.c.bf16 %v5577, %v5576
    %v5588 = vpack.c.bf16 %v5579, %v5578
    %v5589 = vpack.c.bf16 %v5581, %v5580
    %v5598 = vunpack.c.l.b16 %v5582
    %v5599 = vunpack.c.h.b16 %v5582
    %v5600 = vunpack.c.l.b16 %v5583
    %v5601 = vunpack.c.h.b16 %v5583
    %v5602 = vunpack.c.l.b16 %v5584
    %v5603 = vunpack.c.h.b16 %v5584
    %v5604 = vunpack.c.l.b16 %v5585
    %v5605 = vunpack.c.h.b16 %v5585
    %v5606 = vunpack.c.l.b16 %v5586
    %v5607 = vunpack.c.h.b16 %v5586
    %v5608 = vunpack.c.l.b16 %v5587
    %v5609 = vunpack.c.h.b16 %v5587
    %v5610 = vunpack.c.l.b16 %v5588
    %v5611 = vunpack.c.h.b16 %v5588
    %v5612 = vunpack.c.l.b16 %v5589
    %v5613 = vunpack.c.h.b16 %v5589
    %v5614 = vpack.c.b16 %v5598, %v5598
    %v5615 = vpack.c.b16 %v5599, %v5599
    %v5616 = vpack.c.b16 %v5600, %v5600
    %v5617 = vpack.c.b16 %v5601, %v5601
    %v5618 = vpack.c.b16 %v5602, %v5602
    %v5619 = vpack.c.b16 %v5603, %v5603
    %v5620 = vpack.c.b16 %v5604, %v5604
    %v5621 = vpack.c.b16 %v5605, %v5605
    %v5622 = vpack.c.b16 %v5606, %v5606
    %v5623 = vpack.c.b16 %v5607, %v5607
    %v5624 = vpack.c.b16 %v5608, %v5608
    %v5625 = vpack.c.b16 %v5609, %v5609
    %v5626 = vpack.c.b16 %v5610, %v5610
    %v5627 = vpack.c.b16 %v5611, %v5611
    %v5628 = vpack.c.b16 %v5612, %v5612
    %v5629 = vpack.c.b16 %v5613, %v5613
    %5646 = vst.msk [vmem:[#allocation3] sm:$0xf] %vm1480, %v5614
    %5647 = vst.msk [vmem:[#allocation3 + $0x14] sm:$0xf] %vm1480, %v5615
    %5648 = vst.msk [vmem:[#allocation3 + $0x28] sm:$0xf] %vm1480, %v5616
    %5649 = vst.msk [vmem:[#allocation3 + $0x3c] sm:$0xf] %vm1480, %v5617
    %5650 = vst.msk [vmem:[#allocation3 + $0x50] sm:$0xf] %vm1480, %v5618
    %5651 = vst.msk [vmem:[#allocation3 + $0x64] sm:$0xf] %vm1480, %v5619
    %5652 = vst.msk [vmem:[#allocation3 + $0x78] sm:$0xf] %vm1480, %v5620
    %5653 = vst.msk [vmem:[#allocation3 + $0x8c] sm:$0xf] %vm1480, %v5621
    %5654 = vst.msk [vmem:[#allocation3 + $0xa0] sm:$0xf] %vm1480, %v5622
    %5655 = vst.msk [vmem:[#allocation3 + $0xb4] sm:$0xf] %vm1480, %v5623
    %5656 = vst.msk [vmem:[#allocation3 + $0xc8] sm:$0xf] %vm1480, %v5624
    %5657 = vst.msk [vmem:[#allocation3 + $0xdc] sm:$0xf] %vm1480, %v5625
    %5658 = vst.msk [vmem:[#allocation3 + $0xf0] sm:$0xf] %vm1480, %v5626
    %5659 = vst.msk [vmem:[#allocation3 + $0x104] sm:$0xf] %vm1480, %v5627
    %5660 = vst.msk [vmem:[#allocation3 + $0x118] sm:$0xf] %vm1480, %v5628
    %5661 = vst.msk [vmem:[#allocation3 + $0x12c] sm:$0xf] %vm1480, %v5629
    %v5662 = vld [vmem:[#allocation2 + $0x1] sm:$0xff]
    %v5663 = vld [vmem:[#allocation2 + $0x11] sm:$0xff]
    %v5664 = vld [vmem:[#allocation2 + $0x21] sm:$0xff]
    %v5665 = vld [vmem:[#allocation2 + $0x31] sm:$0xff]
    %v5666 = vld [vmem:[#allocation2 + $0x41] sm:$0xff]
    %v5667 = vld [vmem:[#allocation2 + $0x51] sm:$0xff]
    %v5668 = vld [vmem:[#allocation2 + $0x61] sm:$0xff]
    %v5669 = vld [vmem:[#allocation2 + $0x71] sm:$0xff]
    %v5670 = vld [vmem:[#allocation2 + $0xa1] sm:$0xff]
    %v5671 = vld [vmem:[#allocation2 + $0xb1] sm:$0xff]
    %v5672 = vld [vmem:[#allocation2 + $0xc1] sm:$0xff]
    %v5673 = vld [vmem:[#allocation2 + $0xd1] sm:$0xff]
    %v5674 = vld [vmem:[#allocation2 + $0xe1] sm:$0xff]
    %v5675 = vld [vmem:[#allocation2 + $0xf1] sm:$0xff]
    %v5676 = vld [vmem:[#allocation2 + $0x101] sm:$0xff]
    %v5677 = vld [vmem:[#allocation2 + $0x111] sm:$0xff]
    %v5678 = vpack.c.bf16 %v5663, %v5662
    %v5679 = vpack.c.bf16 %v5665, %v5664
    %v5680 = vpack.c.bf16 %v5667, %v5666
    %v5681 = vpack.c.bf16 %v5669, %v5668
    %v5682 = vpack.c.bf16 %v5671, %v5670
    %v5683 = vpack.c.bf16 %v5673, %v5672
    %v5684 = vpack.c.bf16 %v5675, %v5674
    %v5685 = vpack.c.bf16 %v5677, %v5676
    %v5694 = vunpack.c.l.b16 %v5678
    %v5695 = vunpack.c.h.b16 %v5678
    %v5696 = vunpack.c.l.b16 %v5679
    %v5697 = vunpack.c.h.b16 %v5679
    %v5698 = vunpack.c.l.b16 %v5680
    %v5699 = vunpack.c.h.b16 %v5680
    %v5700 = vunpack.c.l.b16 %v5681
    %v5701 = vunpack.c.h.b16 %v5681
    %v5702 = vunpack.c.l.b16 %v5682
    %v5703 = vunpack.c.h.b16 %v5682
    %v5704 = vunpack.c.l.b16 %v5683
    %v5705 = vunpack.c.h.b16 %v5683
    %v5706 = vunpack.c.l.b16 %v5684
    %v5707 = vunpack.c.h.b16 %v5684
    %v5708 = vunpack.c.l.b16 %v5685
    %v5709 = vunpack.c.h.b16 %v5685
    %v5710 = vpack.c.b16 %v5694, %v5694
    %v5711 = vpack.c.b16 %v5695, %v5695
    %v5712 = vpack.c.b16 %v5696, %v5696
    %v5713 = vpack.c.b16 %v5697, %v5697
    %v5714 = vpack.c.b16 %v5698, %v5698
    %v5715 = vpack.c.b16 %v5699, %v5699
    %v5716 = vpack.c.b16 %v5700, %v5700
    %v5717 = vpack.c.b16 %v5701, %v5701
    %v5718 = vpack.c.b16 %v5702, %v5702
    %v5719 = vpack.c.b16 %v5703, %v5703
    %v5720 = vpack.c.b16 %v5704, %v5704
    %v5721 = vpack.c.b16 %v5705, %v5705
    %v5722 = vpack.c.b16 %v5706, %v5706
    %v5723 = vpack.c.b16 %v5707, %v5707
    %v5724 = vpack.c.b16 %v5708, %v5708
    %v5725 = vpack.c.b16 %v5709, %v5709
    %5726 = vrot.lane.b32.xlu0 %v5710, 64
    %v5727 = vpop.permute.xlu0 %5726
    %5728 = vrot.lane.b32.xlu0 %v5711, 64
    %v5729 = vpop.permute.xlu0 %5728
    %5730 = vrot.lane.b32.xlu0 %v5712, 64
    %v5731 = vpop.permute.xlu0 %5730
    %5732 = vrot.lane.b32.xlu0 %v5713, 64
    %v5733 = vpop.permute.xlu0 %5732
    %5734 = vrot.lane.b32.xlu0 %v5714, 64
    %v5735 = vpop.permute.xlu0 %5734
    %5736 = vrot.lane.b32.xlu0 %v5715, 64
    %v5737 = vpop.permute.xlu0 %5736
    %5738 = vrot.lane.b32.xlu0 %v5716, 64
    %v5739 = vpop.permute.xlu0 %5738
    %5740 = vrot.lane.b32.xlu0 %v5717, 64
    %v5741 = vpop.permute.xlu0 %5740
    %5742 = vrot.lane.b32.xlu0 %v5718, 64
    %v5743 = vpop.permute.xlu0 %5742
    %5744 = vrot.lane.b32.xlu0 %v5719, 64
    %v5745 = vpop.permute.xlu0 %5744
    %5746 = vrot.lane.b32.xlu0 %v5720, 64
    %v5747 = vpop.permute.xlu0 %5746
    %5748 = vrot.lane.b32.xlu0 %v5721, 64
    %v5749 = vpop.permute.xlu0 %5748
    %5750 = vrot.lane.b32.xlu0 %v5722, 64
    %v5751 = vpop.permute.xlu0 %5750
    %5752 = vrot.lane.b32.xlu0 %v5723, 64
    %v5753 = vpop.permute.xlu0 %5752
    %5754 = vrot.lane.b32.xlu0 %v5724, 64
    %v5755 = vpop.permute.xlu0 %5754
    %5756 = vrot.lane.b32.xlu0 %v5725, 64
    %v5757 = vpop.permute.xlu0 %5756
    %5774 = vst.msk [vmem:[#allocation3] sm:$0xf] %vm1609, %v5727
    %5775 = vst.msk [vmem:[#allocation3 + $0x14] sm:$0xf] %vm1609, %v5729
    %5776 = vst.msk [vmem:[#allocation3 + $0x28] sm:$0xf] %vm1609, %v5731
    %5777 = vst.msk [vmem:[#allocation3 + $0x3c] sm:$0xf] %vm1609, %v5733
    %5778 = vst.msk [vmem:[#allocation3 + $0x50] sm:$0xf] %vm1609, %v5735
    %5779 = vst.msk [vmem:[#allocation3 + $0x64] sm:$0xf] %vm1609, %v5737
    %5780 = vst.msk [vmem:[#allocation3 + $0x78] sm:$0xf] %vm1609, %v5739
    %5781 = vst.msk [vmem:[#allocation3 + $0x8c] sm:$0xf] %vm1609, %v5741
    %5782 = vst.msk [vmem:[#allocation3 + $0xa0] sm:$0xf] %vm1609, %v5743
    %5783 = vst.msk [vmem:[#allocation3 + $0xb4] sm:$0xf] %vm1609, %v5745
    %5784 = vst.msk [vmem:[#allocation3 + $0xc8] sm:$0xf] %vm1609, %v5747
    %5785 = vst.msk [vmem:[#allocation3 + $0xdc] sm:$0xf] %vm1609, %v5749
    %5786 = vst.msk [vmem:[#allocation3 + $0xf0] sm:$0xf] %vm1609, %v5751
    %5787 = vst.msk [vmem:[#allocation3 + $0x104] sm:$0xf] %vm1609, %v5753
    %5788 = vst.msk [vmem:[#allocation3 + $0x118] sm:$0xf] %vm1609, %v5755
    %5789 = vst.msk [vmem:[#allocation3 + $0x12c] sm:$0xf] %vm1609, %v5757
    %v5790 = vld [vmem:[#allocation2 + $0x2] sm:$0xff]
    %v5791 = vld [vmem:[#allocation2 + $0x12] sm:$0xff]
    %v5792 = vld [vmem:[#allocation2 + $0x22] sm:$0xff]
    %v5793 = vld [vmem:[#allocation2 + $0x32] sm:$0xff]
    %v5794 = vld [vmem:[#allocation2 + $0x42] sm:$0xff]
    %v5795 = vld [vmem:[#allocation2 + $0x52] sm:$0xff]
    %v5796 = vld [vmem:[#allocation2 + $0x62] sm:$0xff]
    %v5797 = vld [vmem:[#allocation2 + $0x72] sm:$0xff]
    %v5798 = vld [vmem:[#allocation2 + $0xa2] sm:$0xff]
    %v5799 = vld [vmem:[#allocation2 + $0xb2] sm:$0xff]
    %v5800 = vld [vmem:[#allocation2 + $0xc2] sm:$0xff]
    %v5801 = vld [vmem:[#allocation2 + $0xd2] sm:$0xff]
    %v5802 = vld [vmem:[#allocation2 + $0xe2] sm:$0xff]
    %v5803 = vld [vmem:[#allocation2 + $0xf2] sm:$0xff]
    %v5804 = vld [vmem:[#allocation2 + $0x102] sm:$0xff]
    %v5805 = vld [vmem:[#allocation2 + $0x112] sm:$0xff]
    %v5806 = vpack.c.bf16 %v5791, %v5790
    %v5807 = vpack.c.bf16 %v5793, %v5792
    %v5808 = vpack.c.bf16 %v5795, %v5794
    %v5809 = vpack.c.bf16 %v5797, %v5796
    %v5810 = vpack.c.bf16 %v5799, %v5798
    %v5811 = vpack.c.bf16 %v5801, %v5800
    %v5812 = vpack.c.bf16 %v5803, %v5802
    %v5813 = vpack.c.bf16 %v5805, %v5804
    %v5822 = vunpack.c.l.b16 %v5806
    %v5823 = vunpack.c.h.b16 %v5806
    %v5824 = vunpack.c.l.b16 %v5807
    %v5825 = vunpack.c.h.b16 %v5807
    %v5826 = vunpack.c.l.b16 %v5808
    %v5827 = vunpack.c.h.b16 %v5808
    %v5828 = vunpack.c.l.b16 %v5809
    %v5829 = vunpack.c.h.b16 %v5809
    %v5830 = vunpack.c.l.b16 %v5810
    %v5831 = vunpack.c.h.b16 %v5810
    %v5832 = vunpack.c.l.b16 %v5811
    %v5833 = vunpack.c.h.b16 %v5811
    %v5834 = vunpack.c.l.b16 %v5812
    %v5835 = vunpack.c.h.b16 %v5812
    %v5836 = vunpack.c.l.b16 %v5813
    %v5837 = vunpack.c.h.b16 %v5813
    %v5838 = vpack.c.b16 %v5822, %v5822
    %v5839 = vpack.c.b16 %v5823, %v5823
    %v5840 = vpack.c.b16 %v5824, %v5824
    %v5841 = vpack.c.b16 %v5825, %v5825
    %v5842 = vpack.c.b16 %v5826, %v5826
    %v5843 = vpack.c.b16 %v5827, %v5827
    %v5844 = vpack.c.b16 %v5828, %v5828
    %v5845 = vpack.c.b16 %v5829, %v5829
    %v5846 = vpack.c.b16 %v5830, %v5830
    %v5847 = vpack.c.b16 %v5831, %v5831
    %v5848 = vpack.c.b16 %v5832, %v5832
    %v5849 = vpack.c.b16 %v5833, %v5833
    %v5850 = vpack.c.b16 %v5834, %v5834
    %v5851 = vpack.c.b16 %v5835, %v5835
    %v5852 = vpack.c.b16 %v5836, %v5836
    %v5853 = vpack.c.b16 %v5837, %v5837
    %5870 = vst.msk [vmem:[#allocation3 + $0x4] sm:$0xf] %vm1480, %v5838
    %5871 = vst.msk [vmem:[#allocation3 + $0x18] sm:$0xf] %vm1480, %v5839
    %5872 = vst.msk [vmem:[#allocation3 + $0x2c] sm:$0xf] %vm1480, %v5840
    %5873 = vst.msk [vmem:[#allocation3 + $0x40] sm:$0xf] %vm1480, %v5841
    %5874 = vst.msk [vmem:[#allocation3 + $0x54] sm:$0xf] %vm1480, %v5842
    %5875 = vst.msk [vmem:[#allocation3 + $0x68] sm:$0xf] %vm1480, %v5843
    %5876 = vst.msk [vmem:[#allocation3 + $0x7c] sm:$0xf] %vm1480, %v5844
    %5877 = vst.msk [vmem:[#allocation3 + $0x90] sm:$0xf] %vm1480, %v5845
    %5878 = vst.msk [vmem:[#allocation3 + $0xa4] sm:$0xf] %vm1480, %v5846
    %5879 = vst.msk [vmem:[#allocation3 + $0xb8] sm:$0xf] %vm1480, %v5847
    %5880 = vst.msk [vmem:[#allocation3 + $0xcc] sm:$0xf] %vm1480, %v5848
    %5881 = vst.msk [vmem:[#allocation3 + $0xe0] sm:$0xf] %vm1480, %v5849
    %5882 = vst.msk [vmem:[#allocation3 + $0xf4] sm:$0xf] %vm1480, %v5850
    %5883 = vst.msk [vmem:[#allocation3 + $0x108] sm:$0xf] %vm1480, %v5851
    %5884 = vst.msk [vmem:[#allocation3 + $0x11c] sm:$0xf] %vm1480, %v5852
    %5885 = vst.msk [vmem:[#allocation3 + $0x130] sm:$0xf] %vm1480, %v5853
    %v5886 = vld [vmem:[%s1383] sm:$0xff]
    %v5887 = vld [vmem:[%s1383 + $0x10] sm:$0xff]
    %v5888 = vld [vmem:[%s1383 + $0x20] sm:$0xff]
    %v5889 = vld [vmem:[%s1383 + $0x30] sm:$0xff]
    %v5890 = vld [vmem:[%s1383 + $0x40] sm:$0xff]
    %v5891 = vld [vmem:[%s1383 + $0x50] sm:$0xff]
    %v5892 = vld [vmem:[%s1383 + $0x60] sm:$0xff]
    %v5893 = vld [vmem:[%s1383 + $0x70] sm:$0xff]
    %v5894 = vld [vmem:[%s1383 + $0xa0] sm:$0xff]
    %v5895 = vld [vmem:[%s1383 + $0xb0] sm:$0xff]
    %v5896 = vld [vmem:[%s1383 + $0xc0] sm:$0xff]
    %v5897 = vld [vmem:[%s1383 + $0xd0] sm:$0xff]
    %v5898 = vld [vmem:[%s1383 + $0xe0] sm:$0xff]
    %v5899 = vld [vmem:[%s1383 + $0xf0] sm:$0xff]
    %v5900 = vld [vmem:[%s1383 + $0x100] sm:$0xff]
    %v5901 = vld [vmem:[%s1383 + $0x110] sm:$0xff]
    %v5902 = vpack.c.bf16 %v5887, %v5886
    %v5903 = vpack.c.bf16 %v5889, %v5888
    %v5904 = vpack.c.bf16 %v5891, %v5890
    %v5905 = vpack.c.bf16 %v5893, %v5892
    %v5906 = vpack.c.bf16 %v5895, %v5894
    %v5907 = vpack.c.bf16 %v5897, %v5896
    %v5908 = vpack.c.bf16 %v5899, %v5898
    %v5909 = vpack.c.bf16 %v5901, %v5900
    %v5918 = vunpack.c.l.b16 %v5902
    %v5919 = vunpack.c.h.b16 %v5902
    %v5920 = vunpack.c.l.b16 %v5903
    %v5921 = vunpack.c.h.b16 %v5903
    %v5922 = vunpack.c.l.b16 %v5904
    %v5923 = vunpack.c.h.b16 %v5904
    %v5924 = vunpack.c.l.b16 %v5905
    %v5925 = vunpack.c.h.b16 %v5905
    %v5926 = vunpack.c.l.b16 %v5906
    %v5927 = vunpack.c.h.b16 %v5906
    %v5928 = vunpack.c.l.b16 %v5907
    %v5929 = vunpack.c.h.b16 %v5907
    %v5930 = vunpack.c.l.b16 %v5908
    %v5931 = vunpack.c.h.b16 %v5908
    %v5932 = vunpack.c.l.b16 %v5909
    %v5933 = vunpack.c.h.b16 %v5909
    %v5934 = vpack.c.b16 %v5918, %v5918
    %v5935 = vpack.c.b16 %v5919, %v5919
    %v5936 = vpack.c.b16 %v5920, %v5920
    %v5937 = vpack.c.b16 %v5921, %v5921
    %v5938 = vpack.c.b16 %v5922, %v5922
    %v5939 = vpack.c.b16 %v5923, %v5923
    %v5940 = vpack.c.b16 %v5924, %v5924
    %v5941 = vpack.c.b16 %v5925, %v5925
    %v5942 = vpack.c.b16 %v5926, %v5926
    %v5943 = vpack.c.b16 %v5927, %v5927
    %v5944 = vpack.c.b16 %v5928, %v5928
    %v5945 = vpack.c.b16 %v5929, %v5929
    %v5946 = vpack.c.b16 %v5930, %v5930
    %v5947 = vpack.c.b16 %v5931, %v5931
    %v5948 = vpack.c.b16 %v5932, %v5932
    %v5949 = vpack.c.b16 %v5933, %v5933
    %5950 = vrot.lane.b32.xlu0 %v5934, 64
    %v5951 = vpop.permute.xlu0 %5950
    %5952 = vrot.lane.b32.xlu0 %v5935, 64
    %v5953 = vpop.permute.xlu0 %5952
    %5954 = vrot.lane.b32.xlu0 %v5936, 64
    %v5955 = vpop.permute.xlu0 %5954
    %5956 = vrot.lane.b32.xlu0 %v5937, 64
    %v5957 = vpop.permute.xlu0 %5956
    %5958 = vrot.lane.b32.xlu0 %v5938, 64
    %v5959 = vpop.permute.xlu0 %5958
    %5960 = vrot.lane.b32.xlu0 %v5939, 64
    %v5961 = vpop.permute.xlu0 %5960
    %5962 = vrot.lane.b32.xlu0 %v5940, 64
    %v5963 = vpop.permute.xlu0 %5962
    %5964 = vrot.lane.b32.xlu0 %v5941, 64
    %v5965 = vpop.permute.xlu0 %5964
    %5966 = vrot.lane.b32.xlu0 %v5942, 64
    %v5967 = vpop.permute.xlu0 %5966
    %5968 = vrot.lane.b32.xlu0 %v5943, 64
    %v5969 = vpop.permute.xlu0 %5968
    %5970 = vrot.lane.b32.xlu0 %v5944, 64
    %v5971 = vpop.permute.xlu0 %5970
    %5972 = vrot.lane.b32.xlu0 %v5945, 64
    %v5973 = vpop.permute.xlu0 %5972
    %5974 = vrot.lane.b32.xlu0 %v5946, 64
    %v5975 = vpop.permute.xlu0 %5974
    %5976 = vrot.lane.b32.xlu0 %v5947, 64
    %v5977 = vpop.permute.xlu0 %5976
    %5978 = vrot.lane.b32.xlu0 %v5948, 64
    %v5979 = vpop.permute.xlu0 %5978
    %5980 = vrot.lane.b32.xlu0 %v5949, 64
    %v5981 = vpop.permute.xlu0 %5980
    %5998 = vst.msk [vmem:[#allocation3 + $0x4] sm:$0xf] %vm1609, %v5951
    %5999 = vst.msk [vmem:[#allocation3 + $0x18] sm:$0xf] %vm1609, %v5953
    %6000 = vst.msk [vmem:[#allocation3 + $0x2c] sm:$0xf] %vm1609, %v5955
    %6001 = vst.msk [vmem:[#allocation3 + $0x40] sm:$0xf] %vm1609, %v5957
    %6002 = vst.msk [vmem:[#allocation3 + $0x54] sm:$0xf] %vm1609, %v5959
    %6003 = vst.msk [vmem:[#allocation3 + $0x68] sm:$0xf] %vm1609, %v5961
    %6004 = vst.msk [vmem:[#allocation3 + $0x7c] sm:$0xf] %vm1609, %v5963
    %6005 = vst.msk [vmem:[#allocation3 + $0x90] sm:$0xf] %vm1609, %v5965
    %6006 = vst.msk [vmem:[#allocation3 + $0xa4] sm:$0xf] %vm1609, %v5967
    %6007 = vst.msk [vmem:[#allocation3 + $0xb8] sm:$0xf] %vm1609, %v5969
    %6008 = vst.msk [vmem:[#allocation3 + $0xcc] sm:$0xf] %vm1609, %v5971
    %6009 = vst.msk [vmem:[#allocation3 + $0xe0] sm:$0xf] %vm1609, %v5973
    %6010 = vst.msk [vmem:[#allocation3 + $0xf4] sm:$0xf] %vm1609, %v5975
    %6011 = vst.msk [vmem:[#allocation3 + $0x108] sm:$0xf] %vm1609, %v5977
    %6012 = vst.msk [vmem:[#allocation3 + $0x11c] sm:$0xf] %vm1609, %v5979
    %6013 = vst.msk [vmem:[#allocation3 + $0x130] sm:$0xf] %vm1609, %v5981
    %v6014 = vld [vmem:[%s1383 + $0x1] sm:$0xff]
    %v6015 = vld [vmem:[%s1383 + $0x11] sm:$0xff]
    %v6016 = vld [vmem:[%s1383 + $0x21] sm:$0xff]
    %v6017 = vld [vmem:[%s1383 + $0x31] sm:$0xff]
    %v6018 = vld [vmem:[%s1383 + $0x41] sm:$0xff]
    %v6019 = vld [vmem:[%s1383 + $0x51] sm:$0xff]
    %v6020 = vld [vmem:[%s1383 + $0x61] sm:$0xff]
    %v6021 = vld [vmem:[%s1383 + $0x71] sm:$0xff]
    %v6022 = vld [vmem:[%s1383 + $0xa1] sm:$0xff]
    %v6023 = vld [vmem:[%s1383 + $0xb1] sm:$0xff]
    %v6024 = vld [vmem:[%s1383 + $0xc1] sm:$0xff]
    %v6025 = vld [vmem:[%s1383 + $0xd1] sm:$0xff]
    %v6026 = vld [vmem:[%s1383 + $0xe1] sm:$0xff]
    %v6027 = vld [vmem:[%s1383 + $0xf1] sm:$0xff]
    %v6028 = vld [vmem:[%s1383 + $0x101] sm:$0xff]
    %v6029 = vld [vmem:[%s1383 + $0x111] sm:$0xff]
    %v6030 = vpack.c.bf16 %v6015, %v6014
    %v6031 = vpack.c.bf16 %v6017, %v6016
    %v6032 = vpack.c.bf16 %v6019, %v6018
    %v6033 = vpack.c.bf16 %v6021, %v6020
    %v6034 = vpack.c.bf16 %v6023, %v6022
    %v6035 = vpack.c.bf16 %v6025, %v6024
    %v6036 = vpack.c.bf16 %v6027, %v6026
    %v6037 = vpack.c.bf16 %v6029, %v6028
    %v6046 = vunpack.c.l.b16 %v6030
    %v6047 = vunpack.c.h.b16 %v6030
    %v6048 = vunpack.c.l.b16 %v6031
    %v6049 = vunpack.c.h.b16 %v6031
    %v6050 = vunpack.c.l.b16 %v6032
    %v6051 = vunpack.c.h.b16 %v6032
    %v6052 = vunpack.c.l.b16 %v6033
    %v6053 = vunpack.c.h.b16 %v6033
    %v6054 = vunpack.c.l.b16 %v6034
    %v6055 = vunpack.c.h.b16 %v6034
    %v6056 = vunpack.c.l.b16 %v6035
    %v6057 = vunpack.c.h.b16 %v6035
    %v6058 = vunpack.c.l.b16 %v6036
    %v6059 = vunpack.c.h.b16 %v6036
    %v6060 = vunpack.c.l.b16 %v6037
    %v6061 = vunpack.c.h.b16 %v6037
    %v6062 = vpack.c.b16 %v6046, %v6046
    %v6063 = vpack.c.b16 %v6047, %v6047
    %v6064 = vpack.c.b16 %v6048, %v6048
    %v6065 = vpack.c.b16 %v6049, %v6049
    %v6066 = vpack.c.b16 %v6050, %v6050
    %v6067 = vpack.c.b16 %v6051, %v6051
    %v6068 = vpack.c.b16 %v6052, %v6052
    %v6069 = vpack.c.b16 %v6053, %v6053
    %v6070 = vpack.c.b16 %v6054, %v6054
    %v6071 = vpack.c.b16 %v6055, %v6055
    %v6072 = vpack.c.b16 %v6056, %v6056
    %v6073 = vpack.c.b16 %v6057, %v6057
    %v6074 = vpack.c.b16 %v6058, %v6058
    %v6075 = vpack.c.b16 %v6059, %v6059
    %v6076 = vpack.c.b16 %v6060, %v6060
    %v6077 = vpack.c.b16 %v6061, %v6061
    %6094 = vst.msk [vmem:[#allocation3 + $0x8] sm:$0xf] %vm1480, %v6062
    %6095 = vst.msk [vmem:[#allocation3 + $0x1c] sm:$0xf] %vm1480, %v6063
    %6096 = vst.msk [vmem:[#allocation3 + $0x30] sm:$0xf] %vm1480, %v6064
    %6097 = vst.msk [vmem:[#allocation3 + $0x44] sm:$0xf] %vm1480, %v6065
    %6098 = vst.msk [vmem:[#allocation3 + $0x58] sm:$0xf] %vm1480, %v6066
    %6099 = vst.msk [vmem:[#allocation3 + $0x6c] sm:$0xf] %vm1480, %v6067
    %6100 = vst.msk [vmem:[#allocation3 + $0x80] sm:$0xf] %vm1480, %v6068
    %6101 = vst.msk [vmem:[#allocation3 + $0x94] sm:$0xf] %vm1480, %v6069
    %6102 = vst.msk [vmem:[#allocation3 + $0xa8] sm:$0xf] %vm1480, %v6070
    %6103 = vst.msk [vmem:[#allocation3 + $0xbc] sm:$0xf] %vm1480, %v6071
    %6104 = vst.msk [vmem:[#allocation3 + $0xd0] sm:$0xf] %vm1480, %v6072
    %6105 = vst.msk [vmem:[#allocation3 + $0xe4] sm:$0xf] %vm1480, %v6073
    %6106 = vst.msk [vmem:[#allocation3 + $0xf8] sm:$0xf] %vm1480, %v6074
    %6107 = vst.msk [vmem:[#allocation3 + $0x10c] sm:$0xf] %vm1480, %v6075
    %6108 = vst.msk [vmem:[#allocation3 + $0x120] sm:$0xf] %vm1480, %v6076
    %6109 = vst.msk [vmem:[#allocation3 + $0x134] sm:$0xf] %vm1480, %v6077
    %v6110 = vld [vmem:[%s1383 + $0x2] sm:$0xff]
    %v6111 = vld [vmem:[%s1383 + $0x12] sm:$0xff]
    %v6112 = vld [vmem:[%s1383 + $0x22] sm:$0xff]
    %v6113 = vld [vmem:[%s1383 + $0x32] sm:$0xff]
    %v6114 = vld [vmem:[%s1383 + $0x42] sm:$0xff]
    %v6115 = vld [vmem:[%s1383 + $0x52] sm:$0xff]
    %v6116 = vld [vmem:[%s1383 + $0x62] sm:$0xff]
    %v6117 = vld [vmem:[%s1383 + $0x72] sm:$0xff]
    %v6118 = vld [vmem:[%s1383 + $0xa2] sm:$0xff]
    %v6119 = vld [vmem:[%s1383 + $0xb2] sm:$0xff]
    %v6120 = vld [vmem:[%s1383 + $0xc2] sm:$0xff]
    %v6121 = vld [vmem:[%s1383 + $0xd2] sm:$0xff]
    %v6122 = vld [vmem:[%s1383 + $0xe2] sm:$0xff]
    %v6123 = vld [vmem:[%s1383 + $0xf2] sm:$0xff]
    %v6124 = vld [vmem:[%s1383 + $0x102] sm:$0xff]
    %v6125 = vld [vmem:[%s1383 + $0x112] sm:$0xff]
    %v6126 = vpack.c.bf16 %v6111, %v6110
    %v6127 = vpack.c.bf16 %v6113, %v6112
    %v6128 = vpack.c.bf16 %v6115, %v6114
    %v6129 = vpack.c.bf16 %v6117, %v6116
    %v6130 = vpack.c.bf16 %v6119, %v6118
    %v6131 = vpack.c.bf16 %v6121, %v6120
    %v6132 = vpack.c.bf16 %v6123, %v6122
    %v6133 = vpack.c.bf16 %v6125, %v6124
    %v6142 = vunpack.c.l.b16 %v6126
    %v6143 = vunpack.c.h.b16 %v6126
    %v6144 = vunpack.c.l.b16 %v6127
    %v6145 = vunpack.c.h.b16 %v6127
    %v6146 = vunpack.c.l.b16 %v6128
    %v6147 = vunpack.c.h.b16 %v6128
    %v6148 = vunpack.c.l.b16 %v6129
    %v6149 = vunpack.c.h.b16 %v6129
    %v6150 = vunpack.c.l.b16 %v6130
    %v6151 = vunpack.c.h.b16 %v6130
    %v6152 = vunpack.c.l.b16 %v6131
    %v6153 = vunpack.c.h.b16 %v6131
    %v6154 = vunpack.c.l.b16 %v6132
    %v6155 = vunpack.c.h.b16 %v6132
    %v6156 = vunpack.c.l.b16 %v6133
    %v6157 = vunpack.c.h.b16 %v6133
    %v6158 = vpack.c.b16 %v6142, %v6142
    %v6159 = vpack.c.b16 %v6143, %v6143
    %v6160 = vpack.c.b16 %v6144, %v6144
    %v6161 = vpack.c.b16 %v6145, %v6145
    %v6162 = vpack.c.b16 %v6146, %v6146
    %v6163 = vpack.c.b16 %v6147, %v6147
    %v6164 = vpack.c.b16 %v6148, %v6148
    %v6165 = vpack.c.b16 %v6149, %v6149
    %v6166 = vpack.c.b16 %v6150, %v6150
    %v6167 = vpack.c.b16 %v6151, %v6151
    %v6168 = vpack.c.b16 %v6152, %v6152
    %v6169 = vpack.c.b16 %v6153, %v6153
    %v6170 = vpack.c.b16 %v6154, %v6154
    %v6171 = vpack.c.b16 %v6155, %v6155
    %v6172 = vpack.c.b16 %v6156, %v6156
    %v6173 = vpack.c.b16 %v6157, %v6157
    %6174 = vrot.lane.b32.xlu0 %v6158, 64
    %v6175 = vpop.permute.xlu0 %6174
    %6176 = vrot.lane.b32.xlu0 %v6159, 64
    %v6177 = vpop.permute.xlu0 %6176
    %6178 = vrot.lane.b32.xlu0 %v6160, 64
    %v6179 = vpop.permute.xlu0 %6178
    %6180 = vrot.lane.b32.xlu0 %v6161, 64
    %v6181 = vpop.permute.xlu0 %6180
    %6182 = vrot.lane.b32.xlu0 %v6162, 64
    %v6183 = vpop.permute.xlu0 %6182
    %6184 = vrot.lane.b32.xlu0 %v6163, 64
    %v6185 = vpop.permute.xlu0 %6184
    %6186 = vrot.lane.b32.xlu0 %v6164, 64
    %v6187 = vpop.permute.xlu0 %6186
    %6188 = vrot.lane.b32.xlu0 %v6165, 64
    %v6189 = vpop.permute.xlu0 %6188
    %6190 = vrot.lane.b32.xlu0 %v6166, 64
    %v6191 = vpop.permute.xlu0 %6190
    %6192 = vrot.lane.b32.xlu0 %v6167, 64
    %v6193 = vpop.permute.xlu0 %6192
    %6194 = vrot.lane.b32.xlu0 %v6168, 64
    %v6195 = vpop.permute.xlu0 %6194
    %6196 = vrot.lane.b32.xlu0 %v6169, 64
    %v6197 = vpop.permute.xlu0 %6196
    %6198 = vrot.lane.b32.xlu0 %v6170, 64
    %v6199 = vpop.permute.xlu0 %6198
    %6200 = vrot.lane.b32.xlu0 %v6171, 64
    %v6201 = vpop.permute.xlu0 %6200
    %6202 = vrot.lane.b32.xlu0 %v6172, 64
    %v6203 = vpop.permute.xlu0 %6202
    %6204 = vrot.lane.b32.xlu0 %v6173, 64
    %v6205 = vpop.permute.xlu0 %6204
    %6222 = vst.msk [vmem:[#allocation3 + $0x8] sm:$0xf] %vm1609, %v6175
    %6223 = vst.msk [vmem:[#allocation3 + $0x1c] sm:$0xf] %vm1609, %v6177
    %6224 = vst.msk [vmem:[#allocation3 + $0x30] sm:$0xf] %vm1609, %v6179
    %6225 = vst.msk [vmem:[#allocation3 + $0x44] sm:$0xf] %vm1609, %v6181
    %6226 = vst.msk [vmem:[#allocation3 + $0x58] sm:$0xf] %vm1609, %v6183
    %6227 = vst.msk [vmem:[#allocation3 + $0x6c] sm:$0xf] %vm1609, %v6185
    %6228 = vst.msk [vmem:[#allocation3 + $0x80] sm:$0xf] %vm1609, %v6187
    %6229 = vst.msk [vmem:[#allocation3 + $0x94] sm:$0xf] %vm1609, %v6189
    %6230 = vst.msk [vmem:[#allocation3 + $0xa8] sm:$0xf] %vm1609, %v6191
    %6231 = vst.msk [vmem:[#allocation3 + $0xbc] sm:$0xf] %vm1609, %v6193
    %6232 = vst.msk [vmem:[#allocation3 + $0xd0] sm:$0xf] %vm1609, %v6195
    %6233 = vst.msk [vmem:[#allocation3 + $0xe4] sm:$0xf] %vm1609, %v6197
    %6234 = vst.msk [vmem:[#allocation3 + $0xf8] sm:$0xf] %vm1609, %v6199
    %6235 = vst.msk [vmem:[#allocation3 + $0x10c] sm:$0xf] %vm1609, %v6201
    %6236 = vst.msk [vmem:[#allocation3 + $0x120] sm:$0xf] %vm1609, %v6203
    %6237 = vst.msk [vmem:[#allocation3 + $0x134] sm:$0xf] %vm1609, %v6205
    %v6238 = vld [vmem:[%s2074] sm:$0xff]
    %v6239 = vld [vmem:[%s2074 + $0x10] sm:$0xff]
    %v6240 = vld [vmem:[%s2074 + $0x20] sm:$0xff]
    %v6241 = vld [vmem:[%s2074 + $0x30] sm:$0xff]
    %v6242 = vld [vmem:[%s2074 + $0x40] sm:$0xff]
    %v6243 = vld [vmem:[%s2074 + $0x50] sm:$0xff]
    %v6244 = vld [vmem:[%s2074 + $0x60] sm:$0xff]
    %v6245 = vld [vmem:[%s2074 + $0x70] sm:$0xff]
    %v6246 = vld [vmem:[%s2074 + $0xa0] sm:$0xff]
    %v6247 = vld [vmem:[%s2074 + $0xb0] sm:$0xff]
    %v6248 = vld [vmem:[%s2074 + $0xc0] sm:$0xff]
    %v6249 = vld [vmem:[%s2074 + $0xd0] sm:$0xff]
    %v6250 = vld [vmem:[%s2074 + $0xe0] sm:$0xff]
    %v6251 = vld [vmem:[%s2074 + $0xf0] sm:$0xff]
    %v6252 = vld [vmem:[%s2074 + $0x100] sm:$0xff]
    %v6253 = vld [vmem:[%s2074 + $0x110] sm:$0xff]
    %v6254 = vpack.c.bf16 %v6239, %v6238
    %v6255 = vpack.c.bf16 %v6241, %v6240
    %v6256 = vpack.c.bf16 %v6243, %v6242
    %v6257 = vpack.c.bf16 %v6245, %v6244
    %v6258 = vpack.c.bf16 %v6247, %v6246
    %v6259 = vpack.c.bf16 %v6249, %v6248
    %v6260 = vpack.c.bf16 %v6251, %v6250
    %v6261 = vpack.c.bf16 %v6253, %v6252
    %v6270 = vunpack.c.l.b16 %v6254
    %v6271 = vunpack.c.h.b16 %v6254
    %v6272 = vunpack.c.l.b16 %v6255
    %v6273 = vunpack.c.h.b16 %v6255
    %v6274 = vunpack.c.l.b16 %v6256
    %v6275 = vunpack.c.h.b16 %v6256
    %v6276 = vunpack.c.l.b16 %v6257
    %v6277 = vunpack.c.h.b16 %v6257
    %v6278 = vunpack.c.l.b16 %v6258
    %v6279 = vunpack.c.h.b16 %v6258
    %v6280 = vunpack.c.l.b16 %v6259
    %v6281 = vunpack.c.h.b16 %v6259
    %v6282 = vunpack.c.l.b16 %v6260
    %v6283 = vunpack.c.h.b16 %v6260
    %v6284 = vunpack.c.l.b16 %v6261
    %v6285 = vunpack.c.h.b16 %v6261
    %v6286 = vpack.c.b16 %v6270, %v6270
    %v6287 = vpack.c.b16 %v6271, %v6271
    %v6288 = vpack.c.b16 %v6272, %v6272
    %v6289 = vpack.c.b16 %v6273, %v6273
    %v6290 = vpack.c.b16 %v6274, %v6274
    %v6291 = vpack.c.b16 %v6275, %v6275
    %v6292 = vpack.c.b16 %v6276, %v6276
    %v6293 = vpack.c.b16 %v6277, %v6277
    %v6294 = vpack.c.b16 %v6278, %v6278
    %v6295 = vpack.c.b16 %v6279, %v6279
    %v6296 = vpack.c.b16 %v6280, %v6280
    %v6297 = vpack.c.b16 %v6281, %v6281
    %v6298 = vpack.c.b16 %v6282, %v6282
    %v6299 = vpack.c.b16 %v6283, %v6283
    %v6300 = vpack.c.b16 %v6284, %v6284
    %v6301 = vpack.c.b16 %v6285, %v6285
    %6318 = vst.msk [vmem:[#allocation3 + $0xc] sm:$0xf] %vm1480, %v6286
    %6319 = vst.msk [vmem:[#allocation3 + $0x20] sm:$0xf] %vm1480, %v6287
    %6320 = vst.msk [vmem:[#allocation3 + $0x34] sm:$0xf] %vm1480, %v6288
    %6321 = vst.msk [vmem:[#allocation3 + $0x48] sm:$0xf] %vm1480, %v6289
    %6322 = vst.msk [vmem:[#allocation3 + $0x5c] sm:$0xf] %vm1480, %v6290
    %6323 = vst.msk [vmem:[#allocation3 + $0x70] sm:$0xf] %vm1480, %v6291
    %6324 = vst.msk [vmem:[#allocation3 + $0x84] sm:$0xf] %vm1480, %v6292
    %6325 = vst.msk [vmem:[#allocation3 + $0x98] sm:$0xf] %vm1480, %v6293
    %6326 = vst.msk [vmem:[#allocation3 + $0xac] sm:$0xf] %vm1480, %v6294
    %6327 = vst.msk [vmem:[#allocation3 + $0xc0] sm:$0xf] %vm1480, %v6295
    %6328 = vst.msk [vmem:[#allocation3 + $0xd4] sm:$0xf] %vm1480, %v6296
    %6329 = vst.msk [vmem:[#allocation3 + $0xe8] sm:$0xf] %vm1480, %v6297
    %6330 = vst.msk [vmem:[#allocation3 + $0xfc] sm:$0xf] %vm1480, %v6298
    %6331 = vst.msk [vmem:[#allocation3 + $0x110] sm:$0xf] %vm1480, %v6299
    %6332 = vst.msk [vmem:[#allocation3 + $0x124] sm:$0xf] %vm1480, %v6300
    %6333 = vst.msk [vmem:[#allocation3 + $0x138] sm:$0xf] %vm1480, %v6301
    %v6334 = vld [vmem:[%s2074 + $0x1] sm:$0xff]
    %v6335 = vld [vmem:[%s2074 + $0x11] sm:$0xff]
    %v6336 = vld [vmem:[%s2074 + $0x21] sm:$0xff]
    %v6337 = vld [vmem:[%s2074 + $0x31] sm:$0xff]
    %v6338 = vld [vmem:[%s2074 + $0x41] sm:$0xff]
    %v6339 = vld [vmem:[%s2074 + $0x51] sm:$0xff]
    %v6340 = vld [vmem:[%s2074 + $0x61] sm:$0xff]
    %v6341 = vld [vmem:[%s2074 + $0x71] sm:$0xff]
    %v6342 = vld [vmem:[%s2074 + $0xa1] sm:$0xff]
    %v6343 = vld [vmem:[%s2074 + $0xb1] sm:$0xff]
    %v6344 = vld [vmem:[%s2074 + $0xc1] sm:$0xff]
    %v6345 = vld [vmem:[%s2074 + $0xd1] sm:$0xff]
    %v6346 = vld [vmem:[%s2074 + $0xe1] sm:$0xff]
    %v6347 = vld [vmem:[%s2074 + $0xf1] sm:$0xff]
    %v6348 = vld [vmem:[%s2074 + $0x101] sm:$0xff]
    %v6349 = vld [vmem:[%s2074 + $0x111] sm:$0xff]
    %v6350 = vpack.c.bf16 %v6335, %v6334
    %v6351 = vpack.c.bf16 %v6337, %v6336
    %v6352 = vpack.c.bf16 %v6339, %v6338
    %v6353 = vpack.c.bf16 %v6341, %v6340
    %v6354 = vpack.c.bf16 %v6343, %v6342
    %v6355 = vpack.c.bf16 %v6345, %v6344
    %v6356 = vpack.c.bf16 %v6347, %v6346
    %v6357 = vpack.c.bf16 %v6349, %v6348
    %v6366 = vunpack.c.l.b16 %v6350
    %v6367 = vunpack.c.h.b16 %v6350
    %v6368 = vunpack.c.l.b16 %v6351
    %v6369 = vunpack.c.h.b16 %v6351
    %v6370 = vunpack.c.l.b16 %v6352
    %v6371 = vunpack.c.h.b16 %v6352
    %v6372 = vunpack.c.l.b16 %v6353
    %v6373 = vunpack.c.h.b16 %v6353
    %v6374 = vunpack.c.l.b16 %v6354
    %v6375 = vunpack.c.h.b16 %v6354
    %v6376 = vunpack.c.l.b16 %v6355
    %v6377 = vunpack.c.h.b16 %v6355
    %v6378 = vunpack.c.l.b16 %v6356
    %v6379 = vunpack.c.h.b16 %v6356
    %v6380 = vunpack.c.l.b16 %v6357
    %v6381 = vunpack.c.h.b16 %v6357
    %v6382 = vpack.c.b16 %v6366, %v6366
    %v6383 = vpack.c.b16 %v6367, %v6367
    %v6384 = vpack.c.b16 %v6368, %v6368
    %v6385 = vpack.c.b16 %v6369, %v6369
    %v6386 = vpack.c.b16 %v6370, %v6370
    %v6387 = vpack.c.b16 %v6371, %v6371
    %v6388 = vpack.c.b16 %v6372, %v6372
    %v6389 = vpack.c.b16 %v6373, %v6373
    %v6390 = vpack.c.b16 %v6374, %v6374
    %v6391 = vpack.c.b16 %v6375, %v6375
    %v6392 = vpack.c.b16 %v6376, %v6376
    %v6393 = vpack.c.b16 %v6377, %v6377
    %v6394 = vpack.c.b16 %v6378, %v6378
    %v6395 = vpack.c.b16 %v6379, %v6379
    %v6396 = vpack.c.b16 %v6380, %v6380
    %v6397 = vpack.c.b16 %v6381, %v6381
    %6398 = vrot.lane.b32.xlu0 %v6382, 64
    %v6399 = vpop.permute.xlu0 %6398
    %6400 = vrot.lane.b32.xlu0 %v6383, 64
    %v6401 = vpop.permute.xlu0 %6400
    %6402 = vrot.lane.b32.xlu0 %v6384, 64
    %v6403 = vpop.permute.xlu0 %6402
    %6404 = vrot.lane.b32.xlu0 %v6385, 64
    %v6405 = vpop.permute.xlu0 %6404
    %6406 = vrot.lane.b32.xlu0 %v6386, 64
    %v6407 = vpop.permute.xlu0 %6406
    %6408 = vrot.lane.b32.xlu0 %v6387, 64
    %v6409 = vpop.permute.xlu0 %6408
    %6410 = vrot.lane.b32.xlu0 %v6388, 64
    %v6411 = vpop.permute.xlu0 %6410
    %6412 = vrot.lane.b32.xlu0 %v6389, 64
    %v6413 = vpop.permute.xlu0 %6412
    %6414 = vrot.lane.b32.xlu0 %v6390, 64
    %v6415 = vpop.permute.xlu0 %6414
    %6416 = vrot.lane.b32.xlu0 %v6391, 64
    %v6417 = vpop.permute.xlu0 %6416
    %6418 = vrot.lane.b32.xlu0 %v6392, 64
    %v6419 = vpop.permute.xlu0 %6418
    %6420 = vrot.lane.b32.xlu0 %v6393, 64
    %v6421 = vpop.permute.xlu0 %6420
    %6422 = vrot.lane.b32.xlu0 %v6394, 64
    %v6423 = vpop.permute.xlu0 %6422
    %6424 = vrot.lane.b32.xlu0 %v6395, 64
    %v6425 = vpop.permute.xlu0 %6424
    %6426 = vrot.lane.b32.xlu0 %v6396, 64
    %v6427 = vpop.permute.xlu0 %6426
    %6428 = vrot.lane.b32.xlu0 %v6397, 64
    %v6429 = vpop.permute.xlu0 %6428
    %6446 = vst.msk [vmem:[#allocation3 + $0xc] sm:$0xf] %vm1609, %v6399
    %6447 = vst.msk [vmem:[#allocation3 + $0x20] sm:$0xf] %vm1609, %v6401
    %6448 = vst.msk [vmem:[#allocation3 + $0x34] sm:$0xf] %vm1609, %v6403
    %6449 = vst.msk [vmem:[#allocation3 + $0x48] sm:$0xf] %vm1609, %v6405
    %6450 = vst.msk [vmem:[#allocation3 + $0x5c] sm:$0xf] %vm1609, %v6407
    %6451 = vst.msk [vmem:[#allocation3 + $0x70] sm:$0xf] %vm1609, %v6409
    %6452 = vst.msk [vmem:[#allocation3 + $0x84] sm:$0xf] %vm1609, %v6411
    %6453 = vst.msk [vmem:[#allocation3 + $0x98] sm:$0xf] %vm1609, %v6413
    %6454 = vst.msk [vmem:[#allocation3 + $0xac] sm:$0xf] %vm1609, %v6415
    %6455 = vst.msk [vmem:[#allocation3 + $0xc0] sm:$0xf] %vm1609, %v6417
    %6456 = vst.msk [vmem:[#allocation3 + $0xd4] sm:$0xf] %vm1609, %v6419
    %6457 = vst.msk [vmem:[#allocation3 + $0xe8] sm:$0xf] %vm1609, %v6421
    %6458 = vst.msk [vmem:[#allocation3 + $0xfc] sm:$0xf] %vm1609, %v6423
    %6459 = vst.msk [vmem:[#allocation3 + $0x110] sm:$0xf] %vm1609, %v6425
    %6460 = vst.msk [vmem:[#allocation3 + $0x124] sm:$0xf] %vm1609, %v6427
    %6461 = vst.msk [vmem:[#allocation3 + $0x138] sm:$0xf] %vm1609, %v6429
    %v6462 = vld [vmem:[%s2074 + $0x2] sm:$0xff]
    %v6463 = vld [vmem:[%s2074 + $0x12] sm:$0xff]
    %v6464 = vld [vmem:[%s2074 + $0x22] sm:$0xff]
    %v6465 = vld [vmem:[%s2074 + $0x32] sm:$0xff]
    %v6466 = vld [vmem:[%s2074 + $0x42] sm:$0xff]
    %v6467 = vld [vmem:[%s2074 + $0x52] sm:$0xff]
    %v6468 = vld [vmem:[%s2074 + $0x62] sm:$0xff]
    %v6469 = vld [vmem:[%s2074 + $0x72] sm:$0xff]
    %v6470 = vld [vmem:[%s2074 + $0xa2] sm:$0xff]
    %v6471 = vld [vmem:[%s2074 + $0xb2] sm:$0xff]
    %v6472 = vld [vmem:[%s2074 + $0xc2] sm:$0xff]
    %v6473 = vld [vmem:[%s2074 + $0xd2] sm:$0xff]
    %v6474 = vld [vmem:[%s2074 + $0xe2] sm:$0xff]
    %v6475 = vld [vmem:[%s2074 + $0xf2] sm:$0xff]
    %v6476 = vld [vmem:[%s2074 + $0x102] sm:$0xff]
    %v6477 = vld [vmem:[%s2074 + $0x112] sm:$0xff]
    %v6478 = vpack.c.bf16 %v6463, %v6462
    %v6479 = vpack.c.bf16 %v6465, %v6464
    %v6480 = vpack.c.bf16 %v6467, %v6466
    %v6481 = vpack.c.bf16 %v6469, %v6468
    %v6482 = vpack.c.bf16 %v6471, %v6470
    %v6483 = vpack.c.bf16 %v6473, %v6472
    %v6484 = vpack.c.bf16 %v6475, %v6474
    %v6485 = vpack.c.bf16 %v6477, %v6476
    %v6494 = vunpack.c.l.b16 %v6478
    %v6495 = vunpack.c.h.b16 %v6478
    %v6496 = vunpack.c.l.b16 %v6479
    %v6497 = vunpack.c.h.b16 %v6479
    %v6498 = vunpack.c.l.b16 %v6480
    %v6499 = vunpack.c.h.b16 %v6480
    %v6500 = vunpack.c.l.b16 %v6481
    %v6501 = vunpack.c.h.b16 %v6481
    %v6502 = vunpack.c.l.b16 %v6482
    %v6503 = vunpack.c.h.b16 %v6482
    %v6504 = vunpack.c.l.b16 %v6483
    %v6505 = vunpack.c.h.b16 %v6483
    %v6506 = vunpack.c.l.b16 %v6484
    %v6507 = vunpack.c.h.b16 %v6484
    %v6508 = vunpack.c.l.b16 %v6485
    %v6509 = vunpack.c.h.b16 %v6485
    %v6510 = vpack.c.b16 %v6494, %v6494
    %v6511 = vpack.c.b16 %v6495, %v6495
    %v6512 = vpack.c.b16 %v6496, %v6496
    %v6513 = vpack.c.b16 %v6497, %v6497
    %v6514 = vpack.c.b16 %v6498, %v6498
    %v6515 = vpack.c.b16 %v6499, %v6499
    %v6516 = vpack.c.b16 %v6500, %v6500
    %v6517 = vpack.c.b16 %v6501, %v6501
    %v6518 = vpack.c.b16 %v6502, %v6502
    %v6519 = vpack.c.b16 %v6503, %v6503
    %v6520 = vpack.c.b16 %v6504, %v6504
    %v6521 = vpack.c.b16 %v6505, %v6505
    %v6522 = vpack.c.b16 %v6506, %v6506
    %v6523 = vpack.c.b16 %v6507, %v6507
    %v6524 = vpack.c.b16 %v6508, %v6508
    %v6525 = vpack.c.b16 %v6509, %v6509
    %6542 = vst.msk [vmem:[#allocation3 + $0x10] sm:$0xf] %vm1480, %v6510
    %6543 = vst.msk [vmem:[#allocation3 + $0x24] sm:$0xf] %vm1480, %v6511
    %6544 = vst.msk [vmem:[#allocation3 + $0x38] sm:$0xf] %vm1480, %v6512
    %6545 = vst.msk [vmem:[#allocation3 + $0x4c] sm:$0xf] %vm1480, %v6513
    %6546 = vst.msk [vmem:[#allocation3 + $0x60] sm:$0xf] %vm1480, %v6514
    %6547 = vst.msk [vmem:[#allocation3 + $0x74] sm:$0xf] %vm1480, %v6515
    %6548 = vst.msk [vmem:[#allocation3 + $0x88] sm:$0xf] %vm1480, %v6516
    %6549 = vst.msk [vmem:[#allocation3 + $0x9c] sm:$0xf] %vm1480, %v6517
    %6550 = vst.msk [vmem:[#allocation3 + $0xb0] sm:$0xf] %vm1480, %v6518
    %6551 = vst.msk [vmem:[#allocation3 + $0xc4] sm:$0xf] %vm1480, %v6519
    %6552 = vst.msk [vmem:[#allocation3 + $0xd8] sm:$0xf] %vm1480, %v6520
    %6553 = vst.msk [vmem:[#allocation3 + $0xec] sm:$0xf] %vm1480, %v6521
    %6554 = vst.msk [vmem:[#allocation3 + $0x100] sm:$0xf] %vm1480, %v6522
    %6555 = vst.msk [vmem:[#allocation3 + $0x114] sm:$0xf] %vm1480, %v6523
    %6556 = vst.msk [vmem:[#allocation3 + $0x128] sm:$0xf] %vm1480, %v6524
    %6557 = vst.msk [vmem:[#allocation3 + $0x13c] sm:$0xf] %vm1480, %v6525
    %v6558 = vld [vmem:[#allocation3] sm:$0xff]
    %v6559 = vld [vmem:[#allocation3 + $0x8] sm:$0xff]
    %v6560 = vld [vmem:[#allocation3 + $0x10] sm:$0xf]
    %v6561 = vld [vmem:[#allocation3 + $0x14] sm:$0xff]
    %v6562 = vld [vmem:[#allocation3 + $0x1c] sm:$0xff]
    %v6563 = vld [vmem:[#allocation3 + $0x24] sm:$0xf]
    %v6564 = vld [vmem:[#allocation3 + $0x28] sm:$0xff]
    %v6565 = vld [vmem:[#allocation3 + $0x30] sm:$0xff]
    %v6566 = vld [vmem:[#allocation3 + $0x38] sm:$0xf]
    %v6567 = vld [vmem:[#allocation3 + $0x3c] sm:$0xff]
    %v6568 = vld [vmem:[#allocation3 + $0x44] sm:$0xff]
    %v6569 = vld [vmem:[#allocation3 + $0x4c] sm:$0xf]
    %v6570 = vld [vmem:[#allocation3 + $0x50] sm:$0xff]
    %v6571 = vld [vmem:[#allocation3 + $0x58] sm:$0xff]
    %v6572 = vld [vmem:[#allocation3 + $0x60] sm:$0xf]
    %v6573 = vld [vmem:[#allocation3 + $0x64] sm:$0xff]
    %v6574 = vld [vmem:[#allocation3 + $0x6c] sm:$0xff]
    %v6575 = vld [vmem:[#allocation3 + $0x74] sm:$0xf]
    %v6576 = vld [vmem:[#allocation3 + $0x78] sm:$0xff]
    %v6577 = vld [vmem:[#allocation3 + $0x80] sm:$0xff]
    %v6578 = vld [vmem:[#allocation3 + $0x88] sm:$0xf]
    %v6579 = vld [vmem:[#allocation3 + $0x8c] sm:$0xff]
    %v6580 = vld [vmem:[#allocation3 + $0x94] sm:$0xff]
    %v6581 = vld [vmem:[#allocation3 + $0x9c] sm:$0xf]
    %v6582 = vld [vmem:[#allocation3 + $0xa0] sm:$0xff]
    %v6583 = vld [vmem:[#allocation3 + $0xa8] sm:$0xff]
    %v6584 = vld [vmem:[#allocation3 + $0xb0] sm:$0xf]
    %v6585 = vld [vmem:[#allocation3 + $0xb4] sm:$0xff]
    %v6586 = vld [vmem:[#allocation3 + $0xbc] sm:$0xff]
    %v6587 = vld [vmem:[#allocation3 + $0xc4] sm:$0xf]
    %v6588 = vld [vmem:[#allocation3 + $0xc8] sm:$0xff]
    %v6589 = vld [vmem:[#allocation3 + $0xd0] sm:$0xff]
    %v6590 = vld [vmem:[#allocation3 + $0xd8] sm:$0xf]
    %v6591 = vld [vmem:[#allocation3 + $0xdc] sm:$0xff]
    %v6592 = vld [vmem:[#allocation3 + $0xe4] sm:$0xff]
    %v6593 = vld [vmem:[#allocation3 + $0xec] sm:$0xf]
    %v6594 = vld [vmem:[#allocation3 + $0xf0] sm:$0xff]
    %v6595 = vld [vmem:[#allocation3 + $0xf8] sm:$0xff]
    %v6596 = vld [vmem:[#allocation3 + $0x100] sm:$0xf]
    %v6597 = vld [vmem:[#allocation3 + $0x104] sm:$0xff]
    %v6598 = vld [vmem:[#allocation3 + $0x10c] sm:$0xff]
    %v6599 = vld [vmem:[#allocation3 + $0x114] sm:$0xf]
    %v6600 = vld [vmem:[#allocation3 + $0x118] sm:$0xff]
    %v6601 = vld [vmem:[#allocation3 + $0x120] sm:$0xff]
    %v6602 = vld [vmem:[#allocation3 + $0x128] sm:$0xf]
    %v6603 = vld [vmem:[#allocation3 + $0x12c] sm:$0xff]
    %v6604 = vld [vmem:[#allocation3 + $0x134] sm:$0xff]
    %v6605 = vld [vmem:[#allocation3 + $0x13c] sm:$0xf]
    %v6654 = vunpack.c.l.b16 %v6558
    %v6655 = vunpack.c.h.b16 %v6558
    %v6656 = vunpack.c.l.b16 %v6559
    %v6657 = vunpack.c.h.b16 %v6559
    %v6658 = vunpack.c.l.b16 %v6560
    %v6659 = vunpack.c.l.b16 %v6561
    %v6660 = vunpack.c.h.b16 %v6561
    %v6661 = vunpack.c.l.b16 %v6562
    %v6662 = vunpack.c.h.b16 %v6562
    %v6663 = vunpack.c.l.b16 %v6563
    %v6664 = vunpack.c.l.b16 %v6564
    %v6665 = vunpack.c.h.b16 %v6564
    %v6666 = vunpack.c.l.b16 %v6565
    %v6667 = vunpack.c.h.b16 %v6565
    %v6668 = vunpack.c.l.b16 %v6566
    %v6669 = vunpack.c.l.b16 %v6567
    %v6670 = vunpack.c.h.b16 %v6567
    %v6671 = vunpack.c.l.b16 %v6568
    %v6672 = vunpack.c.h.b16 %v6568
    %v6673 = vunpack.c.l.b16 %v6569
    %v6674 = vunpack.c.l.b16 %v6570
    %v6675 = vunpack.c.h.b16 %v6570
    %v6676 = vunpack.c.l.b16 %v6571
    %v6677 = vunpack.c.h.b16 %v6571
    %v6678 = vunpack.c.l.b16 %v6572
    %v6679 = vunpack.c.l.b16 %v6573
    %v6680 = vunpack.c.h.b16 %v6573
    %v6681 = vunpack.c.l.b16 %v6574
    %v6682 = vunpack.c.h.b16 %v6574
    %v6683 = vunpack.c.l.b16 %v6575
    %v6684 = vunpack.c.l.b16 %v6576
    %v6685 = vunpack.c.h.b16 %v6576
    %v6686 = vunpack.c.l.b16 %v6577
    %v6687 = vunpack.c.h.b16 %v6577
    %v6688 = vunpack.c.l.b16 %v6578
    %v6689 = vunpack.c.l.b16 %v6579
    %v6690 = vunpack.c.h.b16 %v6579
    %v6691 = vunpack.c.l.b16 %v6580
    %v6692 = vunpack.c.h.b16 %v6580
    %v6693 = vunpack.c.l.b16 %v6581
    %v6694 = vunpack.c.l.b16 %v6582
    %v6695 = vunpack.c.h.b16 %v6582
    %v6696 = vunpack.c.l.b16 %v6583
    %v6697 = vunpack.c.h.b16 %v6583
    %v6698 = vunpack.c.l.b16 %v6584
    %v6699 = vunpack.c.l.b16 %v6585
    %v6700 = vunpack.c.h.b16 %v6585
    %v6701 = vunpack.c.l.b16 %v6586
    %v6702 = vunpack.c.h.b16 %v6586
    %v6703 = vunpack.c.l.b16 %v6587
    %v6704 = vunpack.c.l.b16 %v6588
    %v6705 = vunpack.c.h.b16 %v6588
    %v6706 = vunpack.c.l.b16 %v6589
    %v6707 = vunpack.c.h.b16 %v6589
    %v6708 = vunpack.c.l.b16 %v6590
    %v6709 = vunpack.c.l.b16 %v6591
    %v6710 = vunpack.c.h.b16 %v6591
    %v6711 = vunpack.c.l.b16 %v6592
    %v6712 = vunpack.c.h.b16 %v6592
    %v6713 = vunpack.c.l.b16 %v6593
    %v6714 = vunpack.c.l.b16 %v6594
    %v6715 = vunpack.c.h.b16 %v6594
    %v6716 = vunpack.c.l.b16 %v6595
    %v6717 = vunpack.c.h.b16 %v6595
    %v6718 = vunpack.c.l.b16 %v6596
    %v6719 = vunpack.c.l.b16 %v6597
    %v6720 = vunpack.c.h.b16 %v6597
    %v6721 = vunpack.c.l.b16 %v6598
    %v6722 = vunpack.c.h.b16 %v6598
    %v6723 = vunpack.c.l.b16 %v6599
    %v6724 = vunpack.c.l.b16 %v6600
    %v6725 = vunpack.c.h.b16 %v6600
    %v6726 = vunpack.c.l.b16 %v6601
    %v6727 = vunpack.c.h.b16 %v6601
    %v6728 = vunpack.c.l.b16 %v6602
    %v6729 = vunpack.c.l.b16 %v6603
    %v6730 = vunpack.c.h.b16 %v6603
    %v6731 = vunpack.c.l.b16 %v6604
    %v6732 = vunpack.c.h.b16 %v6604
    %v6733 = vunpack.c.l.b16 %v6605
    %v6734 = vpack.c.b16 %v6659, %v6654
    %v6735 = vpack.c.b16 %v6660, %v6655
    %v6736 = vpack.c.b16 %v6661, %v6656
    %v6737 = vpack.c.b16 %v6662, %v6657
    %v6738 = vpack.c.b16 %v6663, %v6658
    %v6739 = vpack.c.b16 %v6669, %v6664
    %v6740 = vpack.c.b16 %v6670, %v6665
    %v6741 = vpack.c.b16 %v6671, %v6666
    %v6742 = vpack.c.b16 %v6672, %v6667
    %v6743 = vpack.c.b16 %v6673, %v6668
    %v6744 = vpack.c.b16 %v6679, %v6674
    %v6745 = vpack.c.b16 %v6680, %v6675
    %v6746 = vpack.c.b16 %v6681, %v6676
    %v6747 = vpack.c.b16 %v6682, %v6677
    %v6748 = vpack.c.b16 %v6683, %v6678
    %v6749 = vpack.c.b16 %v6689, %v6684
    %v6750 = vpack.c.b16 %v6690, %v6685
    %v6751 = vpack.c.b16 %v6691, %v6686
    %v6752 = vpack.c.b16 %v6692, %v6687
    %v6753 = vpack.c.b16 %v6693, %v6688
    %v6754 = vpack.c.b16 %v6699, %v6694
    %v6755 = vpack.c.b16 %v6700, %v6695
    %v6756 = vpack.c.b16 %v6701, %v6696
    %v6757 = vpack.c.b16 %v6702, %v6697
    %v6758 = vpack.c.b16 %v6703, %v6698
    %v6759 = vpack.c.b16 %v6709, %v6704
    %v6760 = vpack.c.b16 %v6710, %v6705
    %v6761 = vpack.c.b16 %v6711, %v6706
    %v6762 = vpack.c.b16 %v6712, %v6707
    %v6763 = vpack.c.b16 %v6713, %v6708
    %v6764 = vpack.c.b16 %v6719, %v6714
    %v6765 = vpack.c.b16 %v6720, %v6715
    %v6766 = vpack.c.b16 %v6721, %v6716
    %v6767 = vpack.c.b16 %v6722, %v6717
    %v6768 = vpack.c.b16 %v6723, %v6718
    %v6769 = vpack.c.b16 %v6729, %v6724
    %v6770 = vpack.c.b16 %v6730, %v6725
    %v6771 = vpack.c.b16 %v6731, %v6726
    %v6772 = vpack.c.b16 %v6732, %v6727
    %v6773 = vpack.c.b16 %v6733, %v6728
    %v6878 = vunpack.c.l.b16 %v5478
    %v6879 = vunpack.c.l.b16 %v5479
    %v6880 = vunpack.c.l.b16 %v5480
    %v6881 = vunpack.c.l.b16 %v5481
    %v6882 = vunpack.c.l.b16 %v5482
    %v6883 = vunpack.c.l.b16 %v5483
    %v6884 = vunpack.c.l.b16 %v5484
    %v6885 = vunpack.c.l.b16 %v5485
    %v6886 = vunpack.c.l.b16 %v5486
    %v6887 = vunpack.c.l.b16 %v5487
    %v6888 = vunpack.c.l.b16 %v5488
    %v6889 = vunpack.c.l.b16 %v5489
    %v6890 = vunpack.c.l.b16 %v5490
    %v6891 = vunpack.c.l.b16 %v5491
    %v6892 = vunpack.c.l.b16 %v5492
    %v6893 = vunpack.c.l.b16 %v5493
    %v6894 = vunpack.c.l.b16 %v5494
    %v6895 = vunpack.c.l.b16 %v5495
    %v6896 = vunpack.c.l.b16 %v5496
    %v6897 = vunpack.c.l.b16 %v5497
    %v6898 = vunpack.c.l.b16 %v5498
    %v6899 = vunpack.c.l.b16 %v5499
    %v6900 = vunpack.c.l.b16 %v5500
    %v6901 = vunpack.c.l.b16 %v5501
    %v6902 = vunpack.c.l.b16 %v5502
    %v6903 = vunpack.c.l.b16 %v5503
    %v6904 = vunpack.c.l.b16 %v5504
    %v6905 = vunpack.c.l.b16 %v5505
    %v6906 = vunpack.c.l.b16 %v5506
    %v6907 = vunpack.c.l.b16 %v5507
    %v6908 = vunpack.c.l.b16 %v5508
    %v6909 = vunpack.c.l.b16 %v5509
    %v6910 = vunpack.c.l.b16 %v5510
    %v6911 = vunpack.c.l.b16 %v5511
    %v6912 = vunpack.c.l.b16 %v5512
    %v6913 = vunpack.c.l.b16 %v5513
    %v6914 = vunpack.c.l.b16 %v5514
    %v6915 = vunpack.c.l.b16 %v5515
    %v6916 = vunpack.c.l.b16 %v5516
    %v6917 = vunpack.c.l.b16 %v5517
    %v6918 = vunpack.c.l.b16 %v5518
    %v6919 = vunpack.c.l.b16 %v5519
    %v6920 = vunpack.c.l.b16 %v5520
    %v6921 = vunpack.c.l.b16 %v5521
    %v6922 = vunpack.c.l.b16 %v5522
    %v6923 = vunpack.c.l.b16 %v5523
    %v6924 = vunpack.c.l.b16 %v5524
    %v6925 = vunpack.c.l.b16 %v5525
    %v6926 = vunpack.c.l.b16 %v5526
    %v6927 = vunpack.c.l.b16 %v5527
    %v6928 = vunpack.c.l.b16 %v5528
    %v6929 = vunpack.c.l.b16 %v5529
    %v6930 = vunpack.c.l.b16 %v5530
    %v6931 = vunpack.c.l.b16 %v5531
    %v6932 = vunpack.c.l.b16 %v5532
    %v6933 = vunpack.c.l.b16 %v5533
    %v6934 = vunpack.c.l.b16 %v5534
    %v6935 = vunpack.c.l.b16 %v5535
    %v6936 = vunpack.c.l.b16 %v5536
    %v6937 = vunpack.c.l.b16 %v5537
    %v6938 = vunpack.c.l.b16 %v5538
    %v6939 = vunpack.c.l.b16 %v5539
    %v6940 = vunpack.c.l.b16 %v5540
    %v6941 = vunpack.c.l.b16 %v5541
    %v6942 = vunpack.c.l.b16 %v5542
    %v6943 = vunpack.c.l.b16 %v5543
    %v6944 = vunpack.c.l.b16 %v5544
    %v6945 = vunpack.c.l.b16 %v5545
    %v6946 = vunpack.c.l.b16 %v5546
    %v6947 = vunpack.c.l.b16 %v5547
    %v6948 = vunpack.c.l.b16 %v5548
    %v6949 = vunpack.c.l.b16 %v5549
    %v6950 = vpack.c.b16 %v6879, %v6878
    %v6951 = vpack.c.b16 %v6881, %v6880
    %v6952 = vpack.c.b16 %v6883, %v6882
    %v6953 = vpack.c.b16 %v6885, %v6884
    %v6954 = vpack.c.b16 %v6887, %v6886
    %v6955 = vpack.c.b16 %v6889, %v6888
    %v6956 = vpack.c.b16 %v6891, %v6890
    %v6957 = vpack.c.b16 %v6893, %v6892
    %v6958 = vpack.c.b16 %v6895, %v6894
    %v6959 = vpack.c.b16 %v6897, %v6896
    %v6960 = vpack.c.b16 %v6899, %v6898
    %v6961 = vpack.c.b16 %v6901, %v6900
    %v6962 = vpack.c.b16 %v6903, %v6902
    %v6963 = vpack.c.b16 %v6905, %v6904
    %v6964 = vpack.c.b16 %v6907, %v6906
    %v6965 = vpack.c.b16 %v6909, %v6908
    %v6966 = vpack.c.b16 %v6911, %v6910
    %v6967 = vpack.c.b16 %v6913, %v6912
    %v6968 = vpack.c.b16 %v6915, %v6914
    %v6969 = vpack.c.b16 %v6917, %v6916
    %v6970 = vpack.c.b16 %v6919, %v6918
    %v6971 = vpack.c.b16 %v6921, %v6920
    %v6972 = vpack.c.b16 %v6923, %v6922
    %v6973 = vpack.c.b16 %v6925, %v6924
    %v6974 = vpack.c.b16 %v6927, %v6926
    %v6975 = vpack.c.b16 %v6929, %v6928
    %v6976 = vpack.c.b16 %v6931, %v6930
    %v6977 = vpack.c.b16 %v6933, %v6932
    %v6978 = vpack.c.b16 %v6935, %v6934
    %v6979 = vpack.c.b16 %v6937, %v6936
    %v6980 = vpack.c.b16 %v6939, %v6938
    %v6981 = vpack.c.b16 %v6941, %v6940
    %v6982 = vpack.c.b16 %v6943, %v6942
    %v6983 = vpack.c.b16 %v6945, %v6944
    %v6984 = vpack.c.b16 %v6947, %v6946
    %v6985 = vpack.c.b16 %v6949, %v6948
    %v7023 = vsel %vm34, %v6738, 0
    %v7026 = vsel %vm34, %v6743, 0
    %v7029 = vsel %vm34, %v6748, 0
    %v7032 = vsel %vm34, %v6753, 0
    %v7035 = vsel %vm34, %v6758, 0
    %v7038 = vsel %vm34, %v6763, 0
    %v7041 = vsel %vm34, %v6768, 0
    %v7044 = vsel %vm34, %v6773, 0
    %7046 = vmatprep.subr.bf16.mxu0 0
    %7047 = vmatpush1.bf16.msra.mxu0 %v6957
    %7048 = vmatprep.subr.bf16.mxu0 0
    %7049 = vmatpush1.bf16.msra.mxu0 %v6956
    %7050 = vmatprep.subr.bf16.mxu0 0
    %7051 = vmatpush1.bf16.msra.mxu0 %v6955
    %7052 = vmatprep.subr.bf16.mxu0 0
    %7053 = vmatpush1.bf16.msra.mxu0 %v6954
    %7054 = vmatprep.subr.bf16.mxu0 0
    %7055 = vmatpush1.bf16.msra.mxu0 %v6953
    %7056 = vmatprep.subr.bf16.mxu0 0
    %7057 = vmatpush1.bf16.msra.mxu0 %v6952
    %7058 = vmatprep.subr.bf16.mxu0 0
    %7059 = vmatpush1.bf16.msra.mxu0 %v6951
    %7060 = vmatprep.subr.bf16.mxu0 0
    %7061 = vmatpush1.bf16.msra.mxu0 %v6950
    %7062 = vmatprep.subr.bf16.mxu0 0
    %7063 = vmatpush2.bf16.msra.mxu0 %v6965
    %7064 = vmatprep.subr.bf16.mxu0 0
    %7065 = vmatpush2.bf16.msra.mxu0 %v6964
    %7066 = vmatprep.subr.bf16.mxu0 0
    %7067 = vmatpush2.bf16.msra.mxu0 %v6963
    %7068 = vmatprep.subr.bf16.mxu0 0
    %7069 = vmatpush2.bf16.msra.mxu0 %v6962
    %7070 = vmatprep.subr.bf16.mxu0 0
    %7071 = vmatpush2.bf16.msra.mxu0 %v6961
    %7072 = vmatprep.subr.bf16.mxu0 0
    %7073 = vmatpush2.bf16.msra.mxu0 %v6960
    %7074 = vmatprep.subr.bf16.mxu0 0
    %7075 = vmatpush2.bf16.msra.mxu0 %v6959
    %7076 = vmatprep.subr.bf16.mxu0 0
    %7077 = vmatpush2.bf16.msra.mxu0 %v6958
    %7078 = vmatprep.mubr.bf16.mxu0 %v6735
    %7079 = vmatmul.mubr.bf16.gmra.mxu0 %v6734
    %v7080 = vpop.f32.mrf.mxu0
    %v7081 = vadd.f32 0.0, %v7080
    %v7082 = vpop.f32.mrf.mxu0
    %v7083 = vpop.f32.mrf.mxu0
    %v7084 = vadd.f32 0.0, %v7083
    %v7085 = vpop.f32.mrf.mxu0
    %7086 = vmatprep.mubr.bf16.mxu0 %v6740
    %7087 = vmatmul.mubr.bf16.gmra.mxu0 %v6739
    %v7088 = vpop.f32.mrf.mxu0
    %v7089 = vadd.f32 0.0, %v7088
    %v7090 = vpop.f32.mrf.mxu0
    %v7091 = vpop.f32.mrf.mxu0
    %v7092 = vadd.f32 0.0, %v7091
    %v7093 = vpop.f32.mrf.mxu0
    %7094 = vmatprep.mubr.bf16.mxu0 %v6745
    %7095 = vmatmul.mubr.bf16.gmra.mxu0 %v6744
    %v7096 = vpop.f32.mrf.mxu0
    %v7097 = vadd.f32 0.0, %v7096
    %v7098 = vpop.f32.mrf.mxu0
    %v7099 = vpop.f32.mrf.mxu0
    %v7100 = vadd.f32 0.0, %v7099
    %v7101 = vpop.f32.mrf.mxu0
    %7102 = vmatprep.mubr.bf16.mxu0 %v6750
    %7103 = vmatmul.mubr.bf16.gmra.mxu0 %v6749
    %v7104 = vpop.f32.mrf.mxu0
    %v7105 = vadd.f32 0.0, %v7104
    %v7106 = vpop.f32.mrf.mxu0
    %v7107 = vpop.f32.mrf.mxu0
    %v7108 = vadd.f32 0.0, %v7107
    %v7109 = vpop.f32.mrf.mxu0
    %7110 = vmatprep.mubr.bf16.mxu0 %v6755
    %7111 = vmatmul.mubr.bf16.gmra.mxu0 %v6754
    %v7112 = vpop.f32.mrf.mxu0
    %v7113 = vadd.f32 0.0, %v7112
    %v7114 = vpop.f32.mrf.mxu0
    %v7115 = vpop.f32.mrf.mxu0
    %v7116 = vadd.f32 0.0, %v7115
    %v7117 = vpop.f32.mrf.mxu0
    %7118 = vmatprep.mubr.bf16.mxu0 %v6760
    %7119 = vmatmul.mubr.bf16.gmra.mxu0 %v6759
    %v7120 = vpop.f32.mrf.mxu0
    %v7121 = vadd.f32 0.0, %v7120
    %v7122 = vpop.f32.mrf.mxu0
    %v7123 = vpop.f32.mrf.mxu0
    %v7124 = vadd.f32 0.0, %v7123
    %v7125 = vpop.f32.mrf.mxu0
    %7126 = vmatprep.mubr.bf16.mxu0 %v6765
    %7127 = vmatmul.mubr.bf16.gmra.mxu0 %v6764
    %v7128 = vpop.f32.mrf.mxu0
    %v7129 = vadd.f32 0.0, %v7128
    %v7130 = vpop.f32.mrf.mxu0
    %v7131 = vpop.f32.mrf.mxu0
    %v7132 = vadd.f32 0.0, %v7131
    %v7133 = vpop.f32.mrf.mxu0
    %7134 = vmatprep.mubr.bf16.mxu0 %v6770
    %7135 = vmatmul.mubr.bf16.gmra.mxu0 %v6769
    %v7136 = vpop.f32.mrf.mxu0
    %v7137 = vadd.f32 0.0, %v7136
    %v7138 = vpop.f32.mrf.mxu0
    %v7139 = vpop.f32.mrf.mxu0
    %v7140 = vadd.f32 0.0, %v7139
    %v7141 = vpop.f32.mrf.mxu0
    %7142 = vdwg.mxu0
    %7143 = vmatprep.subr.bf16.mxu0 0
    %7144 = vmatpush1.bf16.msra.mxu0 %v6973
    %7145 = vmatprep.subr.bf16.mxu0 0
    %7146 = vmatpush1.bf16.msra.mxu0 %v6972
    %7147 = vmatprep.subr.bf16.mxu0 0
    %7148 = vmatpush1.bf16.msra.mxu0 %v6971
    %7149 = vmatprep.subr.bf16.mxu0 0
    %7150 = vmatpush1.bf16.msra.mxu0 %v6970
    %7151 = vmatprep.subr.bf16.mxu0 0
    %7152 = vmatpush1.bf16.msra.mxu0 %v6969
    %7153 = vmatprep.subr.bf16.mxu0 0
    %7154 = vmatpush1.bf16.msra.mxu0 %v6968
    %7155 = vmatprep.subr.bf16.mxu0 0
    %7156 = vmatpush1.bf16.msra.mxu0 %v6967
    %7157 = vmatprep.subr.bf16.mxu0 0
    %7158 = vmatpush1.bf16.msra.mxu0 %v6966
    %7159 = vmatprep.subr.bf16.mxu0 0
    %7160 = vmatpush2.bf16.msra.mxu0 %v6981
    %7161 = vmatprep.subr.bf16.mxu0 0
    %7162 = vmatpush2.bf16.msra.mxu0 %v6980
    %7163 = vmatprep.subr.bf16.mxu0 0
    %7164 = vmatpush2.bf16.msra.mxu0 %v6979
    %7165 = vmatprep.subr.bf16.mxu0 0
    %7166 = vmatpush2.bf16.msra.mxu0 %v6978
    %7167 = vmatprep.subr.bf16.mxu0 0
    %7168 = vmatpush2.bf16.msra.mxu0 %v6977
    %7169 = vmatprep.subr.bf16.mxu0 0
    %7170 = vmatpush2.bf16.msra.mxu0 %v6976
    %7171 = vmatprep.subr.bf16.mxu0 0
    %7172 = vmatpush2.bf16.msra.mxu0 %v6975
    %7173 = vmatprep.subr.bf16.mxu0 0
    %7174 = vmatpush2.bf16.msra.mxu0 %v6974
    %7175 = vmatprep.mubr.bf16.mxu0 %v6737
    %7176 = vmatmul.mubr.bf16.gmra.mxu0 %v6736
    %v7177 = vpop.f32.mrf.mxu0
    %v7178 = vadd.f32 %v7081, %v7177
    %v7179 = vpop.f32.mrf.mxu0
    %v7180 = vpop.f32.mrf.mxu0
    %v7181 = vadd.f32 %v7084, %v7180
    %v7182 = vpop.f32.mrf.mxu0
    %7183 = vmatprep.mubr.bf16.mxu0 %v6742
    %7184 = vmatmul.mubr.bf16.gmra.mxu0 %v6741
    %v7185 = vpop.f32.mrf.mxu0
    %v7186 = vadd.f32 %v7089, %v7185
    %v7187 = vpop.f32.mrf.mxu0
    %v7188 = vpop.f32.mrf.mxu0
    %v7189 = vadd.f32 %v7092, %v7188
    %v7190 = vpop.f32.mrf.mxu0
    %7191 = vmatprep.mubr.bf16.mxu0 %v6747
    %7192 = vmatmul.mubr.bf16.gmra.mxu0 %v6746
    %v7193 = vpop.f32.mrf.mxu0
    %v7194 = vadd.f32 %v7097, %v7193
    %v7195 = vpop.f32.mrf.mxu0
    %v7196 = vpop.f32.mrf.mxu0
    %v7197 = vadd.f32 %v7100, %v7196
    %v7198 = vpop.f32.mrf.mxu0
    %7199 = vmatprep.mubr.bf16.mxu0 %v6752
    %7200 = vmatmul.mubr.bf16.gmra.mxu0 %v6751
    %v7201 = vpop.f32.mrf.mxu0
    %v7202 = vadd.f32 %v7105, %v7201
    %v7203 = vpop.f32.mrf.mxu0
    %v7204 = vpop.f32.mrf.mxu0
    %v7205 = vadd.f32 %v7108, %v7204
    %v7206 = vpop.f32.mrf.mxu0
    %7207 = vmatprep.mubr.bf16.mxu0 %v6757
    %7208 = vmatmul.mubr.bf16.gmra.mxu0 %v6756
    %v7209 = vpop.f32.mrf.mxu0
    %v7210 = vadd.f32 %v7113, %v7209
    %v7211 = vpop.f32.mrf.mxu0
    %v7212 = vpop.f32.mrf.mxu0
    %v7213 = vadd.f32 %v7116, %v7212
    %v7214 = vpop.f32.mrf.mxu0
    %7215 = vmatprep.mubr.bf16.mxu0 %v6762
    %7216 = vmatmul.mubr.bf16.gmra.mxu0 %v6761
    %v7217 = vpop.f32.mrf.mxu0
    %v7218 = vadd.f32 %v7121, %v7217
    %v7219 = vpop.f32.mrf.mxu0
    %v7220 = vpop.f32.mrf.mxu0
    %v7221 = vadd.f32 %v7124, %v7220
    %v7222 = vpop.f32.mrf.mxu0
    %7223 = vmatprep.mubr.bf16.mxu0 %v6767
    %7224 = vmatmul.mubr.bf16.gmra.mxu0 %v6766
    %v7225 = vpop.f32.mrf.mxu0
    %v7226 = vadd.f32 %v7129, %v7225
    %v7227 = vpop.f32.mrf.mxu0
    %v7228 = vpop.f32.mrf.mxu0
    %v7229 = vadd.f32 %v7132, %v7228
    %v7230 = vpop.f32.mrf.mxu0
    %7231 = vmatprep.mubr.bf16.mxu0 %v6772
    %7232 = vmatmul.mubr.bf16.gmra.mxu0 %v6771
    %v7233 = vpop.f32.mrf.mxu0
    %v7234 = vadd.f32 %v7137, %v7233
    %v7235 = vpop.f32.mrf.mxu0
    %v7236 = vpop.f32.mrf.mxu0
    %v7237 = vadd.f32 %v7140, %v7236
    %v7238 = vpop.f32.mrf.mxu0
    %7239 = vdwg.mxu0
    %7240 = vmatprep.subr.bf16.mxu0 0
    %7241 = vmatpush1.bf16.msra.mxu0 0
    %7242 = vmatprep.subr.bf16.mxu0 0
    %7243 = vmatpush1.bf16.msra.mxu0 0
    %7244 = vmatprep.subr.bf16.mxu0 0
    %7245 = vmatpush1.bf16.msra.mxu0 0
    %7246 = vmatprep.subr.bf16.mxu0 0
    %7247 = vmatpush1.bf16.msra.mxu0 0
    %7248 = vmatprep.subr.bf16.mxu0 0
    %7249 = vmatpush1.bf16.msra.mxu0 %v6985
    %7250 = vmatprep.subr.bf16.mxu0 0
    %7251 = vmatpush1.bf16.msra.mxu0 %v6984
    %7252 = vmatprep.subr.bf16.mxu0 0
    %7253 = vmatpush1.bf16.msra.mxu0 %v6983
    %7254 = vmatprep.subr.bf16.mxu0 0
    %7255 = vmatpush1.bf16.msra.mxu0 %v6982
    %7256 = vmatprep.subr.bf16.mxu0 0
    %7257 = vmatpush2.bf16.msra.mxu0 0
    %7258 = vmatprep.subr.bf16.mxu0 0
    %7259 = vmatpush2.bf16.msra.mxu0 0
    %7260 = vmatprep.subr.bf16.mxu0 0
    %7261 = vmatpush2.bf16.msra.mxu0 0
    %7262 = vmatprep.subr.bf16.mxu0 0
    %7263 = vmatpush2.bf16.msra.mxu0 0
    %7264 = vmatprep.subr.bf16.mxu0 0
    %7265 = vmatpush2.bf16.msra.mxu0 0
    %7266 = vmatprep.subr.bf16.mxu0 0
    %7267 = vmatpush2.bf16.msra.mxu0 0
    %7268 = vmatprep.subr.bf16.mxu0 0
    %7269 = vmatpush2.bf16.msra.mxu0 0
    %7270 = vmatprep.subr.bf16.mxu0 0
    %7271 = vmatpush2.bf16.msra.mxu0 0
    %7272 = vmatprep.mubr.bf16.mxu0 0
    %7273 = vmatmul.mubr.bf16.gmra.mxu0 %v7023
    %v7274 = vpop.f32.mrf.mxu0
    %v7275 = vadd.f32 %v7178, %v7274
    %v7276 = vpop.f32.mrf.mxu0
    %v7277 = vpop.f32.mrf.mxu0
    %v7278 = vadd.f32 %v7181, %v7277
    %v7279 = vpop.f32.mrf.mxu0
    %7280 = vmatprep.mubr.bf16.mxu0 0
    %7281 = vmatmul.mubr.bf16.gmra.mxu0 %v7026
    %v7282 = vpop.f32.mrf.mxu0
    %v7283 = vadd.f32 %v7186, %v7282
    %v7284 = vpop.f32.mrf.mxu0
    %v7285 = vpop.f32.mrf.mxu0
    %v7286 = vadd.f32 %v7189, %v7285
    %v7287 = vpop.f32.mrf.mxu0
    %7288 = vmatprep.mubr.bf16.mxu0 0
    %7289 = vmatmul.mubr.bf16.gmra.mxu0 %v7029
    %v7290 = vpop.f32.mrf.mxu0
    %v7291 = vadd.f32 %v7194, %v7290
    %v7292 = vpop.f32.mrf.mxu0
    %v7293 = vpop.f32.mrf.mxu0
    %v7294 = vadd.f32 %v7197, %v7293
    %v7295 = vpop.f32.mrf.mxu0
    %7296 = vmatprep.mubr.bf16.mxu0 0
    %7297 = vmatmul.mubr.bf16.gmra.mxu0 %v7032
    %v7298 = vpop.f32.mrf.mxu0
    %v7299 = vadd.f32 %v7202, %v7298
    %v7300 = vpop.f32.mrf.mxu0
    %v7301 = vpop.f32.mrf.mxu0
    %v7302 = vadd.f32 %v7205, %v7301
    %v7303 = vpop.f32.mrf.mxu0
    %7304 = vmatprep.mubr.bf16.mxu0 0
    %7305 = vmatmul.mubr.bf16.gmra.mxu0 %v7035
    %v7306 = vpop.f32.mrf.mxu0
    %v7307 = vadd.f32 %v7210, %v7306
    %v7308 = vpop.f32.mrf.mxu0
    %v7309 = vpop.f32.mrf.mxu0
    %v7310 = vadd.f32 %v7213, %v7309
    %v7311 = vpop.f32.mrf.mxu0
    %7312 = vmatprep.mubr.bf16.mxu0 0
    %7313 = vmatmul.mubr.bf16.gmra.mxu0 %v7038
    %v7314 = vpop.f32.mrf.mxu0
    %v7315 = vadd.f32 %v7218, %v7314
    %v7316 = vpop.f32.mrf.mxu0
    %v7317 = vpop.f32.mrf.mxu0
    %v7318 = vadd.f32 %v7221, %v7317
    %v7319 = vpop.f32.mrf.mxu0
    %7320 = vmatprep.mubr.bf16.mxu0 0
    %7321 = vmatmul.mubr.bf16.gmra.mxu0 %v7041
    %v7322 = vpop.f32.mrf.mxu0
    %v7323 = vadd.f32 %v7226, %v7322
    %v7324 = vpop.f32.mrf.mxu0
    %v7325 = vpop.f32.mrf.mxu0
    %v7326 = vadd.f32 %v7229, %v7325
    %v7327 = vpop.f32.mrf.mxu0
    %7328 = vmatprep.mubr.bf16.mxu0 0
    %7329 = vmatmul.mubr.bf16.gmra.mxu0 %v7044
    %v7330 = vpop.f32.mrf.mxu0
    %v7331 = vadd.f32 %v7234, %v7330
    %v7332 = vpop.f32.mrf.mxu0
    %v7333 = vpop.f32.mrf.mxu0
    %v7334 = vadd.f32 %v7237, %v7333
    %v7335 = vpop.f32.mrf.mxu0
    %7336 = vdwg.mxu0
    %v7337 = vsel %vm34, %v7275, 0.0
    %v7338 = vsel %vm34, %v7278, 0.0
    %v7339 = vadd.f32 %v7337, %v7338
    %v7340 = vsel %vm34, %v7283, 0.0
    %v7341 = vadd.f32 %v7339, %v7340
    %v7342 = vsel %vm34, %v7286, 0.0
    %v7343 = vadd.f32 %v7341, %v7342
    %v7344 = vsel %vm34, %v7291, 0.0
    %v7345 = vadd.f32 %v7343, %v7344
    %v7346 = vsel %vm34, %v7294, 0.0
    %v7347 = vadd.f32 %v7345, %v7346
    %v7348 = vsel %vm34, %v7299, 0.0
    %v7349 = vadd.f32 %v7347, %v7348
    %v7350 = vsel %vm34, %v7302, 0.0
    %v7351 = vadd.f32 %v7349, %v7350
    %v7352 = vsel %vm34, %v7307, 0.0
    %v7353 = vadd.f32 %v7351, %v7352
    %v7354 = vsel %vm34, %v7310, 0.0
    %v7355 = vadd.f32 %v7353, %v7354
    %v7356 = vsel %vm34, %v7315, 0.0
    %v7357 = vadd.f32 %v7355, %v7356
    %v7358 = vsel %vm34, %v7318, 0.0
    %v7359 = vadd.f32 %v7357, %v7358
    %v7360 = vsel %vm34, %v7323, 0.0
    %v7361 = vadd.f32 %v7359, %v7360
    %v7362 = vsel %vm34, %v7326, 0.0
    %v7363 = vadd.f32 %v7361, %v7362
    %v7364 = vsel %vm34, %v7331, 0.0
    %v7365 = vadd.f32 %v7363, %v7364
    %v7366 = vsel %vm34, %v7334, 0.0
    %v7367 = vadd.f32 %v7365, %v7366
    %v7368 = vrot.slane %v7367, 4
    %v7369 = vadd.f32 %v7367, %v7368
    %v7370 = vrot.slane %v7369, 2
    %v7371 = vadd.f32 %v7369, %v7370
    %v7372 = vrot.slane %v7371, 1
    %v7373 = vadd.f32 %v7371, %v7372
    %v7374 = vmul.f32 %v7373, %v1141
    %v7375 = vsub.f32 %v7275, %v7374
    %v7376 = vsub.f32 %v7278, %v7374
    %v7377 = vsub.f32 %v7283, %v7374
    %v7378 = vsub.f32 %v7286, %v7374
    %v7379 = vsub.f32 %v7291, %v7374
    %v7380 = vsub.f32 %v7294, %v7374
    %v7381 = vsub.f32 %v7299, %v7374
    %v7382 = vsub.f32 %v7302, %v7374
    %v7383 = vsub.f32 %v7307, %v7374
    %v7384 = vsub.f32 %v7310, %v7374
    %v7385 = vsub.f32 %v7315, %v7374
    %v7386 = vsub.f32 %v7318, %v7374
    %v7387 = vsub.f32 %v7323, %v7374
    %v7388 = vsub.f32 %v7326, %v7374
    %v7389 = vsub.f32 %v7331, %v7374
    %v7390 = vsub.f32 %v7334, %v7374
    %v7391 = vmul.f32 %v7375, %v7375
    %v7392 = vmul.f32 %v7376, %v7376
    %v7393 = vmul.f32 %v7377, %v7377
    %v7394 = vmul.f32 %v7378, %v7378
    %v7395 = vmul.f32 %v7379, %v7379
    %v7396 = vmul.f32 %v7380, %v7380
    %v7397 = vmul.f32 %v7381, %v7381
    %v7398 = vmul.f32 %v7382, %v7382
    %v7399 = vmul.f32 %v7383, %v7383
    %v7400 = vmul.f32 %v7384, %v7384
    %v7401 = vmul.f32 %v7385, %v7385
    %v7402 = vmul.f32 %v7386, %v7386
    %v7403 = vmul.f32 %v7387, %v7387
    %v7404 = vmul.f32 %v7388, %v7388
    %v7405 = vmul.f32 %v7389, %v7389
    %v7406 = vmul.f32 %v7390, %v7390
    %v7407 = vsel %vm34, %v7391, 0.0
    %v7408 = vsel %vm34, %v7392, 0.0
    %v7409 = vadd.f32 %v7407, %v7408
    %v7410 = vsel %vm34, %v7393, 0.0
    %v7411 = vadd.f32 %v7409, %v7410
    %v7412 = vsel %vm34, %v7394, 0.0
    %v7413 = vadd.f32 %v7411, %v7412
    %v7414 = vsel %vm34, %v7395, 0.0
    %v7415 = vadd.f32 %v7413, %v7414
    %v7416 = vsel %vm34, %v7396, 0.0
    %v7417 = vadd.f32 %v7415, %v7416
    %v7418 = vsel %vm34, %v7397, 0.0
    %v7419 = vadd.f32 %v7417, %v7418
    %v7420 = vsel %vm34, %v7398, 0.0
    %v7421 = vadd.f32 %v7419, %v7420
    %v7422 = vsel %vm34, %v7399, 0.0
    %v7423 = vadd.f32 %v7421, %v7422
    %v7424 = vsel %vm34, %v7400, 0.0
    %v7425 = vadd.f32 %v7423, %v7424
    %v7426 = vsel %vm34, %v7401, 0.0
    %v7427 = vadd.f32 %v7425, %v7426
    %v7428 = vsel %vm34, %v7402, 0.0
    %v7429 = vadd.f32 %v7427, %v7428
    %v7430 = vsel %vm34, %v7403, 0.0
    %v7431 = vadd.f32 %v7429, %v7430
    %v7432 = vsel %vm34, %v7404, 0.0
    %v7433 = vadd.f32 %v7431, %v7432
    %v7434 = vsel %vm34, %v7405, 0.0
    %v7435 = vadd.f32 %v7433, %v7434
    %v7436 = vsel %vm34, %v7406, 0.0
    %v7437 = vadd.f32 %v7435, %v7436
    %v7438 = vrot.slane %v7437, 4
    %v7439 = vadd.f32 %v7437, %v7438
    %v7440 = vrot.slane %v7439, 2
    %v7441 = vadd.f32 %v7439, %v7440
    %v7442 = vrot.slane %v7441, 1
    %v7443 = vadd.f32 %v7441, %v7442
    %v7444 = vmul.f32 %v7443, %v1141
    %v7445 = vadd.f32 %v7444, 1e-05
    %v7446 = vrsqrt.pop %v7445
    %v7447 = vmul.f32 %v7375, %v7446
    %v7448 = vmul.f32 %v7376, %v7446
    %v7449 = vmul.f32 %v7377, %v7446
    %v7450 = vmul.f32 %v7378, %v7446
    %v7451 = vmul.f32 %v7379, %v7446
    %v7452 = vmul.f32 %v7380, %v7446
    %v7453 = vmul.f32 %v7381, %v7446
    %v7454 = vmul.f32 %v7382, %v7446
    %v7455 = vmul.f32 %v7383, %v7446
    %v7456 = vmul.f32 %v7384, %v7446
    %v7457 = vmul.f32 %v7385, %v7446
    %v7458 = vmul.f32 %v7386, %v7446
    %v7459 = vmul.f32 %v7387, %v7446
    %v7460 = vmul.f32 %v7388, %v7446
    %v7461 = vmul.f32 %v7389, %v7446
    %v7462 = vmul.f32 %v7390, %v7446
    %v7463 = vlaneseq
    %v7464 = vshrl.u32 %v7463, 7
    %v7465 = vsub.s32 2, %v7464
    %v7466 = vrot.slane %v3436, %v7465
    %v7467 = vmul.f32 %v7447, %v7466
    %v7468 = vmul.f32 %v7448, %v7466
    %v7469 = vmul.f32 %v7449, %v7466
    %v7470 = vmul.f32 %v7450, %v7466
    %v7471 = vmul.f32 %v7451, %v7466
    %v7472 = vmul.f32 %v7452, %v7466
    %v7473 = vmul.f32 %v7453, %v7466
    %v7474 = vmul.f32 %v7454, %v7466
    %v7475 = vmul.f32 %v7455, %v7466
    %v7476 = vmul.f32 %v7456, %v7466
    %v7477 = vmul.f32 %v7457, %v7466
    %v7478 = vmul.f32 %v7458, %v7466
    %v7479 = vmul.f32 %v7459, %v7466
    %v7480 = vmul.f32 %v7460, %v7466
    %v7481 = vmul.f32 %v7461, %v7466
    %v7482 = vmul.f32 %v7462, %v7466
    %v7483 = vlaneseq
    %v7484 = vshrl.u32 %v7483, 7
    %v7485 = vsub.s32 3, %v7484
    %v7486 = vrot.slane %v3436, %v7485
    %v7487 = vadd.f32 %v7467, %v7486
    %v7488 = vadd.f32 %v7468, %v7486
    %v7489 = vadd.f32 %v7469, %v7486
    %v7490 = vadd.f32 %v7470, %v7486
    %v7491 = vadd.f32 %v7471, %v7486
    %v7492 = vadd.f32 %v7472, %v7486
    %v7493 = vadd.f32 %v7473, %v7486
    %v7494 = vadd.f32 %v7474, %v7486
    %v7495 = vadd.f32 %v7475, %v7486
    %v7496 = vadd.f32 %v7476, %v7486
    %v7497 = vadd.f32 %v7477, %v7486
    %v7498 = vadd.f32 %v7478, %v7486
    %v7499 = vadd.f32 %v7479, %v7486
    %v7500 = vadd.f32 %v7480, %v7486
    %v7501 = vadd.f32 %v7481, %v7486
    %v7502 = vadd.f32 %v7482, %v7486
    %v7503 = vadd.f32 %v7487, %v3420
    %v7504 = vadd.f32 %v7488, %v3421
    %v7505 = vadd.f32 %v7489, %v3422
    %v7506 = vadd.f32 %v7490, %v3423
    %v7507 = vadd.f32 %v7491, %v3424
    %v7508 = vadd.f32 %v7492, %v3425
    %v7509 = vadd.f32 %v7493, %v3426
    %v7510 = vadd.f32 %v7494, %v3427
    %v7511 = vadd.f32 %v7495, %v3428
    %v7512 = vadd.f32 %v7496, %v3429
    %v7513 = vadd.f32 %v7497, %v3430
    %v7514 = vadd.f32 %v7498, %v3431
    %v7515 = vadd.f32 %v7499, %v3432
    %v7516 = vadd.f32 %v7500, %v3433
    %v7517 = vadd.f32 %v7501, %v3434
    %v7518 = vadd.f32 %v7502, %v3435
    %v7519 = vmax.f32 %v7503, 0.0
    %v7520 = vmax.f32 %v7504, 0.0
    %v7521 = vmax.f32 %v7505, 0.0
    %v7522 = vmax.f32 %v7506, 0.0
    %v7523 = vmax.f32 %v7507, 0.0
    %v7524 = vmax.f32 %v7508, 0.0
    %v7525 = vmax.f32 %v7509, 0.0
    %v7526 = vmax.f32 %v7510, 0.0
    %v7527 = vmax.f32 %v7511, 0.0
    %v7528 = vmax.f32 %v7512, 0.0
    %v7529 = vmax.f32 %v7513, 0.0
    %v7530 = vmax.f32 %v7514, 0.0
    %v7531 = vmax.f32 %v7515, 0.0
    %v7532 = vmax.f32 %v7516, 0.0
    %v7533 = vmax.f32 %v7517, 0.0
    %v7534 = vmax.f32 %v7518, 0.0
    %v7535 = vsel %vm34, %v7519, 0.0
    %v7536 = vsel %vm34, %v7520, 0.0
    %v7537 = vadd.f32 %v7535, %v7536
    %v7538 = vsel %vm34, %v7521, 0.0
    %v7539 = vadd.f32 %v7537, %v7538
    %v7540 = vsel %vm34, %v7522, 0.0
    %v7541 = vadd.f32 %v7539, %v7540
    %v7542 = vsel %vm34, %v7523, 0.0
    %v7543 = vadd.f32 %v7541, %v7542
    %v7544 = vsel %vm34, %v7524, 0.0
    %v7545 = vadd.f32 %v7543, %v7544
    %v7546 = vsel %vm34, %v7525, 0.0
    %v7547 = vadd.f32 %v7545, %v7546
    %v7548 = vsel %vm34, %v7526, 0.0
    %v7549 = vadd.f32 %v7547, %v7548
    %v7550 = vrot.slane %v7549, 4
    %v7551 = vadd.f32 %v7549, %v7550
    %v7552 = vrot.slane %v7551, 2
    %v7553 = vadd.f32 %v7551, %v7552
    %v7554 = vrot.slane %v7553, 1
    %v7555 = vadd.f32 %v7553, %v7554
    %v7556 = vsel %vm34, %v7527, 0.0
    %v7557 = vsel %vm34, %v7528, 0.0
    %v7558 = vadd.f32 %v7556, %v7557
    %v7559 = vsel %vm34, %v7529, 0.0
    %v7560 = vadd.f32 %v7558, %v7559
    %v7561 = vsel %vm34, %v7530, 0.0
    %v7562 = vadd.f32 %v7560, %v7561
    %v7563 = vsel %vm34, %v7531, 0.0
    %v7564 = vadd.f32 %v7562, %v7563
    %v7565 = vsel %vm34, %v7532, 0.0
    %v7566 = vadd.f32 %v7564, %v7565
    %v7567 = vsel %vm34, %v7533, 0.0
    %v7568 = vadd.f32 %v7566, %v7567
    %v7569 = vsel %vm34, %v7534, 0.0
    %v7570 = vadd.f32 %v7568, %v7569
    %v7571 = vrot.slane %v7570, 4
    %v7572 = vadd.f32 %v7570, %v7571
    %v7573 = vrot.slane %v7572, 2
    %v7574 = vadd.f32 %v7572, %v7573
    %v7575 = vrot.slane %v7574, 1
    %v7576 = vadd.f32 %v7574, %v7575
    %v7577 = vrcp.pop 64.0
    %v7578 = vmul.f32 %v7555, %v7577
    %v7579 = vmul.f32 %v7576, %v7577
    %v7580 = vpack.c.bf16 %v7578, %v7578
    %v7581 = vpack.c.bf16 %v7579, %v7579
    %v7582 = vld [vmem:[%s7] sm:$0xf]
    %v7583 = vld [vmem:[%s7 + $0x4] sm:$0xf]
    %v7584 = vld [vmem:[%s7 + $0x8] sm:$0xf]
    %v7585 = vld [vmem:[%s7 + $0xc] sm:$0xf]
    %v7586 = vld [vmem:[%s7 + $0x10] sm:$0xf]
    %v7587 = vld [vmem:[%s7 + $0x14] sm:$0xf]
    %v7588 = vld [vmem:[%s7 + $0x18] sm:$0xf]
    %v7589 = vld [vmem:[%s7 + $0x1c] sm:$0xf]
    %v7590 = vld [vmem:[%s8] sm:$0x1]
    %v7592 = vlaneseq
    %v7593 = vshrl.u32 %v7592, 7
    %v7594 = vsub.s32 0, %v7593
    %v7595 = vrot.slane %v7590, %v7594
    %v7599 = vunpack.c.l.b16 %v7580
    %v7600 = vunpack.c.l.b16 %v7581
    %vm7601 = vcmask 1041409
    %v7602 = vsel %vm7601, %v7600, %v7599
    %v7603 = vpack.c.b16 %v7602, %v7602
    %v7612 = vunpack.c.l.b16 %v7582
    %v7613 = vunpack.c.l.b16 %v7583
    %v7614 = vunpack.c.l.b16 %v7584
    %v7615 = vunpack.c.l.b16 %v7585
    %v7616 = vunpack.c.l.b16 %v7586
    %v7617 = vunpack.c.l.b16 %v7587
    %v7618 = vunpack.c.l.b16 %v7588
    %v7619 = vunpack.c.l.b16 %v7589
    %v7620 = vpack.c.b16 %v7613, %v7612
    %v7621 = vpack.c.b16 %v7615, %v7614
    %v7622 = vpack.c.b16 %v7617, %v7616
    %v7623 = vpack.c.b16 %v7619, %v7618
    %v7629 = vsel %vm34, %v7603, 0
    %7631 = vmatprep.subr.bf16.mxu0 0
    %7632 = vmatpush1.bf16.msra.mxu0 0
    %7633 = vmatprep.subr.bf16.mxu0 0
    %7634 = vmatpush1.bf16.msra.mxu0 0
    %7635 = vmatprep.subr.bf16.mxu0 0
    %7636 = vmatpush1.bf16.msra.mxu0 0
    %7637 = vmatprep.subr.bf16.mxu0 0
    %7638 = vmatpush1.bf16.msra.mxu0 0
    %7639 = vmatprep.subr.bf16.mxu0 0
    %7640 = vmatpush1.bf16.msra.mxu0 %v7623
    %7641 = vmatprep.subr.bf16.mxu0 0
    %7642 = vmatpush1.bf16.msra.mxu0 %v7622
    %7643 = vmatprep.subr.bf16.mxu0 0
    %7644 = vmatpush1.bf16.msra.mxu0 %v7621
    %7645 = vmatprep.subr.bf16.mxu0 0
    %7646 = vmatpush1.bf16.msra.mxu0 %v7620
    %7647 = vmatprep.subr.bf16.mxu0 0
    %7648 = vmatpush2.bf16.msra.mxu0 0
    %7649 = vmatprep.subr.bf16.mxu0 0
    %7650 = vmatpush2.bf16.msra.mxu0 0
    %7651 = vmatprep.subr.bf16.mxu0 0
    %7652 = vmatpush2.bf16.msra.mxu0 0
    %7653 = vmatprep.subr.bf16.mxu0 0
    %7654 = vmatpush2.bf16.msra.mxu0 0
    %7655 = vmatprep.subr.bf16.mxu0 0
    %7656 = vmatpush2.bf16.msra.mxu0 0
    %7657 = vmatprep.subr.bf16.mxu0 0
    %7658 = vmatpush2.bf16.msra.mxu0 0
    %7659 = vmatprep.subr.bf16.mxu0 0
    %7660 = vmatpush2.bf16.msra.mxu0 0
    %7661 = vmatprep.subr.bf16.mxu0 0
    %7662 = vmatpush2.bf16.msra.mxu0 0
    %7663 = vmatprep.mubr.bf16.mxu0 0
    %7664 = vmatmul.mubr.bf16.gmra.mxu0 %v7629
    %v7665 = vpop.f32.mrf.mxu0
    %v7666 = vadd.f32 %v7595, %v7665
    %v7667 = vpop.f32.mrf.mxu0
    %v7668 = vpop.f32.mrf.mxu0
    %v7669 = vpop.f32.mrf.mxu0
    %7670 = vdwg.mxu0
    %7671 = vst [vmem:[#allocation4] sm:$0x3] %v7666
    // Predicated region
    $region38: #{decoder_forward.1} parent=1 // pred_check
      _
    $region39: #{decoder_forward.1} parent=1 // pred_check_branch
      %7673 = sbr.rel (0) target = $region41
    $region40: #{decoder_forward.1} parent=1 // pred_region
      %s7675 = ssub.s32 32, 32
      %7676 = vsyncadd [#allocation5], %s7675
      %s7678 = sshll.u32 [#allocation4], 4
      %s7679 = int_to_ptr.vmem [resolvable:$true] %s7678
      %7681 = dma.vmem_to_hbm [thread:$0]  %s7679, 32, %s9, [#allocation5]
    $region41: #{decoder_forward.1} parent=1 // pred_fallthru
      _
    // Predicated region
    $region42: #{decoder_forward.1} parent=1 // pred_check
      _
    $region43: #{decoder_forward.1} parent=1 // pred_check_branch
      %7683 = sbr.rel (0) target = $region45
    $region44: #{decoder_forward.1} parent=1 // pred_region
      %7684 = dma.done [#allocation5], 32
    $region45: #{decoder_forward.1} parent=1 // pred_fallthru
      _
    %7685 = vsyncpa [#allocation5], 1

</llo_original>
